<compile_context>
chip_gen: v7x
topology: tpu7x:2x2x1
jax: 0.10.0
libtpu: 0.0.40
codegen_flags: <defaults>
</compile_context>

<pallas_src>
import jax
import jax.numpy as jnp
from jax.experimental import pallas as pl
from jax.experimental.pallas import tpu as pltpu

TAP_PAD = 128   # each conv tap's output channels live in their own 128-lane group


# ----------------------------------------------------------------------------
# Fused Pallas kernel: entire DCNN forward, one invocation, everything in VMEM.
# ----------------------------------------------------------------------------
def dcnn_fused_kernel(
    x_ref,                                    # (B*L, C)   input, row = b*L + t
    s8_ref, s4_ref, s2_ref, s1_ref,           # (B*L, B*L) block-diag causal shifts
    e_ref,                                    # (L, B, B*L) per-time row selectors
    w_b1a_ref, b_b1a_ref,                     # conv1,2,3     (3, C, 3*TAP_PAD) / (3,1,C)
    w_b1b_ref, b_b1b_ref,                     # conv_1,_2,_3
    w_b2_ref,  b_b2_ref,                      # conv4,5,6   (shared by both branches)
    w_b3_ref,  b_b3_ref,                      # conv7,8,9   (shared by both branches)
    wg_b_ref, wg_a_ref, fc1_b_ref,            # fc1 folded with lastconv_/lastconv: (C, L*H1), (1, H1)
    fc2_w_ref, fc2_b_ref,                     # (256,512) / (1,512)
    fc3_w_ref, fc3_b_ref,                     # (512,128) / (1,128)
    fc4_w_ref, fc4_b_ref,                     # (128,1)   / (1,1)
    o_ref,                                    # (B, 1) output
):
    def dot(a, b):
        return jnp.dot(a, b, preferred_element_type=jnp.float32)

    x = x_ref[...]                                            # (B*L, C)
    C = x.shape[1]
    L = e_ref.shape[0]
    H1 = fc1_b_ref.shape[1]
    # Shift matrices, loaded once and reused by every block.
    shifts = {8: s8_ref[...], 4: s4_ref[...], 2: s2_ref[...], 1: s1_ref[...]}

    def block(h_in, dils, w_ref, b_ref):
        """3 causal dilated Conv1d (kernel=3) -> ReLU -> + residual, on (B*L, C)."""
        h = h_in
        for i, d in enumerate(dils):
            # One matmul produces all 3 taps side-by-side in 128-aligned lane groups.
            # tap k has causal shift (2-k)*d = 2d, d, 0; shift commutes with the
            # channel weight, so it is applied to the tap's slice afterwards.
            hw = dot(h, w_ref[i])                                      # (B*L, 3*TAP_PAD)
            acc = hw[:, 2 * TAP_PAD:2 * TAP_PAD + C] + b_ref[i]        # shift 0 (+ bias)
            acc = acc + dot(shifts[d],     hw[:, TAP_PAD:TAP_PAD + C]) # shift d
            acc = acc + dot(shifts[2 * d], hw[:, 0:C])                 # shift 2d
            h = acc
        return jnp.maximum(h, 0.0) + h_in

    # Branch A (conv1..9) and branch B (conv_1.._3 then shared conv4..9).
    inputs2  = block(x, (4, 2, 1), w_b1a_ref, b_b1a_ref)
    inputs_2 = block(x, (1, 2, 4), w_b1b_ref, b_b1b_ref)
    inputs3  = block(inputs2,  (4, 2, 1), w_b2_ref, b_b2_ref)
    inputs_3 = block(inputs_2, (4, 2, 1), w_b2_ref, b_b2_ref)
    inputs4  = block(inputs3,  (4, 2, 1), w_b3_ref, b_b3_ref)
    inputs_4 = block(inputs_3, (4, 2, 1), w_b3_ref, b_b3_ref)

    # lastconv / lastconv_, the channel-major flatten and fc1 are folded into 2 wide
    # matmuls (weights pre-composed in glue):  z[:, t*H1:(t+1)*H1] holds the per-time-t
    # fc1 contribution of every (batch, time) row; E[t] then picks rows {t, L+t}.
    z = dot(inputs_4, wg_b_ref[...]) + dot(inputs4, wg_a_ref[...])     # (B*L, L*H1)
    acc1 = dot(e_ref[0], z[:, 0:H1]) + fc1_b_ref[...]
    for t in range(1, L):
        acc1 = acc1 + dot(e_ref[t], z[:, t * H1:(t + 1) * H1])
    h = jnp.maximum(acc1, 0.0)
    h = jnp.maximum(dot(h, fc2_w_ref[...]) + fc2_b_ref[...], 0.0)
    h = jnp.maximum(dot(h, fc3_w_ref[...]) + fc3_b_ref[...], 0.0)
    o_ref[...] = dot(h, fc4_w_ref[...]) + fc4_b_ref[...]


# ----------------------------------------------------------------------------
# Glue: parameter init, kernel-input packing, forward wrapper
# ----------------------------------------------------------------------------
def init_params(key, C, L):
    keys = jax.random.split(key, 20)
    s = 0.05

    def nrm(k, shape):
        return s * jax.random.normal(k, shape, jnp.float32)

    # conv stacks: (3 convs, 3 taps, C_in, C_out); torch W[co,ci,k] == w[conv][k,ci,co]
    return {
        "w_b1a": nrm(keys[0], (3, 3, C, C)), "b_b1a": nrm(keys[1], (3, 1, C)),   # conv1,2,3
        "w_b1b": nrm(keys[2], (3, 3, C, C)), "b_b1b": nrm(keys[3], (3, 1, C)),   # conv_1,_2,_3
        "w_b2":  nrm(keys[4], (3, 3, C, C)), "b_b2":  nrm(keys[5], (3, 1, C)),   # conv4,5,6
        "w_b3":  nrm(keys[6], (3, 3, C, C)), "b_b3":  nrm(keys[7], (3, 1, C)),   # conv7,8,9
        "w_last":  nrm(keys[8],  (C, C)), "b_last":  nrm(keys[9],  (1, C)),      # lastconv
        "w_last_": nrm(keys[10], (C, C)), "b_last_": nrm(keys[11], (1, C)),      # lastconv_
        "fc1_w": nrm(keys[12], (2 * C * L, 256)), "fc1_b": nrm(keys[13], (1, 256)),
        "fc2_w": nrm(keys[14], (256, 512)),       "fc2_b": nrm(keys[15], (1, 512)),
        "fc3_w": nrm(keys[16], (512, 128)),       "fc3_b": nrm(keys[17], (1, 128)),
        "fc4_w": nrm(keys[18], (128, 1)),         "fc4_b": nrm(keys[19], (1, 1)),
    }


def pack_kernel_inputs(params, B, C, L):
    """Pre-compute all kernel-resident constants / pre-composed weights (done once)."""
    f32 = jnp.float32
    hp = jax.lax.Precision.HIGHEST

    def shift_mat(sh):
        # Block-diagonal over batch: S[b*L+t, b*L+t-sh] = 1 for t >= sh.
        return jnp.kron(jnp.eye(B, dtype=f32), jnp.eye(L, L, -sh, dtype=f32))

    # Row selectors: E[t, b, b*L + t] = 1  ->  E[t] @ act picks time-t row per batch.
    e_sel = jnp.stack([jnp.eye(B * L, dtype=f32)[t::L] for t in range(L)])  # (L, B, B*L)

    def pack_taps(w):
        # (3 convs, 3 taps, C, C) -> (3, C, 3*TAP_PAD) with tap k in lanes [k*TAP_PAD, k*TAP_PAD+C)
        out = jnp.zeros((3, C, 3 * TAP_PAD), f32)
        for k in range(3):
            out = out.at[:, :, k * TAP_PAD:k * TAP_PAD + C].set(w[:, k])
        return out

    # Fold torch's channel-major flatten (cat dim=1 then reshape) AND the 1x1 lastconvs
    # into fc1's weights:
    #   flat[b, c*L + t]       = lastconv_(inputs_4)  -> G_B[c, t*H1 + j] = W1[c*L + t, j]
    #   flat[b, C*L + c*L + t] = lastconv (inputs4)   -> G_A[c, t*H1 + j] = W1[C*L + c*L + t, j]
    W1 = params["fc1_w"]
    H1 = W1.shape[1]
    g_b = W1[:C * L].reshape(C, L * H1)            # [c, t*H1 + j]
    g_a = W1[C * L:].reshape(C, L * H1)
    wg_b = jnp.dot(params["w_last_"], g_b, precision=hp)           # (C, L*H1)
    wg_a = jnp.dot(params["w_last"],  g_a, precision=hp)
    fold_b = jnp.dot(params["b_last_"], g_b, precision=hp).reshape(L, H1).sum(0)
    fold_a = jnp.dot(params["b_last"],  g_a, precision=hp).reshape(L, H1).sum(0)
    fc1_b_eff = params["fc1_b"] + fold_b[None, :] + fold_a[None, :]

    return (
        shift_mat(8), shift_mat(4), shift_mat(2), shift_mat(1), e_sel,
        pack_taps(params["w_b1a"]), params["b_b1a"],
        pack_taps(params["w_b1b"]), params["b_b1b"],
        pack_taps(params["w_b2"]),  params["b_b2"],
        pack_taps(params["w_b3"]),  params["b_b3"],
        wg_b, wg_a, fc1_b_eff,
        params["fc2_w"], params["fc2_b"], params["fc3_w"], params["fc3_b"],
        params["fc4_w"], params["fc4_b"],
    )


@jax.jit
def dcnn_forward(x_ncl, packed):
    """x_ncl: (B, feature_size, num_steps) -- same NCL convention as the PyTorch module."""
    B, C, L = x_ncl.shape
    # (B, C, L) -> (B*L, C): row index = b*L + t, channel on the lane axis.
    x_flat = jnp.transpose(x_ncl, (0, 2, 1)).reshape(B * L, C)

    y = pl.pallas_call(
        dcnn_fused_kernel,
        out_shape=jax.ShapeDtypeStruct((B, 1), jnp.float32),
        compiler_params=pltpu.CompilerParams(vmem_limit_bytes=32 * 1024 * 1024),
    )(x_flat, *packed)
    return y[:, 0]                                          # .reshape(len(inputs))


# ----------------------------------------------------------------------------
# Pure-JAX reference (lax.conv_general_dilated) for validation
# ----------------------------------------------------------------------------
def ref_forward(x_ncl, p):
    hp = jax.lax.Precision.HIGHEST

    def conv(x, w3, b3, d):
        w_t = jnp.transpose(w3, (2, 1, 0))           # (C_out, C_in, K) torch layout
        y = jax.lax.conv_general_dilated(
            x, w_t, window_strides=(1,), padding=[(2 * d, 0)],
            rhs_dilation=(d,), dimension_numbers=("NCH", "OIH", "NCH"),
            precision=hp)
        return y + b3.reshape(1, -1, 1)

    def block(x, w, b, dils):
        h = x
        for i, d in enumerate(dils):
            h = conv(h, w[i], b[i], d)
        return jax.nn.relu(h) + x

    i2  = block(x_ncl, p["w_b1a"], p["b_b1a"], (4, 2, 1))
    i_2 = block(x_ncl, p["w_b1b"], p["b_b1b"], (1, 2, 4))
    i3  = block(i2,  p["w_b2"], p["b_b2"], (4, 2, 1))
    i_3 = block(i_2, p["w_b2"], p["b_b2"], (4, 2, 1))
    i4  = block(i3,  p["w_b3"], p["b_b3"], (4, 2, 1))
    i_4 = block(i_3, p["w_b3"], p["b_b3"], (4, 2, 1))

    o_a = jnp.einsum("ncl,co->nol", i4,  p["w_last"],  precision=hp) + p["b_last"].reshape(1, -1, 1)
    o_b = jnp.einsum("ncl,co->nol", i_4, p["w_last_"], precision=hp) + p["b_last_"].reshape(1, -1, 1)

    B = x_ncl.shape[0]
    flat = jnp.concatenate([o_b, o_a], axis=1).reshape(B, -1)
    h = jax.nn.relu(jnp.dot(flat, p["fc1_w"], precision=hp) + p["fc1_b"])
    h = jax.nn.relu(jnp.dot(h, p["fc2_w"], precision=hp) + p["fc2_b"])
    h = jax.nn.relu(jnp.dot(h, p["fc3_w"], precision=hp) + p["fc3_b"])
    y = jnp.dot(h, p["fc4_w"], precision=hp) + p["fc4_b"]
    return y[:, 0]


if __name__ == "__main__":
    B = 2      # batch
    C = 32     # feature_size
    L = 10     # num_steps (fixed by the module: fc expects 2*feature_size*10 inputs)

    key = jax.random.PRNGKey(0)
    k_x, k_p = jax.random.split(key)
    x = jax.random.normal(k_x, (B, C, L), jnp.float32)   # NCL, like the PyTorch Conv1d input
    params = init_params(k_p, C, L)
    packed = pack_kernel_inputs(params, B, C, L)

    out = jax.block_until_ready(dcnn_forward(x, packed))
    assert out.shape == (B,), out.shape

    ref = ref_forward(x, params)
    if not jnp.allclose(out, ref, rtol=2e-2, atol=2e-2):
        raise AssertionError(f"mismatch: pallas={out} ref={ref}")

    print("KERNEL_OK")
</pallas_src>

<mosaic_0001>
module attributes {stable_mosaic.version = 11 : i64} {
  func.func @dcnn_fused_kernel(%arg0: memref<20x32xf32, #tpu.memory_space<vmem>>, %arg1: memref<20x20xf32, #tpu.memory_space<vmem>>, %arg2: memref<20x20xf32, #tpu.memory_space<vmem>>, %arg3: memref<20x20xf32, #tpu.memory_space<vmem>>, %arg4: memref<20x20xf32, #tpu.memory_space<vmem>>, %arg5: memref<10x2x20xf32, #tpu.memory_space<vmem>>, %arg6: memref<3x32x384xf32, #tpu.memory_space<vmem>>, %arg7: memref<3x1x32xf32, #tpu.memory_space<vmem>>, %arg8: memref<3x32x384xf32, #tpu.memory_space<vmem>>, %arg9: memref<3x1x32xf32, #tpu.memory_space<vmem>>, %arg10: memref<3x32x384xf32, #tpu.memory_space<vmem>>, %arg11: memref<3x1x32xf32, #tpu.memory_space<vmem>>, %arg12: memref<3x32x384xf32, #tpu.memory_space<vmem>>, %arg13: memref<3x1x32xf32, #tpu.memory_space<vmem>>, %arg14: memref<32x2560xf32, #tpu.memory_space<vmem>>, %arg15: memref<32x2560xf32, #tpu.memory_space<vmem>>, %arg16: memref<1x256xf32, #tpu.memory_space<vmem>>, %arg17: memref<256x512xf32, #tpu.memory_space<vmem>>, %arg18: memref<1x512xf32, #tpu.memory_space<vmem>>, %arg19: memref<512x128xf32, #tpu.memory_space<vmem>>, %arg20: memref<1x128xf32, #tpu.memory_space<vmem>>, %arg21: memref<128x1xf32, #tpu.memory_space<vmem>>, %arg22: memref<1x1xf32, #tpu.memory_space<vmem>>, %arg23: memref<2x1xf32, #tpu.memory_space<vmem>>) attributes {dimension_semantics = [], scalar_prefetch = 0 : i64, scratch_operands = 0 : i64, tpu.core_type = #tpu.core_type<tc>} {
    %c0 = arith.constant 0 : index
    %c0_0 = arith.constant 0 : index
    %0 = vector.load %arg0[%c0, %c0_0] : memref<20x32xf32, #tpu.memory_space<vmem>>, vector<20x32xf32>
    %c0_1 = arith.constant 0 : index
    %c0_2 = arith.constant 0 : index
    %1 = vector.load %arg1[%c0_1, %c0_2] : memref<20x20xf32, #tpu.memory_space<vmem>>, vector<20x20xf32>
    %c0_3 = arith.constant 0 : index
    %c0_4 = arith.constant 0 : index
    %2 = vector.load %arg2[%c0_3, %c0_4] : memref<20x20xf32, #tpu.memory_space<vmem>>, vector<20x20xf32>
    %c0_5 = arith.constant 0 : index
    %c0_6 = arith.constant 0 : index
    %3 = vector.load %arg3[%c0_5, %c0_6] : memref<20x20xf32, #tpu.memory_space<vmem>>, vector<20x20xf32>
    %c0_7 = arith.constant 0 : index
    %c0_8 = arith.constant 0 : index
    %4 = vector.load %arg4[%c0_7, %c0_8] : memref<20x20xf32, #tpu.memory_space<vmem>>, vector<20x20xf32>
    %c0_9 = arith.constant 0 : index
    %c0_10 = arith.constant 0 : index
    %c0_11 = arith.constant 0 : index
    %5 = vector.load %arg6[%c0_9, %c0_10, %c0_11] : memref<3x32x384xf32, #tpu.memory_space<vmem>>, vector<1x32x384xf32>
    %6 = vector.shape_cast %5 : vector<1x32x384xf32> to vector<32x384xf32>
    %cst = arith.constant dense<0.000000e+00> : vector<20x384xf32>
    %7 = tpu.matmul %0, %6, %cst {dimension_numbers = #tpu.dot_dimension_numbers<[1], [0], [0], [1], [0, 0, 1, 1], [], []>} : vector<20x32xf32>, vector<32x384xf32>, vector<20x384xf32> -> vector<20x384xf32>
    %8 = vector.extract_strided_slice %7 {offsets = [0, 256], sizes = [20, 32], strides = [1, 1]} : vector<20x384xf32> to vector<20x32xf32>
    %c0_12 = arith.constant 0 : index
    %c0_13 = arith.constant 0 : index
    %c0_14 = arith.constant 0 : index
    %9 = vector.load %arg7[%c0_12, %c0_13, %c0_14] : memref<3x1x32xf32, #tpu.memory_space<vmem>>, vector<1x1x32xf32>
    %10 = vector.shape_cast %9 : vector<1x1x32xf32> to vector<1x32xf32>
    %11 = vector.broadcast %10 : vector<1x32xf32> to vector<20x32xf32>
    %12 = arith.addf %8, %11 : vector<20x32xf32>
    %13 = vector.extract_strided_slice %7 {offsets = [0, 128], sizes = [20, 32], strides = [1, 1]} : vector<20x384xf32> to vector<20x32xf32>
    %cst_15 = arith.constant dense<0.000000e+00> : vector<20x32xf32>
    %14 = tpu.matmul %2, %13, %cst_15 {dimension_numbers = #tpu.dot_dimension_numbers<[1], [0], [0], [1], [0, 0, 1, 1], [], []>} : vector<20x20xf32>, vector<20x32xf32>, vector<20x32xf32> -> vector<20x32xf32>
    %15 = arith.addf %12, %14 : vector<20x32xf32>
    %16 = vector.extract_strided_slice %7 {offsets = [0, 0], sizes = [20, 32], strides = [1, 1]} : vector<20x384xf32> to vector<20x32xf32>
    %cst_16 = arith.constant dense<0.000000e+00> : vector<20x32xf32>
    %17 = tpu.matmul %1, %16, %cst_16 {dimension_numbers = #tpu.dot_dimension_numbers<[1], [0], [0], [1], [0, 0, 1, 1], [], []>} : vector<20x20xf32>, vector<20x32xf32>, vector<20x32xf32> -> vector<20x32xf32>
    %18 = arith.addf %15, %17 : vector<20x32xf32>
    %c1 = arith.constant 1 : index
    %c0_17 = arith.constant 0 : index
    %c0_18 = arith.constant 0 : index
    %19 = vector.load %arg6[%c1, %c0_17, %c0_18] : memref<3x32x384xf32, #tpu.memory_space<vmem>>, vector<1x32x384xf32>
    %20 = vector.shape_cast %19 : vector<1x32x384xf32> to vector<32x384xf32>
    %cst_19 = arith.constant dense<0.000000e+00> : vector<20x384xf32>
    %21 = tpu.matmul %18, %20, %cst_19 {dimension_numbers = #tpu.dot_dimension_numbers<[1], [0], [0], [1], [0, 0, 1, 1], [], []>} : vector<20x32xf32>, vector<32x384xf32>, vector<20x384xf32> -> vector<20x384xf32>
    %22 = vector.extract_strided_slice %21 {offsets = [0, 256], sizes = [20, 32], strides = [1, 1]} : vector<20x384xf32> to vector<20x32xf32>
    %c1_20 = arith.constant 1 : index
    %c0_21 = arith.constant 0 : index
    %c0_22 = arith.constant 0 : index
    %23 = vector.load %arg7[%c1_20, %c0_21, %c0_22] : memref<3x1x32xf32, #tpu.memory_space<vmem>>, vector<1x1x32xf32>
    %24 = vector.shape_cast %23 : vector<1x1x32xf32> to vector<1x32xf32>
    %25 = vector.broadcast %24 : vector<1x32xf32> to vector<20x32xf32>
    %26 = arith.addf %22, %25 : vector<20x32xf32>
    %27 = vector.extract_strided_slice %21 {offsets = [0, 128], sizes = [20, 32], strides = [1, 1]} : vector<20x384xf32> to vector<20x32xf32>
    %cst_23 = arith.constant dense<0.000000e+00> : vector<20x32xf32>
    %28 = tpu.matmul %3, %27, %cst_23 {dimension_numbers = #tpu.dot_dimension_numbers<[1], [0], [0], [1], [0, 0, 1, 1], [], []>} : vector<20x20xf32>, vector<20x32xf32>, vector<20x32xf32> -> vector<20x32xf32>
    %29 = arith.addf %26, %28 : vector<20x32xf32>
    %30 = vector.extract_strided_slice %21 {offsets = [0, 0], sizes = [20, 32], strides = [1, 1]} : vector<20x384xf32> to vector<20x32xf32>
    %cst_24 = arith.constant dense<0.000000e+00> : vector<20x32xf32>
    %31 = tpu.matmul %2, %30, %cst_24 {dimension_numbers = #tpu.dot_dimension_numbers<[1], [0], [0], [1], [0, 0, 1, 1], [], []>} : vector<20x20xf32>, vector<20x32xf32>, vector<20x32xf32> -> vector<20x32xf32>
    %32 = arith.addf %29, %31 : vector<20x32xf32>
    %c2 = arith.constant 2 : index
    %c0_25 = arith.constant 0 : index
    %c0_26 = arith.constant 0 : index
    %33 = vector.load %arg6[%c2, %c0_25, %c0_26] : memref<3x32x384xf32, #tpu.memory_space<vmem>>, vector<1x32x384xf32>
    %34 = vector.shape_cast %33 : vector<1x32x384xf32> to vector<32x384xf32>
    %cst_27 = arith.constant dense<0.000000e+00> : vector<20x384xf32>
    %35 = tpu.matmul %32, %34, %cst_27 {dimension_numbers = #tpu.dot_dimension_numbers<[1], [0], [0], [1], [0, 0, 1, 1], [], []>} : vector<20x32xf32>, vector<32x384xf32>, vector<20x384xf32> -> vector<20x384xf32>
    %36 = vector.extract_strided_slice %35 {offsets = [0, 256], sizes = [20, 32], strides = [1, 1]} : vector<20x384xf32> to vector<20x32xf32>
    %c2_28 = arith.constant 2 : index
    %c0_29 = arith.constant 0 : index
    %c0_30 = arith.constant 0 : index
    %37 = vector.load %arg7[%c2_28, %c0_29, %c0_30] : memref<3x1x32xf32, #tpu.memory_space<vmem>>, vector<1x1x32xf32>
    %38 = vector.shape_cast %37 : vector<1x1x32xf32> to vector<1x32xf32>
    %39 = vector.broadcast %38 : vector<1x32xf32> to vector<20x32xf32>
    %40 = arith.addf %36, %39 : vector<20x32xf32>
    %41 = vector.extract_strided_slice %35 {offsets = [0, 128], sizes = [20, 32], strides = [1, 1]} : vector<20x384xf32> to vector<20x32xf32>
    %cst_31 = arith.constant dense<0.000000e+00> : vector<20x32xf32>
    %42 = tpu.matmul %4, %41, %cst_31 {dimension_numbers = #tpu.dot_dimension_numbers<[1], [0], [0], [1], [0, 0, 1, 1], [], []>} : vector<20x20xf32>, vector<20x32xf32>, vector<20x32xf32> -> vector<20x32xf32>
    %43 = arith.addf %40, %42 : vector<20x32xf32>
    %44 = vector.extract_strided_slice %35 {offsets = [0, 0], sizes = [20, 32], strides = [1, 1]} : vector<20x384xf32> to vector<20x32xf32>
    %cst_32 = arith.constant dense<0.000000e+00> : vector<20x32xf32>
    %45 = tpu.matmul %3, %44, %cst_32 {dimension_numbers = #tpu.dot_dimension_numbers<[1], [0], [0], [1], [0, 0, 1, 1], [], []>} : vector<20x20xf32>, vector<20x32xf32>, vector<20x32xf32> -> vector<20x32xf32>
    %46 = arith.addf %43, %45 : vector<20x32xf32>
    %cst_33 = arith.constant 0.000000e+00 : f32
    %47 = vector.broadcast %cst_33 : f32 to vector<20x32xf32>
    %48 = arith.maximumf %46, %47 : vector<20x32xf32>
    %49 = arith.addf %48, %0 : vector<20x32xf32>
    %c0_34 = arith.constant 0 : index
    %c0_35 = arith.constant 0 : index
    %c0_36 = arith.constant 0 : index
    %50 = vector.load %arg8[%c0_34, %c0_35, %c0_36] : memref<3x32x384xf32, #tpu.memory_space<vmem>>, vector<1x32x384xf32>
    %51 = vector.shape_cast %50 : vector<1x32x384xf32> to vector<32x384xf32>
    %cst_37 = arith.constant dense<0.000000e+00> : vector<20x384xf32>
    %52 = tpu.matmul %0, %51, %cst_37 {dimension_numbers = #tpu.dot_dimension_numbers<[1], [0], [0], [1], [0, 0, 1, 1], [], []>} : vector<20x32xf32>, vector<32x384xf32>, vector<20x384xf32> -> vector<20x384xf32>
    %53 = vector.extract_strided_slice %52 {offsets = [0, 256], sizes = [20, 32], strides = [1, 1]} : vector<20x384xf32> to vector<20x32xf32>
    %c0_38 = arith.constant 0 : index
    %c0_39 = arith.constant 0 : index
    %c0_40 = arith.constant 0 : index
    %54 = vector.load %arg9[%c0_38, %c0_39, %c0_40] : memref<3x1x32xf32, #tpu.memory_space<vmem>>, vector<1x1x32xf32>
    %55 = vector.shape_cast %54 : vector<1x1x32xf32> to vector<1x32xf32>
    %56 = vector.broadcast %55 : vector<1x32xf32> to vector<20x32xf32>
    %57 = arith.addf %53, %56 : vector<20x32xf32>
    %58 = vector.extract_strided_slice %52 {offsets = [0, 128], sizes = [20, 32], strides = [1, 1]} : vector<20x384xf32> to vector<20x32xf32>
    %cst_41 = arith.constant dense<0.000000e+00> : vector<20x32xf32>
    %59 = tpu.matmul %4, %58, %cst_41 {dimension_numbers = #tpu.dot_dimension_numbers<[1], [0], [0], [1], [0, 0, 1, 1], [], []>} : vector<20x20xf32>, vector<20x32xf32>, vector<20x32xf32> -> vector<20x32xf32>
    %60 = arith.addf %57, %59 : vector<20x32xf32>
    %61 = vector.extract_strided_slice %52 {offsets = [0, 0], sizes = [20, 32], strides = [1, 1]} : vector<20x384xf32> to vector<20x32xf32>
    %cst_42 = arith.constant dense<0.000000e+00> : vector<20x32xf32>
    %62 = tpu.matmul %3, %61, %cst_42 {dimension_numbers = #tpu.dot_dimension_numbers<[1], [0], [0], [1], [0, 0, 1, 1], [], []>} : vector<20x20xf32>, vector<20x32xf32>, vector<20x32xf32> -> vector<20x32xf32>
    %63 = arith.addf %60, %62 : vector<20x32xf32>
    %c1_43 = arith.constant 1 : index
    %c0_44 = arith.constant 0 : index
    %c0_45 = arith.constant 0 : index
    %64 = vector.load %arg8[%c1_43, %c0_44, %c0_45] : memref<3x32x384xf32, #tpu.memory_space<vmem>>, vector<1x32x384xf32>
    %65 = vector.shape_cast %64 : vector<1x32x384xf32> to vector<32x384xf32>
    %cst_46 = arith.constant dense<0.000000e+00> : vector<20x384xf32>
    %66 = tpu.matmul %63, %65, %cst_46 {dimension_numbers = #tpu.dot_dimension_numbers<[1], [0], [0], [1], [0, 0, 1, 1], [], []>} : vector<20x32xf32>, vector<32x384xf32>, vector<20x384xf32> -> vector<20x384xf32>
    %67 = vector.extract_strided_slice %66 {offsets = [0, 256], sizes = [20, 32], strides = [1, 1]} : vector<20x384xf32> to vector<20x32xf32>
    %c1_47 = arith.constant 1 : index
    %c0_48 = arith.constant 0 : index
    %c0_49 = arith.constant 0 : index
    %68 = vector.load %arg9[%c1_47, %c0_48, %c0_49] : memref<3x1x32xf32, #tpu.memory_space<vmem>>, vector<1x1x32xf32>
    %69 = vector.shape_cast %68 : vector<1x1x32xf32> to vector<1x32xf32>
    %70 = vector.broadcast %69 : vector<1x32xf32> to vector<20x32xf32>
    %71 = arith.addf %67, %70 : vector<20x32xf32>
    %72 = vector.extract_strided_slice %66 {offsets = [0, 128], sizes = [20, 32], strides = [1, 1]} : vector<20x384xf32> to vector<20x32xf32>
    %cst_50 = arith.constant dense<0.000000e+00> : vector<20x32xf32>
    %73 = tpu.matmul %3, %72, %cst_50 {dimension_numbers = #tpu.dot_dimension_numbers<[1], [0], [0], [1], [0, 0, 1, 1], [], []>} : vector<20x20xf32>, vector<20x32xf32>, vector<20x32xf32> -> vector<20x32xf32>
    %74 = arith.addf %71, %73 : vector<20x32xf32>
    %75 = vector.extract_strided_slice %66 {offsets = [0, 0], sizes = [20, 32], strides = [1, 1]} : vector<20x384xf32> to vector<20x32xf32>
    %cst_51 = arith.constant dense<0.000000e+00> : vector<20x32xf32>
    %76 = tpu.matmul %2, %75, %cst_51 {dimension_numbers = #tpu.dot_dimension_numbers<[1], [0], [0], [1], [0, 0, 1, 1], [], []>} : vector<20x20xf32>, vector<20x32xf32>, vector<20x32xf32> -> vector<20x32xf32>
    %77 = arith.addf %74, %76 : vector<20x32xf32>
    %c2_52 = arith.constant 2 : index
    %c0_53 = arith.constant 0 : index
    %c0_54 = arith.constant 0 : index
    %78 = vector.load %arg8[%c2_52, %c0_53, %c0_54] : memref<3x32x384xf32, #tpu.memory_space<vmem>>, vector<1x32x384xf32>
    %79 = vector.shape_cast %78 : vector<1x32x384xf32> to vector<32x384xf32>
    %cst_55 = arith.constant dense<0.000000e+00> : vector<20x384xf32>
    %80 = tpu.matmul %77, %79, %cst_55 {dimension_numbers = #tpu.dot_dimension_numbers<[1], [0], [0], [1], [0, 0, 1, 1], [], []>} : vector<20x32xf32>, vector<32x384xf32>, vector<20x384xf32> -> vector<20x384xf32>
    %81 = vector.extract_strided_slice %80 {offsets = [0, 256], sizes = [20, 32], strides = [1, 1]} : vector<20x384xf32> to vector<20x32xf32>
    %c2_56 = arith.constant 2 : index
    %c0_57 = arith.constant 0 : index
    %c0_58 = arith.constant 0 : index
    %82 = vector.load %arg9[%c2_56, %c0_57, %c0_58] : memref<3x1x32xf32, #tpu.memory_space<vmem>>, vector<1x1x32xf32>
    %83 = vector.shape_cast %82 : vector<1x1x32xf32> to vector<1x32xf32>
    %84 = vector.broadcast %83 : vector<1x32xf32> to vector<20x32xf32>
    %85 = arith.addf %81, %84 : vector<20x32xf32>
    %86 = vector.extract_strided_slice %80 {offsets = [0, 128], sizes = [20, 32], strides = [1, 1]} : vector<20x384xf32> to vector<20x32xf32>
    %cst_59 = arith.constant dense<0.000000e+00> : vector<20x32xf32>
    %87 = tpu.matmul %2, %86, %cst_59 {dimension_numbers = #tpu.dot_dimension_numbers<[1], [0], [0], [1], [0, 0, 1, 1], [], []>} : vector<20x20xf32>, vector<20x32xf32>, vector<20x32xf32> -> vector<20x32xf32>
    %88 = arith.addf %85, %87 : vector<20x32xf32>
    %89 = vector.extract_strided_slice %80 {offsets = [0, 0], sizes = [20, 32], strides = [1, 1]} : vector<20x384xf32> to vector<20x32xf32>
    %cst_60 = arith.constant dense<0.000000e+00> : vector<20x32xf32>
    %90 = tpu.matmul %1, %89, %cst_60 {dimension_numbers = #tpu.dot_dimension_numbers<[1], [0], [0], [1], [0, 0, 1, 1], [], []>} : vector<20x20xf32>, vector<20x32xf32>, vector<20x32xf32> -> vector<20x32xf32>
    %91 = arith.addf %88, %90 : vector<20x32xf32>
    %cst_61 = arith.constant 0.000000e+00 : f32
    %92 = vector.broadcast %cst_61 : f32 to vector<20x32xf32>
    %93 = arith.maximumf %91, %92 : vector<20x32xf32>
    %94 = arith.addf %93, %0 : vector<20x32xf32>
    %c0_62 = arith.constant 0 : index
    %c0_63 = arith.constant 0 : index
    %c0_64 = arith.constant 0 : index
    %95 = vector.load %arg10[%c0_62, %c0_63, %c0_64] : memref<3x32x384xf32, #tpu.memory_space<vmem>>, vector<1x32x384xf32>
    %96 = vector.shape_cast %95 : vector<1x32x384xf32> to vector<32x384xf32>
    %cst_65 = arith.constant dense<0.000000e+00> : vector<20x384xf32>
    %97 = tpu.matmul %49, %96, %cst_65 {dimension_numbers = #tpu.dot_dimension_numbers<[1], [0], [0], [1], [0, 0, 1, 1], [], []>} : vector<20x32xf32>, vector<32x384xf32>, vector<20x384xf32> -> vector<20x384xf32>
    %98 = vector.extract_strided_slice %97 {offsets = [0, 256], sizes = [20, 32], strides = [1, 1]} : vector<20x384xf32> to vector<20x32xf32>
    %c0_66 = arith.constant 0 : index
    %c0_67 = arith.constant 0 : index
    %c0_68 = arith.constant 0 : index
    %99 = vector.load %arg11[%c0_66, %c0_67, %c0_68] : memref<3x1x32xf32, #tpu.memory_space<vmem>>, vector<1x1x32xf32>
    %100 = vector.shape_cast %99 : vector<1x1x32xf32> to vector<1x32xf32>
    %101 = vector.broadcast %100 : vector<1x32xf32> to vector<20x32xf32>
    %102 = arith.addf %98, %101 : vector<20x32xf32>
    %103 = vector.extract_strided_slice %97 {offsets = [0, 128], sizes = [20, 32], strides = [1, 1]} : vector<20x384xf32> to vector<20x32xf32>
    %cst_69 = arith.constant dense<0.000000e+00> : vector<20x32xf32>
    %104 = tpu.matmul %2, %103, %cst_69 {dimension_numbers = #tpu.dot_dimension_numbers<[1], [0], [0], [1], [0, 0, 1, 1], [], []>} : vector<20x20xf32>, vector<20x32xf32>, vector<20x32xf32> -> vector<20x32xf32>
    %105 = arith.addf %102, %104 : vector<20x32xf32>
    %106 = vector.extract_strided_slice %97 {offsets = [0, 0], sizes = [20, 32], strides = [1, 1]} : vector<20x384xf32> to vector<20x32xf32>
    %cst_70 = arith.constant dense<0.000000e+00> : vector<20x32xf32>
    %107 = tpu.matmul %1, %106, %cst_70 {dimension_numbers = #tpu.dot_dimension_numbers<[1], [0], [0], [1], [0, 0, 1, 1], [], []>} : vector<20x20xf32>, vector<20x32xf32>, vector<20x32xf32> -> vector<20x32xf32>
    %108 = arith.addf %105, %107 : vector<20x32xf32>
    %c1_71 = arith.constant 1 : index
    %c0_72 = arith.constant 0 : index
    %c0_73 = arith.constant 0 : index
    %109 = vector.load %arg10[%c1_71, %c0_72, %c0_73] : memref<3x32x384xf32, #tpu.memory_space<vmem>>, vector<1x32x384xf32>
    %110 = vector.shape_cast %109 : vector<1x32x384xf32> to vector<32x384xf32>
    %cst_74 = arith.constant dense<0.000000e+00> : vector<20x384xf32>
    %111 = tpu.matmul %108, %110, %cst_74 {dimension_numbers = #tpu.dot_dimension_numbers<[1], [0], [0], [1], [0, 0, 1, 1], [], []>} : vector<20x32xf32>, vector<32x384xf32>, vector<20x384xf32> -> vector<20x384xf32>
    %112 = vector.extract_strided_slice %111 {offsets = [0, 256], sizes = [20, 32], strides = [1, 1]} : vector<20x384xf32> to vector<20x32xf32>
    %c1_75 = arith.constant 1 : index
    %c0_76 = arith.constant 0 : index
    %c0_77 = arith.constant 0 : index
    %113 = vector.load %arg11[%c1_75, %c0_76, %c0_77] : memref<3x1x32xf32, #tpu.memory_space<vmem>>, vector<1x1x32xf32>
    %114 = vector.shape_cast %113 : vector<1x1x32xf32> to vector<1x32xf32>
    %115 = vector.broadcast %114 : vector<1x32xf32> to vector<20x32xf32>
    %116 = arith.addf %112, %115 : vector<20x32xf32>
    %117 = vector.extract_strided_slice %111 {offsets = [0, 128], sizes = [20, 32], strides = [1, 1]} : vector<20x384xf32> to vector<20x32xf32>
    %cst_78 = arith.constant dense<0.000000e+00> : vector<20x32xf32>
    %118 = tpu.matmul %3, %117, %cst_78 {dimension_numbers = #tpu.dot_dimension_numbers<[1], [0], [0], [1], [0, 0, 1, 1], [], []>} : vector<20x20xf32>, vector<20x32xf32>, vector<20x32xf32> -> vector<20x32xf32>
    %119 = arith.addf %116, %118 : vector<20x32xf32>
    %120 = vector.extract_strided_slice %111 {offsets = [0, 0], sizes = [20, 32], strides = [1, 1]} : vector<20x384xf32> to vector<20x32xf32>
    %cst_79 = arith.constant dense<0.000000e+00> : vector<20x32xf32>
    %121 = tpu.matmul %2, %120, %cst_79 {dimension_numbers = #tpu.dot_dimension_numbers<[1], [0], [0], [1], [0, 0, 1, 1], [], []>} : vector<20x20xf32>, vector<20x32xf32>, vector<20x32xf32> -> vector<20x32xf32>
    %122 = arith.addf %119, %121 : vector<20x32xf32>
    %c2_80 = arith.constant 2 : index
    %c0_81 = arith.constant 0 : index
    %c0_82 = arith.constant 0 : index
    %123 = vector.load %arg10[%c2_80, %c0_81, %c0_82] : memref<3x32x384xf32, #tpu.memory_space<vmem>>, vector<1x32x384xf32>
    %124 = vector.shape_cast %123 : vector<1x32x384xf32> to vector<32x384xf32>
    %cst_83 = arith.constant dense<0.000000e+00> : vector<20x384xf32>
    %125 = tpu.matmul %122, %124, %cst_83 {dimension_numbers = #tpu.dot_dimension_numbers<[1], [0], [0], [1], [0, 0, 1, 1], [], []>} : vector<20x32xf32>, vector<32x384xf32>, vector<20x384xf32> -> vector<20x384xf32>
    %126 = vector.extract_strided_slice %125 {offsets = [0, 256], sizes = [20, 32], strides = [1, 1]} : vector<20x384xf32> to vector<20x32xf32>
    %c2_84 = arith.constant 2 : index
    %c0_85 = arith.constant 0 : index
    %c0_86 = arith.constant 0 : index
    %127 = vector.load %arg11[%c2_84, %c0_85, %c0_86] : memref<3x1x32xf32, #tpu.memory_space<vmem>>, vector<1x1x32xf32>
    %128 = vector.shape_cast %127 : vector<1x1x32xf32> to vector<1x32xf32>
    %129 = vector.broadcast %128 : vector<1x32xf32> to vector<20x32xf32>
    %130 = arith.addf %126, %129 : vector<20x32xf32>
    %131 = vector.extract_strided_slice %125 {offsets = [0, 128], sizes = [20, 32], strides = [1, 1]} : vector<20x384xf32> to vector<20x32xf32>
    %cst_87 = arith.constant dense<0.000000e+00> : vector<20x32xf32>
    %132 = tpu.matmul %4, %131, %cst_87 {dimension_numbers = #tpu.dot_dimension_numbers<[1], [0], [0], [1], [0, 0, 1, 1], [], []>} : vector<20x20xf32>, vector<20x32xf32>, vector<20x32xf32> -> vector<20x32xf32>
    %133 = arith.addf %130, %132 : vector<20x32xf32>
    %134 = vector.extract_strided_slice %125 {offsets = [0, 0], sizes = [20, 32], strides = [1, 1]} : vector<20x384xf32> to vector<20x32xf32>
    %cst_88 = arith.constant dense<0.000000e+00> : vector<20x32xf32>
    %135 = tpu.matmul %3, %134, %cst_88 {dimension_numbers = #tpu.dot_dimension_numbers<[1], [0], [0], [1], [0, 0, 1, 1], [], []>} : vector<20x20xf32>, vector<20x32xf32>, vector<20x32xf32> -> vector<20x32xf32>
    %136 = arith.addf %133, %135 : vector<20x32xf32>
    %cst_89 = arith.constant 0.000000e+00 : f32
    %137 = vector.broadcast %cst_89 : f32 to vector<20x32xf32>
    %138 = arith.maximumf %136, %137 : vector<20x32xf32>
    %139 = arith.addf %138, %49 : vector<20x32xf32>
    %c0_90 = arith.constant 0 : index
    %c0_91 = arith.constant 0 : index
    %c0_92 = arith.constant 0 : index
    %140 = vector.load %arg10[%c0_90, %c0_91, %c0_92] : memref<3x32x384xf32, #tpu.memory_space<vmem>>, vector<1x32x384xf32>
    %141 = vector.shape_cast %140 : vector<1x32x384xf32> to vector<32x384xf32>
    %cst_93 = arith.constant dense<0.000000e+00> : vector<20x384xf32>
    %142 = tpu.matmul %94, %141, %cst_93 {dimension_numbers = #tpu.dot_dimension_numbers<[1], [0], [0], [1], [0, 0, 1, 1], [], []>} : vector<20x32xf32>, vector<32x384xf32>, vector<20x384xf32> -> vector<20x384xf32>
    %143 = vector.extract_strided_slice %142 {offsets = [0, 256], sizes = [20, 32], strides = [1, 1]} : vector<20x384xf32> to vector<20x32xf32>
    %c0_94 = arith.constant 0 : index
    %c0_95 = arith.constant 0 : index
    %c0_96 = arith.constant 0 : index
    %144 = vector.load %arg11[%c0_94, %c0_95, %c0_96] : memref<3x1x32xf32, #tpu.memory_space<vmem>>, vector<1x1x32xf32>
    %145 = vector.shape_cast %144 : vector<1x1x32xf32> to vector<1x32xf32>
    %146 = vector.broadcast %145 : vector<1x32xf32> to vector<20x32xf32>
    %147 = arith.addf %143, %146 : vector<20x32xf32>
    %148 = vector.extract_strided_slice %142 {offsets = [0, 128], sizes = [20, 32], strides = [1, 1]} : vector<20x384xf32> to vector<20x32xf32>
    %cst_97 = arith.constant dense<0.000000e+00> : vector<20x32xf32>
    %149 = tpu.matmul %2, %148, %cst_97 {dimension_numbers = #tpu.dot_dimension_numbers<[1], [0], [0], [1], [0, 0, 1, 1], [], []>} : vector<20x20xf32>, vector<20x32xf32>, vector<20x32xf32> -> vector<20x32xf32>
    %150 = arith.addf %147, %149 : vector<20x32xf32>
    %151 = vector.extract_strided_slice %142 {offsets = [0, 0], sizes = [20, 32], strides = [1, 1]} : vector<20x384xf32> to vector<20x32xf32>
    %cst_98 = arith.constant dense<0.000000e+00> : vector<20x32xf32>
    %152 = tpu.matmul %1, %151, %cst_98 {dimension_numbers = #tpu.dot_dimension_numbers<[1], [0], [0], [1], [0, 0, 1, 1], [], []>} : vector<20x20xf32>, vector<20x32xf32>, vector<20x32xf32> -> vector<20x32xf32>
    %153 = arith.addf %150, %152 : vector<20x32xf32>
    %c1_99 = arith.constant 1 : index
    %c0_100 = arith.constant 0 : index
    %c0_101 = arith.constant 0 : index
    %154 = vector.load %arg10[%c1_99, %c0_100, %c0_101] : memref<3x32x384xf32, #tpu.memory_space<vmem>>, vector<1x32x384xf32>
    %155 = vector.shape_cast %154 : vector<1x32x384xf32> to vector<32x384xf32>
    %cst_102 = arith.constant dense<0.000000e+00> : vector<20x384xf32>
    %156 = tpu.matmul %153, %155, %cst_102 {dimension_numbers = #tpu.dot_dimension_numbers<[1], [0], [0], [1], [0, 0, 1, 1], [], []>} : vector<20x32xf32>, vector<32x384xf32>, vector<20x384xf32> -> vector<20x384xf32>
    %157 = vector.extract_strided_slice %156 {offsets = [0, 256], sizes = [20, 32], strides = [1, 1]} : vector<20x384xf32> to vector<20x32xf32>
    %c1_103 = arith.constant 1 : index
    %c0_104 = arith.constant 0 : index
    %c0_105 = arith.constant 0 : index
    %158 = vector.load %arg11[%c1_103, %c0_104, %c0_105] : memref<3x1x32xf32, #tpu.memory_space<vmem>>, vector<1x1x32xf32>
    %159 = vector.shape_cast %158 : vector<1x1x32xf32> to vector<1x32xf32>
    %160 = vector.broadcast %159 : vector<1x32xf32> to vector<20x32xf32>
    %161 = arith.addf %157, %160 : vector<20x32xf32>
    %162 = vector.extract_strided_slice %156 {offsets = [0, 128], sizes = [20, 32], strides = [1, 1]} : vector<20x384xf32> to vector<20x32xf32>
    %cst_106 = arith.constant dense<0.000000e+00> : vector<20x32xf32>
    %163 = tpu.matmul %3, %162, %cst_106 {dimension_numbers = #tpu.dot_dimension_numbers<[1], [0], [0], [1], [0, 0, 1, 1], [], []>} : vector<20x20xf32>, vector<20x32xf32>, vector<20x32xf32> -> vector<20x32xf32>
    %164 = arith.addf %161, %163 : vector<20x32xf32>
    %165 = vector.extract_strided_slice %156 {offsets = [0, 0], sizes = [20, 32], strides = [1, 1]} : vector<20x384xf32> to vector<20x32xf32>
    %cst_107 = arith.constant dense<0.000000e+00> : vector<20x32xf32>
    %166 = tpu.matmul %2, %165, %cst_107 {dimension_numbers = #tpu.dot_dimension_numbers<[1], [0], [0], [1], [0, 0, 1, 1], [], []>} : vector<20x20xf32>, vector<20x32xf32>, vector<20x32xf32> -> vector<20x32xf32>
    %167 = arith.addf %164, %166 : vector<20x32xf32>
    %c2_108 = arith.constant 2 : index
    %c0_109 = arith.constant 0 : index
    %c0_110 = arith.constant 0 : index
    %168 = vector.load %arg10[%c2_108, %c0_109, %c0_110] : memref<3x32x384xf32, #tpu.memory_space<vmem>>, vector<1x32x384xf32>
    %169 = vector.shape_cast %168 : vector<1x32x384xf32> to vector<32x384xf32>
    %cst_111 = arith.constant dense<0.000000e+00> : vector<20x384xf32>
    %170 = tpu.matmul %167, %169, %cst_111 {dimension_numbers = #tpu.dot_dimension_numbers<[1], [0], [0], [1], [0, 0, 1, 1], [], []>} : vector<20x32xf32>, vector<32x384xf32>, vector<20x384xf32> -> vector<20x384xf32>
    %171 = vector.extract_strided_slice %170 {offsets = [0, 256], sizes = [20, 32], strides = [1, 1]} : vector<20x384xf32> to vector<20x32xf32>
    %c2_112 = arith.constant 2 : index
    %c0_113 = arith.constant 0 : index
    %c0_114 = arith.constant 0 : index
    %172 = vector.load %arg11[%c2_112, %c0_113, %c0_114] : memref<3x1x32xf32, #tpu.memory_space<vmem>>, vector<1x1x32xf32>
    %173 = vector.shape_cast %172 : vector<1x1x32xf32> to vector<1x32xf32>
    %174 = vector.broadcast %173 : vector<1x32xf32> to vector<20x32xf32>
    %175 = arith.addf %171, %174 : vector<20x32xf32>
    %176 = vector.extract_strided_slice %170 {offsets = [0, 128], sizes = [20, 32], strides = [1, 1]} : vector<20x384xf32> to vector<20x32xf32>
    %cst_115 = arith.constant dense<0.000000e+00> : vector<20x32xf32>
    %177 = tpu.matmul %4, %176, %cst_115 {dimension_numbers = #tpu.dot_dimension_numbers<[1], [0], [0], [1], [0, 0, 1, 1], [], []>} : vector<20x20xf32>, vector<20x32xf32>, vector<20x32xf32> -> vector<20x32xf32>
    %178 = arith.addf %175, %177 : vector<20x32xf32>
    %179 = vector.extract_strided_slice %170 {offsets = [0, 0], sizes = [20, 32], strides = [1, 1]} : vector<20x384xf32> to vector<20x32xf32>
    %cst_116 = arith.constant dense<0.000000e+00> : vector<20x32xf32>
    %180 = tpu.matmul %3, %179, %cst_116 {dimension_numbers = #tpu.dot_dimension_numbers<[1], [0], [0], [1], [0, 0, 1, 1], [], []>} : vector<20x20xf32>, vector<20x32xf32>, vector<20x32xf32> -> vector<20x32xf32>
    %181 = arith.addf %178, %180 : vector<20x32xf32>
    %cst_117 = arith.constant 0.000000e+00 : f32
    %182 = vector.broadcast %cst_117 : f32 to vector<20x32xf32>
    %183 = arith.maximumf %181, %182 : vector<20x32xf32>
    %184 = arith.addf %183, %94 : vector<20x32xf32>
    %c0_118 = arith.constant 0 : index
    %c0_119 = arith.constant 0 : index
    %c0_120 = arith.constant 0 : index
    %185 = vector.load %arg12[%c0_118, %c0_119, %c0_120] : memref<3x32x384xf32, #tpu.memory_space<vmem>>, vector<1x32x384xf32>
    %186 = vector.shape_cast %185 : vector<1x32x384xf32> to vector<32x384xf32>
    %cst_121 = arith.constant dense<0.000000e+00> : vector<20x384xf32>
    %187 = tpu.matmul %139, %186, %cst_121 {dimension_numbers = #tpu.dot_dimension_numbers<[1], [0], [0], [1], [0, 0, 1, 1], [], []>} : vector<20x32xf32>, vector<32x384xf32>, vector<20x384xf32> -> vector<20x384xf32>
    %188 = vector.extract_strided_slice %187 {offsets = [0, 256], sizes = [20, 32], strides = [1, 1]} : vector<20x384xf32> to vector<20x32xf32>
    %c0_122 = arith.constant 0 : index
    %c0_123 = arith.constant 0 : index
    %c0_124 = arith.constant 0 : index
    %189 = vector.load %arg13[%c0_122, %c0_123, %c0_124] : memref<3x1x32xf32, #tpu.memory_space<vmem>>, vector<1x1x32xf32>
    %190 = vector.shape_cast %189 : vector<1x1x32xf32> to vector<1x32xf32>
    %191 = vector.broadcast %190 : vector<1x32xf32> to vector<20x32xf32>
    %192 = arith.addf %188, %191 : vector<20x32xf32>
    %193 = vector.extract_strided_slice %187 {offsets = [0, 128], sizes = [20, 32], strides = [1, 1]} : vector<20x384xf32> to vector<20x32xf32>
    %cst_125 = arith.constant dense<0.000000e+00> : vector<20x32xf32>
    %194 = tpu.matmul %2, %193, %cst_125 {dimension_numbers = #tpu.dot_dimension_numbers<[1], [0], [0], [1], [0, 0, 1, 1], [], []>} : vector<20x20xf32>, vector<20x32xf32>, vector<20x32xf32> -> vector<20x32xf32>
    %195 = arith.addf %192, %194 : vector<20x32xf32>
    %196 = vector.extract_strided_slice %187 {offsets = [0, 0], sizes = [20, 32], strides = [1, 1]} : vector<20x384xf32> to vector<20x32xf32>
    %cst_126 = arith.constant dense<0.000000e+00> : vector<20x32xf32>
    %197 = tpu.matmul %1, %196, %cst_126 {dimension_numbers = #tpu.dot_dimension_numbers<[1], [0], [0], [1], [0, 0, 1, 1], [], []>} : vector<20x20xf32>, vector<20x32xf32>, vector<20x32xf32> -> vector<20x32xf32>
    %198 = arith.addf %195, %197 : vector<20x32xf32>
    %c1_127 = arith.constant 1 : index
    %c0_128 = arith.constant 0 : index
    %c0_129 = arith.constant 0 : index
    %199 = vector.load %arg12[%c1_127, %c0_128, %c0_129] : memref<3x32x384xf32, #tpu.memory_space<vmem>>, vector<1x32x384xf32>
    %200 = vector.shape_cast %199 : vector<1x32x384xf32> to vector<32x384xf32>
    %cst_130 = arith.constant dense<0.000000e+00> : vector<20x384xf32>
    %201 = tpu.matmul %198, %200, %cst_130 {dimension_numbers = #tpu.dot_dimension_numbers<[1], [0], [0], [1], [0, 0, 1, 1], [], []>} : vector<20x32xf32>, vector<32x384xf32>, vector<20x384xf32> -> vector<20x384xf32>
    %202 = vector.extract_strided_slice %201 {offsets = [0, 256], sizes = [20, 32], strides = [1, 1]} : vector<20x384xf32> to vector<20x32xf32>
    %c1_131 = arith.constant 1 : index
    %c0_132 = arith.constant 0 : index
    %c0_133 = arith.constant 0 : index
    %203 = vector.load %arg13[%c1_131, %c0_132, %c0_133] : memref<3x1x32xf32, #tpu.memory_space<vmem>>, vector<1x1x32xf32>
    %204 = vector.shape_cast %203 : vector<1x1x32xf32> to vector<1x32xf32>
    %205 = vector.broadcast %204 : vector<1x32xf32> to vector<20x32xf32>
    %206 = arith.addf %202, %205 : vector<20x32xf32>
    %207 = vector.extract_strided_slice %201 {offsets = [0, 128], sizes = [20, 32], strides = [1, 1]} : vector<20x384xf32> to vector<20x32xf32>
    %cst_134 = arith.constant dense<0.000000e+00> : vector<20x32xf32>
    %208 = tpu.matmul %3, %207, %cst_134 {dimension_numbers = #tpu.dot_dimension_numbers<[1], [0], [0], [1], [0, 0, 1, 1], [], []>} : vector<20x20xf32>, vector<20x32xf32>, vector<20x32xf32> -> vector<20x32xf32>
    %209 = arith.addf %206, %208 : vector<20x32xf32>
    %210 = vector.extract_strided_slice %201 {offsets = [0, 0], sizes = [20, 32], strides = [1, 1]} : vector<20x384xf32> to vector<20x32xf32>
    %cst_135 = arith.constant dense<0.000000e+00> : vector<20x32xf32>
    %211 = tpu.matmul %2, %210, %cst_135 {dimension_numbers = #tpu.dot_dimension_numbers<[1], [0], [0], [1], [0, 0, 1, 1], [], []>} : vector<20x20xf32>, vector<20x32xf32>, vector<20x32xf32> -> vector<20x32xf32>
    %212 = arith.addf %209, %211 : vector<20x32xf32>
    %c2_136 = arith.constant 2 : index
    %c0_137 = arith.constant 0 : index
    %c0_138 = arith.constant 0 : index
    %213 = vector.load %arg12[%c2_136, %c0_137, %c0_138] : memref<3x32x384xf32, #tpu.memory_space<vmem>>, vector<1x32x384xf32>
    %214 = vector.shape_cast %213 : vector<1x32x384xf32> to vector<32x384xf32>
    %cst_139 = arith.constant dense<0.000000e+00> : vector<20x384xf32>
    %215 = tpu.matmul %212, %214, %cst_139 {dimension_numbers = #tpu.dot_dimension_numbers<[1], [0], [0], [1], [0, 0, 1, 1], [], []>} : vector<20x32xf32>, vector<32x384xf32>, vector<20x384xf32> -> vector<20x384xf32>
    %216 = vector.extract_strided_slice %215 {offsets = [0, 256], sizes = [20, 32], strides = [1, 1]} : vector<20x384xf32> to vector<20x32xf32>
    %c2_140 = arith.constant 2 : index
    %c0_141 = arith.constant 0 : index
    %c0_142 = arith.constant 0 : index
    %217 = vector.load %arg13[%c2_140, %c0_141, %c0_142] : memref<3x1x32xf32, #tpu.memory_space<vmem>>, vector<1x1x32xf32>
    %218 = vector.shape_cast %217 : vector<1x1x32xf32> to vector<1x32xf32>
    %219 = vector.broadcast %218 : vector<1x32xf32> to vector<20x32xf32>
    %220 = arith.addf %216, %219 : vector<20x32xf32>
    %221 = vector.extract_strided_slice %215 {offsets = [0, 128], sizes = [20, 32], strides = [1, 1]} : vector<20x384xf32> to vector<20x32xf32>
    %cst_143 = arith.constant dense<0.000000e+00> : vector<20x32xf32>
    %222 = tpu.matmul %4, %221, %cst_143 {dimension_numbers = #tpu.dot_dimension_numbers<[1], [0], [0], [1], [0, 0, 1, 1], [], []>} : vector<20x20xf32>, vector<20x32xf32>, vector<20x32xf32> -> vector<20x32xf32>
    %223 = arith.addf %220, %222 : vector<20x32xf32>
    %224 = vector.extract_strided_slice %215 {offsets = [0, 0], sizes = [20, 32], strides = [1, 1]} : vector<20x384xf32> to vector<20x32xf32>
    %cst_144 = arith.constant dense<0.000000e+00> : vector<20x32xf32>
    %225 = tpu.matmul %3, %224, %cst_144 {dimension_numbers = #tpu.dot_dimension_numbers<[1], [0], [0], [1], [0, 0, 1, 1], [], []>} : vector<20x20xf32>, vector<20x32xf32>, vector<20x32xf32> -> vector<20x32xf32>
    %226 = arith.addf %223, %225 : vector<20x32xf32>
    %cst_145 = arith.constant 0.000000e+00 : f32
    %227 = vector.broadcast %cst_145 : f32 to vector<20x32xf32>
    %228 = arith.maximumf %226, %227 : vector<20x32xf32>
    %229 = arith.addf %228, %139 : vector<20x32xf32>
    %c0_146 = arith.constant 0 : index
    %c0_147 = arith.constant 0 : index
    %c0_148 = arith.constant 0 : index
    %230 = vector.load %arg12[%c0_146, %c0_147, %c0_148] : memref<3x32x384xf32, #tpu.memory_space<vmem>>, vector<1x32x384xf32>
    %231 = vector.shape_cast %230 : vector<1x32x384xf32> to vector<32x384xf32>
    %cst_149 = arith.constant dense<0.000000e+00> : vector<20x384xf32>
    %232 = tpu.matmul %184, %231, %cst_149 {dimension_numbers = #tpu.dot_dimension_numbers<[1], [0], [0], [1], [0, 0, 1, 1], [], []>} : vector<20x32xf32>, vector<32x384xf32>, vector<20x384xf32> -> vector<20x384xf32>
    %233 = vector.extract_strided_slice %232 {offsets = [0, 256], sizes = [20, 32], strides = [1, 1]} : vector<20x384xf32> to vector<20x32xf32>
    %c0_150 = arith.constant 0 : index
    %c0_151 = arith.constant 0 : index
    %c0_152 = arith.constant 0 : index
    %234 = vector.load %arg13[%c0_150, %c0_151, %c0_152] : memref<3x1x32xf32, #tpu.memory_space<vmem>>, vector<1x1x32xf32>
    %235 = vector.shape_cast %234 : vector<1x1x32xf32> to vector<1x32xf32>
    %236 = vector.broadcast %235 : vector<1x32xf32> to vector<20x32xf32>
    %237 = arith.addf %233, %236 : vector<20x32xf32>
    %238 = vector.extract_strided_slice %232 {offsets = [0, 128], sizes = [20, 32], strides = [1, 1]} : vector<20x384xf32> to vector<20x32xf32>
    %cst_153 = arith.constant dense<0.000000e+00> : vector<20x32xf32>
    %239 = tpu.matmul %2, %238, %cst_153 {dimension_numbers = #tpu.dot_dimension_numbers<[1], [0], [0], [1], [0, 0, 1, 1], [], []>} : vector<20x20xf32>, vector<20x32xf32>, vector<20x32xf32> -> vector<20x32xf32>
    %240 = arith.addf %237, %239 : vector<20x32xf32>
    %241 = vector.extract_strided_slice %232 {offsets = [0, 0], sizes = [20, 32], strides = [1, 1]} : vector<20x384xf32> to vector<20x32xf32>
    %cst_154 = arith.constant dense<0.000000e+00> : vector<20x32xf32>
    %242 = tpu.matmul %1, %241, %cst_154 {dimension_numbers = #tpu.dot_dimension_numbers<[1], [0], [0], [1], [0, 0, 1, 1], [], []>} : vector<20x20xf32>, vector<20x32xf32>, vector<20x32xf32> -> vector<20x32xf32>
    %243 = arith.addf %240, %242 : vector<20x32xf32>
    %c1_155 = arith.constant 1 : index
    %c0_156 = arith.constant 0 : index
    %c0_157 = arith.constant 0 : index
    %244 = vector.load %arg12[%c1_155, %c0_156, %c0_157] : memref<3x32x384xf32, #tpu.memory_space<vmem>>, vector<1x32x384xf32>
    %245 = vector.shape_cast %244 : vector<1x32x384xf32> to vector<32x384xf32>
    %cst_158 = arith.constant dense<0.000000e+00> : vector<20x384xf32>
    %246 = tpu.matmul %243, %245, %cst_158 {dimension_numbers = #tpu.dot_dimension_numbers<[1], [0], [0], [1], [0, 0, 1, 1], [], []>} : vector<20x32xf32>, vector<32x384xf32>, vector<20x384xf32> -> vector<20x384xf32>
    %247 = vector.extract_strided_slice %246 {offsets = [0, 256], sizes = [20, 32], strides = [1, 1]} : vector<20x384xf32> to vector<20x32xf32>
    %c1_159 = arith.constant 1 : index
    %c0_160 = arith.constant 0 : index
    %c0_161 = arith.constant 0 : index
    %248 = vector.load %arg13[%c1_159, %c0_160, %c0_161] : memref<3x1x32xf32, #tpu.memory_space<vmem>>, vector<1x1x32xf32>
    %249 = vector.shape_cast %248 : vector<1x1x32xf32> to vector<1x32xf32>
    %250 = vector.broadcast %249 : vector<1x32xf32> to vector<20x32xf32>
    %251 = arith.addf %247, %250 : vector<20x32xf32>
    %252 = vector.extract_strided_slice %246 {offsets = [0, 128], sizes = [20, 32], strides = [1, 1]} : vector<20x384xf32> to vector<20x32xf32>
    %cst_162 = arith.constant dense<0.000000e+00> : vector<20x32xf32>
    %253 = tpu.matmul %3, %252, %cst_162 {dimension_numbers = #tpu.dot_dimension_numbers<[1], [0], [0], [1], [0, 0, 1, 1], [], []>} : vector<20x20xf32>, vector<20x32xf32>, vector<20x32xf32> -> vector<20x32xf32>
    %254 = arith.addf %251, %253 : vector<20x32xf32>
    %255 = vector.extract_strided_slice %246 {offsets = [0, 0], sizes = [20, 32], strides = [1, 1]} : vector<20x384xf32> to vector<20x32xf32>
    %cst_163 = arith.constant dense<0.000000e+00> : vector<20x32xf32>
    %256 = tpu.matmul %2, %255, %cst_163 {dimension_numbers = #tpu.dot_dimension_numbers<[1], [0], [0], [1], [0, 0, 1, 1], [], []>} : vector<20x20xf32>, vector<20x32xf32>, vector<20x32xf32> -> vector<20x32xf32>
    %257 = arith.addf %254, %256 : vector<20x32xf32>
    %c2_164 = arith.constant 2 : index
    %c0_165 = arith.constant 0 : index
    %c0_166 = arith.constant 0 : index
    %258 = vector.load %arg12[%c2_164, %c0_165, %c0_166] : memref<3x32x384xf32, #tpu.memory_space<vmem>>, vector<1x32x384xf32>
    %259 = vector.shape_cast %258 : vector<1x32x384xf32> to vector<32x384xf32>
    %cst_167 = arith.constant dense<0.000000e+00> : vector<20x384xf32>
    %260 = tpu.matmul %257, %259, %cst_167 {dimension_numbers = #tpu.dot_dimension_numbers<[1], [0], [0], [1], [0, 0, 1, 1], [], []>} : vector<20x32xf32>, vector<32x384xf32>, vector<20x384xf32> -> vector<20x384xf32>
    %261 = vector.extract_strided_slice %260 {offsets = [0, 256], sizes = [20, 32], strides = [1, 1]} : vector<20x384xf32> to vector<20x32xf32>
    %c2_168 = arith.constant 2 : index
    %c0_169 = arith.constant 0 : index
    %c0_170 = arith.constant 0 : index
    %262 = vector.load %arg13[%c2_168, %c0_169, %c0_170] : memref<3x1x32xf32, #tpu.memory_space<vmem>>, vector<1x1x32xf32>
    %263 = vector.shape_cast %262 : vector<1x1x32xf32> to vector<1x32xf32>
    %264 = vector.broadcast %263 : vector<1x32xf32> to vector<20x32xf32>
    %265 = arith.addf %261, %264 : vector<20x32xf32>
    %266 = vector.extract_strided_slice %260 {offsets = [0, 128], sizes = [20, 32], strides = [1, 1]} : vector<20x384xf32> to vector<20x32xf32>
    %cst_171 = arith.constant dense<0.000000e+00> : vector<20x32xf32>
    %267 = tpu.matmul %4, %266, %cst_171 {dimension_numbers = #tpu.dot_dimension_numbers<[1], [0], [0], [1], [0, 0, 1, 1], [], []>} : vector<20x20xf32>, vector<20x32xf32>, vector<20x32xf32> -> vector<20x32xf32>
    %268 = arith.addf %265, %267 : vector<20x32xf32>
    %269 = vector.extract_strided_slice %260 {offsets = [0, 0], sizes = [20, 32], strides = [1, 1]} : vector<20x384xf32> to vector<20x32xf32>
    %cst_172 = arith.constant dense<0.000000e+00> : vector<20x32xf32>
    %270 = tpu.matmul %3, %269, %cst_172 {dimension_numbers = #tpu.dot_dimension_numbers<[1], [0], [0], [1], [0, 0, 1, 1], [], []>} : vector<20x20xf32>, vector<20x32xf32>, vector<20x32xf32> -> vector<20x32xf32>
    %271 = arith.addf %268, %270 : vector<20x32xf32>
    %cst_173 = arith.constant 0.000000e+00 : f32
    %272 = vector.broadcast %cst_173 : f32 to vector<20x32xf32>
    %273 = arith.maximumf %271, %272 : vector<20x32xf32>
    %274 = arith.addf %273, %184 : vector<20x32xf32>
    %c0_174 = arith.constant 0 : index
    %c0_175 = arith.constant 0 : index
    %275 = vector.load %arg14[%c0_174, %c0_175] : memref<32x2560xf32, #tpu.memory_space<vmem>>, vector<32x2560xf32>
    %cst_176 = arith.constant dense<0.000000e+00> : vector<20x2560xf32>
    %276 = tpu.matmul %274, %275, %cst_176 {dimension_numbers = #tpu.dot_dimension_numbers<[1], [0], [0], [1], [0, 0, 1, 1], [], []>} : vector<20x32xf32>, vector<32x2560xf32>, vector<20x2560xf32> -> vector<20x2560xf32>
    %c0_177 = arith.constant 0 : index
    %c0_178 = arith.constant 0 : index
    %277 = vector.load %arg15[%c0_177, %c0_178] : memref<32x2560xf32, #tpu.memory_space<vmem>>, vector<32x2560xf32>
    %cst_179 = arith.constant dense<0.000000e+00> : vector<20x2560xf32>
    %278 = tpu.matmul %229, %277, %cst_179 {dimension_numbers = #tpu.dot_dimension_numbers<[1], [0], [0], [1], [0, 0, 1, 1], [], []>} : vector<20x32xf32>, vector<32x2560xf32>, vector<20x2560xf32> -> vector<20x2560xf32>
    %279 = arith.addf %276, %278 : vector<20x2560xf32>
    %c0_180 = arith.constant 0 : index
    %c0_181 = arith.constant 0 : index
    %c0_182 = arith.constant 0 : index
    %280 = vector.load %arg5[%c0_180, %c0_181, %c0_182] : memref<10x2x20xf32, #tpu.memory_space<vmem>>, vector<1x2x20xf32>
    %281 = vector.shape_cast %280 : vector<1x2x20xf32> to vector<2x20xf32>
    %282 = vector.extract_strided_slice %279 {offsets = [0, 0], sizes = [20, 256], strides = [1, 1]} : vector<20x2560xf32> to vector<20x256xf32>
    %cst_183 = arith.constant dense<0.000000e+00> : vector<2x256xf32>
    %283 = tpu.matmul %281, %282, %cst_183 {dimension_numbers = #tpu.dot_dimension_numbers<[1], [0], [0], [1], [0, 0, 1, 1], [], []>} : vector<2x20xf32>, vector<20x256xf32>, vector<2x256xf32> -> vector<2x256xf32>
    %c0_184 = arith.constant 0 : index
    %c0_185 = arith.constant 0 : index
    %284 = vector.load %arg16[%c0_184, %c0_185] : memref<1x256xf32, #tpu.memory_space<vmem>>, vector<1x256xf32>
    %285 = vector.broadcast %284 : vector<1x256xf32> to vector<2x256xf32>
    %286 = arith.addf %283, %285 : vector<2x256xf32>
    %c1_186 = arith.constant 1 : index
    %c0_187 = arith.constant 0 : index
    %c0_188 = arith.constant 0 : index
    %287 = vector.load %arg5[%c1_186, %c0_187, %c0_188] : memref<10x2x20xf32, #tpu.memory_space<vmem>>, vector<1x2x20xf32>
    %288 = vector.shape_cast %287 : vector<1x2x20xf32> to vector<2x20xf32>
    %289 = vector.extract_strided_slice %279 {offsets = [0, 256], sizes = [20, 256], strides = [1, 1]} : vector<20x2560xf32> to vector<20x256xf32>
    %cst_189 = arith.constant dense<0.000000e+00> : vector<2x256xf32>
    %290 = tpu.matmul %288, %289, %cst_189 {dimension_numbers = #tpu.dot_dimension_numbers<[1], [0], [0], [1], [0, 0, 1, 1], [], []>} : vector<2x20xf32>, vector<20x256xf32>, vector<2x256xf32> -> vector<2x256xf32>
    %291 = arith.addf %286, %290 : vector<2x256xf32>
    %c2_190 = arith.constant 2 : index
    %c0_191 = arith.constant 0 : index
    %c0_192 = arith.constant 0 : index
    %292 = vector.load %arg5[%c2_190, %c0_191, %c0_192] : memref<10x2x20xf32, #tpu.memory_space<vmem>>, vector<1x2x20xf32>
    %293 = vector.shape_cast %292 : vector<1x2x20xf32> to vector<2x20xf32>
    %294 = vector.extract_strided_slice %279 {offsets = [0, 512], sizes = [20, 256], strides = [1, 1]} : vector<20x2560xf32> to vector<20x256xf32>
    %cst_193 = arith.constant dense<0.000000e+00> : vector<2x256xf32>
    %295 = tpu.matmul %293, %294, %cst_193 {dimension_numbers = #tpu.dot_dimension_numbers<[1], [0], [0], [1], [0, 0, 1, 1], [], []>} : vector<2x20xf32>, vector<20x256xf32>, vector<2x256xf32> -> vector<2x256xf32>
    %296 = arith.addf %291, %295 : vector<2x256xf32>
    %c3 = arith.constant 3 : index
    %c0_194 = arith.constant 0 : index
    %c0_195 = arith.constant 0 : index
    %297 = vector.load %arg5[%c3, %c0_194, %c0_195] : memref<10x2x20xf32, #tpu.memory_space<vmem>>, vector<1x2x20xf32>
    %298 = vector.shape_cast %297 : vector<1x2x20xf32> to vector<2x20xf32>
    %299 = vector.extract_strided_slice %279 {offsets = [0, 768], sizes = [20, 256], strides = [1, 1]} : vector<20x2560xf32> to vector<20x256xf32>
    %cst_196 = arith.constant dense<0.000000e+00> : vector<2x256xf32>
    %300 = tpu.matmul %298, %299, %cst_196 {dimension_numbers = #tpu.dot_dimension_numbers<[1], [0], [0], [1], [0, 0, 1, 1], [], []>} : vector<2x20xf32>, vector<20x256xf32>, vector<2x256xf32> -> vector<2x256xf32>
    %301 = arith.addf %296, %300 : vector<2x256xf32>
    %c4 = arith.constant 4 : index
    %c0_197 = arith.constant 0 : index
    %c0_198 = arith.constant 0 : index
    %302 = vector.load %arg5[%c4, %c0_197, %c0_198] : memref<10x2x20xf32, #tpu.memory_space<vmem>>, vector<1x2x20xf32>
    %303 = vector.shape_cast %302 : vector<1x2x20xf32> to vector<2x20xf32>
    %304 = vector.extract_strided_slice %279 {offsets = [0, 1024], sizes = [20, 256], strides = [1, 1]} : vector<20x2560xf32> to vector<20x256xf32>
    %cst_199 = arith.constant dense<0.000000e+00> : vector<2x256xf32>
    %305 = tpu.matmul %303, %304, %cst_199 {dimension_numbers = #tpu.dot_dimension_numbers<[1], [0], [0], [1], [0, 0, 1, 1], [], []>} : vector<2x20xf32>, vector<20x256xf32>, vector<2x256xf32> -> vector<2x256xf32>
    %306 = arith.addf %301, %305 : vector<2x256xf32>
    %c5 = arith.constant 5 : index
    %c0_200 = arith.constant 0 : index
    %c0_201 = arith.constant 0 : index
    %307 = vector.load %arg5[%c5, %c0_200, %c0_201] : memref<10x2x20xf32, #tpu.memory_space<vmem>>, vector<1x2x20xf32>
    %308 = vector.shape_cast %307 : vector<1x2x20xf32> to vector<2x20xf32>
    %309 = vector.extract_strided_slice %279 {offsets = [0, 1280], sizes = [20, 256], strides = [1, 1]} : vector<20x2560xf32> to vector<20x256xf32>
    %cst_202 = arith.constant dense<0.000000e+00> : vector<2x256xf32>
    %310 = tpu.matmul %308, %309, %cst_202 {dimension_numbers = #tpu.dot_dimension_numbers<[1], [0], [0], [1], [0, 0, 1, 1], [], []>} : vector<2x20xf32>, vector<20x256xf32>, vector<2x256xf32> -> vector<2x256xf32>
    %311 = arith.addf %306, %310 : vector<2x256xf32>
    %c6 = arith.constant 6 : index
    %c0_203 = arith.constant 0 : index
    %c0_204 = arith.constant 0 : index
    %312 = vector.load %arg5[%c6, %c0_203, %c0_204] : memref<10x2x20xf32, #tpu.memory_space<vmem>>, vector<1x2x20xf32>
    %313 = vector.shape_cast %312 : vector<1x2x20xf32> to vector<2x20xf32>
    %314 = vector.extract_strided_slice %279 {offsets = [0, 1536], sizes = [20, 256], strides = [1, 1]} : vector<20x2560xf32> to vector<20x256xf32>
    %cst_205 = arith.constant dense<0.000000e+00> : vector<2x256xf32>
    %315 = tpu.matmul %313, %314, %cst_205 {dimension_numbers = #tpu.dot_dimension_numbers<[1], [0], [0], [1], [0, 0, 1, 1], [], []>} : vector<2x20xf32>, vector<20x256xf32>, vector<2x256xf32> -> vector<2x256xf32>
    %316 = arith.addf %311, %315 : vector<2x256xf32>
    %c7 = arith.constant 7 : index
    %c0_206 = arith.constant 0 : index
    %c0_207 = arith.constant 0 : index
    %317 = vector.load %arg5[%c7, %c0_206, %c0_207] : memref<10x2x20xf32, #tpu.memory_space<vmem>>, vector<1x2x20xf32>
    %318 = vector.shape_cast %317 : vector<1x2x20xf32> to vector<2x20xf32>
    %319 = vector.extract_strided_slice %279 {offsets = [0, 1792], sizes = [20, 256], strides = [1, 1]} : vector<20x2560xf32> to vector<20x256xf32>
    %cst_208 = arith.constant dense<0.000000e+00> : vector<2x256xf32>
    %320 = tpu.matmul %318, %319, %cst_208 {dimension_numbers = #tpu.dot_dimension_numbers<[1], [0], [0], [1], [0, 0, 1, 1], [], []>} : vector<2x20xf32>, vector<20x256xf32>, vector<2x256xf32> -> vector<2x256xf32>
    %321 = arith.addf %316, %320 : vector<2x256xf32>
    %c8 = arith.constant 8 : index
    %c0_209 = arith.constant 0 : index
    %c0_210 = arith.constant 0 : index
    %322 = vector.load %arg5[%c8, %c0_209, %c0_210] : memref<10x2x20xf32, #tpu.memory_space<vmem>>, vector<1x2x20xf32>
    %323 = vector.shape_cast %322 : vector<1x2x20xf32> to vector<2x20xf32>
    %324 = vector.extract_strided_slice %279 {offsets = [0, 2048], sizes = [20, 256], strides = [1, 1]} : vector<20x2560xf32> to vector<20x256xf32>
    %cst_211 = arith.constant dense<0.000000e+00> : vector<2x256xf32>
    %325 = tpu.matmul %323, %324, %cst_211 {dimension_numbers = #tpu.dot_dimension_numbers<[1], [0], [0], [1], [0, 0, 1, 1], [], []>} : vector<2x20xf32>, vector<20x256xf32>, vector<2x256xf32> -> vector<2x256xf32>
    %326 = arith.addf %321, %325 : vector<2x256xf32>
    %c9 = arith.constant 9 : index
    %c0_212 = arith.constant 0 : index
    %c0_213 = arith.constant 0 : index
    %327 = vector.load %arg5[%c9, %c0_212, %c0_213] : memref<10x2x20xf32, #tpu.memory_space<vmem>>, vector<1x2x20xf32>
    %328 = vector.shape_cast %327 : vector<1x2x20xf32> to vector<2x20xf32>
    %329 = vector.extract_strided_slice %279 {offsets = [0, 2304], sizes = [20, 256], strides = [1, 1]} : vector<20x2560xf32> to vector<20x256xf32>
    %cst_214 = arith.constant dense<0.000000e+00> : vector<2x256xf32>
    %330 = tpu.matmul %328, %329, %cst_214 {dimension_numbers = #tpu.dot_dimension_numbers<[1], [0], [0], [1], [0, 0, 1, 1], [], []>} : vector<2x20xf32>, vector<20x256xf32>, vector<2x256xf32> -> vector<2x256xf32>
    %331 = arith.addf %326, %330 : vector<2x256xf32>
    %cst_215 = arith.constant 0.000000e+00 : f32
    %332 = vector.broadcast %cst_215 : f32 to vector<2x256xf32>
    %333 = arith.maximumf %331, %332 : vector<2x256xf32>
    %c0_216 = arith.constant 0 : index
    %c0_217 = arith.constant 0 : index
    %334 = vector.load %arg17[%c0_216, %c0_217] : memref<256x512xf32, #tpu.memory_space<vmem>>, vector<256x512xf32>
    %cst_218 = arith.constant dense<0.000000e+00> : vector<2x512xf32>
    %335 = tpu.matmul %333, %334, %cst_218 {dimension_numbers = #tpu.dot_dimension_numbers<[1], [0], [0], [1], [0, 0, 1, 1], [], []>} : vector<2x256xf32>, vector<256x512xf32>, vector<2x512xf32> -> vector<2x512xf32>
    %c0_219 = arith.constant 0 : index
    %c0_220 = arith.constant 0 : index
    %336 = vector.load %arg18[%c0_219, %c0_220] : memref<1x512xf32, #tpu.memory_space<vmem>>, vector<1x512xf32>
    %337 = vector.broadcast %336 : vector<1x512xf32> to vector<2x512xf32>
    %338 = arith.addf %335, %337 : vector<2x512xf32>
    %cst_221 = arith.constant 0.000000e+00 : f32
    %339 = vector.broadcast %cst_221 : f32 to vector<2x512xf32>
    %340 = arith.maximumf %338, %339 : vector<2x512xf32>
    %c0_222 = arith.constant 0 : index
    %c0_223 = arith.constant 0 : index
    %341 = vector.load %arg19[%c0_222, %c0_223] : memref<512x128xf32, #tpu.memory_space<vmem>>, vector<512x128xf32>
    %cst_224 = arith.constant dense<0.000000e+00> : vector<2x128xf32>
    %342 = tpu.matmul %340, %341, %cst_224 {dimension_numbers = #tpu.dot_dimension_numbers<[1], [0], [0], [1], [0, 0, 1, 1], [], []>} : vector<2x512xf32>, vector<512x128xf32>, vector<2x128xf32> -> vector<2x128xf32>
    %c0_225 = arith.constant 0 : index
    %c0_226 = arith.constant 0 : index
    %343 = vector.load %arg20[%c0_225, %c0_226] : memref<1x128xf32, #tpu.memory_space<vmem>>, vector<1x128xf32>
    %344 = vector.broadcast %343 : vector<1x128xf32> to vector<2x128xf32>
    %345 = arith.addf %342, %344 : vector<2x128xf32>
    %cst_227 = arith.constant 0.000000e+00 : f32
    %346 = vector.broadcast %cst_227 : f32 to vector<2x128xf32>
    %347 = arith.maximumf %345, %346 : vector<2x128xf32>
    %c0_228 = arith.constant 0 : index
    %c0_229 = arith.constant 0 : index
    %348 = vector.load %arg21[%c0_228, %c0_229] : memref<128x1xf32, #tpu.memory_space<vmem>>, vector<128x1xf32>
    %cst_230 = arith.constant dense<0.000000e+00> : vector<2x1xf32>
    %349 = tpu.matmul %347, %348, %cst_230 {dimension_numbers = #tpu.dot_dimension_numbers<[1], [0], [0], [1], [0, 0, 1, 1], [], []>} : vector<2x128xf32>, vector<128x1xf32>, vector<2x1xf32> -> vector<2x1xf32>
    %c0_231 = arith.constant 0 : index
    %c0_232 = arith.constant 0 : index
    %350 = vector.load %arg22[%c0_231, %c0_232] : memref<1x1xf32, #tpu.memory_space<vmem>>, vector<1x1xf32>
    %351 = vector.broadcast %350 : vector<1x1xf32> to vector<2x1xf32>
    %352 = arith.addf %349, %351 : vector<2x1xf32>
    %c0_233 = arith.constant 0 : index
    %c0_234 = arith.constant 0 : index
    %353 = vector.load %arg23[%c0_233, %c0_234] : memref<2x1xf32, #tpu.memory_space<vmem>>, vector<2x1xf32>
    tpu.vector_store %arg23[%c0_233, %c0_234], %352 {strides = array<i32>} : memref<2x1xf32, #tpu.memory_space<vmem>>, vector<2x1xf32>,
    return
  }
}

</mosaic_0001>

<llo_original>
// kernel: dcnn_forward.1
$region0: #{dcnn_forward.1}
  #allocation0 [shape = 'u32[]', space=smem, size = 0x4, offset = 0x4, fixed_abs, tag = 'smem constant byte address 0x4 - core index']
  #allocation1 [shape = 'u32[144,128]{1,0:T(1,128)}', space=vmem, size = 0x12000, scoped, tag = 'internal scratch']
  #allocation2 [shape = 'f32[1,1]{1,0:T(1,128)S(1)}', space=vmem, size = 0x200, scoped, tag = 'scoped memory for dcnn_forward.1']
  %s0 = inlined_call_operand.vmem [shape: f32[20,32], index: 0, kind: input, shape index: {}]
  %s1 = inlined_call_operand.hbm [shape: f32[20,20], index: 1, kind: input, shape index: {}]
  %s2 = inlined_call_operand.hbm [shape: f32[20,20], index: 2, kind: input, shape index: {}]
  %s3 = inlined_call_operand.hbm [shape: f32[20,20], index: 3, kind: input, shape index: {}]
  %s4 = inlined_call_operand.hbm [shape: f32[20,20], index: 4, kind: input, shape index: {}]
  %s5 = inlined_call_operand.hbm [shape: f32[10,2,20], index: 5, kind: input, shape index: {}]
  %s6 = inlined_call_operand.hbm [shape: f32[3,32,384], index: 6, kind: input, shape index: {}]
  %s7 = inlined_call_operand.hbm [shape: f32[3,1,32], index: 7, kind: input, shape index: {}]
  %s8 = inlined_call_operand.hbm [shape: f32[3,32,384], index: 8, kind: input, shape index: {}]
  %s9 = inlined_call_operand.hbm [shape: f32[3,1,32], index: 9, kind: input, shape index: {}]
  %s10 = inlined_call_operand.hbm [shape: f32[3,32,384], index: 10, kind: input, shape index: {}]
  %s11 = inlined_call_operand.hbm [shape: f32[3,1,32], index: 11, kind: input, shape index: {}]
  %s12 = inlined_call_operand.vmem [shape: f32[3,32,384], index: 12, kind: input, shape index: {}]
  %s13 = inlined_call_operand.hbm [shape: f32[3,1,32], index: 13, kind: input, shape index: {}]
  %s14 = inlined_call_operand.hbm [shape: f32[32,2560], index: 14, kind: input, shape index: {}]
  %s15 = inlined_call_operand.hbm [shape: f32[32,2560], index: 15, kind: input, shape index: {}]
  %s16 = inlined_call_operand.vmem [shape: f32[1,256], index: 16, kind: input, shape index: {}]
  %s17 = inlined_call_operand.hbm [shape: f32[256,512], index: 17, kind: input, shape index: {}]
  %s18 = inlined_call_operand.vmem [shape: f32[1,512], index: 18, kind: input, shape index: {}]
  %s19 = inlined_call_operand.hbm [shape: f32[512,128], index: 19, kind: input, shape index: {}]
  %s20 = inlined_call_operand.vmem [shape: f32[1,128], index: 20, kind: input, shape index: {}]
  %s21 = inlined_call_operand.vmem [shape: f32[128,1], index: 21, kind: input, shape index: {}]
  %s22 = inlined_call_operand.<no memory space> [shape: f32[1,1], index: 22, kind: input, shape index: {}]
  %s23 = inlined_call_operand.vmem [shape: f32[2,1], index: 23, kind: output, shape index: {}]
  %s24 = sld [smem:[#allocation0]]
  $region166: #{dcnn_forward.1} parent=0
    _
  %s26 = ssub.s32 1, %s24
  %s27 = scalar_select 0, %s26, %s24
  %v28 = vstv %s22
  %29 = vst [vmem:[#allocation2] sm:$0x1] %v28
  $region1: #{dcnn_forward.1} parent=0
    #allocation3 [shape = 'u8[12288]{0}', space=vmem, size = 0x3000, scoped, tag = 'input window, operand 1, single buffered']
    #allocation4 [shape = 's32[1]{0}', space=sflag, size = 0x4, scoped, tag = 'scoped memory for dcnn_forward.1']
    #allocation5 [shape = 'u8[12288]{0}', space=vmem, size = 0x3000, scoped, tag = 'input window, operand 2, single buffered']
    #allocation6 [shape = 's32[1]{0}', space=sflag, size = 0x4, scoped, tag = 'scoped memory for dcnn_forward.1']
    #allocation7 [shape = 'u8[12288]{0}', space=vmem, size = 0x3000, scoped, tag = 'input window, operand 3, single buffered']
    #allocation8 [shape = 'u8[12288]{0}', space=vmem, size = 0x3000, scoped, tag = 'input window, operand 4, single buffered']
    #allocation9 [shape = 's32[1]{0}', space=sflag, size = 0x4, scoped, tag = 'scoped memory for dcnn_forward.1']
    #allocation10 [shape = 'u8[10240]{0}', space=vmem, size = 0x2800, scoped, tag = 'input window, operand 5, single buffered']
    #allocation11 [shape = 'u8[147456]{0}', space=vmem, size = 0x24000, scoped, tag = 'input window, operand 6, single buffered']
    #allocation12 [shape = 's32[1]{0}', space=sflag, size = 0x4, scoped, tag = 'scoped memory for dcnn_forward.1']
    #allocation13 [shape = 'u8[1536]{0}', space=vmem, size = 0x800, scoped, tag = 'input window, operand 7, single buffered']
    #allocation14 [shape = 'u8[147456]{0}', space=vmem, size = 0x24000, scoped, tag = 'input window, operand 8, single buffered']
    #allocation15 [shape = 's32[1]{0}', space=sflag, size = 0x4, scoped, tag = 'scoped memory for dcnn_forward.1']
    #allocation16 [shape = 'u8[1536]{0}', space=vmem, size = 0x800, scoped, tag = 'input window, operand 9, single buffered']
    #allocation17 [shape = 'u8[147456]{0}', space=vmem, size = 0x24000, scoped, tag = 'input window, operand 10, single buffered']
    #allocation18 [shape = 's32[1]{0}', space=sflag, size = 0x4, scoped, tag = 'scoped memory for dcnn_forward.1']
    #allocation19 [shape = 'u8[1536]{0}', space=vmem, size = 0x800, scoped, tag = 'input window, operand 11, single buffered']
    #allocation20 [shape = 'u8[1536]{0}', space=vmem, size = 0x800, scoped, tag = 'input window, operand 13, single buffered']
    #allocation21 [shape = 's32[1]{0}', space=sflag, size = 0x4, scoped, tag = 'scoped memory for dcnn_forward.1']
    #allocation22 [shape = 'u8[327680]{0}', space=vmem, size = 0x50000, scoped, tag = 'input window, operand 14, single buffered']
    #allocation23 [shape = 'u8[327680]{0}', space=vmem, size = 0x50000, scoped, tag = 'input window, operand 15, single buffered']
    #allocation24 [shape = 's32[1]{0}', space=sflag, size = 0x4, scoped, tag = 'scoped memory for dcnn_forward.1']
    #allocation25 [shape = 'u8[524288]{0}', space=vmem, size = 0x80000, scoped, tag = 'input window, operand 17, single buffered']
    #allocation26 [shape = 'u8[262144]{0}', space=vmem, size = 0x40000, scoped, tag = 'input window, operand 19, single buffered']
    #allocation27 [shape = 's32[1]{0}', space=sflag, size = 0x4, scoped, tag = 'scoped memory for dcnn_forward.1']
    %30 = vsyncpa [#allocation4], 0
    %31 = vsyncpa [#allocation6], 0
    %32 = vsyncpa [#allocation9], 0
    %33 = vsyncpa [#allocation12], 0
    %34 = vsyncpa [#allocation15], 0
    %35 = vsyncpa [#allocation18], 0
    %36 = vsyncpa [#allocation21], 0
    %37 = vsyncpa [#allocation24], 0
    %38 = vsyncpa [#allocation27], 0
    // Predicated region
    $region2: #{dcnn_forward.1} parent=1 // pred_check
      _
    $region3: #{dcnn_forward.1} parent=1 // pred_check_branch
      %40 = sbr.rel (0) target = $region5
    $region4: #{dcnn_forward.1} parent=1 // pred_region
      _
    $region5: #{dcnn_forward.1} parent=1 // pred_fallthru
      _
    // Predicated region
    $region6: #{dcnn_forward.1} parent=1 // pred_check
      _
    $region7: #{dcnn_forward.1} parent=1 // pred_check_branch
      %42 = sbr.rel (0) target = $region9
    $region8: #{dcnn_forward.1} parent=1 // pred_region
      %s44 = ssub.s32 384, 384
      %45 = vsyncadd [#allocation4], %s44
      %s46 = sshll.u32 [#allocation3], 4
      %s47 = int_to_ptr.vmem [resolvable:$true] %s46
      %52 = dma.hbm_to_vmem [thread:$0]  %s1, 384, %s47, [#allocation4], 128, 128, 8
    $region9: #{dcnn_forward.1} parent=1 // pred_fallthru
      _
    // Predicated region
    $region10: #{dcnn_forward.1} parent=1 // pred_check
      _
    $region11: #{dcnn_forward.1} parent=1 // pred_check_branch
      %54 = sbr.rel (0) target = $region13
    $region12: #{dcnn_forward.1} parent=1 // pred_region
      %s56 = ssub.s32 384, 384
      %57 = vsyncadd [#allocation6], %s56
      %s58 = sshll.u32 [#allocation5], 4
      %s59 = int_to_ptr.vmem [resolvable:$true] %s58
      %64 = dma.hbm_to_vmem [thread:$0]  %s2, 384, %s59, [#allocation6], 128, 128, 8
    $region13: #{dcnn_forward.1} parent=1 // pred_fallthru
      _
    // Predicated region
    $region14: #{dcnn_forward.1} parent=1 // pred_check
      _
    $region15: #{dcnn_forward.1} parent=1 // pred_check_branch
      %66 = sbr.rel (0) target = $region17
    $region16: #{dcnn_forward.1} parent=1 // pred_region
      %s68 = ssub.s32 384, 384
      %69 = vsyncadd [#allocation6], %s68
      %s70 = sshll.u32 [#allocation7], 4
      %s71 = int_to_ptr.vmem [resolvable:$true] %s70
      %76 = dma.hbm_to_vmem [thread:$0]  %s3, 384, %s71, [#allocation6], 128, 128, 8
    $region17: #{dcnn_forward.1} parent=1 // pred_fallthru
      _
    // Predicated region
    $region18: #{dcnn_forward.1} parent=1 // pred_check
      _
    $region19: #{dcnn_forward.1} parent=1 // pred_check_branch
      %78 = sbr.rel (0) target = $region21
    $region20: #{dcnn_forward.1} parent=1 // pred_region
      %s80 = ssub.s32 384, 384
      %81 = vsyncadd [#allocation9], %s80
      %s82 = sshll.u32 [#allocation8], 4
      %s83 = int_to_ptr.vmem [resolvable:$true] %s82
      %88 = dma.hbm_to_vmem [thread:$0]  %s4, 384, %s83, [#allocation9], 128, 128, 8
    $region21: #{dcnn_forward.1} parent=1 // pred_fallthru
      _
    // Predicated region
    $region22: #{dcnn_forward.1} parent=1 // pred_check
      _
    $region23: #{dcnn_forward.1} parent=1 // pred_check_branch
      %90 = sbr.rel (0) target = $region25
    $region24: #{dcnn_forward.1} parent=1 // pred_region
      %s92 = ssub.s32 320, 320
      %93 = vsyncadd [#allocation9], %s92
      %s94 = sshll.u32 [#allocation10], 4
      %s95 = int_to_ptr.vmem [resolvable:$true] %s94
      %100 = dma.hbm_to_vmem [thread:$0]  %s5, 320, %s95, [#allocation9], 32, 32, 2
    $region25: #{dcnn_forward.1} parent=1 // pred_fallthru
      _
    // Predicated region
    $region26: #{dcnn_forward.1} parent=1 // pred_check
      _
    $region27: #{dcnn_forward.1} parent=1 // pred_check_branch
      %102 = sbr.rel (0) target = $region29
    $region28: #{dcnn_forward.1} parent=1 // pred_region
      %s104 = ssub.s32 4608, 4608
      %105 = vsyncadd [#allocation12], %s104
      %s106 = sshll.u32 [#allocation11], 4
      %s107 = int_to_ptr.vmem [resolvable:$true] %s106
      %112 = dma.hbm_to_vmem [thread:$0]  %s6, 4608, %s107, [#allocation12], 384, 384, 24
    $region29: #{dcnn_forward.1} parent=1 // pred_fallthru
      _
    // Predicated region
    $region30: #{dcnn_forward.1} parent=1 // pred_check
      _
    $region31: #{dcnn_forward.1} parent=1 // pred_check_branch
      %114 = sbr.rel (0) target = $region33
    $region32: #{dcnn_forward.1} parent=1 // pred_region
      %s116 = ssub.s32 48, 48
      %117 = vsyncadd [#allocation12], %s116
      %s118 = sshll.u32 [#allocation13], 4
      %s119 = int_to_ptr.vmem [resolvable:$true] %s118
      %124 = dma.hbm_to_vmem [thread:$0]  %s7, 48, %s119, [#allocation12], 16, 16, 1
    $region33: #{dcnn_forward.1} parent=1 // pred_fallthru
      _
    // Predicated region
    $region34: #{dcnn_forward.1} parent=1 // pred_check
      _
    $region35: #{dcnn_forward.1} parent=1 // pred_check_branch
      %126 = sbr.rel (0) target = $region37
    $region36: #{dcnn_forward.1} parent=1 // pred_region
      %s128 = ssub.s32 4608, 4608
      %129 = vsyncadd [#allocation15], %s128
      %s130 = sshll.u32 [#allocation14], 4
      %s131 = int_to_ptr.vmem [resolvable:$true] %s130
      %136 = dma.hbm_to_vmem [thread:$0]  %s8, 4608, %s131, [#allocation15], 384, 384, 24
    $region37: #{dcnn_forward.1} parent=1 // pred_fallthru
      _
    // Predicated region
    $region38: #{dcnn_forward.1} parent=1 // pred_check
      _
    $region39: #{dcnn_forward.1} parent=1 // pred_check_branch
      %138 = sbr.rel (0) target = $region41
    $region40: #{dcnn_forward.1} parent=1 // pred_region
      %s140 = ssub.s32 48, 48
      %141 = vsyncadd [#allocation15], %s140
      %s142 = sshll.u32 [#allocation16], 4
      %s143 = int_to_ptr.vmem [resolvable:$true] %s142
      %148 = dma.hbm_to_vmem [thread:$0]  %s9, 48, %s143, [#allocation15], 16, 16, 1
    $region41: #{dcnn_forward.1} parent=1 // pred_fallthru
      _
    // Predicated region
    $region42: #{dcnn_forward.1} parent=1 // pred_check
      _
    $region43: #{dcnn_forward.1} parent=1 // pred_check_branch
      %150 = sbr.rel (0) target = $region45
    $region44: #{dcnn_forward.1} parent=1 // pred_region
      %s152 = ssub.s32 4608, 4608
      %153 = vsyncadd [#allocation18], %s152
      %s154 = sshll.u32 [#allocation17], 4
      %s155 = int_to_ptr.vmem [resolvable:$true] %s154
      %160 = dma.hbm_to_vmem [thread:$0]  %s10, 4608, %s155, [#allocation18], 384, 384, 24
    $region45: #{dcnn_forward.1} parent=1 // pred_fallthru
      _
    // Predicated region
    $region46: #{dcnn_forward.1} parent=1 // pred_check
      _
    $region47: #{dcnn_forward.1} parent=1 // pred_check_branch
      %162 = sbr.rel (0) target = $region49
    $region48: #{dcnn_forward.1} parent=1 // pred_region
      %s164 = ssub.s32 48, 48
      %165 = vsyncadd [#allocation18], %s164
      %s166 = sshll.u32 [#allocation19], 4
      %s167 = int_to_ptr.vmem [resolvable:$true] %s166
      %172 = dma.hbm_to_vmem [thread:$0]  %s11, 48, %s167, [#allocation18], 16, 16, 1
    $region49: #{dcnn_forward.1} parent=1 // pred_fallthru
      _
    // Predicated region
    $region50: #{dcnn_forward.1} parent=1 // pred_check
      _
    $region51: #{dcnn_forward.1} parent=1 // pred_check_branch
      %174 = sbr.rel (0) target = $region53
    $region52: #{dcnn_forward.1} parent=1 // pred_region
      _
    $region53: #{dcnn_forward.1} parent=1 // pred_fallthru
      _
    // Predicated region
    $region54: #{dcnn_forward.1} parent=1 // pred_check
      _
    $region55: #{dcnn_forward.1} parent=1 // pred_check_branch
      %176 = sbr.rel (0) target = $region57
    $region56: #{dcnn_forward.1} parent=1 // pred_region
      %s178 = ssub.s32 48, 48
      %179 = vsyncadd [#allocation21], %s178
      %s180 = sshll.u32 [#allocation20], 4
      %s181 = int_to_ptr.vmem [resolvable:$true] %s180
      %186 = dma.hbm_to_vmem [thread:$0]  %s13, 48, %s181, [#allocation21], 16, 16, 1
    $region57: #{dcnn_forward.1} parent=1 // pred_fallthru
      _
    // Predicated region
    $region58: #{dcnn_forward.1} parent=1 // pred_check
      _
    $region59: #{dcnn_forward.1} parent=1 // pred_check_branch
      %188 = sbr.rel (0) target = $region61
    $region60: #{dcnn_forward.1} parent=1 // pred_region
      %s190 = ssub.s32 10240, 10240
      %191 = vsyncadd [#allocation21], %s190
      %s192 = sshll.u32 [#allocation22], 4
      %s193 = int_to_ptr.vmem [resolvable:$true] %s192
      %198 = dma.hbm_to_vmem [thread:$0]  %s14, 10240, %s193, [#allocation21], 2560, 2560, 160
    $region61: #{dcnn_forward.1} parent=1 // pred_fallthru
      _
    // Predicated region
    $region62: #{dcnn_forward.1} parent=1 // pred_check
      _
    $region63: #{dcnn_forward.1} parent=1 // pred_check_branch
      %200 = sbr.rel (0) target = $region65
    $region64: #{dcnn_forward.1} parent=1 // pred_region
      %s202 = ssub.s32 10240, 10240
      %203 = vsyncadd [#allocation24], %s202
      %s204 = sshll.u32 [#allocation23], 4
      %s205 = int_to_ptr.vmem [resolvable:$true] %s204
      %210 = dma.hbm_to_vmem [thread:$0]  %s15, 10240, %s205, [#allocation24], 2560, 2560, 160
    $region65: #{dcnn_forward.1} parent=1 // pred_fallthru
      _
    // Predicated region
    $region66: #{dcnn_forward.1} parent=1 // pred_check
      _
    $region67: #{dcnn_forward.1} parent=1 // pred_check_branch
      %212 = sbr.rel (0) target = $region69
    $region68: #{dcnn_forward.1} parent=1 // pred_region
      _
    $region69: #{dcnn_forward.1} parent=1 // pred_fallthru
      _
    // Predicated region
    $region70: #{dcnn_forward.1} parent=1 // pred_check
      _
    $region71: #{dcnn_forward.1} parent=1 // pred_check_branch
      %214 = sbr.rel (0) target = $region73
    $region72: #{dcnn_forward.1} parent=1 // pred_region
      %s216 = ssub.s32 16384, 16384
      %217 = vsyncadd [#allocation24], %s216
      %s218 = sshll.u32 [#allocation25], 4
      %s219 = int_to_ptr.vmem [resolvable:$true] %s218
      %224 = dma.hbm_to_vmem [thread:$0]  %s17, 16384, %s219, [#allocation24], 512, 512, 32
    $region73: #{dcnn_forward.1} parent=1 // pred_fallthru
      _
    // Predicated region
    $region74: #{dcnn_forward.1} parent=1 // pred_check
      _
    $region75: #{dcnn_forward.1} parent=1 // pred_check_branch
      %226 = sbr.rel (0) target = $region77
    $region76: #{dcnn_forward.1} parent=1 // pred_region
      _
    $region77: #{dcnn_forward.1} parent=1 // pred_fallthru
      _
    // Predicated region
    $region78: #{dcnn_forward.1} parent=1 // pred_check
      _
    $region79: #{dcnn_forward.1} parent=1 // pred_check_branch
      %228 = sbr.rel (0) target = $region81
    $region80: #{dcnn_forward.1} parent=1 // pred_region
      %s230 = ssub.s32 8192, 8192
      %231 = vsyncadd [#allocation27], %s230
      %s232 = sshll.u32 [#allocation26], 4
      %s233 = int_to_ptr.vmem [resolvable:$true] %s232
      %238 = dma.hbm_to_vmem [thread:$0]  %s19, 8192, %s233, [#allocation27], 128, 128, 8
    $region81: #{dcnn_forward.1} parent=1 // pred_fallthru
      _
    // Predicated region
    $region82: #{dcnn_forward.1} parent=1 // pred_check
      _
    $region83: #{dcnn_forward.1} parent=1 // pred_check_branch
      %240 = sbr.rel (0) target = $region85
    $region84: #{dcnn_forward.1} parent=1 // pred_region
      _
    $region85: #{dcnn_forward.1} parent=1 // pred_fallthru
      _
    // Predicated region
    $region86: #{dcnn_forward.1} parent=1 // pred_check
      _
    $region87: #{dcnn_forward.1} parent=1 // pred_check_branch
      %242 = sbr.rel (0) target = $region89
    $region88: #{dcnn_forward.1} parent=1 // pred_region
      _
    $region89: #{dcnn_forward.1} parent=1 // pred_fallthru
      _
    // Predicated region
    $region90: #{dcnn_forward.1} parent=1 // pred_check
      _
    $region91: #{dcnn_forward.1} parent=1 // pred_check_branch
      %244 = sbr.rel (0) target = $region93
    $region92: #{dcnn_forward.1} parent=1 // pred_region
      _
    $region93: #{dcnn_forward.1} parent=1 // pred_fallthru
      _
    // Predicated region
    $region94: #{dcnn_forward.1} parent=1 // pred_check
      _
    $region95: #{dcnn_forward.1} parent=1 // pred_check_branch
      %246 = sbr.rel (0) target = $region97
    $region96: #{dcnn_forward.1} parent=1 // pred_region
      %247 = dma.done [#allocation4], 384
    $region97: #{dcnn_forward.1} parent=1 // pred_fallthru
      _
    // Predicated region
    $region98: #{dcnn_forward.1} parent=1 // pred_check
      _
    $region99: #{dcnn_forward.1} parent=1 // pred_check_branch
      %249 = sbr.rel (0) target = $region101
    $region100: #{dcnn_forward.1} parent=1 // pred_region
      %250 = dma.done [#allocation6], 384
    $region101: #{dcnn_forward.1} parent=1 // pred_fallthru
      _
    // Predicated region
    $region102: #{dcnn_forward.1} parent=1 // pred_check
      _
    $region103: #{dcnn_forward.1} parent=1 // pred_check_branch
      %252 = sbr.rel (0) target = $region105
    $region104: #{dcnn_forward.1} parent=1 // pred_region
      %253 = dma.done [#allocation6], 384
    $region105: #{dcnn_forward.1} parent=1 // pred_fallthru
      _
    // Predicated region
    $region106: #{dcnn_forward.1} parent=1 // pred_check
      _
    $region107: #{dcnn_forward.1} parent=1 // pred_check_branch
      %255 = sbr.rel (0) target = $region109
    $region108: #{dcnn_forward.1} parent=1 // pred_region
      %256 = dma.done [#allocation9], 384
    $region109: #{dcnn_forward.1} parent=1 // pred_fallthru
      _
    // Predicated region
    $region110: #{dcnn_forward.1} parent=1 // pred_check
      _
    $region111: #{dcnn_forward.1} parent=1 // pred_check_branch
      %258 = sbr.rel (0) target = $region113
    $region112: #{dcnn_forward.1} parent=1 // pred_region
      %259 = dma.done [#allocation9], 320
    $region113: #{dcnn_forward.1} parent=1 // pred_fallthru
      _
    // Predicated region
    $region114: #{dcnn_forward.1} parent=1 // pred_check
      _
    $region115: #{dcnn_forward.1} parent=1 // pred_check_branch
      %261 = sbr.rel (0) target = $region117
    $region116: #{dcnn_forward.1} parent=1 // pred_region
      %262 = dma.done [#allocation12], 4608
    $region117: #{dcnn_forward.1} parent=1 // pred_fallthru
      _
    // Predicated region
    $region118: #{dcnn_forward.1} parent=1 // pred_check
      _
    $region119: #{dcnn_forward.1} parent=1 // pred_check_branch
      %264 = sbr.rel (0) target = $region121
    $region120: #{dcnn_forward.1} parent=1 // pred_region
      %265 = dma.done [#allocation12], 48
    $region121: #{dcnn_forward.1} parent=1 // pred_fallthru
      _
    // Predicated region
    $region122: #{dcnn_forward.1} parent=1 // pred_check
      _
    $region123: #{dcnn_forward.1} parent=1 // pred_check_branch
      %267 = sbr.rel (0) target = $region125
    $region124: #{dcnn_forward.1} parent=1 // pred_region
      %268 = dma.done [#allocation15], 4608
    $region125: #{dcnn_forward.1} parent=1 // pred_fallthru
      _
    // Predicated region
    $region126: #{dcnn_forward.1} parent=1 // pred_check
      _
    $region127: #{dcnn_forward.1} parent=1 // pred_check_branch
      %270 = sbr.rel (0) target = $region129
    $region128: #{dcnn_forward.1} parent=1 // pred_region
      %271 = dma.done [#allocation15], 48
    $region129: #{dcnn_forward.1} parent=1 // pred_fallthru
      _
    // Predicated region
    $region130: #{dcnn_forward.1} parent=1 // pred_check
      _
    $region131: #{dcnn_forward.1} parent=1 // pred_check_branch
      %273 = sbr.rel (0) target = $region133
    $region132: #{dcnn_forward.1} parent=1 // pred_region
      %274 = dma.done [#allocation18], 4608
    $region133: #{dcnn_forward.1} parent=1 // pred_fallthru
      _
    // Predicated region
    $region134: #{dcnn_forward.1} parent=1 // pred_check
      _
    $region135: #{dcnn_forward.1} parent=1 // pred_check_branch
      %276 = sbr.rel (0) target = $region137
    $region136: #{dcnn_forward.1} parent=1 // pred_region
      %277 = dma.done [#allocation18], 48
    $region137: #{dcnn_forward.1} parent=1 // pred_fallthru
      _
    // Predicated region
    $region138: #{dcnn_forward.1} parent=1 // pred_check
      _
    $region139: #{dcnn_forward.1} parent=1 // pred_check_branch
      %279 = sbr.rel (0) target = $region141
    $region140: #{dcnn_forward.1} parent=1 // pred_region
      %280 = dma.done [#allocation21], 48
    $region141: #{dcnn_forward.1} parent=1 // pred_fallthru
      _
    // Predicated region
    $region142: #{dcnn_forward.1} parent=1 // pred_check
      _
    $region143: #{dcnn_forward.1} parent=1 // pred_check_branch
      %282 = sbr.rel (0) target = $region145
    $region144: #{dcnn_forward.1} parent=1 // pred_region
      %283 = dma.done [#allocation21], 10240
    $region145: #{dcnn_forward.1} parent=1 // pred_fallthru
      _
    // Predicated region
    $region146: #{dcnn_forward.1} parent=1 // pred_check
      _
    $region147: #{dcnn_forward.1} parent=1 // pred_check_branch
      %285 = sbr.rel (0) target = $region149
    $region148: #{dcnn_forward.1} parent=1 // pred_region
      %286 = dma.done [#allocation24], 10240
    $region149: #{dcnn_forward.1} parent=1 // pred_fallthru
      _
    // Predicated region
    $region150: #{dcnn_forward.1} parent=1 // pred_check
      _
    $region151: #{dcnn_forward.1} parent=1 // pred_check_branch
      %288 = sbr.rel (0) target = $region153
    $region152: #{dcnn_forward.1} parent=1 // pred_region
      %289 = dma.done [#allocation24], 16384
    $region153: #{dcnn_forward.1} parent=1 // pred_fallthru
      _
    // Predicated region
    $region154: #{dcnn_forward.1} parent=1 // pred_check
      _
    $region155: #{dcnn_forward.1} parent=1 // pred_check_branch
      %291 = sbr.rel (0) target = $region157
    $region156: #{dcnn_forward.1} parent=1 // pred_region
      %292 = dma.done [#allocation27], 8192
    $region157: #{dcnn_forward.1} parent=1 // pred_fallthru
      _
    %v293 = vld [vmem:[%s0] sm:$0xff]
    %v294 = vld [vmem:[%s0 + $0x8] sm:$0xff]
    %v295 = vld [vmem:[%s0 + $0x10] sm:$0xf]
    %v296 = vld [vmem:[#allocation3] sm:$0xff]
    %v297 = vld [vmem:[#allocation3 + $0x8] sm:$0xff]
    %v298 = vld [vmem:[#allocation3 + $0x10] sm:$0xf]
    %v299 = vld [vmem:[#allocation5] sm:$0xff]
    %v300 = vld [vmem:[#allocation5 + $0x8] sm:$0xff]
    %v301 = vld [vmem:[#allocation5 + $0x10] sm:$0xf]
    %v302 = vld [vmem:[#allocation7] sm:$0xff]
    %v303 = vld [vmem:[#allocation7 + $0x8] sm:$0xff]
    %v304 = vld [vmem:[#allocation7 + $0x10] sm:$0xf]
    %v305 = vld [vmem:[#allocation8] sm:$0xff]
    %v306 = vld [vmem:[#allocation8 + $0x8] sm:$0xff]
    %v307 = vld [vmem:[#allocation8 + $0x10] sm:$0xf]
    %v308 = vld [vmem:[#allocation11] sm:$0xff]
    %v309 = vld [vmem:[#allocation11 + $0x8] sm:$0xff]
    %v310 = vld [vmem:[#allocation11 + $0x10] sm:$0xff]
    %v311 = vld [vmem:[#allocation11 + $0x18] sm:$0xff]
    %v312 = vld [vmem:[#allocation11 + $0x20] sm:$0xff]
    %v313 = vld [vmem:[#allocation11 + $0x28] sm:$0xff]
    %v314 = vld [vmem:[#allocation11 + $0x30] sm:$0xff]
    %v315 = vld [vmem:[#allocation11 + $0x38] sm:$0xff]
    %v316 = vld [vmem:[#allocation11 + $0x40] sm:$0xff]
    %v317 = vld [vmem:[#allocation11 + $0x48] sm:$0xff]
    %v318 = vld [vmem:[#allocation11 + $0x50] sm:$0xff]
    %v319 = vld [vmem:[#allocation11 + $0x58] sm:$0xff]
    %vm320 = vcmask 261120
    %v322 = vsel %vm320, %v293, 0
    %v325 = vsel %vm320, %v294, 0
    %v328 = vsel %vm320, %v295, 0
    %330 = vmatprep.subr.mxu0 %v309
    %331 = vmatpush1.msra.mxu0 %v308
    %332 = vmatprep.subr.mxu0 %v312
    %333 = vmatpush1.msra.mxu0 %v311
    %334 = vmatprep.subr.mxu0 %v315
    %335 = vmatpush1.msra.mxu0 %v314
    %336 = vmatprep.subr.mxu0 %v318
    %337 = vmatpush1.msra.mxu0 %v317
    %338 = vmatprep.subr.mxu0 0.0
    %339 = vmatpush1.msra.mxu0 0.0
    %340 = vmatprep.subr.mxu0 0.0
    %341 = vmatpush1.msra.mxu0 0.0
    %342 = vmatprep.subr.mxu0 0.0
    %343 = vmatpush1.msra.mxu0 0.0
    %344 = vmatprep.subr.mxu0 0.0
    %345 = vmatpush1.msra.mxu0 0.0
    %346 = vmatprep.subr.mxu0 0.0
    %347 = vmatpush1.msra.mxu0 0.0
    %348 = vmatprep.subr.mxu0 0.0
    %349 = vmatpush1.msra.mxu0 0.0
    %350 = vmatprep.subr.mxu0 0.0
    %351 = vmatpush1.msra.mxu0 0.0
    %352 = vmatprep.subr.mxu0 0.0
    %353 = vmatpush1.msra.mxu0 0.0
    %354 = vmatprep.subr.mxu0 0.0
    %355 = vmatpush1.msra.mxu0 0.0
    %356 = vmatprep.subr.mxu0 0.0
    %357 = vmatpush1.msra.mxu0 0.0
    %358 = vmatprep.subr.mxu0 0.0
    %359 = vmatpush1.msra.mxu0 0.0
    %360 = vmatprep.subr.mxu0 0.0
    %361 = vmatpush1.msra.mxu0 0.0
    %362 = vmatprep.subr.mxu0 0.0
    %363 = vmatpush1.msra.mxu0 0.0
    %364 = vmatprep.subr.mxu0 0.0
    %365 = vmatpush1.msra.mxu0 0.0
    %366 = vmatprep.subr.mxu0 0.0
    %367 = vmatpush1.msra.mxu0 0.0
    %368 = vmatprep.subr.mxu0 0.0
    %369 = vmatpush1.msra.mxu0 0.0
    %370 = vmatprep.subr.mxu0 0.0
    %371 = vmatpush1.msra.mxu0 0.0
    %372 = vmatprep.subr.mxu0 0.0
    %373 = vmatpush1.msra.mxu0 0.0
    %374 = vmatprep.subr.mxu0 0.0
    %375 = vmatpush1.msra.mxu0 0.0
    %376 = vmatprep.subr.mxu0 0.0
    %377 = vmatpush1.msra.mxu0 0.0
    %378 = vmatprep.subr.mxu0 0.0
    %379 = vmatpush1.msra.mxu0 0.0
    %380 = vmatprep.subr.mxu0 0.0
    %381 = vmatpush1.msra.mxu0 0.0
    %382 = vmatprep.subr.mxu0 0.0
    %383 = vmatpush1.msra.mxu0 0.0
    %384 = vmatprep.subr.mxu0 0.0
    %385 = vmatpush1.msra.mxu0 0.0
    %386 = vmatprep.subr.mxu0 0.0
    %387 = vmatpush1.msra.mxu0 0.0
    %388 = vmatprep.subr.mxu0 0.0
    %389 = vmatpush1.msra.mxu0 0.0
    %390 = vmatprep.subr.mxu0 0.0
    %391 = vmatpush1.msra.mxu0 0.0
    %392 = vmatprep.subr.mxu0 0.0
    %393 = vmatpush1.msra.mxu0 0.0
    %394 = vmatprep.mubr.f32.mxu0 0.0
    %395 = vmatmul.mubr.f32.gmra.mrb[0].mxu0 %v322
    %v396 = vpop.f32.mrb[0].mxu0
    %v397 = vadd.f32 0.0, %v396
    %v398 = vpop.f32.mrb[0].mxu0
    %v399 = vadd.f32 0.0, %v398
    %400 = vmatprep.mubr.f32.mxu0 0.0
    %401 = vmatmul.mubr.f32.gmra.mrb[0].mxu0 %v325
    %v402 = vpop.f32.mrb[0].mxu0
    %v403 = vadd.f32 0.0, %v402
    %v404 = vpop.f32.mrb[0].mxu0
    %v405 = vadd.f32 0.0, %v404
    %406 = vmatprep.mubr.f32.mxu0 0.0
    %407 = vmatmul.mubr.f32.gmra.mrb[0].mxu0 %v328
    %v408 = vpop.f32.mrb[0].mxu0
    %v409 = vadd.f32 0.0, %v408
    %v410 = vpop.f32.mrb[0].mxu0
    %v411 = vadd.f32 0.0, %v410
    %412 = vdwg.mxu0
    %413 = vmatprep.subr.mxu0 0.0
    %414 = vmatpush1.msra.mxu0 %v310
    %415 = vmatprep.subr.mxu0 0.0
    %416 = vmatpush1.msra.mxu0 %v313
    %417 = vmatprep.subr.mxu0 0.0
    %418 = vmatpush1.msra.mxu0 %v316
    %419 = vmatprep.subr.mxu0 0.0
    %420 = vmatpush1.msra.mxu0 %v319
    %421 = vmatprep.subr.mxu0 0.0
    %422 = vmatpush1.msra.mxu0 0.0
    %423 = vmatprep.subr.mxu0 0.0
    %424 = vmatpush1.msra.mxu0 0.0
    %425 = vmatprep.subr.mxu0 0.0
    %426 = vmatpush1.msra.mxu0 0.0
    %427 = vmatprep.subr.mxu0 0.0
    %428 = vmatpush1.msra.mxu0 0.0
    %429 = vmatprep.subr.mxu0 0.0
    %430 = vmatpush1.msra.mxu0 0.0
    %431 = vmatprep.subr.mxu0 0.0
    %432 = vmatpush1.msra.mxu0 0.0
    %433 = vmatprep.subr.mxu0 0.0
    %434 = vmatpush1.msra.mxu0 0.0
    %435 = vmatprep.subr.mxu0 0.0
    %436 = vmatpush1.msra.mxu0 0.0
    %437 = vmatprep.subr.mxu0 0.0
    %438 = vmatpush1.msra.mxu0 0.0
    %439 = vmatprep.subr.mxu0 0.0
    %440 = vmatpush1.msra.mxu0 0.0
    %441 = vmatprep.subr.mxu0 0.0
    %442 = vmatpush1.msra.mxu0 0.0
    %443 = vmatprep.subr.mxu0 0.0
    %444 = vmatpush1.msra.mxu0 0.0
    %445 = vmatprep.subr.mxu0 0.0
    %446 = vmatpush1.msra.mxu0 0.0
    %447 = vmatprep.subr.mxu0 0.0
    %448 = vmatpush1.msra.mxu0 0.0
    %449 = vmatprep.subr.mxu0 0.0
    %450 = vmatpush1.msra.mxu0 0.0
    %451 = vmatprep.subr.mxu0 0.0
    %452 = vmatpush1.msra.mxu0 0.0
    %453 = vmatprep.subr.mxu0 0.0
    %454 = vmatpush1.msra.mxu0 0.0
    %455 = vmatprep.subr.mxu0 0.0
    %456 = vmatpush1.msra.mxu0 0.0
    %457 = vmatprep.subr.mxu0 0.0
    %458 = vmatpush1.msra.mxu0 0.0
    %459 = vmatprep.subr.mxu0 0.0
    %460 = vmatpush1.msra.mxu0 0.0
    %461 = vmatprep.subr.mxu0 0.0
    %462 = vmatpush1.msra.mxu0 0.0
    %463 = vmatprep.subr.mxu0 0.0
    %464 = vmatpush1.msra.mxu0 0.0
    %465 = vmatprep.subr.mxu0 0.0
    %466 = vmatpush1.msra.mxu0 0.0
    %467 = vmatprep.subr.mxu0 0.0
    %468 = vmatpush1.msra.mxu0 0.0
    %469 = vmatprep.subr.mxu0 0.0
    %470 = vmatpush1.msra.mxu0 0.0
    %471 = vmatprep.subr.mxu0 0.0
    %472 = vmatpush1.msra.mxu0 0.0
    %473 = vmatprep.subr.mxu0 0.0
    %474 = vmatpush1.msra.mxu0 0.0
    %475 = vmatprep.subr.mxu0 0.0
    %476 = vmatpush1.msra.mxu0 0.0
    %477 = vmatprep.mubr.f32.mxu0 0.0
    %478 = vmatmul.mubr.f32.gmra.mrb[0].mxu0 %v322
    %v479 = vpop.f32.mrb[0].mxu0
    %v480 = vadd.f32 0.0, %v479
    %v481 = vpop.f32.mrb[0].mxu0
    %482 = vmatprep.mubr.f32.mxu0 0.0
    %483 = vmatmul.mubr.f32.gmra.mrb[0].mxu0 %v325
    %v484 = vpop.f32.mrb[0].mxu0
    %v485 = vadd.f32 0.0, %v484
    %v486 = vpop.f32.mrb[0].mxu0
    %487 = vmatprep.mubr.f32.mxu0 0.0
    %488 = vmatmul.mubr.f32.gmra.mrb[0].mxu0 %v328
    %v489 = vpop.f32.mrb[0].mxu0
    %v490 = vadd.f32 0.0, %v489
    %v491 = vpop.f32.mrb[0].mxu0
    %492 = vdwg.mxu0
    %v493 = vld [vmem:[#allocation13] sm:$0x1]
    %v495 = vlaneseq
    %v496 = vshrl.u32 %v495, 7
    %v497 = vsub.s32 0, %v496
    %v498 = vrot.slane %v493, %v497
    %v500 = vadd.f32 %v480, %v498
    %v501 = vadd.f32 %v485, %v498
    %v502 = vadd.f32 %v490, %v498
    %vm503 = vcmask 162816
    %v505 = vsel %vm503, %v299, 0
    %v508 = vsel %vm503, %v300, 0
    %v511 = vsel %vm503, %v301, 0
    %vm513 = vcmask 1043456
    %v515 = vsel %vm513, %v411, 0
    %517 = vmatprep.subr.mxu0 0.0
    %518 = vmatpush1.msra.mxu0 %v399
    %519 = vmatprep.subr.mxu0 0.0
    %520 = vmatpush1.msra.mxu0 %v405
    %521 = vmatprep.subr.mxu0 0.0
    %522 = vmatpush1.msra.mxu0 %v515
    %523 = vmatprep.subr.mxu0 0.0
    %524 = vmatpush1.msra.mxu0 0.0
    %525 = vmatprep.subr.mxu0 0.0
    %526 = vmatpush1.msra.mxu0 0.0
    %527 = vmatprep.subr.mxu0 0.0
    %528 = vmatpush1.msra.mxu0 0.0
    %529 = vmatprep.subr.mxu0 0.0
    %530 = vmatpush1.msra.mxu0 0.0
    %531 = vmatprep.subr.mxu0 0.0
    %532 = vmatpush1.msra.mxu0 0.0
    %533 = vmatprep.subr.mxu0 0.0
    %534 = vmatpush1.msra.mxu0 0.0
    %535 = vmatprep.subr.mxu0 0.0
    %536 = vmatpush1.msra.mxu0 0.0
    %537 = vmatprep.subr.mxu0 0.0
    %538 = vmatpush1.msra.mxu0 0.0
    %539 = vmatprep.subr.mxu0 0.0
    %540 = vmatpush1.msra.mxu0 0.0
    %541 = vmatprep.subr.mxu0 0.0
    %542 = vmatpush1.msra.mxu0 0.0
    %543 = vmatprep.subr.mxu0 0.0
    %544 = vmatpush1.msra.mxu0 0.0
    %545 = vmatprep.subr.mxu0 0.0
    %546 = vmatpush1.msra.mxu0 0.0
    %547 = vmatprep.subr.mxu0 0.0
    %548 = vmatpush1.msra.mxu0 0.0
    %549 = vmatprep.subr.mxu0 0.0
    %550 = vmatpush1.msra.mxu0 0.0
    %551 = vmatprep.subr.mxu0 0.0
    %552 = vmatpush1.msra.mxu0 0.0
    %553 = vmatprep.subr.mxu0 0.0
    %554 = vmatpush1.msra.mxu0 0.0
    %555 = vmatprep.subr.mxu0 0.0
    %556 = vmatpush1.msra.mxu0 0.0
    %557 = vmatprep.subr.mxu0 0.0
    %558 = vmatpush1.msra.mxu0 0.0
    %559 = vmatprep.subr.mxu0 0.0
    %560 = vmatpush1.msra.mxu0 0.0
    %561 = vmatprep.subr.mxu0 0.0
    %562 = vmatpush1.msra.mxu0 0.0
    %563 = vmatprep.subr.mxu0 0.0
    %564 = vmatpush1.msra.mxu0 0.0
    %565 = vmatprep.subr.mxu0 0.0
    %566 = vmatpush1.msra.mxu0 0.0
    %567 = vmatprep.subr.mxu0 0.0
    %568 = vmatpush1.msra.mxu0 0.0
    %569 = vmatprep.subr.mxu0 0.0
    %570 = vmatpush1.msra.mxu0 0.0
    %571 = vmatprep.subr.mxu0 0.0
    %572 = vmatpush1.msra.mxu0 0.0
    %573 = vmatprep.subr.mxu0 0.0
    %574 = vmatpush1.msra.mxu0 0.0
    %575 = vmatprep.subr.mxu0 0.0
    %576 = vmatpush1.msra.mxu0 0.0
    %577 = vmatprep.subr.mxu0 0.0
    %578 = vmatpush1.msra.mxu0 0.0
    %579 = vmatprep.subr.mxu0 0.0
    %580 = vmatpush1.msra.mxu0 0.0
    %581 = vmatprep.mubr.f32.mxu0 0.0
    %582 = vmatmul.mubr.f32.gmra.mrb[0].mxu0 %v505
    %v583 = vpop.f32.mrb[0].mxu0
    %v584 = vadd.f32 0.0, %v583
    %v585 = vpop.f32.mrb[0].mxu0
    %586 = vmatprep.mubr.f32.mxu0 0.0
    %587 = vmatmul.mubr.f32.gmra.mrb[0].mxu0 %v508
    %v588 = vpop.f32.mrb[0].mxu0
    %v589 = vadd.f32 0.0, %v588
    %v590 = vpop.f32.mrb[0].mxu0
    %591 = vmatprep.mubr.f32.mxu0 0.0
    %592 = vmatmul.mubr.f32.gmra.mrb[0].mxu0 %v511
    %v593 = vpop.f32.mrb[0].mxu0
    %v594 = vadd.f32 0.0, %v593
    %v595 = vpop.f32.mrb[0].mxu0
    %596 = vdwg.mxu0
    %v597 = vadd.f32 %v500, %v584
    %v598 = vadd.f32 %v501, %v589
    %v599 = vadd.f32 %v502, %v594
    %v601 = vsel %vm503, %v296, 0
    %v604 = vsel %vm503, %v297, 0
    %v607 = vsel %vm503, %v298, 0
    %v610 = vsel %vm513, %v409, 0
    %612 = vmatprep.subr.mxu0 0.0
    %613 = vmatpush1.msra.mxu0 %v397
    %614 = vmatprep.subr.mxu0 0.0
    %615 = vmatpush1.msra.mxu0 %v403
    %616 = vmatprep.subr.mxu0 0.0
    %617 = vmatpush1.msra.mxu0 %v610
    %618 = vmatprep.subr.mxu0 0.0
    %619 = vmatpush1.msra.mxu0 0.0
    %620 = vmatprep.subr.mxu0 0.0
    %621 = vmatpush1.msra.mxu0 0.0
    %622 = vmatprep.subr.mxu0 0.0
    %623 = vmatpush1.msra.mxu0 0.0
    %624 = vmatprep.subr.mxu0 0.0
    %625 = vmatpush1.msra.mxu0 0.0
    %626 = vmatprep.subr.mxu0 0.0
    %627 = vmatpush1.msra.mxu0 0.0
    %628 = vmatprep.subr.mxu0 0.0
    %629 = vmatpush1.msra.mxu0 0.0
    %630 = vmatprep.subr.mxu0 0.0
    %631 = vmatpush1.msra.mxu0 0.0
    %632 = vmatprep.subr.mxu0 0.0
    %633 = vmatpush1.msra.mxu0 0.0
    %634 = vmatprep.subr.mxu0 0.0
    %635 = vmatpush1.msra.mxu0 0.0
    %636 = vmatprep.subr.mxu0 0.0
    %637 = vmatpush1.msra.mxu0 0.0
    %638 = vmatprep.subr.mxu0 0.0
    %639 = vmatpush1.msra.mxu0 0.0
    %640 = vmatprep.subr.mxu0 0.0
    %641 = vmatpush1.msra.mxu0 0.0
    %642 = vmatprep.subr.mxu0 0.0
    %643 = vmatpush1.msra.mxu0 0.0
    %644 = vmatprep.subr.mxu0 0.0
    %645 = vmatpush1.msra.mxu0 0.0
    %646 = vmatprep.subr.mxu0 0.0
    %647 = vmatpush1.msra.mxu0 0.0
    %648 = vmatprep.subr.mxu0 0.0
    %649 = vmatpush1.msra.mxu0 0.0
    %650 = vmatprep.subr.mxu0 0.0
    %651 = vmatpush1.msra.mxu0 0.0
    %652 = vmatprep.subr.mxu0 0.0
    %653 = vmatpush1.msra.mxu0 0.0
    %654 = vmatprep.subr.mxu0 0.0
    %655 = vmatpush1.msra.mxu0 0.0
    %656 = vmatprep.subr.mxu0 0.0
    %657 = vmatpush1.msra.mxu0 0.0
    %658 = vmatprep.subr.mxu0 0.0
    %659 = vmatpush1.msra.mxu0 0.0
    %660 = vmatprep.subr.mxu0 0.0
    %661 = vmatpush1.msra.mxu0 0.0
    %662 = vmatprep.subr.mxu0 0.0
    %663 = vmatpush1.msra.mxu0 0.0
    %664 = vmatprep.subr.mxu0 0.0
    %665 = vmatpush1.msra.mxu0 0.0
    %666 = vmatprep.subr.mxu0 0.0
    %667 = vmatpush1.msra.mxu0 0.0
    %668 = vmatprep.subr.mxu0 0.0
    %669 = vmatpush1.msra.mxu0 0.0
    %670 = vmatprep.subr.mxu0 0.0
    %671 = vmatpush1.msra.mxu0 0.0
    %672 = vmatprep.subr.mxu0 0.0
    %673 = vmatpush1.msra.mxu0 0.0
    %674 = vmatprep.subr.mxu0 0.0
    %675 = vmatpush1.msra.mxu0 0.0
    %676 = vmatprep.mubr.f32.mxu0 0.0
    %677 = vmatmul.mubr.f32.gmra.mrb[0].mxu0 %v601
    %v678 = vpop.f32.mrb[0].mxu0
    %v679 = vadd.f32 0.0, %v678
    %v680 = vpop.f32.mrb[0].mxu0
    %681 = vmatprep.mubr.f32.mxu0 0.0
    %682 = vmatmul.mubr.f32.gmra.mrb[0].mxu0 %v604
    %v683 = vpop.f32.mrb[0].mxu0
    %v684 = vadd.f32 0.0, %v683
    %v685 = vpop.f32.mrb[0].mxu0
    %686 = vmatprep.mubr.f32.mxu0 0.0
    %687 = vmatmul.mubr.f32.gmra.mrb[0].mxu0 %v607
    %v688 = vpop.f32.mrb[0].mxu0
    %v689 = vadd.f32 0.0, %v688
    %v690 = vpop.f32.mrb[0].mxu0
    %691 = vdwg.mxu0
    %v692 = vadd.f32 %v597, %v679
    %v693 = vadd.f32 %v598, %v684
    %v694 = vadd.f32 %v599, %v689
    %s695 = scalar_lea.vmem [#allocation11], 96
    %v696 = vld [vmem:[%s695] sm:$0xff]
    %v697 = vld [vmem:[%s695 + $0x8] sm:$0xff]
    %v698 = vld [vmem:[%s695 + $0x10] sm:$0xff]
    %v699 = vld [vmem:[%s695 + $0x18] sm:$0xff]
    %v700 = vld [vmem:[%s695 + $0x20] sm:$0xff]
    %v701 = vld [vmem:[%s695 + $0x28] sm:$0xff]
    %v702 = vld [vmem:[%s695 + $0x30] sm:$0xff]
    %v703 = vld [vmem:[%s695 + $0x38] sm:$0xff]
    %v704 = vld [vmem:[%s695 + $0x40] sm:$0xff]
    %v705 = vld [vmem:[%s695 + $0x48] sm:$0xff]
    %v706 = vld [vmem:[%s695 + $0x50] sm:$0xff]
    %v707 = vld [vmem:[%s695 + $0x58] sm:$0xff]
    %v709 = vsel %vm320, %v692, 0
    %v712 = vsel %vm320, %v693, 0
    %v715 = vsel %vm320, %v694, 0
    %717 = vmatprep.subr.mxu0 %v697
    %718 = vmatpush1.msra.mxu0 %v696
    %719 = vmatprep.subr.mxu0 %v700
    %720 = vmatpush1.msra.mxu0 %v699
    %721 = vmatprep.subr.mxu0 %v703
    %722 = vmatpush1.msra.mxu0 %v702
    %723 = vmatprep.subr.mxu0 %v706
    %724 = vmatpush1.msra.mxu0 %v705
    %725 = vmatprep.subr.mxu0 0.0
    %726 = vmatpush1.msra.mxu0 0.0
    %727 = vmatprep.subr.mxu0 0.0
    %728 = vmatpush1.msra.mxu0 0.0
    %729 = vmatprep.subr.mxu0 0.0
    %730 = vmatpush1.msra.mxu0 0.0
    %731 = vmatprep.subr.mxu0 0.0
    %732 = vmatpush1.msra.mxu0 0.0
    %733 = vmatprep.subr.mxu0 0.0
    %734 = vmatpush1.msra.mxu0 0.0
    %735 = vmatprep.subr.mxu0 0.0
    %736 = vmatpush1.msra.mxu0 0.0
    %737 = vmatprep.subr.mxu0 0.0
    %738 = vmatpush1.msra.mxu0 0.0
    %739 = vmatprep.subr.mxu0 0.0
    %740 = vmatpush1.msra.mxu0 0.0
    %741 = vmatprep.subr.mxu0 0.0
    %742 = vmatpush1.msra.mxu0 0.0
    %743 = vmatprep.subr.mxu0 0.0
    %744 = vmatpush1.msra.mxu0 0.0
    %745 = vmatprep.subr.mxu0 0.0
    %746 = vmatpush1.msra.mxu0 0.0
    %747 = vmatprep.subr.mxu0 0.0
    %748 = vmatpush1.msra.mxu0 0.0
    %749 = vmatprep.subr.mxu0 0.0
    %750 = vmatpush1.msra.mxu0 0.0
    %751 = vmatprep.subr.mxu0 0.0
    %752 = vmatpush1.msra.mxu0 0.0
    %753 = vmatprep.subr.mxu0 0.0
    %754 = vmatpush1.msra.mxu0 0.0
    %755 = vmatprep.subr.mxu0 0.0
    %756 = vmatpush1.msra.mxu0 0.0
    %757 = vmatprep.subr.mxu0 0.0
    %758 = vmatpush1.msra.mxu0 0.0
    %759 = vmatprep.subr.mxu0 0.0
    %760 = vmatpush1.msra.mxu0 0.0
    %761 = vmatprep.subr.mxu0 0.0
    %762 = vmatpush1.msra.mxu0 0.0
    %763 = vmatprep.subr.mxu0 0.0
    %764 = vmatpush1.msra.mxu0 0.0
    %765 = vmatprep.subr.mxu0 0.0
    %766 = vmatpush1.msra.mxu0 0.0
    %767 = vmatprep.subr.mxu0 0.0
    %768 = vmatpush1.msra.mxu0 0.0
    %769 = vmatprep.subr.mxu0 0.0
    %770 = vmatpush1.msra.mxu0 0.0
    %771 = vmatprep.subr.mxu0 0.0
    %772 = vmatpush1.msra.mxu0 0.0
    %773 = vmatprep.subr.mxu0 0.0
    %774 = vmatpush1.msra.mxu0 0.0
    %775 = vmatprep.subr.mxu0 0.0
    %776 = vmatpush1.msra.mxu0 0.0
    %777 = vmatprep.subr.mxu0 0.0
    %778 = vmatpush1.msra.mxu0 0.0
    %779 = vmatprep.subr.mxu0 0.0
    %780 = vmatpush1.msra.mxu0 0.0
    %781 = vmatprep.mubr.f32.mxu0 0.0
    %782 = vmatmul.mubr.f32.gmra.mrb[0].mxu0 %v709
    %v783 = vpop.f32.mrb[0].mxu0
    %v784 = vadd.f32 0.0, %v783
    %v785 = vpop.f32.mrb[0].mxu0
    %v786 = vadd.f32 0.0, %v785
    %787 = vmatprep.mubr.f32.mxu0 0.0
    %788 = vmatmul.mubr.f32.gmra.mrb[0].mxu0 %v712
    %v789 = vpop.f32.mrb[0].mxu0
    %v790 = vadd.f32 0.0, %v789
    %v791 = vpop.f32.mrb[0].mxu0
    %v792 = vadd.f32 0.0, %v791
    %793 = vmatprep.mubr.f32.mxu0 0.0
    %794 = vmatmul.mubr.f32.gmra.mrb[0].mxu0 %v715
    %v795 = vpop.f32.mrb[0].mxu0
    %v796 = vadd.f32 0.0, %v795
    %v797 = vpop.f32.mrb[0].mxu0
    %v798 = vadd.f32 0.0, %v797
    %799 = vdwg.mxu0
    %800 = vmatprep.subr.mxu0 0.0
    %801 = vmatpush1.msra.mxu0 %v698
    %802 = vmatprep.subr.mxu0 0.0
    %803 = vmatpush1.msra.mxu0 %v701
    %804 = vmatprep.subr.mxu0 0.0
    %805 = vmatpush1.msra.mxu0 %v704
    %806 = vmatprep.subr.mxu0 0.0
    %807 = vmatpush1.msra.mxu0 %v707
    %808 = vmatprep.subr.mxu0 0.0
    %809 = vmatpush1.msra.mxu0 0.0
    %810 = vmatprep.subr.mxu0 0.0
    %811 = vmatpush1.msra.mxu0 0.0
    %812 = vmatprep.subr.mxu0 0.0
    %813 = vmatpush1.msra.mxu0 0.0
    %814 = vmatprep.subr.mxu0 0.0
    %815 = vmatpush1.msra.mxu0 0.0
    %816 = vmatprep.subr.mxu0 0.0
    %817 = vmatpush1.msra.mxu0 0.0
    %818 = vmatprep.subr.mxu0 0.0
    %819 = vmatpush1.msra.mxu0 0.0
    %820 = vmatprep.subr.mxu0 0.0
    %821 = vmatpush1.msra.mxu0 0.0
    %822 = vmatprep.subr.mxu0 0.0
    %823 = vmatpush1.msra.mxu0 0.0
    %824 = vmatprep.subr.mxu0 0.0
    %825 = vmatpush1.msra.mxu0 0.0
    %826 = vmatprep.subr.mxu0 0.0
    %827 = vmatpush1.msra.mxu0 0.0
    %828 = vmatprep.subr.mxu0 0.0
    %829 = vmatpush1.msra.mxu0 0.0
    %830 = vmatprep.subr.mxu0 0.0
    %831 = vmatpush1.msra.mxu0 0.0
    %832 = vmatprep.subr.mxu0 0.0
    %833 = vmatpush1.msra.mxu0 0.0
    %834 = vmatprep.subr.mxu0 0.0
    %835 = vmatpush1.msra.mxu0 0.0
    %836 = vmatprep.subr.mxu0 0.0
    %837 = vmatpush1.msra.mxu0 0.0
    %838 = vmatprep.subr.mxu0 0.0
    %839 = vmatpush1.msra.mxu0 0.0
    %840 = vmatprep.subr.mxu0 0.0
    %841 = vmatpush1.msra.mxu0 0.0
    %842 = vmatprep.subr.mxu0 0.0
    %843 = vmatpush1.msra.mxu0 0.0
    %844 = vmatprep.subr.mxu0 0.0
    %845 = vmatpush1.msra.mxu0 0.0
    %846 = vmatprep.subr.mxu0 0.0
    %847 = vmatpush1.msra.mxu0 0.0
    %848 = vmatprep.subr.mxu0 0.0
    %849 = vmatpush1.msra.mxu0 0.0
    %850 = vmatprep.subr.mxu0 0.0
    %851 = vmatpush1.msra.mxu0 0.0
    %852 = vmatprep.subr.mxu0 0.0
    %853 = vmatpush1.msra.mxu0 0.0
    %854 = vmatprep.subr.mxu0 0.0
    %855 = vmatpush1.msra.mxu0 0.0
    %856 = vmatprep.subr.mxu0 0.0
    %857 = vmatpush1.msra.mxu0 0.0
    %858 = vmatprep.subr.mxu0 0.0
    %859 = vmatpush1.msra.mxu0 0.0
    %860 = vmatprep.subr.mxu0 0.0
    %861 = vmatpush1.msra.mxu0 0.0
    %862 = vmatprep.subr.mxu0 0.0
    %863 = vmatpush1.msra.mxu0 0.0
    %864 = vmatprep.mubr.f32.mxu0 0.0
    %865 = vmatmul.mubr.f32.gmra.mrb[0].mxu0 %v709
    %v866 = vpop.f32.mrb[0].mxu0
    %v867 = vadd.f32 0.0, %v866
    %v868 = vpop.f32.mrb[0].mxu0
    %869 = vmatprep.mubr.f32.mxu0 0.0
    %870 = vmatmul.mubr.f32.gmra.mrb[0].mxu0 %v712
    %v871 = vpop.f32.mrb[0].mxu0
    %v872 = vadd.f32 0.0, %v871
    %v873 = vpop.f32.mrb[0].mxu0
    %874 = vmatprep.mubr.f32.mxu0 0.0
    %875 = vmatmul.mubr.f32.gmra.mrb[0].mxu0 %v715
    %v876 = vpop.f32.mrb[0].mxu0
    %v877 = vadd.f32 0.0, %v876
    %v878 = vpop.f32.mrb[0].mxu0
    %879 = vdwg.mxu0
    %s880 = scalar_lea.vmem [#allocation13], 1
    %v881 = vld [vmem:[%s880] sm:$0x1]
    %v883 = vlaneseq
    %v884 = vshrl.u32 %v883, 7
    %v885 = vsub.s32 0, %v884
    %v886 = vrot.slane %v881, %v885
    %v888 = vadd.f32 %v867, %v886
    %v889 = vadd.f32 %v872, %v886
    %v890 = vadd.f32 %v877, %v886
    %v892 = vsel %vm503, %v302, 0
    %v895 = vsel %vm503, %v303, 0
    %v898 = vsel %vm503, %v304, 0
    %v901 = vsel %vm513, %v798, 0
    %903 = vmatprep.subr.mxu0 0.0
    %904 = vmatpush1.msra.mxu0 %v786
    %905 = vmatprep.subr.mxu0 0.0
    %906 = vmatpush1.msra.mxu0 %v792
    %907 = vmatprep.subr.mxu0 0.0
    %908 = vmatpush1.msra.mxu0 %v901
    %909 = vmatprep.subr.mxu0 0.0
    %910 = vmatpush1.msra.mxu0 0.0
    %911 = vmatprep.subr.mxu0 0.0
    %912 = vmatpush1.msra.mxu0 0.0
    %913 = vmatprep.subr.mxu0 0.0
    %914 = vmatpush1.msra.mxu0 0.0
    %915 = vmatprep.subr.mxu0 0.0
    %916 = vmatpush1.msra.mxu0 0.0
    %917 = vmatprep.subr.mxu0 0.0
    %918 = vmatpush1.msra.mxu0 0.0
    %919 = vmatprep.subr.mxu0 0.0
    %920 = vmatpush1.msra.mxu0 0.0
    %921 = vmatprep.subr.mxu0 0.0
    %922 = vmatpush1.msra.mxu0 0.0
    %923 = vmatprep.subr.mxu0 0.0
    %924 = vmatpush1.msra.mxu0 0.0
    %925 = vmatprep.subr.mxu0 0.0
    %926 = vmatpush1.msra.mxu0 0.0
    %927 = vmatprep.subr.mxu0 0.0
    %928 = vmatpush1.msra.mxu0 0.0
    %929 = vmatprep.subr.mxu0 0.0
    %930 = vmatpush1.msra.mxu0 0.0
    %931 = vmatprep.subr.mxu0 0.0
    %932 = vmatpush1.msra.mxu0 0.0
    %933 = vmatprep.subr.mxu0 0.0
    %934 = vmatpush1.msra.mxu0 0.0
    %935 = vmatprep.subr.mxu0 0.0
    %936 = vmatpush1.msra.mxu0 0.0
    %937 = vmatprep.subr.mxu0 0.0
    %938 = vmatpush1.msra.mxu0 0.0
    %939 = vmatprep.subr.mxu0 0.0
    %940 = vmatpush1.msra.mxu0 0.0
    %941 = vmatprep.subr.mxu0 0.0
    %942 = vmatpush1.msra.mxu0 0.0
    %943 = vmatprep.subr.mxu0 0.0
    %944 = vmatpush1.msra.mxu0 0.0
    %945 = vmatprep.subr.mxu0 0.0
    %946 = vmatpush1.msra.mxu0 0.0
    %947 = vmatprep.subr.mxu0 0.0
    %948 = vmatpush1.msra.mxu0 0.0
    %949 = vmatprep.subr.mxu0 0.0
    %950 = vmatpush1.msra.mxu0 0.0
    %951 = vmatprep.subr.mxu0 0.0
    %952 = vmatpush1.msra.mxu0 0.0
    %953 = vmatprep.subr.mxu0 0.0
    %954 = vmatpush1.msra.mxu0 0.0
    %955 = vmatprep.subr.mxu0 0.0
    %956 = vmatpush1.msra.mxu0 0.0
    %957 = vmatprep.subr.mxu0 0.0
    %958 = vmatpush1.msra.mxu0 0.0
    %959 = vmatprep.subr.mxu0 0.0
    %960 = vmatpush1.msra.mxu0 0.0
    %961 = vmatprep.subr.mxu0 0.0
    %962 = vmatpush1.msra.mxu0 0.0
    %963 = vmatprep.subr.mxu0 0.0
    %964 = vmatpush1.msra.mxu0 0.0
    %965 = vmatprep.subr.mxu0 0.0
    %966 = vmatpush1.msra.mxu0 0.0
    %967 = vmatprep.mubr.f32.mxu0 0.0
    %968 = vmatmul.mubr.f32.gmra.mrb[0].mxu0 %v892
    %v969 = vpop.f32.mrb[0].mxu0
    %v970 = vadd.f32 0.0, %v969
    %v971 = vpop.f32.mrb[0].mxu0
    %972 = vmatprep.mubr.f32.mxu0 0.0
    %973 = vmatmul.mubr.f32.gmra.mrb[0].mxu0 %v895
    %v974 = vpop.f32.mrb[0].mxu0
    %v975 = vadd.f32 0.0, %v974
    %v976 = vpop.f32.mrb[0].mxu0
    %977 = vmatprep.mubr.f32.mxu0 0.0
    %978 = vmatmul.mubr.f32.gmra.mrb[0].mxu0 %v898
    %v979 = vpop.f32.mrb[0].mxu0
    %v980 = vadd.f32 0.0, %v979
    %v981 = vpop.f32.mrb[0].mxu0
    %982 = vdwg.mxu0
    %v983 = vadd.f32 %v888, %v970
    %v984 = vadd.f32 %v889, %v975
    %v985 = vadd.f32 %v890, %v980
    %v987 = vsel %vm513, %v796, 0
    %989 = vmatprep.subr.mxu0 0.0
    %990 = vmatpush1.msra.mxu0 %v784
    %991 = vmatprep.subr.mxu0 0.0
    %992 = vmatpush1.msra.mxu0 %v790
    %993 = vmatprep.subr.mxu0 0.0
    %994 = vmatpush1.msra.mxu0 %v987
    %995 = vmatprep.subr.mxu0 0.0
    %996 = vmatpush1.msra.mxu0 0.0
    %997 = vmatprep.subr.mxu0 0.0
    %998 = vmatpush1.msra.mxu0 0.0
    %999 = vmatprep.subr.mxu0 0.0
    %1000 = vmatpush1.msra.mxu0 0.0
    %1001 = vmatprep.subr.mxu0 0.0
    %1002 = vmatpush1.msra.mxu0 0.0
    %1003 = vmatprep.subr.mxu0 0.0
    %1004 = vmatpush1.msra.mxu0 0.0
    %1005 = vmatprep.subr.mxu0 0.0
    %1006 = vmatpush1.msra.mxu0 0.0
    %1007 = vmatprep.subr.mxu0 0.0
    %1008 = vmatpush1.msra.mxu0 0.0
    %1009 = vmatprep.subr.mxu0 0.0
    %1010 = vmatpush1.msra.mxu0 0.0
    %1011 = vmatprep.subr.mxu0 0.0
    %1012 = vmatpush1.msra.mxu0 0.0
    %1013 = vmatprep.subr.mxu0 0.0
    %1014 = vmatpush1.msra.mxu0 0.0
    %1015 = vmatprep.subr.mxu0 0.0
    %1016 = vmatpush1.msra.mxu0 0.0
    %1017 = vmatprep.subr.mxu0 0.0
    %1018 = vmatpush1.msra.mxu0 0.0
    %1019 = vmatprep.subr.mxu0 0.0
    %1020 = vmatpush1.msra.mxu0 0.0
    %1021 = vmatprep.subr.mxu0 0.0
    %1022 = vmatpush1.msra.mxu0 0.0
    %1023 = vmatprep.subr.mxu0 0.0
    %1024 = vmatpush1.msra.mxu0 0.0
    %1025 = vmatprep.subr.mxu0 0.0
    %1026 = vmatpush1.msra.mxu0 0.0
    %1027 = vmatprep.subr.mxu0 0.0
    %1028 = vmatpush1.msra.mxu0 0.0
    %1029 = vmatprep.subr.mxu0 0.0
    %1030 = vmatpush1.msra.mxu0 0.0
    %1031 = vmatprep.subr.mxu0 0.0
    %1032 = vmatpush1.msra.mxu0 0.0
    %1033 = vmatprep.subr.mxu0 0.0
    %1034 = vmatpush1.msra.mxu0 0.0
    %1035 = vmatprep.subr.mxu0 0.0
    %1036 = vmatpush1.msra.mxu0 0.0
    %1037 = vmatprep.subr.mxu0 0.0
    %1038 = vmatpush1.msra.mxu0 0.0
    %1039 = vmatprep.subr.mxu0 0.0
    %1040 = vmatpush1.msra.mxu0 0.0
    %1041 = vmatprep.subr.mxu0 0.0
    %1042 = vmatpush1.msra.mxu0 0.0
    %1043 = vmatprep.subr.mxu0 0.0
    %1044 = vmatpush1.msra.mxu0 0.0
    %1045 = vmatprep.subr.mxu0 0.0
    %1046 = vmatpush1.msra.mxu0 0.0
    %1047 = vmatprep.subr.mxu0 0.0
    %1048 = vmatpush1.msra.mxu0 0.0
    %1049 = vmatprep.subr.mxu0 0.0
    %1050 = vmatpush1.msra.mxu0 0.0
    %1051 = vmatprep.subr.mxu0 0.0
    %1052 = vmatpush1.msra.mxu0 0.0
    %1053 = vmatprep.mubr.f32.mxu0 0.0
    %1054 = vmatmul.mubr.f32.gmra.mrb[0].mxu0 %v505
    %v1055 = vpop.f32.mrb[0].mxu0
    %v1056 = vadd.f32 0.0, %v1055
    %v1057 = vpop.f32.mrb[0].mxu0
    %1058 = vmatprep.mubr.f32.mxu0 0.0
    %1059 = vmatmul.mubr.f32.gmra.mrb[0].mxu0 %v508
    %v1060 = vpop.f32.mrb[0].mxu0
    %v1061 = vadd.f32 0.0, %v1060
    %v1062 = vpop.f32.mrb[0].mxu0
    %1063 = vmatprep.mubr.f32.mxu0 0.0
    %1064 = vmatmul.mubr.f32.gmra.mrb[0].mxu0 %v511
    %v1065 = vpop.f32.mrb[0].mxu0
    %v1066 = vadd.f32 0.0, %v1065
    %v1067 = vpop.f32.mrb[0].mxu0
    %1068 = vdwg.mxu0
    %v1069 = vadd.f32 %v983, %v1056
    %v1070 = vadd.f32 %v984, %v1061
    %v1071 = vadd.f32 %v985, %v1066
    %s1072 = scalar_lea.vmem [#allocation11], 192
    %v1073 = vld [vmem:[%s1072] sm:$0xff]
    %v1074 = vld [vmem:[%s1072 + $0x8] sm:$0xff]
    %v1075 = vld [vmem:[%s1072 + $0x10] sm:$0xff]
    %v1076 = vld [vmem:[%s1072 + $0x18] sm:$0xff]
    %v1077 = vld [vmem:[%s1072 + $0x20] sm:$0xff]
    %v1078 = vld [vmem:[%s1072 + $0x28] sm:$0xff]
    %v1079 = vld [vmem:[%s1072 + $0x30] sm:$0xff]
    %v1080 = vld [vmem:[%s1072 + $0x38] sm:$0xff]
    %v1081 = vld [vmem:[%s1072 + $0x40] sm:$0xff]
    %v1082 = vld [vmem:[%s1072 + $0x48] sm:$0xff]
    %v1083 = vld [vmem:[%s1072 + $0x50] sm:$0xff]
    %v1084 = vld [vmem:[%s1072 + $0x58] sm:$0xff]
    %v1086 = vsel %vm320, %v1069, 0
    %v1089 = vsel %vm320, %v1070, 0
    %v1092 = vsel %vm320, %v1071, 0
    %1094 = vmatprep.subr.mxu0 %v1074
    %1095 = vmatpush1.msra.mxu0 %v1073
    %1096 = vmatprep.subr.mxu0 %v1077
    %1097 = vmatpush1.msra.mxu0 %v1076
    %1098 = vmatprep.subr.mxu0 %v1080
    %1099 = vmatpush1.msra.mxu0 %v1079
    %1100 = vmatprep.subr.mxu0 %v1083
    %1101 = vmatpush1.msra.mxu0 %v1082
    %1102 = vmatprep.subr.mxu0 0.0
    %1103 = vmatpush1.msra.mxu0 0.0
    %1104 = vmatprep.subr.mxu0 0.0
    %1105 = vmatpush1.msra.mxu0 0.0
    %1106 = vmatprep.subr.mxu0 0.0
    %1107 = vmatpush1.msra.mxu0 0.0
    %1108 = vmatprep.subr.mxu0 0.0
    %1109 = vmatpush1.msra.mxu0 0.0
    %1110 = vmatprep.subr.mxu0 0.0
    %1111 = vmatpush1.msra.mxu0 0.0
    %1112 = vmatprep.subr.mxu0 0.0
    %1113 = vmatpush1.msra.mxu0 0.0
    %1114 = vmatprep.subr.mxu0 0.0
    %1115 = vmatpush1.msra.mxu0 0.0
    %1116 = vmatprep.subr.mxu0 0.0
    %1117 = vmatpush1.msra.mxu0 0.0
    %1118 = vmatprep.subr.mxu0 0.0
    %1119 = vmatpush1.msra.mxu0 0.0
    %1120 = vmatprep.subr.mxu0 0.0
    %1121 = vmatpush1.msra.mxu0 0.0
    %1122 = vmatprep.subr.mxu0 0.0
    %1123 = vmatpush1.msra.mxu0 0.0
    %1124 = vmatprep.subr.mxu0 0.0
    %1125 = vmatpush1.msra.mxu0 0.0
    %1126 = vmatprep.subr.mxu0 0.0
    %1127 = vmatpush1.msra.mxu0 0.0
    %1128 = vmatprep.subr.mxu0 0.0
    %1129 = vmatpush1.msra.mxu0 0.0
    %1130 = vmatprep.subr.mxu0 0.0
    %1131 = vmatpush1.msra.mxu0 0.0
    %1132 = vmatprep.subr.mxu0 0.0
    %1133 = vmatpush1.msra.mxu0 0.0
    %1134 = vmatprep.subr.mxu0 0.0
    %1135 = vmatpush1.msra.mxu0 0.0
    %1136 = vmatprep.subr.mxu0 0.0
    %1137 = vmatpush1.msra.mxu0 0.0
    %1138 = vmatprep.subr.mxu0 0.0
    %1139 = vmatpush1.msra.mxu0 0.0
    %1140 = vmatprep.subr.mxu0 0.0
    %1141 = vmatpush1.msra.mxu0 0.0
    %1142 = vmatprep.subr.mxu0 0.0
    %1143 = vmatpush1.msra.mxu0 0.0
    %1144 = vmatprep.subr.mxu0 0.0
    %1145 = vmatpush1.msra.mxu0 0.0
    %1146 = vmatprep.subr.mxu0 0.0
    %1147 = vmatpush1.msra.mxu0 0.0
    %1148 = vmatprep.subr.mxu0 0.0
    %1149 = vmatpush1.msra.mxu0 0.0
    %1150 = vmatprep.subr.mxu0 0.0
    %1151 = vmatpush1.msra.mxu0 0.0
    %1152 = vmatprep.subr.mxu0 0.0
    %1153 = vmatpush1.msra.mxu0 0.0
    %1154 = vmatprep.subr.mxu0 0.0
    %1155 = vmatpush1.msra.mxu0 0.0
    %1156 = vmatprep.subr.mxu0 0.0
    %1157 = vmatpush1.msra.mxu0 0.0
    %1158 = vmatprep.mubr.f32.mxu0 0.0
    %1159 = vmatmul.mubr.f32.gmra.mrb[0].mxu0 %v1086
    %v1160 = vpop.f32.mrb[0].mxu0
    %v1161 = vadd.f32 0.0, %v1160
    %v1162 = vpop.f32.mrb[0].mxu0
    %v1163 = vadd.f32 0.0, %v1162
    %1164 = vmatprep.mubr.f32.mxu0 0.0
    %1165 = vmatmul.mubr.f32.gmra.mrb[0].mxu0 %v1089
    %v1166 = vpop.f32.mrb[0].mxu0
    %v1167 = vadd.f32 0.0, %v1166
    %v1168 = vpop.f32.mrb[0].mxu0
    %v1169 = vadd.f32 0.0, %v1168
    %1170 = vmatprep.mubr.f32.mxu0 0.0
    %1171 = vmatmul.mubr.f32.gmra.mrb[0].mxu0 %v1092
    %v1172 = vpop.f32.mrb[0].mxu0
    %v1173 = vadd.f32 0.0, %v1172
    %v1174 = vpop.f32.mrb[0].mxu0
    %v1175 = vadd.f32 0.0, %v1174
    %1176 = vdwg.mxu0
    %1177 = vmatprep.subr.mxu0 0.0
    %1178 = vmatpush1.msra.mxu0 %v1075
    %1179 = vmatprep.subr.mxu0 0.0
    %1180 = vmatpush1.msra.mxu0 %v1078
    %1181 = vmatprep.subr.mxu0 0.0
    %1182 = vmatpush1.msra.mxu0 %v1081
    %1183 = vmatprep.subr.mxu0 0.0
    %1184 = vmatpush1.msra.mxu0 %v1084
    %1185 = vmatprep.subr.mxu0 0.0
    %1186 = vmatpush1.msra.mxu0 0.0
    %1187 = vmatprep.subr.mxu0 0.0
    %1188 = vmatpush1.msra.mxu0 0.0
    %1189 = vmatprep.subr.mxu0 0.0
    %1190 = vmatpush1.msra.mxu0 0.0
    %1191 = vmatprep.subr.mxu0 0.0
    %1192 = vmatpush1.msra.mxu0 0.0
    %1193 = vmatprep.subr.mxu0 0.0
    %1194 = vmatpush1.msra.mxu0 0.0
    %1195 = vmatprep.subr.mxu0 0.0
    %1196 = vmatpush1.msra.mxu0 0.0
    %1197 = vmatprep.subr.mxu0 0.0
    %1198 = vmatpush1.msra.mxu0 0.0
    %1199 = vmatprep.subr.mxu0 0.0
    %1200 = vmatpush1.msra.mxu0 0.0
    %1201 = vmatprep.subr.mxu0 0.0
    %1202 = vmatpush1.msra.mxu0 0.0
    %1203 = vmatprep.subr.mxu0 0.0
    %1204 = vmatpush1.msra.mxu0 0.0
    %1205 = vmatprep.subr.mxu0 0.0
    %1206 = vmatpush1.msra.mxu0 0.0
    %1207 = vmatprep.subr.mxu0 0.0
    %1208 = vmatpush1.msra.mxu0 0.0
    %1209 = vmatprep.subr.mxu0 0.0
    %1210 = vmatpush1.msra.mxu0 0.0
    %1211 = vmatprep.subr.mxu0 0.0
    %1212 = vmatpush1.msra.mxu0 0.0
    %1213 = vmatprep.subr.mxu0 0.0
    %1214 = vmatpush1.msra.mxu0 0.0
    %1215 = vmatprep.subr.mxu0 0.0
    %1216 = vmatpush1.msra.mxu0 0.0
    %1217 = vmatprep.subr.mxu0 0.0
    %1218 = vmatpush1.msra.mxu0 0.0
    %1219 = vmatprep.subr.mxu0 0.0
    %1220 = vmatpush1.msra.mxu0 0.0
    %1221 = vmatprep.subr.mxu0 0.0
    %1222 = vmatpush1.msra.mxu0 0.0
    %1223 = vmatprep.subr.mxu0 0.0
    %1224 = vmatpush1.msra.mxu0 0.0
    %1225 = vmatprep.subr.mxu0 0.0
    %1226 = vmatpush1.msra.mxu0 0.0
    %1227 = vmatprep.subr.mxu0 0.0
    %1228 = vmatpush1.msra.mxu0 0.0
    %1229 = vmatprep.subr.mxu0 0.0
    %1230 = vmatpush1.msra.mxu0 0.0
    %1231 = vmatprep.subr.mxu0 0.0
    %1232 = vmatpush1.msra.mxu0 0.0
    %1233 = vmatprep.subr.mxu0 0.0
    %1234 = vmatpush1.msra.mxu0 0.0
    %1235 = vmatprep.subr.mxu0 0.0
    %1236 = vmatpush1.msra.mxu0 0.0
    %1237 = vmatprep.subr.mxu0 0.0
    %1238 = vmatpush1.msra.mxu0 0.0
    %1239 = vmatprep.subr.mxu0 0.0
    %1240 = vmatpush1.msra.mxu0 0.0
    %1241 = vmatprep.mubr.f32.mxu0 0.0
    %1242 = vmatmul.mubr.f32.gmra.mrb[0].mxu0 %v1086
    %v1243 = vpop.f32.mrb[0].mxu0
    %v1244 = vadd.f32 0.0, %v1243
    %v1245 = vpop.f32.mrb[0].mxu0
    %1246 = vmatprep.mubr.f32.mxu0 0.0
    %1247 = vmatmul.mubr.f32.gmra.mrb[0].mxu0 %v1089
    %v1248 = vpop.f32.mrb[0].mxu0
    %v1249 = vadd.f32 0.0, %v1248
    %v1250 = vpop.f32.mrb[0].mxu0
    %1251 = vmatprep.mubr.f32.mxu0 0.0
    %1252 = vmatmul.mubr.f32.gmra.mrb[0].mxu0 %v1092
    %v1253 = vpop.f32.mrb[0].mxu0
    %v1254 = vadd.f32 0.0, %v1253
    %v1255 = vpop.f32.mrb[0].mxu0
    %1256 = vdwg.mxu0
    %s1257 = scalar_lea.vmem [#allocation13], 2
    %v1258 = vld [vmem:[%s1257] sm:$0x1]
    %v1260 = vlaneseq
    %v1261 = vshrl.u32 %v1260, 7
    %v1262 = vsub.s32 0, %v1261
    %v1263 = vrot.slane %v1258, %v1262
    %v1265 = vadd.f32 %v1244, %v1263
    %v1266 = vadd.f32 %v1249, %v1263
    %v1267 = vadd.f32 %v1254, %v1263
    %v1269 = vsel %vm503, %v305, 0
    %v1272 = vsel %vm503, %v306, 0
    %v1275 = vsel %vm503, %v307, 0
    %v1278 = vsel %vm513, %v1175, 0
    %1280 = vmatprep.subr.mxu0 0.0
    %1281 = vmatpush1.msra.mxu0 %v1163
    %1282 = vmatprep.subr.mxu0 0.0
    %1283 = vmatpush1.msra.mxu0 %v1169
    %1284 = vmatprep.subr.mxu0 0.0
    %1285 = vmatpush1.msra.mxu0 %v1278
    %1286 = vmatprep.subr.mxu0 0.0
    %1287 = vmatpush1.msra.mxu0 0.0
    %1288 = vmatprep.subr.mxu0 0.0
    %1289 = vmatpush1.msra.mxu0 0.0
    %1290 = vmatprep.subr.mxu0 0.0
    %1291 = vmatpush1.msra.mxu0 0.0
    %1292 = vmatprep.subr.mxu0 0.0
    %1293 = vmatpush1.msra.mxu0 0.0
    %1294 = vmatprep.subr.mxu0 0.0
    %1295 = vmatpush1.msra.mxu0 0.0
    %1296 = vmatprep.subr.mxu0 0.0
    %1297 = vmatpush1.msra.mxu0 0.0
    %1298 = vmatprep.subr.mxu0 0.0
    %1299 = vmatpush1.msra.mxu0 0.0
    %1300 = vmatprep.subr.mxu0 0.0
    %1301 = vmatpush1.msra.mxu0 0.0
    %1302 = vmatprep.subr.mxu0 0.0
    %1303 = vmatpush1.msra.mxu0 0.0
    %1304 = vmatprep.subr.mxu0 0.0
    %1305 = vmatpush1.msra.mxu0 0.0
    %1306 = vmatprep.subr.mxu0 0.0
    %1307 = vmatpush1.msra.mxu0 0.0
    %1308 = vmatprep.subr.mxu0 0.0
    %1309 = vmatpush1.msra.mxu0 0.0
    %1310 = vmatprep.subr.mxu0 0.0
    %1311 = vmatpush1.msra.mxu0 0.0
    %1312 = vmatprep.subr.mxu0 0.0
    %1313 = vmatpush1.msra.mxu0 0.0
    %1314 = vmatprep.subr.mxu0 0.0
    %1315 = vmatpush1.msra.mxu0 0.0
    %1316 = vmatprep.subr.mxu0 0.0
    %1317 = vmatpush1.msra.mxu0 0.0
    %1318 = vmatprep.subr.mxu0 0.0
    %1319 = vmatpush1.msra.mxu0 0.0
    %1320 = vmatprep.subr.mxu0 0.0
    %1321 = vmatpush1.msra.mxu0 0.0
    %1322 = vmatprep.subr.mxu0 0.0
    %1323 = vmatpush1.msra.mxu0 0.0
    %1324 = vmatprep.subr.mxu0 0.0
    %1325 = vmatpush1.msra.mxu0 0.0
    %1326 = vmatprep.subr.mxu0 0.0
    %1327 = vmatpush1.msra.mxu0 0.0
    %1328 = vmatprep.subr.mxu0 0.0
    %1329 = vmatpush1.msra.mxu0 0.0
    %1330 = vmatprep.subr.mxu0 0.0
    %1331 = vmatpush1.msra.mxu0 0.0
    %1332 = vmatprep.subr.mxu0 0.0
    %1333 = vmatpush1.msra.mxu0 0.0
    %1334 = vmatprep.subr.mxu0 0.0
    %1335 = vmatpush1.msra.mxu0 0.0
    %1336 = vmatprep.subr.mxu0 0.0
    %1337 = vmatpush1.msra.mxu0 0.0
    %1338 = vmatprep.subr.mxu0 0.0
    %1339 = vmatpush1.msra.mxu0 0.0
    %1340 = vmatprep.subr.mxu0 0.0
    %1341 = vmatpush1.msra.mxu0 0.0
    %1342 = vmatprep.subr.mxu0 0.0
    %1343 = vmatpush1.msra.mxu0 0.0
    %1344 = vmatprep.mubr.f32.mxu0 0.0
    %1345 = vmatmul.mubr.f32.gmra.mrb[0].mxu0 %v1269
    %v1346 = vpop.f32.mrb[0].mxu0
    %v1347 = vadd.f32 0.0, %v1346
    %v1348 = vpop.f32.mrb[0].mxu0
    %1349 = vmatprep.mubr.f32.mxu0 0.0
    %1350 = vmatmul.mubr.f32.gmra.mrb[0].mxu0 %v1272
    %v1351 = vpop.f32.mrb[0].mxu0
    %v1352 = vadd.f32 0.0, %v1351
    %v1353 = vpop.f32.mrb[0].mxu0
    %1354 = vmatprep.mubr.f32.mxu0 0.0
    %1355 = vmatmul.mubr.f32.gmra.mrb[0].mxu0 %v1275
    %v1356 = vpop.f32.mrb[0].mxu0
    %v1357 = vadd.f32 0.0, %v1356
    %v1358 = vpop.f32.mrb[0].mxu0
    %1359 = vdwg.mxu0
    %v1360 = vadd.f32 %v1265, %v1347
    %v1361 = vadd.f32 %v1266, %v1352
    %v1362 = vadd.f32 %v1267, %v1357
    %v1364 = vsel %vm513, %v1173, 0
    %1366 = vmatprep.subr.mxu0 0.0
    %1367 = vmatpush1.msra.mxu0 %v1161
    %1368 = vmatprep.subr.mxu0 0.0
    %1369 = vmatpush1.msra.mxu0 %v1167
    %1370 = vmatprep.subr.mxu0 0.0
    %1371 = vmatpush1.msra.mxu0 %v1364
    %1372 = vmatprep.subr.mxu0 0.0
    %1373 = vmatpush1.msra.mxu0 0.0
    %1374 = vmatprep.subr.mxu0 0.0
    %1375 = vmatpush1.msra.mxu0 0.0
    %1376 = vmatprep.subr.mxu0 0.0
    %1377 = vmatpush1.msra.mxu0 0.0
    %1378 = vmatprep.subr.mxu0 0.0
    %1379 = vmatpush1.msra.mxu0 0.0
    %1380 = vmatprep.subr.mxu0 0.0
    %1381 = vmatpush1.msra.mxu0 0.0
    %1382 = vmatprep.subr.mxu0 0.0
    %1383 = vmatpush1.msra.mxu0 0.0
    %1384 = vmatprep.subr.mxu0 0.0
    %1385 = vmatpush1.msra.mxu0 0.0
    %1386 = vmatprep.subr.mxu0 0.0
    %1387 = vmatpush1.msra.mxu0 0.0
    %1388 = vmatprep.subr.mxu0 0.0
    %1389 = vmatpush1.msra.mxu0 0.0
    %1390 = vmatprep.subr.mxu0 0.0
    %1391 = vmatpush1.msra.mxu0 0.0
    %1392 = vmatprep.subr.mxu0 0.0
    %1393 = vmatpush1.msra.mxu0 0.0
    %1394 = vmatprep.subr.mxu0 0.0
    %1395 = vmatpush1.msra.mxu0 0.0
    %1396 = vmatprep.subr.mxu0 0.0
    %1397 = vmatpush1.msra.mxu0 0.0
    %1398 = vmatprep.subr.mxu0 0.0
    %1399 = vmatpush1.msra.mxu0 0.0
    %1400 = vmatprep.subr.mxu0 0.0
    %1401 = vmatpush1.msra.mxu0 0.0
    %1402 = vmatprep.subr.mxu0 0.0
    %1403 = vmatpush1.msra.mxu0 0.0
    %1404 = vmatprep.subr.mxu0 0.0
    %1405 = vmatpush1.msra.mxu0 0.0
    %1406 = vmatprep.subr.mxu0 0.0
    %1407 = vmatpush1.msra.mxu0 0.0
    %1408 = vmatprep.subr.mxu0 0.0
    %1409 = vmatpush1.msra.mxu0 0.0
    %1410 = vmatprep.subr.mxu0 0.0
    %1411 = vmatpush1.msra.mxu0 0.0
    %1412 = vmatprep.subr.mxu0 0.0
    %1413 = vmatpush1.msra.mxu0 0.0
    %1414 = vmatprep.subr.mxu0 0.0
    %1415 = vmatpush1.msra.mxu0 0.0
    %1416 = vmatprep.subr.mxu0 0.0
    %1417 = vmatpush1.msra.mxu0 0.0
    %1418 = vmatprep.subr.mxu0 0.0
    %1419 = vmatpush1.msra.mxu0 0.0
    %1420 = vmatprep.subr.mxu0 0.0
    %1421 = vmatpush1.msra.mxu0 0.0
    %1422 = vmatprep.subr.mxu0 0.0
    %1423 = vmatpush1.msra.mxu0 0.0
    %1424 = vmatprep.subr.mxu0 0.0
    %1425 = vmatpush1.msra.mxu0 0.0
    %1426 = vmatprep.subr.mxu0 0.0
    %1427 = vmatpush1.msra.mxu0 0.0
    %1428 = vmatprep.subr.mxu0 0.0
    %1429 = vmatpush1.msra.mxu0 0.0
    %1430 = vmatprep.mubr.f32.mxu0 0.0
    %1431 = vmatmul.mubr.f32.gmra.mrb[0].mxu0 %v892
    %v1432 = vpop.f32.mrb[0].mxu0
    %v1433 = vadd.f32 0.0, %v1432
    %v1434 = vpop.f32.mrb[0].mxu0
    %1435 = vmatprep.mubr.f32.mxu0 0.0
    %1436 = vmatmul.mubr.f32.gmra.mrb[0].mxu0 %v895
    %v1437 = vpop.f32.mrb[0].mxu0
    %v1438 = vadd.f32 0.0, %v1437
    %v1439 = vpop.f32.mrb[0].mxu0
    %1440 = vmatprep.mubr.f32.mxu0 0.0
    %1441 = vmatmul.mubr.f32.gmra.mrb[0].mxu0 %v898
    %v1442 = vpop.f32.mrb[0].mxu0
    %v1443 = vadd.f32 0.0, %v1442
    %v1444 = vpop.f32.mrb[0].mxu0
    %1445 = vdwg.mxu0
    %v1446 = vadd.f32 %v1360, %v1433
    %v1447 = vadd.f32 %v1361, %v1438
    %v1448 = vadd.f32 %v1362, %v1443
    %v1449 = vmax.f32 %v1446, 0.0
    %v1450 = vmax.f32 %v1447, 0.0
    %v1451 = vmax.f32 %v1448, 0.0
    %v1452 = vadd.f32 %v1449, %v293
    %v1453 = vadd.f32 %v1450, %v294
    %v1454 = vadd.f32 %v1451, %v295
    %v1455 = vld [vmem:[#allocation14] sm:$0xff]
    %v1456 = vld [vmem:[#allocation14 + $0x8] sm:$0xff]
    %v1457 = vld [vmem:[#allocation14 + $0x10] sm:$0xff]
    %v1458 = vld [vmem:[#allocation14 + $0x18] sm:$0xff]
    %v1459 = vld [vmem:[#allocation14 + $0x20] sm:$0xff]
    %v1460 = vld [vmem:[#allocation14 + $0x28] sm:$0xff]
    %v1461 = vld [vmem:[#allocation14 + $0x30] sm:$0xff]
    %v1462 = vld [vmem:[#allocation14 + $0x38] sm:$0xff]
    %v1463 = vld [vmem:[#allocation14 + $0x40] sm:$0xff]
    %v1464 = vld [vmem:[#allocation14 + $0x48] sm:$0xff]
    %v1465 = vld [vmem:[#allocation14 + $0x50] sm:$0xff]
    %v1466 = vld [vmem:[#allocation14 + $0x58] sm:$0xff]
    %1467 = vmatprep.subr.mxu0 %v1456
    %1468 = vmatpush1.msra.mxu0 %v1455
    %1469 = vmatprep.subr.mxu0 %v1459
    %1470 = vmatpush1.msra.mxu0 %v1458
    %1471 = vmatprep.subr.mxu0 %v1462
    %1472 = vmatpush1.msra.mxu0 %v1461
    %1473 = vmatprep.subr.mxu0 %v1465
    %1474 = vmatpush1.msra.mxu0 %v1464
    %1475 = vmatprep.subr.mxu0 0.0
    %1476 = vmatpush1.msra.mxu0 0.0
    %1477 = vmatprep.subr.mxu0 0.0
    %1478 = vmatpush1.msra.mxu0 0.0
    %1479 = vmatprep.subr.mxu0 0.0
    %1480 = vmatpush1.msra.mxu0 0.0
    %1481 = vmatprep.subr.mxu0 0.0
    %1482 = vmatpush1.msra.mxu0 0.0
    %1483 = vmatprep.subr.mxu0 0.0
    %1484 = vmatpush1.msra.mxu0 0.0
    %1485 = vmatprep.subr.mxu0 0.0
    %1486 = vmatpush1.msra.mxu0 0.0
    %1487 = vmatprep.subr.mxu0 0.0
    %1488 = vmatpush1.msra.mxu0 0.0
    %1489 = vmatprep.subr.mxu0 0.0
    %1490 = vmatpush1.msra.mxu0 0.0
    %1491 = vmatprep.subr.mxu0 0.0
    %1492 = vmatpush1.msra.mxu0 0.0
    %1493 = vmatprep.subr.mxu0 0.0
    %1494 = vmatpush1.msra.mxu0 0.0
    %1495 = vmatprep.subr.mxu0 0.0
    %1496 = vmatpush1.msra.mxu0 0.0
    %1497 = vmatprep.subr.mxu0 0.0
    %1498 = vmatpush1.msra.mxu0 0.0
    %1499 = vmatprep.subr.mxu0 0.0
    %1500 = vmatpush1.msra.mxu0 0.0
    %1501 = vmatprep.subr.mxu0 0.0
    %1502 = vmatpush1.msra.mxu0 0.0
    %1503 = vmatprep.subr.mxu0 0.0
    %1504 = vmatpush1.msra.mxu0 0.0
    %1505 = vmatprep.subr.mxu0 0.0
    %1506 = vmatpush1.msra.mxu0 0.0
    %1507 = vmatprep.subr.mxu0 0.0
    %1508 = vmatpush1.msra.mxu0 0.0
    %1509 = vmatprep.subr.mxu0 0.0
    %1510 = vmatpush1.msra.mxu0 0.0
    %1511 = vmatprep.subr.mxu0 0.0
    %1512 = vmatpush1.msra.mxu0 0.0
    %1513 = vmatprep.subr.mxu0 0.0
    %1514 = vmatpush1.msra.mxu0 0.0
    %1515 = vmatprep.subr.mxu0 0.0
    %1516 = vmatpush1.msra.mxu0 0.0
    %1517 = vmatprep.subr.mxu0 0.0
    %1518 = vmatpush1.msra.mxu0 0.0
    %1519 = vmatprep.subr.mxu0 0.0
    %1520 = vmatpush1.msra.mxu0 0.0
    %1521 = vmatprep.subr.mxu0 0.0
    %1522 = vmatpush1.msra.mxu0 0.0
    %1523 = vmatprep.subr.mxu0 0.0
    %1524 = vmatpush1.msra.mxu0 0.0
    %1525 = vmatprep.subr.mxu0 0.0
    %1526 = vmatpush1.msra.mxu0 0.0
    %1527 = vmatprep.subr.mxu0 0.0
    %1528 = vmatpush1.msra.mxu0 0.0
    %1529 = vmatprep.subr.mxu0 0.0
    %1530 = vmatpush1.msra.mxu0 0.0
    %1531 = vmatprep.mubr.f32.mxu0 0.0
    %1532 = vmatmul.mubr.f32.gmra.mrb[0].mxu0 %v322
    %v1533 = vpop.f32.mrb[0].mxu0
    %v1534 = vadd.f32 0.0, %v1533
    %v1535 = vpop.f32.mrb[0].mxu0
    %v1536 = vadd.f32 0.0, %v1535
    %1537 = vmatprep.mubr.f32.mxu0 0.0
    %1538 = vmatmul.mubr.f32.gmra.mrb[0].mxu0 %v325
    %v1539 = vpop.f32.mrb[0].mxu0
    %v1540 = vadd.f32 0.0, %v1539
    %v1541 = vpop.f32.mrb[0].mxu0
    %v1542 = vadd.f32 0.0, %v1541
    %1543 = vmatprep.mubr.f32.mxu0 0.0
    %1544 = vmatmul.mubr.f32.gmra.mrb[0].mxu0 %v328
    %v1545 = vpop.f32.mrb[0].mxu0
    %v1546 = vadd.f32 0.0, %v1545
    %v1547 = vpop.f32.mrb[0].mxu0
    %v1548 = vadd.f32 0.0, %v1547
    %1549 = vdwg.mxu0
    %1550 = vmatprep.subr.mxu0 0.0
    %1551 = vmatpush1.msra.mxu0 %v1457
    %1552 = vmatprep.subr.mxu0 0.0
    %1553 = vmatpush1.msra.mxu0 %v1460
    %1554 = vmatprep.subr.mxu0 0.0
    %1555 = vmatpush1.msra.mxu0 %v1463
    %1556 = vmatprep.subr.mxu0 0.0
    %1557 = vmatpush1.msra.mxu0 %v1466
    %1558 = vmatprep.subr.mxu0 0.0
    %1559 = vmatpush1.msra.mxu0 0.0
    %1560 = vmatprep.subr.mxu0 0.0
    %1561 = vmatpush1.msra.mxu0 0.0
    %1562 = vmatprep.subr.mxu0 0.0
    %1563 = vmatpush1.msra.mxu0 0.0
    %1564 = vmatprep.subr.mxu0 0.0
    %1565 = vmatpush1.msra.mxu0 0.0
    %1566 = vmatprep.subr.mxu0 0.0
    %1567 = vmatpush1.msra.mxu0 0.0
    %1568 = vmatprep.subr.mxu0 0.0
    %1569 = vmatpush1.msra.mxu0 0.0
    %1570 = vmatprep.subr.mxu0 0.0
    %1571 = vmatpush1.msra.mxu0 0.0
    %1572 = vmatprep.subr.mxu0 0.0
    %1573 = vmatpush1.msra.mxu0 0.0
    %1574 = vmatprep.subr.mxu0 0.0
    %1575 = vmatpush1.msra.mxu0 0.0
    %1576 = vmatprep.subr.mxu0 0.0
    %1577 = vmatpush1.msra.mxu0 0.0
    %1578 = vmatprep.subr.mxu0 0.0
    %1579 = vmatpush1.msra.mxu0 0.0
    %1580 = vmatprep.subr.mxu0 0.0
    %1581 = vmatpush1.msra.mxu0 0.0
    %1582 = vmatprep.subr.mxu0 0.0
    %1583 = vmatpush1.msra.mxu0 0.0
    %1584 = vmatprep.subr.mxu0 0.0
    %1585 = vmatpush1.msra.mxu0 0.0
    %1586 = vmatprep.subr.mxu0 0.0
    %1587 = vmatpush1.msra.mxu0 0.0
    %1588 = vmatprep.subr.mxu0 0.0
    %1589 = vmatpush1.msra.mxu0 0.0
    %1590 = vmatprep.subr.mxu0 0.0
    %1591 = vmatpush1.msra.mxu0 0.0
    %1592 = vmatprep.subr.mxu0 0.0
    %1593 = vmatpush1.msra.mxu0 0.0
    %1594 = vmatprep.subr.mxu0 0.0
    %1595 = vmatpush1.msra.mxu0 0.0
    %1596 = vmatprep.subr.mxu0 0.0
    %1597 = vmatpush1.msra.mxu0 0.0
    %1598 = vmatprep.subr.mxu0 0.0
    %1599 = vmatpush1.msra.mxu0 0.0
    %1600 = vmatprep.subr.mxu0 0.0
    %1601 = vmatpush1.msra.mxu0 0.0
    %1602 = vmatprep.subr.mxu0 0.0
    %1603 = vmatpush1.msra.mxu0 0.0
    %1604 = vmatprep.subr.mxu0 0.0
    %1605 = vmatpush1.msra.mxu0 0.0
    %1606 = vmatprep.subr.mxu0 0.0
    %1607 = vmatpush1.msra.mxu0 0.0
    %1608 = vmatprep.subr.mxu0 0.0
    %1609 = vmatpush1.msra.mxu0 0.0
    %1610 = vmatprep.subr.mxu0 0.0
    %1611 = vmatpush1.msra.mxu0 0.0
    %1612 = vmatprep.subr.mxu0 0.0
    %1613 = vmatpush1.msra.mxu0 0.0
    %1614 = vmatprep.mubr.f32.mxu0 0.0
    %1615 = vmatmul.mubr.f32.gmra.mrb[0].mxu0 %v322
    %v1616 = vpop.f32.mrb[0].mxu0
    %v1617 = vadd.f32 0.0, %v1616
    %v1618 = vpop.f32.mrb[0].mxu0
    %1619 = vmatprep.mubr.f32.mxu0 0.0
    %1620 = vmatmul.mubr.f32.gmra.mrb[0].mxu0 %v325
    %v1621 = vpop.f32.mrb[0].mxu0
    %v1622 = vadd.f32 0.0, %v1621
    %v1623 = vpop.f32.mrb[0].mxu0
    %1624 = vmatprep.mubr.f32.mxu0 0.0
    %1625 = vmatmul.mubr.f32.gmra.mrb[0].mxu0 %v328
    %v1626 = vpop.f32.mrb[0].mxu0
    %v1627 = vadd.f32 0.0, %v1626
    %v1628 = vpop.f32.mrb[0].mxu0
    %1629 = vdwg.mxu0
    %v1630 = vld [vmem:[#allocation16] sm:$0x1]
    %v1632 = vlaneseq
    %v1633 = vshrl.u32 %v1632, 7
    %v1634 = vsub.s32 0, %v1633
    %v1635 = vrot.slane %v1630, %v1634
    %v1637 = vadd.f32 %v1617, %v1635
    %v1638 = vadd.f32 %v1622, %v1635
    %v1639 = vadd.f32 %v1627, %v1635
    %v1641 = vsel %vm513, %v1548, 0
    %1643 = vmatprep.subr.mxu0 0.0
    %1644 = vmatpush1.msra.mxu0 %v1536
    %1645 = vmatprep.subr.mxu0 0.0
    %1646 = vmatpush1.msra.mxu0 %v1542
    %1647 = vmatprep.subr.mxu0 0.0
    %1648 = vmatpush1.msra.mxu0 %v1641
    %1649 = vmatprep.subr.mxu0 0.0
    %1650 = vmatpush1.msra.mxu0 0.0
    %1651 = vmatprep.subr.mxu0 0.0
    %1652 = vmatpush1.msra.mxu0 0.0
    %1653 = vmatprep.subr.mxu0 0.0
    %1654 = vmatpush1.msra.mxu0 0.0
    %1655 = vmatprep.subr.mxu0 0.0
    %1656 = vmatpush1.msra.mxu0 0.0
    %1657 = vmatprep.subr.mxu0 0.0
    %1658 = vmatpush1.msra.mxu0 0.0
    %1659 = vmatprep.subr.mxu0 0.0
    %1660 = vmatpush1.msra.mxu0 0.0
    %1661 = vmatprep.subr.mxu0 0.0
    %1662 = vmatpush1.msra.mxu0 0.0
    %1663 = vmatprep.subr.mxu0 0.0
    %1664 = vmatpush1.msra.mxu0 0.0
    %1665 = vmatprep.subr.mxu0 0.0
    %1666 = vmatpush1.msra.mxu0 0.0
    %1667 = vmatprep.subr.mxu0 0.0
    %1668 = vmatpush1.msra.mxu0 0.0
    %1669 = vmatprep.subr.mxu0 0.0
    %1670 = vmatpush1.msra.mxu0 0.0
    %1671 = vmatprep.subr.mxu0 0.0
    %1672 = vmatpush1.msra.mxu0 0.0
    %1673 = vmatprep.subr.mxu0 0.0
    %1674 = vmatpush1.msra.mxu0 0.0
    %1675 = vmatprep.subr.mxu0 0.0
    %1676 = vmatpush1.msra.mxu0 0.0
    %1677 = vmatprep.subr.mxu0 0.0
    %1678 = vmatpush1.msra.mxu0 0.0
    %1679 = vmatprep.subr.mxu0 0.0
    %1680 = vmatpush1.msra.mxu0 0.0
    %1681 = vmatprep.subr.mxu0 0.0
    %1682 = vmatpush1.msra.mxu0 0.0
    %1683 = vmatprep.subr.mxu0 0.0
    %1684 = vmatpush1.msra.mxu0 0.0
    %1685 = vmatprep.subr.mxu0 0.0
    %1686 = vmatpush1.msra.mxu0 0.0
    %1687 = vmatprep.subr.mxu0 0.0
    %1688 = vmatpush1.msra.mxu0 0.0
    %1689 = vmatprep.subr.mxu0 0.0
    %1690 = vmatpush1.msra.mxu0 0.0
    %1691 = vmatprep.subr.mxu0 0.0
    %1692 = vmatpush1.msra.mxu0 0.0
    %1693 = vmatprep.subr.mxu0 0.0
    %1694 = vmatpush1.msra.mxu0 0.0
    %1695 = vmatprep.subr.mxu0 0.0
    %1696 = vmatpush1.msra.mxu0 0.0
    %1697 = vmatprep.subr.mxu0 0.0
    %1698 = vmatpush1.msra.mxu0 0.0
    %1699 = vmatprep.subr.mxu0 0.0
    %1700 = vmatpush1.msra.mxu0 0.0
    %1701 = vmatprep.subr.mxu0 0.0
    %1702 = vmatpush1.msra.mxu0 0.0
    %1703 = vmatprep.subr.mxu0 0.0
    %1704 = vmatpush1.msra.mxu0 0.0
    %1705 = vmatprep.subr.mxu0 0.0
    %1706 = vmatpush1.msra.mxu0 0.0
    %1707 = vmatprep.mubr.f32.mxu0 0.0
    %1708 = vmatmul.mubr.f32.gmra.mrb[0].mxu0 %v1269
    %v1709 = vpop.f32.mrb[0].mxu0
    %v1710 = vadd.f32 0.0, %v1709
    %v1711 = vpop.f32.mrb[0].mxu0
    %1712 = vmatprep.mubr.f32.mxu0 0.0
    %1713 = vmatmul.mubr.f32.gmra.mrb[0].mxu0 %v1272
    %v1714 = vpop.f32.mrb[0].mxu0
    %v1715 = vadd.f32 0.0, %v1714
    %v1716 = vpop.f32.mrb[0].mxu0
    %1717 = vmatprep.mubr.f32.mxu0 0.0
    %1718 = vmatmul.mubr.f32.gmra.mrb[0].mxu0 %v1275
    %v1719 = vpop.f32.mrb[0].mxu0
    %v1720 = vadd.f32 0.0, %v1719
    %v1721 = vpop.f32.mrb[0].mxu0
    %1722 = vdwg.mxu0
    %v1723 = vadd.f32 %v1637, %v1710
    %v1724 = vadd.f32 %v1638, %v1715
    %v1725 = vadd.f32 %v1639, %v1720
    %v1727 = vsel %vm513, %v1546, 0
    %1729 = vmatprep.subr.mxu0 0.0
    %1730 = vmatpush1.msra.mxu0 %v1534
    %1731 = vmatprep.subr.mxu0 0.0
    %1732 = vmatpush1.msra.mxu0 %v1540
    %1733 = vmatprep.subr.mxu0 0.0
    %1734 = vmatpush1.msra.mxu0 %v1727
    %1735 = vmatprep.subr.mxu0 0.0
    %1736 = vmatpush1.msra.mxu0 0.0
    %1737 = vmatprep.subr.mxu0 0.0
    %1738 = vmatpush1.msra.mxu0 0.0
    %1739 = vmatprep.subr.mxu0 0.0
    %1740 = vmatpush1.msra.mxu0 0.0
    %1741 = vmatprep.subr.mxu0 0.0
    %1742 = vmatpush1.msra.mxu0 0.0
    %1743 = vmatprep.subr.mxu0 0.0
    %1744 = vmatpush1.msra.mxu0 0.0
    %1745 = vmatprep.subr.mxu0 0.0
    %1746 = vmatpush1.msra.mxu0 0.0
    %1747 = vmatprep.subr.mxu0 0.0
    %1748 = vmatpush1.msra.mxu0 0.0
    %1749 = vmatprep.subr.mxu0 0.0
    %1750 = vmatpush1.msra.mxu0 0.0
    %1751 = vmatprep.subr.mxu0 0.0
    %1752 = vmatpush1.msra.mxu0 0.0
    %1753 = vmatprep.subr.mxu0 0.0
    %1754 = vmatpush1.msra.mxu0 0.0
    %1755 = vmatprep.subr.mxu0 0.0
    %1756 = vmatpush1.msra.mxu0 0.0
    %1757 = vmatprep.subr.mxu0 0.0
    %1758 = vmatpush1.msra.mxu0 0.0
    %1759 = vmatprep.subr.mxu0 0.0
    %1760 = vmatpush1.msra.mxu0 0.0
    %1761 = vmatprep.subr.mxu0 0.0
    %1762 = vmatpush1.msra.mxu0 0.0
    %1763 = vmatprep.subr.mxu0 0.0
    %1764 = vmatpush1.msra.mxu0 0.0
    %1765 = vmatprep.subr.mxu0 0.0
    %1766 = vmatpush1.msra.mxu0 0.0
    %1767 = vmatprep.subr.mxu0 0.0
    %1768 = vmatpush1.msra.mxu0 0.0
    %1769 = vmatprep.subr.mxu0 0.0
    %1770 = vmatpush1.msra.mxu0 0.0
    %1771 = vmatprep.subr.mxu0 0.0
    %1772 = vmatpush1.msra.mxu0 0.0
    %1773 = vmatprep.subr.mxu0 0.0
    %1774 = vmatpush1.msra.mxu0 0.0
    %1775 = vmatprep.subr.mxu0 0.0
    %1776 = vmatpush1.msra.mxu0 0.0
    %1777 = vmatprep.subr.mxu0 0.0
    %1778 = vmatpush1.msra.mxu0 0.0
    %1779 = vmatprep.subr.mxu0 0.0
    %1780 = vmatpush1.msra.mxu0 0.0
    %1781 = vmatprep.subr.mxu0 0.0
    %1782 = vmatpush1.msra.mxu0 0.0
    %1783 = vmatprep.subr.mxu0 0.0
    %1784 = vmatpush1.msra.mxu0 0.0
    %1785 = vmatprep.subr.mxu0 0.0
    %1786 = vmatpush1.msra.mxu0 0.0
    %1787 = vmatprep.subr.mxu0 0.0
    %1788 = vmatpush1.msra.mxu0 0.0
    %1789 = vmatprep.subr.mxu0 0.0
    %1790 = vmatpush1.msra.mxu0 0.0
    %1791 = vmatprep.subr.mxu0 0.0
    %1792 = vmatpush1.msra.mxu0 0.0
    %1793 = vmatprep.mubr.f32.mxu0 0.0
    %1794 = vmatmul.mubr.f32.gmra.mrb[0].mxu0 %v892
    %v1795 = vpop.f32.mrb[0].mxu0
    %v1796 = vadd.f32 0.0, %v1795
    %v1797 = vpop.f32.mrb[0].mxu0
    %1798 = vmatprep.mubr.f32.mxu0 0.0
    %1799 = vmatmul.mubr.f32.gmra.mrb[0].mxu0 %v895
    %v1800 = vpop.f32.mrb[0].mxu0
    %v1801 = vadd.f32 0.0, %v1800
    %v1802 = vpop.f32.mrb[0].mxu0
    %1803 = vmatprep.mubr.f32.mxu0 0.0
    %1804 = vmatmul.mubr.f32.gmra.mrb[0].mxu0 %v898
    %v1805 = vpop.f32.mrb[0].mxu0
    %v1806 = vadd.f32 0.0, %v1805
    %v1807 = vpop.f32.mrb[0].mxu0
    %1808 = vdwg.mxu0
    %v1809 = vadd.f32 %v1723, %v1796
    %v1810 = vadd.f32 %v1724, %v1801
    %v1811 = vadd.f32 %v1725, %v1806
    %s1812 = scalar_lea.vmem [#allocation14], 96
    %v1813 = vld [vmem:[%s1812] sm:$0xff]
    %v1814 = vld [vmem:[%s1812 + $0x8] sm:$0xff]
    %v1815 = vld [vmem:[%s1812 + $0x10] sm:$0xff]
    %v1816 = vld [vmem:[%s1812 + $0x18] sm:$0xff]
    %v1817 = vld [vmem:[%s1812 + $0x20] sm:$0xff]
    %v1818 = vld [vmem:[%s1812 + $0x28] sm:$0xff]
    %v1819 = vld [vmem:[%s1812 + $0x30] sm:$0xff]
    %v1820 = vld [vmem:[%s1812 + $0x38] sm:$0xff]
    %v1821 = vld [vmem:[%s1812 + $0x40] sm:$0xff]
    %v1822 = vld [vmem:[%s1812 + $0x48] sm:$0xff]
    %v1823 = vld [vmem:[%s1812 + $0x50] sm:$0xff]
    %v1824 = vld [vmem:[%s1812 + $0x58] sm:$0xff]
    %v1826 = vsel %vm320, %v1809, 0
    %v1829 = vsel %vm320, %v1810, 0
    %v1832 = vsel %vm320, %v1811, 0
    %1834 = vmatprep.subr.mxu0 %v1814
    %1835 = vmatpush1.msra.mxu0 %v1813
    %1836 = vmatprep.subr.mxu0 %v1817
    %1837 = vmatpush1.msra.mxu0 %v1816
    %1838 = vmatprep.subr.mxu0 %v1820
    %1839 = vmatpush1.msra.mxu0 %v1819
    %1840 = vmatprep.subr.mxu0 %v1823
    %1841 = vmatpush1.msra.mxu0 %v1822
    %1842 = vmatprep.subr.mxu0 0.0
    %1843 = vmatpush1.msra.mxu0 0.0
    %1844 = vmatprep.subr.mxu0 0.0
    %1845 = vmatpush1.msra.mxu0 0.0
    %1846 = vmatprep.subr.mxu0 0.0
    %1847 = vmatpush1.msra.mxu0 0.0
    %1848 = vmatprep.subr.mxu0 0.0
    %1849 = vmatpush1.msra.mxu0 0.0
    %1850 = vmatprep.subr.mxu0 0.0
    %1851 = vmatpush1.msra.mxu0 0.0
    %1852 = vmatprep.subr.mxu0 0.0
    %1853 = vmatpush1.msra.mxu0 0.0
    %1854 = vmatprep.subr.mxu0 0.0
    %1855 = vmatpush1.msra.mxu0 0.0
    %1856 = vmatprep.subr.mxu0 0.0
    %1857 = vmatpush1.msra.mxu0 0.0
    %1858 = vmatprep.subr.mxu0 0.0
    %1859 = vmatpush1.msra.mxu0 0.0
    %1860 = vmatprep.subr.mxu0 0.0
    %1861 = vmatpush1.msra.mxu0 0.0
    %1862 = vmatprep.subr.mxu0 0.0
    %1863 = vmatpush1.msra.mxu0 0.0
    %1864 = vmatprep.subr.mxu0 0.0
    %1865 = vmatpush1.msra.mxu0 0.0
    %1866 = vmatprep.subr.mxu0 0.0
    %1867 = vmatpush1.msra.mxu0 0.0
    %1868 = vmatprep.subr.mxu0 0.0
    %1869 = vmatpush1.msra.mxu0 0.0
    %1870 = vmatprep.subr.mxu0 0.0
    %1871 = vmatpush1.msra.mxu0 0.0
    %1872 = vmatprep.subr.mxu0 0.0
    %1873 = vmatpush1.msra.mxu0 0.0
    %1874 = vmatprep.subr.mxu0 0.0
    %1875 = vmatpush1.msra.mxu0 0.0
    %1876 = vmatprep.subr.mxu0 0.0
    %1877 = vmatpush1.msra.mxu0 0.0
    %1878 = vmatprep.subr.mxu0 0.0
    %1879 = vmatpush1.msra.mxu0 0.0
    %1880 = vmatprep.subr.mxu0 0.0
    %1881 = vmatpush1.msra.mxu0 0.0
    %1882 = vmatprep.subr.mxu0 0.0
    %1883 = vmatpush1.msra.mxu0 0.0
    %1884 = vmatprep.subr.mxu0 0.0
    %1885 = vmatpush1.msra.mxu0 0.0
    %1886 = vmatprep.subr.mxu0 0.0
    %1887 = vmatpush1.msra.mxu0 0.0
    %1888 = vmatprep.subr.mxu0 0.0
    %1889 = vmatpush1.msra.mxu0 0.0
    %1890 = vmatprep.subr.mxu0 0.0
    %1891 = vmatpush1.msra.mxu0 0.0
    %1892 = vmatprep.subr.mxu0 0.0
    %1893 = vmatpush1.msra.mxu0 0.0
    %1894 = vmatprep.subr.mxu0 0.0
    %1895 = vmatpush1.msra.mxu0 0.0
    %1896 = vmatprep.subr.mxu0 0.0
    %1897 = vmatpush1.msra.mxu0 0.0
    %1898 = vmatprep.mubr.f32.mxu0 0.0
    %1899 = vmatmul.mubr.f32.gmra.mrb[0].mxu0 %v1826
    %v1900 = vpop.f32.mrb[0].mxu0
    %v1901 = vadd.f32 0.0, %v1900
    %v1902 = vpop.f32.mrb[0].mxu0
    %v1903 = vadd.f32 0.0, %v1902
    %1904 = vmatprep.mubr.f32.mxu0 0.0
    %1905 = vmatmul.mubr.f32.gmra.mrb[0].mxu0 %v1829
    %v1906 = vpop.f32.mrb[0].mxu0
    %v1907 = vadd.f32 0.0, %v1906
    %v1908 = vpop.f32.mrb[0].mxu0
    %v1909 = vadd.f32 0.0, %v1908
    %1910 = vmatprep.mubr.f32.mxu0 0.0
    %1911 = vmatmul.mubr.f32.gmra.mrb[0].mxu0 %v1832
    %v1912 = vpop.f32.mrb[0].mxu0
    %v1913 = vadd.f32 0.0, %v1912
    %v1914 = vpop.f32.mrb[0].mxu0
    %v1915 = vadd.f32 0.0, %v1914
    %1916 = vdwg.mxu0
    %1917 = vmatprep.subr.mxu0 0.0
    %1918 = vmatpush1.msra.mxu0 %v1815
    %1919 = vmatprep.subr.mxu0 0.0
    %1920 = vmatpush1.msra.mxu0 %v1818
    %1921 = vmatprep.subr.mxu0 0.0
    %1922 = vmatpush1.msra.mxu0 %v1821
    %1923 = vmatprep.subr.mxu0 0.0
    %1924 = vmatpush1.msra.mxu0 %v1824
    %1925 = vmatprep.subr.mxu0 0.0
    %1926 = vmatpush1.msra.mxu0 0.0
    %1927 = vmatprep.subr.mxu0 0.0
    %1928 = vmatpush1.msra.mxu0 0.0
    %1929 = vmatprep.subr.mxu0 0.0
    %1930 = vmatpush1.msra.mxu0 0.0
    %1931 = vmatprep.subr.mxu0 0.0
    %1932 = vmatpush1.msra.mxu0 0.0
    %1933 = vmatprep.subr.mxu0 0.0
    %1934 = vmatpush1.msra.mxu0 0.0
    %1935 = vmatprep.subr.mxu0 0.0
    %1936 = vmatpush1.msra.mxu0 0.0
    %1937 = vmatprep.subr.mxu0 0.0
    %1938 = vmatpush1.msra.mxu0 0.0
    %1939 = vmatprep.subr.mxu0 0.0
    %1940 = vmatpush1.msra.mxu0 0.0
    %1941 = vmatprep.subr.mxu0 0.0
    %1942 = vmatpush1.msra.mxu0 0.0
    %1943 = vmatprep.subr.mxu0 0.0
    %1944 = vmatpush1.msra.mxu0 0.0
    %1945 = vmatprep.subr.mxu0 0.0
    %1946 = vmatpush1.msra.mxu0 0.0
    %1947 = vmatprep.subr.mxu0 0.0
    %1948 = vmatpush1.msra.mxu0 0.0
    %1949 = vmatprep.subr.mxu0 0.0
    %1950 = vmatpush1.msra.mxu0 0.0
    %1951 = vmatprep.subr.mxu0 0.0
    %1952 = vmatpush1.msra.mxu0 0.0
    %1953 = vmatprep.subr.mxu0 0.0
    %1954 = vmatpush1.msra.mxu0 0.0
    %1955 = vmatprep.subr.mxu0 0.0
    %1956 = vmatpush1.msra.mxu0 0.0
    %1957 = vmatprep.subr.mxu0 0.0
    %1958 = vmatpush1.msra.mxu0 0.0
    %1959 = vmatprep.subr.mxu0 0.0
    %1960 = vmatpush1.msra.mxu0 0.0
    %1961 = vmatprep.subr.mxu0 0.0
    %1962 = vmatpush1.msra.mxu0 0.0
    %1963 = vmatprep.subr.mxu0 0.0
    %1964 = vmatpush1.msra.mxu0 0.0
    %1965 = vmatprep.subr.mxu0 0.0
    %1966 = vmatpush1.msra.mxu0 0.0
    %1967 = vmatprep.subr.mxu0 0.0
    %1968 = vmatpush1.msra.mxu0 0.0
    %1969 = vmatprep.subr.mxu0 0.0
    %1970 = vmatpush1.msra.mxu0 0.0
    %1971 = vmatprep.subr.mxu0 0.0
    %1972 = vmatpush1.msra.mxu0 0.0
    %1973 = vmatprep.subr.mxu0 0.0
    %1974 = vmatpush1.msra.mxu0 0.0
    %1975 = vmatprep.subr.mxu0 0.0
    %1976 = vmatpush1.msra.mxu0 0.0
    %1977 = vmatprep.subr.mxu0 0.0
    %1978 = vmatpush1.msra.mxu0 0.0
    %1979 = vmatprep.subr.mxu0 0.0
    %1980 = vmatpush1.msra.mxu0 0.0
    %1981 = vmatprep.mubr.f32.mxu0 0.0
    %1982 = vmatmul.mubr.f32.gmra.mrb[0].mxu0 %v1826
    %v1983 = vpop.f32.mrb[0].mxu0
    %v1984 = vadd.f32 0.0, %v1983
    %v1985 = vpop.f32.mrb[0].mxu0
    %1986 = vmatprep.mubr.f32.mxu0 0.0
    %1987 = vmatmul.mubr.f32.gmra.mrb[0].mxu0 %v1829
    %v1988 = vpop.f32.mrb[0].mxu0
    %v1989 = vadd.f32 0.0, %v1988
    %v1990 = vpop.f32.mrb[0].mxu0
    %1991 = vmatprep.mubr.f32.mxu0 0.0
    %1992 = vmatmul.mubr.f32.gmra.mrb[0].mxu0 %v1832
    %v1993 = vpop.f32.mrb[0].mxu0
    %v1994 = vadd.f32 0.0, %v1993
    %v1995 = vpop.f32.mrb[0].mxu0
    %1996 = vdwg.mxu0
    %s1997 = scalar_lea.vmem [#allocation16], 1
    %v1998 = vld [vmem:[%s1997] sm:$0x1]
    %v2000 = vlaneseq
    %v2001 = vshrl.u32 %v2000, 7
    %v2002 = vsub.s32 0, %v2001
    %v2003 = vrot.slane %v1998, %v2002
    %v2005 = vadd.f32 %v1984, %v2003
    %v2006 = vadd.f32 %v1989, %v2003
    %v2007 = vadd.f32 %v1994, %v2003
    %v2009 = vsel %vm513, %v1915, 0
    %2011 = vmatprep.subr.mxu0 0.0
    %2012 = vmatpush1.msra.mxu0 %v1903
    %2013 = vmatprep.subr.mxu0 0.0
    %2014 = vmatpush1.msra.mxu0 %v1909
    %2015 = vmatprep.subr.mxu0 0.0
    %2016 = vmatpush1.msra.mxu0 %v2009
    %2017 = vmatprep.subr.mxu0 0.0
    %2018 = vmatpush1.msra.mxu0 0.0
    %2019 = vmatprep.subr.mxu0 0.0
    %2020 = vmatpush1.msra.mxu0 0.0
    %2021 = vmatprep.subr.mxu0 0.0
    %2022 = vmatpush1.msra.mxu0 0.0
    %2023 = vmatprep.subr.mxu0 0.0
    %2024 = vmatpush1.msra.mxu0 0.0
    %2025 = vmatprep.subr.mxu0 0.0
    %2026 = vmatpush1.msra.mxu0 0.0
    %2027 = vmatprep.subr.mxu0 0.0
    %2028 = vmatpush1.msra.mxu0 0.0
    %2029 = vmatprep.subr.mxu0 0.0
    %2030 = vmatpush1.msra.mxu0 0.0
    %2031 = vmatprep.subr.mxu0 0.0
    %2032 = vmatpush1.msra.mxu0 0.0
    %2033 = vmatprep.subr.mxu0 0.0
    %2034 = vmatpush1.msra.mxu0 0.0
    %2035 = vmatprep.subr.mxu0 0.0
    %2036 = vmatpush1.msra.mxu0 0.0
    %2037 = vmatprep.subr.mxu0 0.0
    %2038 = vmatpush1.msra.mxu0 0.0
    %2039 = vmatprep.subr.mxu0 0.0
    %2040 = vmatpush1.msra.mxu0 0.0
    %2041 = vmatprep.subr.mxu0 0.0
    %2042 = vmatpush1.msra.mxu0 0.0
    %2043 = vmatprep.subr.mxu0 0.0
    %2044 = vmatpush1.msra.mxu0 0.0
    %2045 = vmatprep.subr.mxu0 0.0
    %2046 = vmatpush1.msra.mxu0 0.0
    %2047 = vmatprep.subr.mxu0 0.0
    %2048 = vmatpush1.msra.mxu0 0.0
    %2049 = vmatprep.subr.mxu0 0.0
    %2050 = vmatpush1.msra.mxu0 0.0
    %2051 = vmatprep.subr.mxu0 0.0
    %2052 = vmatpush1.msra.mxu0 0.0
    %2053 = vmatprep.subr.mxu0 0.0
    %2054 = vmatpush1.msra.mxu0 0.0
    %2055 = vmatprep.subr.mxu0 0.0
    %2056 = vmatpush1.msra.mxu0 0.0
    %2057 = vmatprep.subr.mxu0 0.0
    %2058 = vmatpush1.msra.mxu0 0.0
    %2059 = vmatprep.subr.mxu0 0.0
    %2060 = vmatpush1.msra.mxu0 0.0
    %2061 = vmatprep.subr.mxu0 0.0
    %2062 = vmatpush1.msra.mxu0 0.0
    %2063 = vmatprep.subr.mxu0 0.0
    %2064 = vmatpush1.msra.mxu0 0.0
    %2065 = vmatprep.subr.mxu0 0.0
    %2066 = vmatpush1.msra.mxu0 0.0
    %2067 = vmatprep.subr.mxu0 0.0
    %2068 = vmatpush1.msra.mxu0 0.0
    %2069 = vmatprep.subr.mxu0 0.0
    %2070 = vmatpush1.msra.mxu0 0.0
    %2071 = vmatprep.subr.mxu0 0.0
    %2072 = vmatpush1.msra.mxu0 0.0
    %2073 = vmatprep.subr.mxu0 0.0
    %2074 = vmatpush1.msra.mxu0 0.0
    %2075 = vmatprep.mubr.f32.mxu0 0.0
    %2076 = vmatmul.mubr.f32.gmra.mrb[0].mxu0 %v892
    %v2077 = vpop.f32.mrb[0].mxu0
    %v2078 = vadd.f32 0.0, %v2077
    %v2079 = vpop.f32.mrb[0].mxu0
    %2080 = vmatprep.mubr.f32.mxu0 0.0
    %2081 = vmatmul.mubr.f32.gmra.mrb[0].mxu0 %v895
    %v2082 = vpop.f32.mrb[0].mxu0
    %v2083 = vadd.f32 0.0, %v2082
    %v2084 = vpop.f32.mrb[0].mxu0
    %2085 = vmatprep.mubr.f32.mxu0 0.0
    %2086 = vmatmul.mubr.f32.gmra.mrb[0].mxu0 %v898
    %v2087 = vpop.f32.mrb[0].mxu0
    %v2088 = vadd.f32 0.0, %v2087
    %v2089 = vpop.f32.mrb[0].mxu0
    %2090 = vdwg.mxu0
    %v2091 = vadd.f32 %v2005, %v2078
    %v2092 = vadd.f32 %v2006, %v2083
    %v2093 = vadd.f32 %v2007, %v2088
    %v2095 = vsel %vm513, %v1913, 0
    %2097 = vmatprep.subr.mxu0 0.0
    %2098 = vmatpush1.msra.mxu0 %v1901
    %2099 = vmatprep.subr.mxu0 0.0
    %2100 = vmatpush1.msra.mxu0 %v1907
    %2101 = vmatprep.subr.mxu0 0.0
    %2102 = vmatpush1.msra.mxu0 %v2095
    %2103 = vmatprep.subr.mxu0 0.0
    %2104 = vmatpush1.msra.mxu0 0.0
    %2105 = vmatprep.subr.mxu0 0.0
    %2106 = vmatpush1.msra.mxu0 0.0
    %2107 = vmatprep.subr.mxu0 0.0
    %2108 = vmatpush1.msra.mxu0 0.0
    %2109 = vmatprep.subr.mxu0 0.0
    %2110 = vmatpush1.msra.mxu0 0.0
    %2111 = vmatprep.subr.mxu0 0.0
    %2112 = vmatpush1.msra.mxu0 0.0
    %2113 = vmatprep.subr.mxu0 0.0
    %2114 = vmatpush1.msra.mxu0 0.0
    %2115 = vmatprep.subr.mxu0 0.0
    %2116 = vmatpush1.msra.mxu0 0.0
    %2117 = vmatprep.subr.mxu0 0.0
    %2118 = vmatpush1.msra.mxu0 0.0
    %2119 = vmatprep.subr.mxu0 0.0
    %2120 = vmatpush1.msra.mxu0 0.0
    %2121 = vmatprep.subr.mxu0 0.0
    %2122 = vmatpush1.msra.mxu0 0.0
    %2123 = vmatprep.subr.mxu0 0.0
    %2124 = vmatpush1.msra.mxu0 0.0
    %2125 = vmatprep.subr.mxu0 0.0
    %2126 = vmatpush1.msra.mxu0 0.0
    %2127 = vmatprep.subr.mxu0 0.0
    %2128 = vmatpush1.msra.mxu0 0.0
    %2129 = vmatprep.subr.mxu0 0.0
    %2130 = vmatpush1.msra.mxu0 0.0
    %2131 = vmatprep.subr.mxu0 0.0
    %2132 = vmatpush1.msra.mxu0 0.0
    %2133 = vmatprep.subr.mxu0 0.0
    %2134 = vmatpush1.msra.mxu0 0.0
    %2135 = vmatprep.subr.mxu0 0.0
    %2136 = vmatpush1.msra.mxu0 0.0
    %2137 = vmatprep.subr.mxu0 0.0
    %2138 = vmatpush1.msra.mxu0 0.0
    %2139 = vmatprep.subr.mxu0 0.0
    %2140 = vmatpush1.msra.mxu0 0.0
    %2141 = vmatprep.subr.mxu0 0.0
    %2142 = vmatpush1.msra.mxu0 0.0
    %2143 = vmatprep.subr.mxu0 0.0
    %2144 = vmatpush1.msra.mxu0 0.0
    %2145 = vmatprep.subr.mxu0 0.0
    %2146 = vmatpush1.msra.mxu0 0.0
    %2147 = vmatprep.subr.mxu0 0.0
    %2148 = vmatpush1.msra.mxu0 0.0
    %2149 = vmatprep.subr.mxu0 0.0
    %2150 = vmatpush1.msra.mxu0 0.0
    %2151 = vmatprep.subr.mxu0 0.0
    %2152 = vmatpush1.msra.mxu0 0.0
    %2153 = vmatprep.subr.mxu0 0.0
    %2154 = vmatpush1.msra.mxu0 0.0
    %2155 = vmatprep.subr.mxu0 0.0
    %2156 = vmatpush1.msra.mxu0 0.0
    %2157 = vmatprep.subr.mxu0 0.0
    %2158 = vmatpush1.msra.mxu0 0.0
    %2159 = vmatprep.subr.mxu0 0.0
    %2160 = vmatpush1.msra.mxu0 0.0
    %2161 = vmatprep.mubr.f32.mxu0 0.0
    %2162 = vmatmul.mubr.f32.gmra.mrb[0].mxu0 %v505
    %v2163 = vpop.f32.mrb[0].mxu0
    %v2164 = vadd.f32 0.0, %v2163
    %v2165 = vpop.f32.mrb[0].mxu0
    %2166 = vmatprep.mubr.f32.mxu0 0.0
    %2167 = vmatmul.mubr.f32.gmra.mrb[0].mxu0 %v508
    %v2168 = vpop.f32.mrb[0].mxu0
    %v2169 = vadd.f32 0.0, %v2168
    %v2170 = vpop.f32.mrb[0].mxu0
    %2171 = vmatprep.mubr.f32.mxu0 0.0
    %2172 = vmatmul.mubr.f32.gmra.mrb[0].mxu0 %v511
    %v2173 = vpop.f32.mrb[0].mxu0
    %v2174 = vadd.f32 0.0, %v2173
    %v2175 = vpop.f32.mrb[0].mxu0
    %2176 = vdwg.mxu0
    %v2177 = vadd.f32 %v2091, %v2164
    %v2178 = vadd.f32 %v2092, %v2169
    %v2179 = vadd.f32 %v2093, %v2174
    %s2180 = scalar_lea.vmem [#allocation14], 192
    %v2181 = vld [vmem:[%s2180] sm:$0xff]
    %v2182 = vld [vmem:[%s2180 + $0x8] sm:$0xff]
    %v2183 = vld [vmem:[%s2180 + $0x10] sm:$0xff]
    %v2184 = vld [vmem:[%s2180 + $0x18] sm:$0xff]
    %v2185 = vld [vmem:[%s2180 + $0x20] sm:$0xff]
    %v2186 = vld [vmem:[%s2180 + $0x28] sm:$0xff]
    %v2187 = vld [vmem:[%s2180 + $0x30] sm:$0xff]
    %v2188 = vld [vmem:[%s2180 + $0x38] sm:$0xff]
    %v2189 = vld [vmem:[%s2180 + $0x40] sm:$0xff]
    %v2190 = vld [vmem:[%s2180 + $0x48] sm:$0xff]
    %v2191 = vld [vmem:[%s2180 + $0x50] sm:$0xff]
    %v2192 = vld [vmem:[%s2180 + $0x58] sm:$0xff]
    %v2194 = vsel %vm320, %v2177, 0
    %v2197 = vsel %vm320, %v2178, 0
    %v2200 = vsel %vm320, %v2179, 0
    %2202 = vmatprep.subr.mxu0 %v2182
    %2203 = vmatpush1.msra.mxu0 %v2181
    %2204 = vmatprep.subr.mxu0 %v2185
    %2205 = vmatpush1.msra.mxu0 %v2184
    %2206 = vmatprep.subr.mxu0 %v2188
    %2207 = vmatpush1.msra.mxu0 %v2187
    %2208 = vmatprep.subr.mxu0 %v2191
    %2209 = vmatpush1.msra.mxu0 %v2190
    %2210 = vmatprep.subr.mxu0 0.0
    %2211 = vmatpush1.msra.mxu0 0.0
    %2212 = vmatprep.subr.mxu0 0.0
    %2213 = vmatpush1.msra.mxu0 0.0
    %2214 = vmatprep.subr.mxu0 0.0
    %2215 = vmatpush1.msra.mxu0 0.0
    %2216 = vmatprep.subr.mxu0 0.0
    %2217 = vmatpush1.msra.mxu0 0.0
    %2218 = vmatprep.subr.mxu0 0.0
    %2219 = vmatpush1.msra.mxu0 0.0
    %2220 = vmatprep.subr.mxu0 0.0
    %2221 = vmatpush1.msra.mxu0 0.0
    %2222 = vmatprep.subr.mxu0 0.0
    %2223 = vmatpush1.msra.mxu0 0.0
    %2224 = vmatprep.subr.mxu0 0.0
    %2225 = vmatpush1.msra.mxu0 0.0
    %2226 = vmatprep.subr.mxu0 0.0
    %2227 = vmatpush1.msra.mxu0 0.0
    %2228 = vmatprep.subr.mxu0 0.0
    %2229 = vmatpush1.msra.mxu0 0.0
    %2230 = vmatprep.subr.mxu0 0.0
    %2231 = vmatpush1.msra.mxu0 0.0
    %2232 = vmatprep.subr.mxu0 0.0
    %2233 = vmatpush1.msra.mxu0 0.0
    %2234 = vmatprep.subr.mxu0 0.0
    %2235 = vmatpush1.msra.mxu0 0.0
    %2236 = vmatprep.subr.mxu0 0.0
    %2237 = vmatpush1.msra.mxu0 0.0
    %2238 = vmatprep.subr.mxu0 0.0
    %2239 = vmatpush1.msra.mxu0 0.0
    %2240 = vmatprep.subr.mxu0 0.0
    %2241 = vmatpush1.msra.mxu0 0.0
    %2242 = vmatprep.subr.mxu0 0.0
    %2243 = vmatpush1.msra.mxu0 0.0
    %2244 = vmatprep.subr.mxu0 0.0
    %2245 = vmatpush1.msra.mxu0 0.0
    %2246 = vmatprep.subr.mxu0 0.0
    %2247 = vmatpush1.msra.mxu0 0.0
    %2248 = vmatprep.subr.mxu0 0.0
    %2249 = vmatpush1.msra.mxu0 0.0
    %2250 = vmatprep.subr.mxu0 0.0
    %2251 = vmatpush1.msra.mxu0 0.0
    %2252 = vmatprep.subr.mxu0 0.0
    %2253 = vmatpush1.msra.mxu0 0.0
    %2254 = vmatprep.subr.mxu0 0.0
    %2255 = vmatpush1.msra.mxu0 0.0
    %2256 = vmatprep.subr.mxu0 0.0
    %2257 = vmatpush1.msra.mxu0 0.0
    %2258 = vmatprep.subr.mxu0 0.0
    %2259 = vmatpush1.msra.mxu0 0.0
    %2260 = vmatprep.subr.mxu0 0.0
    %2261 = vmatpush1.msra.mxu0 0.0
    %2262 = vmatprep.subr.mxu0 0.0
    %2263 = vmatpush1.msra.mxu0 0.0
    %2264 = vmatprep.subr.mxu0 0.0
    %2265 = vmatpush1.msra.mxu0 0.0
    %2266 = vmatprep.mubr.f32.mxu0 0.0
    %2267 = vmatmul.mubr.f32.gmra.mrb[0].mxu0 %v2194
    %v2268 = vpop.f32.mrb[0].mxu0
    %v2269 = vadd.f32 0.0, %v2268
    %v2270 = vpop.f32.mrb[0].mxu0
    %v2271 = vadd.f32 0.0, %v2270
    %2272 = vmatprep.mubr.f32.mxu0 0.0
    %2273 = vmatmul.mubr.f32.gmra.mrb[0].mxu0 %v2197
    %v2274 = vpop.f32.mrb[0].mxu0
    %v2275 = vadd.f32 0.0, %v2274
    %v2276 = vpop.f32.mrb[0].mxu0
    %v2277 = vadd.f32 0.0, %v2276
    %2278 = vmatprep.mubr.f32.mxu0 0.0
    %2279 = vmatmul.mubr.f32.gmra.mrb[0].mxu0 %v2200
    %v2280 = vpop.f32.mrb[0].mxu0
    %v2281 = vadd.f32 0.0, %v2280
    %v2282 = vpop.f32.mrb[0].mxu0
    %v2283 = vadd.f32 0.0, %v2282
    %2284 = vdwg.mxu0
    %2285 = vmatprep.subr.mxu0 0.0
    %2286 = vmatpush1.msra.mxu0 %v2183
    %2287 = vmatprep.subr.mxu0 0.0
    %2288 = vmatpush1.msra.mxu0 %v2186
    %2289 = vmatprep.subr.mxu0 0.0
    %2290 = vmatpush1.msra.mxu0 %v2189
    %2291 = vmatprep.subr.mxu0 0.0
    %2292 = vmatpush1.msra.mxu0 %v2192
    %2293 = vmatprep.subr.mxu0 0.0
    %2294 = vmatpush1.msra.mxu0 0.0
    %2295 = vmatprep.subr.mxu0 0.0
    %2296 = vmatpush1.msra.mxu0 0.0
    %2297 = vmatprep.subr.mxu0 0.0
    %2298 = vmatpush1.msra.mxu0 0.0
    %2299 = vmatprep.subr.mxu0 0.0
    %2300 = vmatpush1.msra.mxu0 0.0
    %2301 = vmatprep.subr.mxu0 0.0
    %2302 = vmatpush1.msra.mxu0 0.0
    %2303 = vmatprep.subr.mxu0 0.0
    %2304 = vmatpush1.msra.mxu0 0.0
    %2305 = vmatprep.subr.mxu0 0.0
    %2306 = vmatpush1.msra.mxu0 0.0
    %2307 = vmatprep.subr.mxu0 0.0
    %2308 = vmatpush1.msra.mxu0 0.0
    %2309 = vmatprep.subr.mxu0 0.0
    %2310 = vmatpush1.msra.mxu0 0.0
    %2311 = vmatprep.subr.mxu0 0.0
    %2312 = vmatpush1.msra.mxu0 0.0
    %2313 = vmatprep.subr.mxu0 0.0
    %2314 = vmatpush1.msra.mxu0 0.0
    %2315 = vmatprep.subr.mxu0 0.0
    %2316 = vmatpush1.msra.mxu0 0.0
    %2317 = vmatprep.subr.mxu0 0.0
    %2318 = vmatpush1.msra.mxu0 0.0
    %2319 = vmatprep.subr.mxu0 0.0
    %2320 = vmatpush1.msra.mxu0 0.0
    %2321 = vmatprep.subr.mxu0 0.0
    %2322 = vmatpush1.msra.mxu0 0.0
    %2323 = vmatprep.subr.mxu0 0.0
    %2324 = vmatpush1.msra.mxu0 0.0
    %2325 = vmatprep.subr.mxu0 0.0
    %2326 = vmatpush1.msra.mxu0 0.0
    %2327 = vmatprep.subr.mxu0 0.0
    %2328 = vmatpush1.msra.mxu0 0.0
    %2329 = vmatprep.subr.mxu0 0.0
    %2330 = vmatpush1.msra.mxu0 0.0
    %2331 = vmatprep.subr.mxu0 0.0
    %2332 = vmatpush1.msra.mxu0 0.0
    %2333 = vmatprep.subr.mxu0 0.0
    %2334 = vmatpush1.msra.mxu0 0.0
    %2335 = vmatprep.subr.mxu0 0.0
    %2336 = vmatpush1.msra.mxu0 0.0
    %2337 = vmatprep.subr.mxu0 0.0
    %2338 = vmatpush1.msra.mxu0 0.0
    %2339 = vmatprep.subr.mxu0 0.0
    %2340 = vmatpush1.msra.mxu0 0.0
    %2341 = vmatprep.subr.mxu0 0.0
    %2342 = vmatpush1.msra.mxu0 0.0
    %2343 = vmatprep.subr.mxu0 0.0
    %2344 = vmatpush1.msra.mxu0 0.0
    %2345 = vmatprep.subr.mxu0 0.0
    %2346 = vmatpush1.msra.mxu0 0.0
    %2347 = vmatprep.subr.mxu0 0.0
    %2348 = vmatpush1.msra.mxu0 0.0
    %2349 = vmatprep.mubr.f32.mxu0 0.0
    %2350 = vmatmul.mubr.f32.gmra.mrb[0].mxu0 %v2194
    %v2351 = vpop.f32.mrb[0].mxu0
    %v2352 = vadd.f32 0.0, %v2351
    %v2353 = vpop.f32.mrb[0].mxu0
    %2354 = vmatprep.mubr.f32.mxu0 0.0
    %2355 = vmatmul.mubr.f32.gmra.mrb[0].mxu0 %v2197
    %v2356 = vpop.f32.mrb[0].mxu0
    %v2357 = vadd.f32 0.0, %v2356
    %v2358 = vpop.f32.mrb[0].mxu0
    %2359 = vmatprep.mubr.f32.mxu0 0.0
    %2360 = vmatmul.mubr.f32.gmra.mrb[0].mxu0 %v2200
    %v2361 = vpop.f32.mrb[0].mxu0
    %v2362 = vadd.f32 0.0, %v2361
    %v2363 = vpop.f32.mrb[0].mxu0
    %2364 = vdwg.mxu0
    %s2365 = scalar_lea.vmem [#allocation16], 2
    %v2366 = vld [vmem:[%s2365] sm:$0x1]
    %v2368 = vlaneseq
    %v2369 = vshrl.u32 %v2368, 7
    %v2370 = vsub.s32 0, %v2369
    %v2371 = vrot.slane %v2366, %v2370
    %v2373 = vadd.f32 %v2352, %v2371
    %v2374 = vadd.f32 %v2357, %v2371
    %v2375 = vadd.f32 %v2362, %v2371
    %v2377 = vsel %vm513, %v2283, 0
    %2379 = vmatprep.subr.mxu0 0.0
    %2380 = vmatpush1.msra.mxu0 %v2271
    %2381 = vmatprep.subr.mxu0 0.0
    %2382 = vmatpush1.msra.mxu0 %v2277
    %2383 = vmatprep.subr.mxu0 0.0
    %2384 = vmatpush1.msra.mxu0 %v2377
    %2385 = vmatprep.subr.mxu0 0.0
    %2386 = vmatpush1.msra.mxu0 0.0
    %2387 = vmatprep.subr.mxu0 0.0
    %2388 = vmatpush1.msra.mxu0 0.0
    %2389 = vmatprep.subr.mxu0 0.0
    %2390 = vmatpush1.msra.mxu0 0.0
    %2391 = vmatprep.subr.mxu0 0.0
    %2392 = vmatpush1.msra.mxu0 0.0
    %2393 = vmatprep.subr.mxu0 0.0
    %2394 = vmatpush1.msra.mxu0 0.0
    %2395 = vmatprep.subr.mxu0 0.0
    %2396 = vmatpush1.msra.mxu0 0.0
    %2397 = vmatprep.subr.mxu0 0.0
    %2398 = vmatpush1.msra.mxu0 0.0
    %2399 = vmatprep.subr.mxu0 0.0
    %2400 = vmatpush1.msra.mxu0 0.0
    %2401 = vmatprep.subr.mxu0 0.0
    %2402 = vmatpush1.msra.mxu0 0.0
    %2403 = vmatprep.subr.mxu0 0.0
    %2404 = vmatpush1.msra.mxu0 0.0
    %2405 = vmatprep.subr.mxu0 0.0
    %2406 = vmatpush1.msra.mxu0 0.0
    %2407 = vmatprep.subr.mxu0 0.0
    %2408 = vmatpush1.msra.mxu0 0.0
    %2409 = vmatprep.subr.mxu0 0.0
    %2410 = vmatpush1.msra.mxu0 0.0
    %2411 = vmatprep.subr.mxu0 0.0
    %2412 = vmatpush1.msra.mxu0 0.0
    %2413 = vmatprep.subr.mxu0 0.0
    %2414 = vmatpush1.msra.mxu0 0.0
    %2415 = vmatprep.subr.mxu0 0.0
    %2416 = vmatpush1.msra.mxu0 0.0
    %2417 = vmatprep.subr.mxu0 0.0
    %2418 = vmatpush1.msra.mxu0 0.0
    %2419 = vmatprep.subr.mxu0 0.0
    %2420 = vmatpush1.msra.mxu0 0.0
    %2421 = vmatprep.subr.mxu0 0.0
    %2422 = vmatpush1.msra.mxu0 0.0
    %2423 = vmatprep.subr.mxu0 0.0
    %2424 = vmatpush1.msra.mxu0 0.0
    %2425 = vmatprep.subr.mxu0 0.0
    %2426 = vmatpush1.msra.mxu0 0.0
    %2427 = vmatprep.subr.mxu0 0.0
    %2428 = vmatpush1.msra.mxu0 0.0
    %2429 = vmatprep.subr.mxu0 0.0
    %2430 = vmatpush1.msra.mxu0 0.0
    %2431 = vmatprep.subr.mxu0 0.0
    %2432 = vmatpush1.msra.mxu0 0.0
    %2433 = vmatprep.subr.mxu0 0.0
    %2434 = vmatpush1.msra.mxu0 0.0
    %2435 = vmatprep.subr.mxu0 0.0
    %2436 = vmatpush1.msra.mxu0 0.0
    %2437 = vmatprep.subr.mxu0 0.0
    %2438 = vmatpush1.msra.mxu0 0.0
    %2439 = vmatprep.subr.mxu0 0.0
    %2440 = vmatpush1.msra.mxu0 0.0
    %2441 = vmatprep.subr.mxu0 0.0
    %2442 = vmatpush1.msra.mxu0 0.0
    %2443 = vmatprep.mubr.f32.mxu0 0.0
    %2444 = vmatmul.mubr.f32.gmra.mrb[0].mxu0 %v505
    %v2445 = vpop.f32.mrb[0].mxu0
    %v2446 = vadd.f32 0.0, %v2445
    %v2447 = vpop.f32.mrb[0].mxu0
    %2448 = vmatprep.mubr.f32.mxu0 0.0
    %2449 = vmatmul.mubr.f32.gmra.mrb[0].mxu0 %v508
    %v2450 = vpop.f32.mrb[0].mxu0
    %v2451 = vadd.f32 0.0, %v2450
    %v2452 = vpop.f32.mrb[0].mxu0
    %2453 = vmatprep.mubr.f32.mxu0 0.0
    %2454 = vmatmul.mubr.f32.gmra.mrb[0].mxu0 %v511
    %v2455 = vpop.f32.mrb[0].mxu0
    %v2456 = vadd.f32 0.0, %v2455
    %v2457 = vpop.f32.mrb[0].mxu0
    %2458 = vdwg.mxu0
    %v2459 = vadd.f32 %v2373, %v2446
    %v2460 = vadd.f32 %v2374, %v2451
    %v2461 = vadd.f32 %v2375, %v2456
    %v2463 = vsel %vm513, %v2281, 0
    %2465 = vmatprep.subr.mxu0 0.0
    %2466 = vmatpush1.msra.mxu0 %v2269
    %2467 = vmatprep.subr.mxu0 0.0
    %2468 = vmatpush1.msra.mxu0 %v2275
    %2469 = vmatprep.subr.mxu0 0.0
    %2470 = vmatpush1.msra.mxu0 %v2463
    %2471 = vmatprep.subr.mxu0 0.0
    %2472 = vmatpush1.msra.mxu0 0.0
    %2473 = vmatprep.subr.mxu0 0.0
    %2474 = vmatpush1.msra.mxu0 0.0
    %2475 = vmatprep.subr.mxu0 0.0
    %2476 = vmatpush1.msra.mxu0 0.0
    %2477 = vmatprep.subr.mxu0 0.0
    %2478 = vmatpush1.msra.mxu0 0.0
    %2479 = vmatprep.subr.mxu0 0.0
    %2480 = vmatpush1.msra.mxu0 0.0
    %2481 = vmatprep.subr.mxu0 0.0
    %2482 = vmatpush1.msra.mxu0 0.0
    %2483 = vmatprep.subr.mxu0 0.0
    %2484 = vmatpush1.msra.mxu0 0.0
    %2485 = vmatprep.subr.mxu0 0.0
    %2486 = vmatpush1.msra.mxu0 0.0
    %2487 = vmatprep.subr.mxu0 0.0
    %2488 = vmatpush1.msra.mxu0 0.0
    %2489 = vmatprep.subr.mxu0 0.0
    %2490 = vmatpush1.msra.mxu0 0.0
    %2491 = vmatprep.subr.mxu0 0.0
    %2492 = vmatpush1.msra.mxu0 0.0
    %2493 = vmatprep.subr.mxu0 0.0
    %2494 = vmatpush1.msra.mxu0 0.0
    %2495 = vmatprep.subr.mxu0 0.0
    %2496 = vmatpush1.msra.mxu0 0.0
    %2497 = vmatprep.subr.mxu0 0.0
    %2498 = vmatpush1.msra.mxu0 0.0
    %2499 = vmatprep.subr.mxu0 0.0
    %2500 = vmatpush1.msra.mxu0 0.0
    %2501 = vmatprep.subr.mxu0 0.0
    %2502 = vmatpush1.msra.mxu0 0.0
    %2503 = vmatprep.subr.mxu0 0.0
    %2504 = vmatpush1.msra.mxu0 0.0
    %2505 = vmatprep.subr.mxu0 0.0
    %2506 = vmatpush1.msra.mxu0 0.0
    %2507 = vmatprep.subr.mxu0 0.0
    %2508 = vmatpush1.msra.mxu0 0.0
    %2509 = vmatprep.subr.mxu0 0.0
    %2510 = vmatpush1.msra.mxu0 0.0
    %2511 = vmatprep.subr.mxu0 0.0
    %2512 = vmatpush1.msra.mxu0 0.0
    %2513 = vmatprep.subr.mxu0 0.0
    %2514 = vmatpush1.msra.mxu0 0.0
    %2515 = vmatprep.subr.mxu0 0.0
    %2516 = vmatpush1.msra.mxu0 0.0
    %2517 = vmatprep.subr.mxu0 0.0
    %2518 = vmatpush1.msra.mxu0 0.0
    %2519 = vmatprep.subr.mxu0 0.0
    %2520 = vmatpush1.msra.mxu0 0.0
    %2521 = vmatprep.subr.mxu0 0.0
    %2522 = vmatpush1.msra.mxu0 0.0
    %2523 = vmatprep.subr.mxu0 0.0
    %2524 = vmatpush1.msra.mxu0 0.0
    %2525 = vmatprep.subr.mxu0 0.0
    %2526 = vmatpush1.msra.mxu0 0.0
    %2527 = vmatprep.subr.mxu0 0.0
    %2528 = vmatpush1.msra.mxu0 0.0
    %2529 = vmatprep.mubr.f32.mxu0 0.0
    %2530 = vmatmul.mubr.f32.gmra.mrb[0].mxu0 %v601
    %v2531 = vpop.f32.mrb[0].mxu0
    %v2532 = vadd.f32 0.0, %v2531
    %v2533 = vpop.f32.mrb[0].mxu0
    %2534 = vmatprep.mubr.f32.mxu0 0.0
    %2535 = vmatmul.mubr.f32.gmra.mrb[0].mxu0 %v604
    %v2536 = vpop.f32.mrb[0].mxu0
    %v2537 = vadd.f32 0.0, %v2536
    %v2538 = vpop.f32.mrb[0].mxu0
    %2539 = vmatprep.mubr.f32.mxu0 0.0
    %2540 = vmatmul.mubr.f32.gmra.mrb[0].mxu0 %v607
    %v2541 = vpop.f32.mrb[0].mxu0
    %v2542 = vadd.f32 0.0, %v2541
    %v2543 = vpop.f32.mrb[0].mxu0
    %2544 = vdwg.mxu0
    %v2545 = vadd.f32 %v2459, %v2532
    %v2546 = vadd.f32 %v2460, %v2537
    %v2547 = vadd.f32 %v2461, %v2542
    %v2548 = vmax.f32 %v2545, 0.0
    %v2549 = vmax.f32 %v2546, 0.0
    %v2550 = vmax.f32 %v2547, 0.0
    %v2551 = vadd.f32 %v2548, %v293
    %v2552 = vadd.f32 %v2549, %v294
    %v2553 = vadd.f32 %v2550, %v295
    %v2554 = vld [vmem:[#allocation17] sm:$0xff]
    %v2555 = vld [vmem:[#allocation17 + $0x8] sm:$0xff]
    %v2556 = vld [vmem:[#allocation17 + $0x10] sm:$0xff]
    %v2557 = vld [vmem:[#allocation17 + $0x18] sm:$0xff]
    %v2558 = vld [vmem:[#allocation17 + $0x20] sm:$0xff]
    %v2559 = vld [vmem:[#allocation17 + $0x28] sm:$0xff]
    %v2560 = vld [vmem:[#allocation17 + $0x30] sm:$0xff]
    %v2561 = vld [vmem:[#allocation17 + $0x38] sm:$0xff]
    %v2562 = vld [vmem:[#allocation17 + $0x40] sm:$0xff]
    %v2563 = vld [vmem:[#allocation17 + $0x48] sm:$0xff]
    %v2564 = vld [vmem:[#allocation17 + $0x50] sm:$0xff]
    %v2565 = vld [vmem:[#allocation17 + $0x58] sm:$0xff]
    %v2567 = vsel %vm320, %v1452, 0
    %v2570 = vsel %vm320, %v1453, 0
    %v2573 = vsel %vm320, %v1454, 0
    %2575 = vmatprep.subr.mxu0 %v2555
    %2576 = vmatpush1.msra.mxu0 %v2554
    %2577 = vmatprep.subr.mxu0 %v2558
    %2578 = vmatpush1.msra.mxu0 %v2557
    %2579 = vmatprep.subr.mxu0 %v2561
    %2580 = vmatpush1.msra.mxu0 %v2560
    %2581 = vmatprep.subr.mxu0 %v2564
    %2582 = vmatpush1.msra.mxu0 %v2563
    %2583 = vmatprep.subr.mxu0 0.0
    %2584 = vmatpush1.msra.mxu0 0.0
    %2585 = vmatprep.subr.mxu0 0.0
    %2586 = vmatpush1.msra.mxu0 0.0
    %2587 = vmatprep.subr.mxu0 0.0
    %2588 = vmatpush1.msra.mxu0 0.0
    %2589 = vmatprep.subr.mxu0 0.0
    %2590 = vmatpush1.msra.mxu0 0.0
    %2591 = vmatprep.subr.mxu0 0.0
    %2592 = vmatpush1.msra.mxu0 0.0
    %2593 = vmatprep.subr.mxu0 0.0
    %2594 = vmatpush1.msra.mxu0 0.0
    %2595 = vmatprep.subr.mxu0 0.0
    %2596 = vmatpush1.msra.mxu0 0.0
    %2597 = vmatprep.subr.mxu0 0.0
    %2598 = vmatpush1.msra.mxu0 0.0
    %2599 = vmatprep.subr.mxu0 0.0
    %2600 = vmatpush1.msra.mxu0 0.0
    %2601 = vmatprep.subr.mxu0 0.0
    %2602 = vmatpush1.msra.mxu0 0.0
    %2603 = vmatprep.subr.mxu0 0.0
    %2604 = vmatpush1.msra.mxu0 0.0
    %2605 = vmatprep.subr.mxu0 0.0
    %2606 = vmatpush1.msra.mxu0 0.0
    %2607 = vmatprep.subr.mxu0 0.0
    %2608 = vmatpush1.msra.mxu0 0.0
    %2609 = vmatprep.subr.mxu0 0.0
    %2610 = vmatpush1.msra.mxu0 0.0
    %2611 = vmatprep.subr.mxu0 0.0
    %2612 = vmatpush1.msra.mxu0 0.0
    %2613 = vmatprep.subr.mxu0 0.0
    %2614 = vmatpush1.msra.mxu0 0.0
    %2615 = vmatprep.subr.mxu0 0.0
    %2616 = vmatpush1.msra.mxu0 0.0
    %2617 = vmatprep.subr.mxu0 0.0
    %2618 = vmatpush1.msra.mxu0 0.0
    %2619 = vmatprep.subr.mxu0 0.0
    %2620 = vmatpush1.msra.mxu0 0.0
    %2621 = vmatprep.subr.mxu0 0.0
    %2622 = vmatpush1.msra.mxu0 0.0
    %2623 = vmatprep.subr.mxu0 0.0
    %2624 = vmatpush1.msra.mxu0 0.0
    %2625 = vmatprep.subr.mxu0 0.0
    %2626 = vmatpush1.msra.mxu0 0.0
    %2627 = vmatprep.subr.mxu0 0.0
    %2628 = vmatpush1.msra.mxu0 0.0
    %2629 = vmatprep.subr.mxu0 0.0
    %2630 = vmatpush1.msra.mxu0 0.0
    %2631 = vmatprep.subr.mxu0 0.0
    %2632 = vmatpush1.msra.mxu0 0.0
    %2633 = vmatprep.subr.mxu0 0.0
    %2634 = vmatpush1.msra.mxu0 0.0
    %2635 = vmatprep.subr.mxu0 0.0
    %2636 = vmatpush1.msra.mxu0 0.0
    %2637 = vmatprep.subr.mxu0 0.0
    %2638 = vmatpush1.msra.mxu0 0.0
    %2639 = vmatprep.mubr.f32.mxu0 0.0
    %2640 = vmatmul.mubr.f32.gmra.mrb[0].mxu0 %v2567
    %v2641 = vpop.f32.mrb[0].mxu0
    %v2642 = vadd.f32 0.0, %v2641
    %v2643 = vpop.f32.mrb[0].mxu0
    %v2644 = vadd.f32 0.0, %v2643
    %2645 = vmatprep.mubr.f32.mxu0 0.0
    %2646 = vmatmul.mubr.f32.gmra.mrb[0].mxu0 %v2570
    %v2647 = vpop.f32.mrb[0].mxu0
    %v2648 = vadd.f32 0.0, %v2647
    %v2649 = vpop.f32.mrb[0].mxu0
    %v2650 = vadd.f32 0.0, %v2649
    %2651 = vmatprep.mubr.f32.mxu0 0.0
    %2652 = vmatmul.mubr.f32.gmra.mrb[0].mxu0 %v2573
    %v2653 = vpop.f32.mrb[0].mxu0
    %v2654 = vadd.f32 0.0, %v2653
    %v2655 = vpop.f32.mrb[0].mxu0
    %v2656 = vadd.f32 0.0, %v2655
    %2657 = vdwg.mxu0
    %2658 = vmatprep.subr.mxu0 0.0
    %2659 = vmatpush1.msra.mxu0 %v2556
    %2660 = vmatprep.subr.mxu0 0.0
    %2661 = vmatpush1.msra.mxu0 %v2559
    %2662 = vmatprep.subr.mxu0 0.0
    %2663 = vmatpush1.msra.mxu0 %v2562
    %2664 = vmatprep.subr.mxu0 0.0
    %2665 = vmatpush1.msra.mxu0 %v2565
    %2666 = vmatprep.subr.mxu0 0.0
    %2667 = vmatpush1.msra.mxu0 0.0
    %2668 = vmatprep.subr.mxu0 0.0
    %2669 = vmatpush1.msra.mxu0 0.0
    %2670 = vmatprep.subr.mxu0 0.0
    %2671 = vmatpush1.msra.mxu0 0.0
    %2672 = vmatprep.subr.mxu0 0.0
    %2673 = vmatpush1.msra.mxu0 0.0
    %2674 = vmatprep.subr.mxu0 0.0
    %2675 = vmatpush1.msra.mxu0 0.0
    %2676 = vmatprep.subr.mxu0 0.0
    %2677 = vmatpush1.msra.mxu0 0.0
    %2678 = vmatprep.subr.mxu0 0.0
    %2679 = vmatpush1.msra.mxu0 0.0
    %2680 = vmatprep.subr.mxu0 0.0
    %2681 = vmatpush1.msra.mxu0 0.0
    %2682 = vmatprep.subr.mxu0 0.0
    %2683 = vmatpush1.msra.mxu0 0.0
    %2684 = vmatprep.subr.mxu0 0.0
    %2685 = vmatpush1.msra.mxu0 0.0
    %2686 = vmatprep.subr.mxu0 0.0
    %2687 = vmatpush1.msra.mxu0 0.0
    %2688 = vmatprep.subr.mxu0 0.0
    %2689 = vmatpush1.msra.mxu0 0.0
    %2690 = vmatprep.subr.mxu0 0.0
    %2691 = vmatpush1.msra.mxu0 0.0
    %2692 = vmatprep.subr.mxu0 0.0
    %2693 = vmatpush1.msra.mxu0 0.0
    %2694 = vmatprep.subr.mxu0 0.0
    %2695 = vmatpush1.msra.mxu0 0.0
    %2696 = vmatprep.subr.mxu0 0.0
    %2697 = vmatpush1.msra.mxu0 0.0
    %2698 = vmatprep.subr.mxu0 0.0
    %2699 = vmatpush1.msra.mxu0 0.0
    %2700 = vmatprep.subr.mxu0 0.0
    %2701 = vmatpush1.msra.mxu0 0.0
    %2702 = vmatprep.subr.mxu0 0.0
    %2703 = vmatpush1.msra.mxu0 0.0
    %2704 = vmatprep.subr.mxu0 0.0
    %2705 = vmatpush1.msra.mxu0 0.0
    %2706 = vmatprep.subr.mxu0 0.0
    %2707 = vmatpush1.msra.mxu0 0.0
    %2708 = vmatprep.subr.mxu0 0.0
    %2709 = vmatpush1.msra.mxu0 0.0
    %2710 = vmatprep.subr.mxu0 0.0
    %2711 = vmatpush1.msra.mxu0 0.0
    %2712 = vmatprep.subr.mxu0 0.0
    %2713 = vmatpush1.msra.mxu0 0.0
    %2714 = vmatprep.subr.mxu0 0.0
    %2715 = vmatpush1.msra.mxu0 0.0
    %2716 = vmatprep.subr.mxu0 0.0
    %2717 = vmatpush1.msra.mxu0 0.0
    %2718 = vmatprep.subr.mxu0 0.0
    %2719 = vmatpush1.msra.mxu0 0.0
    %2720 = vmatprep.subr.mxu0 0.0
    %2721 = vmatpush1.msra.mxu0 0.0
    %2722 = vmatprep.mubr.f32.mxu0 0.0
    %2723 = vmatmul.mubr.f32.gmra.mrb[0].mxu0 %v2567
    %v2724 = vpop.f32.mrb[0].mxu0
    %v2725 = vadd.f32 0.0, %v2724
    %v2726 = vpop.f32.mrb[0].mxu0
    %2727 = vmatprep.mubr.f32.mxu0 0.0
    %2728 = vmatmul.mubr.f32.gmra.mrb[0].mxu0 %v2570
    %v2729 = vpop.f32.mrb[0].mxu0
    %v2730 = vadd.f32 0.0, %v2729
    %v2731 = vpop.f32.mrb[0].mxu0
    %2732 = vmatprep.mubr.f32.mxu0 0.0
    %2733 = vmatmul.mubr.f32.gmra.mrb[0].mxu0 %v2573
    %v2734 = vpop.f32.mrb[0].mxu0
    %v2735 = vadd.f32 0.0, %v2734
    %v2736 = vpop.f32.mrb[0].mxu0
    %2737 = vdwg.mxu0
    %v2738 = vld [vmem:[#allocation19] sm:$0x1]
    %v2740 = vlaneseq
    %v2741 = vshrl.u32 %v2740, 7
    %v2742 = vsub.s32 0, %v2741
    %v2743 = vrot.slane %v2738, %v2742
    %v2745 = vadd.f32 %v2725, %v2743
    %v2746 = vadd.f32 %v2730, %v2743
    %v2747 = vadd.f32 %v2735, %v2743
    %v2749 = vsel %vm513, %v2656, 0
    %2751 = vmatprep.subr.mxu0 0.0
    %2752 = vmatpush1.msra.mxu0 %v2644
    %2753 = vmatprep.subr.mxu0 0.0
    %2754 = vmatpush1.msra.mxu0 %v2650
    %2755 = vmatprep.subr.mxu0 0.0
    %2756 = vmatpush1.msra.mxu0 %v2749
    %2757 = vmatprep.subr.mxu0 0.0
    %2758 = vmatpush1.msra.mxu0 0.0
    %2759 = vmatprep.subr.mxu0 0.0
    %2760 = vmatpush1.msra.mxu0 0.0
    %2761 = vmatprep.subr.mxu0 0.0
    %2762 = vmatpush1.msra.mxu0 0.0
    %2763 = vmatprep.subr.mxu0 0.0
    %2764 = vmatpush1.msra.mxu0 0.0
    %2765 = vmatprep.subr.mxu0 0.0
    %2766 = vmatpush1.msra.mxu0 0.0
    %2767 = vmatprep.subr.mxu0 0.0
    %2768 = vmatpush1.msra.mxu0 0.0
    %2769 = vmatprep.subr.mxu0 0.0
    %2770 = vmatpush1.msra.mxu0 0.0
    %2771 = vmatprep.subr.mxu0 0.0
    %2772 = vmatpush1.msra.mxu0 0.0
    %2773 = vmatprep.subr.mxu0 0.0
    %2774 = vmatpush1.msra.mxu0 0.0
    %2775 = vmatprep.subr.mxu0 0.0
    %2776 = vmatpush1.msra.mxu0 0.0
    %2777 = vmatprep.subr.mxu0 0.0
    %2778 = vmatpush1.msra.mxu0 0.0
    %2779 = vmatprep.subr.mxu0 0.0
    %2780 = vmatpush1.msra.mxu0 0.0
    %2781 = vmatprep.subr.mxu0 0.0
    %2782 = vmatpush1.msra.mxu0 0.0
    %2783 = vmatprep.subr.mxu0 0.0
    %2784 = vmatpush1.msra.mxu0 0.0
    %2785 = vmatprep.subr.mxu0 0.0
    %2786 = vmatpush1.msra.mxu0 0.0
    %2787 = vmatprep.subr.mxu0 0.0
    %2788 = vmatpush1.msra.mxu0 0.0
    %2789 = vmatprep.subr.mxu0 0.0
    %2790 = vmatpush1.msra.mxu0 0.0
    %2791 = vmatprep.subr.mxu0 0.0
    %2792 = vmatpush1.msra.mxu0 0.0
    %2793 = vmatprep.subr.mxu0 0.0
    %2794 = vmatpush1.msra.mxu0 0.0
    %2795 = vmatprep.subr.mxu0 0.0
    %2796 = vmatpush1.msra.mxu0 0.0
    %2797 = vmatprep.subr.mxu0 0.0
    %2798 = vmatpush1.msra.mxu0 0.0
    %2799 = vmatprep.subr.mxu0 0.0
    %2800 = vmatpush1.msra.mxu0 0.0
    %2801 = vmatprep.subr.mxu0 0.0
    %2802 = vmatpush1.msra.mxu0 0.0
    %2803 = vmatprep.subr.mxu0 0.0
    %2804 = vmatpush1.msra.mxu0 0.0
    %2805 = vmatprep.subr.mxu0 0.0
    %2806 = vmatpush1.msra.mxu0 0.0
    %2807 = vmatprep.subr.mxu0 0.0
    %2808 = vmatpush1.msra.mxu0 0.0
    %2809 = vmatprep.subr.mxu0 0.0
    %2810 = vmatpush1.msra.mxu0 0.0
    %2811 = vmatprep.subr.mxu0 0.0
    %2812 = vmatpush1.msra.mxu0 0.0
    %2813 = vmatprep.subr.mxu0 0.0
    %2814 = vmatpush1.msra.mxu0 0.0
    %2815 = vmatprep.mubr.f32.mxu0 0.0
    %2816 = vmatmul.mubr.f32.gmra.mrb[0].mxu0 %v505
    %v2817 = vpop.f32.mrb[0].mxu0
    %v2818 = vadd.f32 0.0, %v2817
    %v2819 = vpop.f32.mrb[0].mxu0
    %2820 = vmatprep.mubr.f32.mxu0 0.0
    %2821 = vmatmul.mubr.f32.gmra.mrb[0].mxu0 %v508
    %v2822 = vpop.f32.mrb[0].mxu0
    %v2823 = vadd.f32 0.0, %v2822
    %v2824 = vpop.f32.mrb[0].mxu0
    %2825 = vmatprep.mubr.f32.mxu0 0.0
    %2826 = vmatmul.mubr.f32.gmra.mrb[0].mxu0 %v511
    %v2827 = vpop.f32.mrb[0].mxu0
    %v2828 = vadd.f32 0.0, %v2827
    %v2829 = vpop.f32.mrb[0].mxu0
    %2830 = vdwg.mxu0
    %v2831 = vadd.f32 %v2745, %v2818
    %v2832 = vadd.f32 %v2746, %v2823
    %v2833 = vadd.f32 %v2747, %v2828
    %v2835 = vsel %vm513, %v2654, 0
    %2837 = vmatprep.subr.mxu0 0.0
    %2838 = vmatpush1.msra.mxu0 %v2642
    %2839 = vmatprep.subr.mxu0 0.0
    %2840 = vmatpush1.msra.mxu0 %v2648
    %2841 = vmatprep.subr.mxu0 0.0
    %2842 = vmatpush1.msra.mxu0 %v2835
    %2843 = vmatprep.subr.mxu0 0.0
    %2844 = vmatpush1.msra.mxu0 0.0
    %2845 = vmatprep.subr.mxu0 0.0
    %2846 = vmatpush1.msra.mxu0 0.0
    %2847 = vmatprep.subr.mxu0 0.0
    %2848 = vmatpush1.msra.mxu0 0.0
    %2849 = vmatprep.subr.mxu0 0.0
    %2850 = vmatpush1.msra.mxu0 0.0
    %2851 = vmatprep.subr.mxu0 0.0
    %2852 = vmatpush1.msra.mxu0 0.0
    %2853 = vmatprep.subr.mxu0 0.0
    %2854 = vmatpush1.msra.mxu0 0.0
    %2855 = vmatprep.subr.mxu0 0.0
    %2856 = vmatpush1.msra.mxu0 0.0
    %2857 = vmatprep.subr.mxu0 0.0
    %2858 = vmatpush1.msra.mxu0 0.0
    %2859 = vmatprep.subr.mxu0 0.0
    %2860 = vmatpush1.msra.mxu0 0.0
    %2861 = vmatprep.subr.mxu0 0.0
    %2862 = vmatpush1.msra.mxu0 0.0
    %2863 = vmatprep.subr.mxu0 0.0
    %2864 = vmatpush1.msra.mxu0 0.0
    %2865 = vmatprep.subr.mxu0 0.0
    %2866 = vmatpush1.msra.mxu0 0.0
    %2867 = vmatprep.subr.mxu0 0.0
    %2868 = vmatpush1.msra.mxu0 0.0
    %2869 = vmatprep.subr.mxu0 0.0
    %2870 = vmatpush1.msra.mxu0 0.0
    %2871 = vmatprep.subr.mxu0 0.0
    %2872 = vmatpush1.msra.mxu0 0.0
    %2873 = vmatprep.subr.mxu0 0.0
    %2874 = vmatpush1.msra.mxu0 0.0
    %2875 = vmatprep.subr.mxu0 0.0
    %2876 = vmatpush1.msra.mxu0 0.0
    %2877 = vmatprep.subr.mxu0 0.0
    %2878 = vmatpush1.msra.mxu0 0.0
    %2879 = vmatprep.subr.mxu0 0.0
    %2880 = vmatpush1.msra.mxu0 0.0
    %2881 = vmatprep.subr.mxu0 0.0
    %2882 = vmatpush1.msra.mxu0 0.0
    %2883 = vmatprep.subr.mxu0 0.0
    %2884 = vmatpush1.msra.mxu0 0.0
    %2885 = vmatprep.subr.mxu0 0.0
    %2886 = vmatpush1.msra.mxu0 0.0
    %2887 = vmatprep.subr.mxu0 0.0
    %2888 = vmatpush1.msra.mxu0 0.0
    %2889 = vmatprep.subr.mxu0 0.0
    %2890 = vmatpush1.msra.mxu0 0.0
    %2891 = vmatprep.subr.mxu0 0.0
    %2892 = vmatpush1.msra.mxu0 0.0
    %2893 = vmatprep.subr.mxu0 0.0
    %2894 = vmatpush1.msra.mxu0 0.0
    %2895 = vmatprep.subr.mxu0 0.0
    %2896 = vmatpush1.msra.mxu0 0.0
    %2897 = vmatprep.subr.mxu0 0.0
    %2898 = vmatpush1.msra.mxu0 0.0
    %2899 = vmatprep.subr.mxu0 0.0
    %2900 = vmatpush1.msra.mxu0 0.0
    %2901 = vmatprep.mubr.f32.mxu0 0.0
    %2902 = vmatmul.mubr.f32.gmra.mrb[0].mxu0 %v601
    %v2903 = vpop.f32.mrb[0].mxu0
    %v2904 = vadd.f32 0.0, %v2903
    %v2905 = vpop.f32.mrb[0].mxu0
    %2906 = vmatprep.mubr.f32.mxu0 0.0
    %2907 = vmatmul.mubr.f32.gmra.mrb[0].mxu0 %v604
    %v2908 = vpop.f32.mrb[0].mxu0
    %v2909 = vadd.f32 0.0, %v2908
    %v2910 = vpop.f32.mrb[0].mxu0
    %2911 = vmatprep.mubr.f32.mxu0 0.0
    %2912 = vmatmul.mubr.f32.gmra.mrb[0].mxu0 %v607
    %v2913 = vpop.f32.mrb[0].mxu0
    %v2914 = vadd.f32 0.0, %v2913
    %v2915 = vpop.f32.mrb[0].mxu0
    %2916 = vdwg.mxu0
    %v2917 = vadd.f32 %v2831, %v2904
    %v2918 = vadd.f32 %v2832, %v2909
    %v2919 = vadd.f32 %v2833, %v2914
    %s2920 = scalar_lea.vmem [#allocation17], 96
    %v2921 = vld [vmem:[%s2920] sm:$0xff]
    %v2922 = vld [vmem:[%s2920 + $0x8] sm:$0xff]
    %v2923 = vld [vmem:[%s2920 + $0x10] sm:$0xff]
    %v2924 = vld [vmem:[%s2920 + $0x18] sm:$0xff]
    %v2925 = vld [vmem:[%s2920 + $0x20] sm:$0xff]
    %v2926 = vld [vmem:[%s2920 + $0x28] sm:$0xff]
    %v2927 = vld [vmem:[%s2920 + $0x30] sm:$0xff]
    %v2928 = vld [vmem:[%s2920 + $0x38] sm:$0xff]
    %v2929 = vld [vmem:[%s2920 + $0x40] sm:$0xff]
    %v2930 = vld [vmem:[%s2920 + $0x48] sm:$0xff]
    %v2931 = vld [vmem:[%s2920 + $0x50] sm:$0xff]
    %v2932 = vld [vmem:[%s2920 + $0x58] sm:$0xff]
    %v2934 = vsel %vm320, %v2917, 0
    %v2937 = vsel %vm320, %v2918, 0
    %v2940 = vsel %vm320, %v2919, 0
    %2942 = vmatprep.subr.mxu0 %v2922
    %2943 = vmatpush1.msra.mxu0 %v2921
    %2944 = vmatprep.subr.mxu0 %v2925
    %2945 = vmatpush1.msra.mxu0 %v2924
    %2946 = vmatprep.subr.mxu0 %v2928
    %2947 = vmatpush1.msra.mxu0 %v2927
    %2948 = vmatprep.subr.mxu0 %v2931
    %2949 = vmatpush1.msra.mxu0 %v2930
    %2950 = vmatprep.subr.mxu0 0.0
    %2951 = vmatpush1.msra.mxu0 0.0
    %2952 = vmatprep.subr.mxu0 0.0
    %2953 = vmatpush1.msra.mxu0 0.0
    %2954 = vmatprep.subr.mxu0 0.0
    %2955 = vmatpush1.msra.mxu0 0.0
    %2956 = vmatprep.subr.mxu0 0.0
    %2957 = vmatpush1.msra.mxu0 0.0
    %2958 = vmatprep.subr.mxu0 0.0
    %2959 = vmatpush1.msra.mxu0 0.0
    %2960 = vmatprep.subr.mxu0 0.0
    %2961 = vmatpush1.msra.mxu0 0.0
    %2962 = vmatprep.subr.mxu0 0.0
    %2963 = vmatpush1.msra.mxu0 0.0
    %2964 = vmatprep.subr.mxu0 0.0
    %2965 = vmatpush1.msra.mxu0 0.0
    %2966 = vmatprep.subr.mxu0 0.0
    %2967 = vmatpush1.msra.mxu0 0.0
    %2968 = vmatprep.subr.mxu0 0.0
    %2969 = vmatpush1.msra.mxu0 0.0
    %2970 = vmatprep.subr.mxu0 0.0
    %2971 = vmatpush1.msra.mxu0 0.0
    %2972 = vmatprep.subr.mxu0 0.0
    %2973 = vmatpush1.msra.mxu0 0.0
    %2974 = vmatprep.subr.mxu0 0.0
    %2975 = vmatpush1.msra.mxu0 0.0
    %2976 = vmatprep.subr.mxu0 0.0
    %2977 = vmatpush1.msra.mxu0 0.0
    %2978 = vmatprep.subr.mxu0 0.0
    %2979 = vmatpush1.msra.mxu0 0.0
    %2980 = vmatprep.subr.mxu0 0.0
    %2981 = vmatpush1.msra.mxu0 0.0
    %2982 = vmatprep.subr.mxu0 0.0
    %2983 = vmatpush1.msra.mxu0 0.0
    %2984 = vmatprep.subr.mxu0 0.0
    %2985 = vmatpush1.msra.mxu0 0.0
    %2986 = vmatprep.subr.mxu0 0.0
    %2987 = vmatpush1.msra.mxu0 0.0
    %2988 = vmatprep.subr.mxu0 0.0
    %2989 = vmatpush1.msra.mxu0 0.0
    %2990 = vmatprep.subr.mxu0 0.0
    %2991 = vmatpush1.msra.mxu0 0.0
    %2992 = vmatprep.subr.mxu0 0.0
    %2993 = vmatpush1.msra.mxu0 0.0
    %2994 = vmatprep.subr.mxu0 0.0
    %2995 = vmatpush1.msra.mxu0 0.0
    %2996 = vmatprep.subr.mxu0 0.0
    %2997 = vmatpush1.msra.mxu0 0.0
    %2998 = vmatprep.subr.mxu0 0.0
    %2999 = vmatpush1.msra.mxu0 0.0
    %3000 = vmatprep.subr.mxu0 0.0
    %3001 = vmatpush1.msra.mxu0 0.0
    %3002 = vmatprep.subr.mxu0 0.0
    %3003 = vmatpush1.msra.mxu0 0.0
    %3004 = vmatprep.subr.mxu0 0.0
    %3005 = vmatpush1.msra.mxu0 0.0
    %3006 = vmatprep.mubr.f32.mxu0 0.0
    %3007 = vmatmul.mubr.f32.gmra.mrb[0].mxu0 %v2934
    %v3008 = vpop.f32.mrb[0].mxu0
    %v3009 = vadd.f32 0.0, %v3008
    %v3010 = vpop.f32.mrb[0].mxu0
    %v3011 = vadd.f32 0.0, %v3010
    %3012 = vmatprep.mubr.f32.mxu0 0.0
    %3013 = vmatmul.mubr.f32.gmra.mrb[0].mxu0 %v2937
    %v3014 = vpop.f32.mrb[0].mxu0
    %v3015 = vadd.f32 0.0, %v3014
    %v3016 = vpop.f32.mrb[0].mxu0
    %v3017 = vadd.f32 0.0, %v3016
    %3018 = vmatprep.mubr.f32.mxu0 0.0
    %3019 = vmatmul.mubr.f32.gmra.mrb[0].mxu0 %v2940
    %v3020 = vpop.f32.mrb[0].mxu0
    %v3021 = vadd.f32 0.0, %v3020
    %v3022 = vpop.f32.mrb[0].mxu0
    %v3023 = vadd.f32 0.0, %v3022
    %3024 = vdwg.mxu0
    %3025 = vmatprep.subr.mxu0 0.0
    %3026 = vmatpush1.msra.mxu0 %v2923
    %3027 = vmatprep.subr.mxu0 0.0
    %3028 = vmatpush1.msra.mxu0 %v2926
    %3029 = vmatprep.subr.mxu0 0.0
    %3030 = vmatpush1.msra.mxu0 %v2929
    %3031 = vmatprep.subr.mxu0 0.0
    %3032 = vmatpush1.msra.mxu0 %v2932
    %3033 = vmatprep.subr.mxu0 0.0
    %3034 = vmatpush1.msra.mxu0 0.0
    %3035 = vmatprep.subr.mxu0 0.0
    %3036 = vmatpush1.msra.mxu0 0.0
    %3037 = vmatprep.subr.mxu0 0.0
    %3038 = vmatpush1.msra.mxu0 0.0
    %3039 = vmatprep.subr.mxu0 0.0
    %3040 = vmatpush1.msra.mxu0 0.0
    %3041 = vmatprep.subr.mxu0 0.0
    %3042 = vmatpush1.msra.mxu0 0.0
    %3043 = vmatprep.subr.mxu0 0.0
    %3044 = vmatpush1.msra.mxu0 0.0
    %3045 = vmatprep.subr.mxu0 0.0
    %3046 = vmatpush1.msra.mxu0 0.0
    %3047 = vmatprep.subr.mxu0 0.0
    %3048 = vmatpush1.msra.mxu0 0.0
    %3049 = vmatprep.subr.mxu0 0.0
    %3050 = vmatpush1.msra.mxu0 0.0
    %3051 = vmatprep.subr.mxu0 0.0
    %3052 = vmatpush1.msra.mxu0 0.0
    %3053 = vmatprep.subr.mxu0 0.0
    %3054 = vmatpush1.msra.mxu0 0.0
    %3055 = vmatprep.subr.mxu0 0.0
    %3056 = vmatpush1.msra.mxu0 0.0
    %3057 = vmatprep.subr.mxu0 0.0
    %3058 = vmatpush1.msra.mxu0 0.0
    %3059 = vmatprep.subr.mxu0 0.0
    %3060 = vmatpush1.msra.mxu0 0.0
    %3061 = vmatprep.subr.mxu0 0.0
    %3062 = vmatpush1.msra.mxu0 0.0
    %3063 = vmatprep.subr.mxu0 0.0
    %3064 = vmatpush1.msra.mxu0 0.0
    %3065 = vmatprep.subr.mxu0 0.0
    %3066 = vmatpush1.msra.mxu0 0.0
    %3067 = vmatprep.subr.mxu0 0.0
    %3068 = vmatpush1.msra.mxu0 0.0
    %3069 = vmatprep.subr.mxu0 0.0
    %3070 = vmatpush1.msra.mxu0 0.0
    %3071 = vmatprep.subr.mxu0 0.0
    %3072 = vmatpush1.msra.mxu0 0.0
    %3073 = vmatprep.subr.mxu0 0.0
    %3074 = vmatpush1.msra.mxu0 0.0
    %3075 = vmatprep.subr.mxu0 0.0
    %3076 = vmatpush1.msra.mxu0 0.0
    %3077 = vmatprep.subr.mxu0 0.0
    %3078 = vmatpush1.msra.mxu0 0.0
    %3079 = vmatprep.subr.mxu0 0.0
    %3080 = vmatpush1.msra.mxu0 0.0
    %3081 = vmatprep.subr.mxu0 0.0
    %3082 = vmatpush1.msra.mxu0 0.0
    %3083 = vmatprep.subr.mxu0 0.0
    %3084 = vmatpush1.msra.mxu0 0.0
    %3085 = vmatprep.subr.mxu0 0.0
    %3086 = vmatpush1.msra.mxu0 0.0
    %3087 = vmatprep.subr.mxu0 0.0
    %3088 = vmatpush1.msra.mxu0 0.0
    %3089 = vmatprep.mubr.f32.mxu0 0.0
    %3090 = vmatmul.mubr.f32.gmra.mrb[0].mxu0 %v2934
    %v3091 = vpop.f32.mrb[0].mxu0
    %v3092 = vadd.f32 0.0, %v3091
    %v3093 = vpop.f32.mrb[0].mxu0
    %3094 = vmatprep.mubr.f32.mxu0 0.0
    %3095 = vmatmul.mubr.f32.gmra.mrb[0].mxu0 %v2937
    %v3096 = vpop.f32.mrb[0].mxu0
    %v3097 = vadd.f32 0.0, %v3096
    %v3098 = vpop.f32.mrb[0].mxu0
    %3099 = vmatprep.mubr.f32.mxu0 0.0
    %3100 = vmatmul.mubr.f32.gmra.mrb[0].mxu0 %v2940
    %v3101 = vpop.f32.mrb[0].mxu0
    %v3102 = vadd.f32 0.0, %v3101
    %v3103 = vpop.f32.mrb[0].mxu0
    %3104 = vdwg.mxu0
    %s3105 = scalar_lea.vmem [#allocation19], 1
    %v3106 = vld [vmem:[%s3105] sm:$0x1]
    %v3108 = vlaneseq
    %v3109 = vshrl.u32 %v3108, 7
    %v3110 = vsub.s32 0, %v3109
    %v3111 = vrot.slane %v3106, %v3110
    %v3113 = vadd.f32 %v3092, %v3111
    %v3114 = vadd.f32 %v3097, %v3111
    %v3115 = vadd.f32 %v3102, %v3111
    %v3117 = vsel %vm513, %v3023, 0
    %3119 = vmatprep.subr.mxu0 0.0
    %3120 = vmatpush1.msra.mxu0 %v3011
    %3121 = vmatprep.subr.mxu0 0.0
    %3122 = vmatpush1.msra.mxu0 %v3017
    %3123 = vmatprep.subr.mxu0 0.0
    %3124 = vmatpush1.msra.mxu0 %v3117
    %3125 = vmatprep.subr.mxu0 0.0
    %3126 = vmatpush1.msra.mxu0 0.0
    %3127 = vmatprep.subr.mxu0 0.0
    %3128 = vmatpush1.msra.mxu0 0.0
    %3129 = vmatprep.subr.mxu0 0.0
    %3130 = vmatpush1.msra.mxu0 0.0
    %3131 = vmatprep.subr.mxu0 0.0
    %3132 = vmatpush1.msra.mxu0 0.0
    %3133 = vmatprep.subr.mxu0 0.0
    %3134 = vmatpush1.msra.mxu0 0.0
    %3135 = vmatprep.subr.mxu0 0.0
    %3136 = vmatpush1.msra.mxu0 0.0
    %3137 = vmatprep.subr.mxu0 0.0
    %3138 = vmatpush1.msra.mxu0 0.0
    %3139 = vmatprep.subr.mxu0 0.0
    %3140 = vmatpush1.msra.mxu0 0.0
    %3141 = vmatprep.subr.mxu0 0.0
    %3142 = vmatpush1.msra.mxu0 0.0
    %3143 = vmatprep.subr.mxu0 0.0
    %3144 = vmatpush1.msra.mxu0 0.0
    %3145 = vmatprep.subr.mxu0 0.0
    %3146 = vmatpush1.msra.mxu0 0.0
    %3147 = vmatprep.subr.mxu0 0.0
    %3148 = vmatpush1.msra.mxu0 0.0
    %3149 = vmatprep.subr.mxu0 0.0
    %3150 = vmatpush1.msra.mxu0 0.0
    %3151 = vmatprep.subr.mxu0 0.0
    %3152 = vmatpush1.msra.mxu0 0.0
    %3153 = vmatprep.subr.mxu0 0.0
    %3154 = vmatpush1.msra.mxu0 0.0
    %3155 = vmatprep.subr.mxu0 0.0
    %3156 = vmatpush1.msra.mxu0 0.0
    %3157 = vmatprep.subr.mxu0 0.0
    %3158 = vmatpush1.msra.mxu0 0.0
    %3159 = vmatprep.subr.mxu0 0.0
    %3160 = vmatpush1.msra.mxu0 0.0
    %3161 = vmatprep.subr.mxu0 0.0
    %3162 = vmatpush1.msra.mxu0 0.0
    %3163 = vmatprep.subr.mxu0 0.0
    %3164 = vmatpush1.msra.mxu0 0.0
    %3165 = vmatprep.subr.mxu0 0.0
    %3166 = vmatpush1.msra.mxu0 0.0
    %3167 = vmatprep.subr.mxu0 0.0
    %3168 = vmatpush1.msra.mxu0 0.0
    %3169 = vmatprep.subr.mxu0 0.0
    %3170 = vmatpush1.msra.mxu0 0.0
    %3171 = vmatprep.subr.mxu0 0.0
    %3172 = vmatpush1.msra.mxu0 0.0
    %3173 = vmatprep.subr.mxu0 0.0
    %3174 = vmatpush1.msra.mxu0 0.0
    %3175 = vmatprep.subr.mxu0 0.0
    %3176 = vmatpush1.msra.mxu0 0.0
    %3177 = vmatprep.subr.mxu0 0.0
    %3178 = vmatpush1.msra.mxu0 0.0
    %3179 = vmatprep.subr.mxu0 0.0
    %3180 = vmatpush1.msra.mxu0 0.0
    %3181 = vmatprep.subr.mxu0 0.0
    %3182 = vmatpush1.msra.mxu0 0.0
    %3183 = vmatprep.mubr.f32.mxu0 0.0
    %3184 = vmatmul.mubr.f32.gmra.mrb[0].mxu0 %v892
    %v3185 = vpop.f32.mrb[0].mxu0
    %v3186 = vadd.f32 0.0, %v3185
    %v3187 = vpop.f32.mrb[0].mxu0
    %3188 = vmatprep.mubr.f32.mxu0 0.0
    %3189 = vmatmul.mubr.f32.gmra.mrb[0].mxu0 %v895
    %v3190 = vpop.f32.mrb[0].mxu0
    %v3191 = vadd.f32 0.0, %v3190
    %v3192 = vpop.f32.mrb[0].mxu0
    %3193 = vmatprep.mubr.f32.mxu0 0.0
    %3194 = vmatmul.mubr.f32.gmra.mrb[0].mxu0 %v898
    %v3195 = vpop.f32.mrb[0].mxu0
    %v3196 = vadd.f32 0.0, %v3195
    %v3197 = vpop.f32.mrb[0].mxu0
    %3198 = vdwg.mxu0
    %v3199 = vadd.f32 %v3113, %v3186
    %v3200 = vadd.f32 %v3114, %v3191
    %v3201 = vadd.f32 %v3115, %v3196
    %v3203 = vsel %vm513, %v3021, 0
    %3205 = vmatprep.subr.mxu0 0.0
    %3206 = vmatpush1.msra.mxu0 %v3009
    %3207 = vmatprep.subr.mxu0 0.0
    %3208 = vmatpush1.msra.mxu0 %v3015
    %3209 = vmatprep.subr.mxu0 0.0
    %3210 = vmatpush1.msra.mxu0 %v3203
    %3211 = vmatprep.subr.mxu0 0.0
    %3212 = vmatpush1.msra.mxu0 0.0
    %3213 = vmatprep.subr.mxu0 0.0
    %3214 = vmatpush1.msra.mxu0 0.0
    %3215 = vmatprep.subr.mxu0 0.0
    %3216 = vmatpush1.msra.mxu0 0.0
    %3217 = vmatprep.subr.mxu0 0.0
    %3218 = vmatpush1.msra.mxu0 0.0
    %3219 = vmatprep.subr.mxu0 0.0
    %3220 = vmatpush1.msra.mxu0 0.0
    %3221 = vmatprep.subr.mxu0 0.0
    %3222 = vmatpush1.msra.mxu0 0.0
    %3223 = vmatprep.subr.mxu0 0.0
    %3224 = vmatpush1.msra.mxu0 0.0
    %3225 = vmatprep.subr.mxu0 0.0
    %3226 = vmatpush1.msra.mxu0 0.0
    %3227 = vmatprep.subr.mxu0 0.0
    %3228 = vmatpush1.msra.mxu0 0.0
    %3229 = vmatprep.subr.mxu0 0.0
    %3230 = vmatpush1.msra.mxu0 0.0
    %3231 = vmatprep.subr.mxu0 0.0
    %3232 = vmatpush1.msra.mxu0 0.0
    %3233 = vmatprep.subr.mxu0 0.0
    %3234 = vmatpush1.msra.mxu0 0.0
    %3235 = vmatprep.subr.mxu0 0.0
    %3236 = vmatpush1.msra.mxu0 0.0
    %3237 = vmatprep.subr.mxu0 0.0
    %3238 = vmatpush1.msra.mxu0 0.0
    %3239 = vmatprep.subr.mxu0 0.0
    %3240 = vmatpush1.msra.mxu0 0.0
    %3241 = vmatprep.subr.mxu0 0.0
    %3242 = vmatpush1.msra.mxu0 0.0
    %3243 = vmatprep.subr.mxu0 0.0
    %3244 = vmatpush1.msra.mxu0 0.0
    %3245 = vmatprep.subr.mxu0 0.0
    %3246 = vmatpush1.msra.mxu0 0.0
    %3247 = vmatprep.subr.mxu0 0.0
    %3248 = vmatpush1.msra.mxu0 0.0
    %3249 = vmatprep.subr.mxu0 0.0
    %3250 = vmatpush1.msra.mxu0 0.0
    %3251 = vmatprep.subr.mxu0 0.0
    %3252 = vmatpush1.msra.mxu0 0.0
    %3253 = vmatprep.subr.mxu0 0.0
    %3254 = vmatpush1.msra.mxu0 0.0
    %3255 = vmatprep.subr.mxu0 0.0
    %3256 = vmatpush1.msra.mxu0 0.0
    %3257 = vmatprep.subr.mxu0 0.0
    %3258 = vmatpush1.msra.mxu0 0.0
    %3259 = vmatprep.subr.mxu0 0.0
    %3260 = vmatpush1.msra.mxu0 0.0
    %3261 = vmatprep.subr.mxu0 0.0
    %3262 = vmatpush1.msra.mxu0 0.0
    %3263 = vmatprep.subr.mxu0 0.0
    %3264 = vmatpush1.msra.mxu0 0.0
    %3265 = vmatprep.subr.mxu0 0.0
    %3266 = vmatpush1.msra.mxu0 0.0
    %3267 = vmatprep.subr.mxu0 0.0
    %3268 = vmatpush1.msra.mxu0 0.0
    %3269 = vmatprep.mubr.f32.mxu0 0.0
    %3270 = vmatmul.mubr.f32.gmra.mrb[0].mxu0 %v505
    %v3271 = vpop.f32.mrb[0].mxu0
    %v3272 = vadd.f32 0.0, %v3271
    %v3273 = vpop.f32.mrb[0].mxu0
    %3274 = vmatprep.mubr.f32.mxu0 0.0
    %3275 = vmatmul.mubr.f32.gmra.mrb[0].mxu0 %v508
    %v3276 = vpop.f32.mrb[0].mxu0
    %v3277 = vadd.f32 0.0, %v3276
    %v3278 = vpop.f32.mrb[0].mxu0
    %3279 = vmatprep.mubr.f32.mxu0 0.0
    %3280 = vmatmul.mubr.f32.gmra.mrb[0].mxu0 %v511
    %v3281 = vpop.f32.mrb[0].mxu0
    %v3282 = vadd.f32 0.0, %v3281
    %v3283 = vpop.f32.mrb[0].mxu0
    %3284 = vdwg.mxu0
    %v3285 = vadd.f32 %v3199, %v3272
    %v3286 = vadd.f32 %v3200, %v3277
    %v3287 = vadd.f32 %v3201, %v3282
    %s3288 = scalar_lea.vmem [#allocation17], 192
    %v3289 = vld [vmem:[%s3288] sm:$0xff]
    %v3290 = vld [vmem:[%s3288 + $0x8] sm:$0xff]
    %v3291 = vld [vmem:[%s3288 + $0x10] sm:$0xff]
    %v3292 = vld [vmem:[%s3288 + $0x18] sm:$0xff]
    %v3293 = vld [vmem:[%s3288 + $0x20] sm:$0xff]
    %v3294 = vld [vmem:[%s3288 + $0x28] sm:$0xff]
    %v3295 = vld [vmem:[%s3288 + $0x30] sm:$0xff]
    %v3296 = vld [vmem:[%s3288 + $0x38] sm:$0xff]
    %v3297 = vld [vmem:[%s3288 + $0x40] sm:$0xff]
    %v3298 = vld [vmem:[%s3288 + $0x48] sm:$0xff]
    %v3299 = vld [vmem:[%s3288 + $0x50] sm:$0xff]
    %v3300 = vld [vmem:[%s3288 + $0x58] sm:$0xff]
    %v3302 = vsel %vm320, %v3285, 0
    %v3305 = vsel %vm320, %v3286, 0
    %v3308 = vsel %vm320, %v3287, 0
    %3310 = vmatprep.subr.mxu0 %v3290
    %3311 = vmatpush1.msra.mxu0 %v3289
    %3312 = vmatprep.subr.mxu0 %v3293
    %3313 = vmatpush1.msra.mxu0 %v3292
    %3314 = vmatprep.subr.mxu0 %v3296
    %3315 = vmatpush1.msra.mxu0 %v3295
    %3316 = vmatprep.subr.mxu0 %v3299
    %3317 = vmatpush1.msra.mxu0 %v3298
    %3318 = vmatprep.subr.mxu0 0.0
    %3319 = vmatpush1.msra.mxu0 0.0
    %3320 = vmatprep.subr.mxu0 0.0
    %3321 = vmatpush1.msra.mxu0 0.0
    %3322 = vmatprep.subr.mxu0 0.0
    %3323 = vmatpush1.msra.mxu0 0.0
    %3324 = vmatprep.subr.mxu0 0.0
    %3325 = vmatpush1.msra.mxu0 0.0
    %3326 = vmatprep.subr.mxu0 0.0
    %3327 = vmatpush1.msra.mxu0 0.0
    %3328 = vmatprep.subr.mxu0 0.0
    %3329 = vmatpush1.msra.mxu0 0.0
    %3330 = vmatprep.subr.mxu0 0.0
    %3331 = vmatpush1.msra.mxu0 0.0
    %3332 = vmatprep.subr.mxu0 0.0
    %3333 = vmatpush1.msra.mxu0 0.0
    %3334 = vmatprep.subr.mxu0 0.0
    %3335 = vmatpush1.msra.mxu0 0.0
    %3336 = vmatprep.subr.mxu0 0.0
    %3337 = vmatpush1.msra.mxu0 0.0
    %3338 = vmatprep.subr.mxu0 0.0
    %3339 = vmatpush1.msra.mxu0 0.0
    %3340 = vmatprep.subr.mxu0 0.0
    %3341 = vmatpush1.msra.mxu0 0.0
    %3342 = vmatprep.subr.mxu0 0.0
    %3343 = vmatpush1.msra.mxu0 0.0
    %3344 = vmatprep.subr.mxu0 0.0
    %3345 = vmatpush1.msra.mxu0 0.0
    %3346 = vmatprep.subr.mxu0 0.0
    %3347 = vmatpush1.msra.mxu0 0.0
    %3348 = vmatprep.subr.mxu0 0.0
    %3349 = vmatpush1.msra.mxu0 0.0
    %3350 = vmatprep.subr.mxu0 0.0
    %3351 = vmatpush1.msra.mxu0 0.0
    %3352 = vmatprep.subr.mxu0 0.0
    %3353 = vmatpush1.msra.mxu0 0.0
    %3354 = vmatprep.subr.mxu0 0.0
    %3355 = vmatpush1.msra.mxu0 0.0
    %3356 = vmatprep.subr.mxu0 0.0
    %3357 = vmatpush1.msra.mxu0 0.0
    %3358 = vmatprep.subr.mxu0 0.0
    %3359 = vmatpush1.msra.mxu0 0.0
    %3360 = vmatprep.subr.mxu0 0.0
    %3361 = vmatpush1.msra.mxu0 0.0
    %3362 = vmatprep.subr.mxu0 0.0
    %3363 = vmatpush1.msra.mxu0 0.0
    %3364 = vmatprep.subr.mxu0 0.0
    %3365 = vmatpush1.msra.mxu0 0.0
    %3366 = vmatprep.subr.mxu0 0.0
    %3367 = vmatpush1.msra.mxu0 0.0
    %3368 = vmatprep.subr.mxu0 0.0
    %3369 = vmatpush1.msra.mxu0 0.0
    %3370 = vmatprep.subr.mxu0 0.0
    %3371 = vmatpush1.msra.mxu0 0.0
    %3372 = vmatprep.subr.mxu0 0.0
    %3373 = vmatpush1.msra.mxu0 0.0
    %3374 = vmatprep.mubr.f32.mxu0 0.0
    %3375 = vmatmul.mubr.f32.gmra.mrb[0].mxu0 %v3302
    %v3376 = vpop.f32.mrb[0].mxu0
    %v3377 = vadd.f32 0.0, %v3376
    %v3378 = vpop.f32.mrb[0].mxu0
    %v3379 = vadd.f32 0.0, %v3378
    %3380 = vmatprep.mubr.f32.mxu0 0.0
    %3381 = vmatmul.mubr.f32.gmra.mrb[0].mxu0 %v3305
    %v3382 = vpop.f32.mrb[0].mxu0
    %v3383 = vadd.f32 0.0, %v3382
    %v3384 = vpop.f32.mrb[0].mxu0
    %v3385 = vadd.f32 0.0, %v3384
    %3386 = vmatprep.mubr.f32.mxu0 0.0
    %3387 = vmatmul.mubr.f32.gmra.mrb[0].mxu0 %v3308
    %v3388 = vpop.f32.mrb[0].mxu0
    %v3389 = vadd.f32 0.0, %v3388
    %v3390 = vpop.f32.mrb[0].mxu0
    %v3391 = vadd.f32 0.0, %v3390
    %3392 = vdwg.mxu0
    %3393 = vmatprep.subr.mxu0 0.0
    %3394 = vmatpush1.msra.mxu0 %v3291
    %3395 = vmatprep.subr.mxu0 0.0
    %3396 = vmatpush1.msra.mxu0 %v3294
    %3397 = vmatprep.subr.mxu0 0.0
    %3398 = vmatpush1.msra.mxu0 %v3297
    %3399 = vmatprep.subr.mxu0 0.0
    %3400 = vmatpush1.msra.mxu0 %v3300
    %3401 = vmatprep.subr.mxu0 0.0
    %3402 = vmatpush1.msra.mxu0 0.0
    %3403 = vmatprep.subr.mxu0 0.0
    %3404 = vmatpush1.msra.mxu0 0.0
    %3405 = vmatprep.subr.mxu0 0.0
    %3406 = vmatpush1.msra.mxu0 0.0
    %3407 = vmatprep.subr.mxu0 0.0
    %3408 = vmatpush1.msra.mxu0 0.0
    %3409 = vmatprep.subr.mxu0 0.0
    %3410 = vmatpush1.msra.mxu0 0.0
    %3411 = vmatprep.subr.mxu0 0.0
    %3412 = vmatpush1.msra.mxu0 0.0
    %3413 = vmatprep.subr.mxu0 0.0
    %3414 = vmatpush1.msra.mxu0 0.0
    %3415 = vmatprep.subr.mxu0 0.0
    %3416 = vmatpush1.msra.mxu0 0.0
    %3417 = vmatprep.subr.mxu0 0.0
    %3418 = vmatpush1.msra.mxu0 0.0
    %3419 = vmatprep.subr.mxu0 0.0
    %3420 = vmatpush1.msra.mxu0 0.0
    %3421 = vmatprep.subr.mxu0 0.0
    %3422 = vmatpush1.msra.mxu0 0.0
    %3423 = vmatprep.subr.mxu0 0.0
    %3424 = vmatpush1.msra.mxu0 0.0
    %3425 = vmatprep.subr.mxu0 0.0
    %3426 = vmatpush1.msra.mxu0 0.0
    %3427 = vmatprep.subr.mxu0 0.0
    %3428 = vmatpush1.msra.mxu0 0.0
    %3429 = vmatprep.subr.mxu0 0.0
    %3430 = vmatpush1.msra.mxu0 0.0
    %3431 = vmatprep.subr.mxu0 0.0
    %3432 = vmatpush1.msra.mxu0 0.0
    %3433 = vmatprep.subr.mxu0 0.0
    %3434 = vmatpush1.msra.mxu0 0.0
    %3435 = vmatprep.subr.mxu0 0.0
    %3436 = vmatpush1.msra.mxu0 0.0
    %3437 = vmatprep.subr.mxu0 0.0
    %3438 = vmatpush1.msra.mxu0 0.0
    %3439 = vmatprep.subr.mxu0 0.0
    %3440 = vmatpush1.msra.mxu0 0.0
    %3441 = vmatprep.subr.mxu0 0.0
    %3442 = vmatpush1.msra.mxu0 0.0
    %3443 = vmatprep.subr.mxu0 0.0
    %3444 = vmatpush1.msra.mxu0 0.0
    %3445 = vmatprep.subr.mxu0 0.0
    %3446 = vmatpush1.msra.mxu0 0.0
    %3447 = vmatprep.subr.mxu0 0.0
    %3448 = vmatpush1.msra.mxu0 0.0
    %3449 = vmatprep.subr.mxu0 0.0
    %3450 = vmatpush1.msra.mxu0 0.0
    %3451 = vmatprep.subr.mxu0 0.0
    %3452 = vmatpush1.msra.mxu0 0.0
    %3453 = vmatprep.subr.mxu0 0.0
    %3454 = vmatpush1.msra.mxu0 0.0
    %3455 = vmatprep.subr.mxu0 0.0
    %3456 = vmatpush1.msra.mxu0 0.0
    %3457 = vmatprep.mubr.f32.mxu0 0.0
    %3458 = vmatmul.mubr.f32.gmra.mrb[0].mxu0 %v3302
    %v3459 = vpop.f32.mrb[0].mxu0
    %v3460 = vadd.f32 0.0, %v3459
    %v3461 = vpop.f32.mrb[0].mxu0
    %3462 = vmatprep.mubr.f32.mxu0 0.0
    %3463 = vmatmul.mubr.f32.gmra.mrb[0].mxu0 %v3305
    %v3464 = vpop.f32.mrb[0].mxu0
    %v3465 = vadd.f32 0.0, %v3464
    %v3466 = vpop.f32.mrb[0].mxu0
    %3467 = vmatprep.mubr.f32.mxu0 0.0
    %3468 = vmatmul.mubr.f32.gmra.mrb[0].mxu0 %v3308
    %v3469 = vpop.f32.mrb[0].mxu0
    %v3470 = vadd.f32 0.0, %v3469
    %v3471 = vpop.f32.mrb[0].mxu0
    %3472 = vdwg.mxu0
    %s3473 = scalar_lea.vmem [#allocation19], 2
    %v3474 = vld [vmem:[%s3473] sm:$0x1]
    %v3476 = vlaneseq
    %v3477 = vshrl.u32 %v3476, 7
    %v3478 = vsub.s32 0, %v3477
    %v3479 = vrot.slane %v3474, %v3478
    %v3481 = vadd.f32 %v3460, %v3479
    %v3482 = vadd.f32 %v3465, %v3479
    %v3483 = vadd.f32 %v3470, %v3479
    %v3485 = vsel %vm513, %v3391, 0
    %3487 = vmatprep.subr.mxu0 0.0
    %3488 = vmatpush1.msra.mxu0 %v3379
    %3489 = vmatprep.subr.mxu0 0.0
    %3490 = vmatpush1.msra.mxu0 %v3385
    %3491 = vmatprep.subr.mxu0 0.0
    %3492 = vmatpush1.msra.mxu0 %v3485
    %3493 = vmatprep.subr.mxu0 0.0
    %3494 = vmatpush1.msra.mxu0 0.0
    %3495 = vmatprep.subr.mxu0 0.0
    %3496 = vmatpush1.msra.mxu0 0.0
    %3497 = vmatprep.subr.mxu0 0.0
    %3498 = vmatpush1.msra.mxu0 0.0
    %3499 = vmatprep.subr.mxu0 0.0
    %3500 = vmatpush1.msra.mxu0 0.0
    %3501 = vmatprep.subr.mxu0 0.0
    %3502 = vmatpush1.msra.mxu0 0.0
    %3503 = vmatprep.subr.mxu0 0.0
    %3504 = vmatpush1.msra.mxu0 0.0
    %3505 = vmatprep.subr.mxu0 0.0
    %3506 = vmatpush1.msra.mxu0 0.0
    %3507 = vmatprep.subr.mxu0 0.0
    %3508 = vmatpush1.msra.mxu0 0.0
    %3509 = vmatprep.subr.mxu0 0.0
    %3510 = vmatpush1.msra.mxu0 0.0
    %3511 = vmatprep.subr.mxu0 0.0
    %3512 = vmatpush1.msra.mxu0 0.0
    %3513 = vmatprep.subr.mxu0 0.0
    %3514 = vmatpush1.msra.mxu0 0.0
    %3515 = vmatprep.subr.mxu0 0.0
    %3516 = vmatpush1.msra.mxu0 0.0
    %3517 = vmatprep.subr.mxu0 0.0
    %3518 = vmatpush1.msra.mxu0 0.0
    %3519 = vmatprep.subr.mxu0 0.0
    %3520 = vmatpush1.msra.mxu0 0.0
    %3521 = vmatprep.subr.mxu0 0.0
    %3522 = vmatpush1.msra.mxu0 0.0
    %3523 = vmatprep.subr.mxu0 0.0
    %3524 = vmatpush1.msra.mxu0 0.0
    %3525 = vmatprep.subr.mxu0 0.0
    %3526 = vmatpush1.msra.mxu0 0.0
    %3527 = vmatprep.subr.mxu0 0.0
    %3528 = vmatpush1.msra.mxu0 0.0
    %3529 = vmatprep.subr.mxu0 0.0
    %3530 = vmatpush1.msra.mxu0 0.0
    %3531 = vmatprep.subr.mxu0 0.0
    %3532 = vmatpush1.msra.mxu0 0.0
    %3533 = vmatprep.subr.mxu0 0.0
    %3534 = vmatpush1.msra.mxu0 0.0
    %3535 = vmatprep.subr.mxu0 0.0
    %3536 = vmatpush1.msra.mxu0 0.0
    %3537 = vmatprep.subr.mxu0 0.0
    %3538 = vmatpush1.msra.mxu0 0.0
    %3539 = vmatprep.subr.mxu0 0.0
    %3540 = vmatpush1.msra.mxu0 0.0
    %3541 = vmatprep.subr.mxu0 0.0
    %3542 = vmatpush1.msra.mxu0 0.0
    %3543 = vmatprep.subr.mxu0 0.0
    %3544 = vmatpush1.msra.mxu0 0.0
    %3545 = vmatprep.subr.mxu0 0.0
    %3546 = vmatpush1.msra.mxu0 0.0
    %3547 = vmatprep.subr.mxu0 0.0
    %3548 = vmatpush1.msra.mxu0 0.0
    %3549 = vmatprep.subr.mxu0 0.0
    %3550 = vmatpush1.msra.mxu0 0.0
    %3551 = vmatprep.mubr.f32.mxu0 0.0
    %3552 = vmatmul.mubr.f32.gmra.mrb[0].mxu0 %v1269
    %v3553 = vpop.f32.mrb[0].mxu0
    %v3554 = vadd.f32 0.0, %v3553
    %v3555 = vpop.f32.mrb[0].mxu0
    %3556 = vmatprep.mubr.f32.mxu0 0.0
    %3557 = vmatmul.mubr.f32.gmra.mrb[0].mxu0 %v1272
    %v3558 = vpop.f32.mrb[0].mxu0
    %v3559 = vadd.f32 0.0, %v3558
    %v3560 = vpop.f32.mrb[0].mxu0
    %3561 = vmatprep.mubr.f32.mxu0 0.0
    %3562 = vmatmul.mubr.f32.gmra.mrb[0].mxu0 %v1275
    %v3563 = vpop.f32.mrb[0].mxu0
    %v3564 = vadd.f32 0.0, %v3563
    %v3565 = vpop.f32.mrb[0].mxu0
    %3566 = vdwg.mxu0
    %v3567 = vadd.f32 %v3481, %v3554
    %v3568 = vadd.f32 %v3482, %v3559
    %v3569 = vadd.f32 %v3483, %v3564
    %v3571 = vsel %vm513, %v3389, 0
    %3573 = vmatprep.subr.mxu0 0.0
    %3574 = vmatpush1.msra.mxu0 %v3377
    %3575 = vmatprep.subr.mxu0 0.0
    %3576 = vmatpush1.msra.mxu0 %v3383
    %3577 = vmatprep.subr.mxu0 0.0
    %3578 = vmatpush1.msra.mxu0 %v3571
    %3579 = vmatprep.subr.mxu0 0.0
    %3580 = vmatpush1.msra.mxu0 0.0
    %3581 = vmatprep.subr.mxu0 0.0
    %3582 = vmatpush1.msra.mxu0 0.0
    %3583 = vmatprep.subr.mxu0 0.0
    %3584 = vmatpush1.msra.mxu0 0.0
    %3585 = vmatprep.subr.mxu0 0.0
    %3586 = vmatpush1.msra.mxu0 0.0
    %3587 = vmatprep.subr.mxu0 0.0
    %3588 = vmatpush1.msra.mxu0 0.0
    %3589 = vmatprep.subr.mxu0 0.0
    %3590 = vmatpush1.msra.mxu0 0.0
    %3591 = vmatprep.subr.mxu0 0.0
    %3592 = vmatpush1.msra.mxu0 0.0
    %3593 = vmatprep.subr.mxu0 0.0
    %3594 = vmatpush1.msra.mxu0 0.0
    %3595 = vmatprep.subr.mxu0 0.0
    %3596 = vmatpush1.msra.mxu0 0.0
    %3597 = vmatprep.subr.mxu0 0.0
    %3598 = vmatpush1.msra.mxu0 0.0
    %3599 = vmatprep.subr.mxu0 0.0
    %3600 = vmatpush1.msra.mxu0 0.0
    %3601 = vmatprep.subr.mxu0 0.0
    %3602 = vmatpush1.msra.mxu0 0.0
    %3603 = vmatprep.subr.mxu0 0.0
    %3604 = vmatpush1.msra.mxu0 0.0
    %3605 = vmatprep.subr.mxu0 0.0
    %3606 = vmatpush1.msra.mxu0 0.0
    %3607 = vmatprep.subr.mxu0 0.0
    %3608 = vmatpush1.msra.mxu0 0.0
    %3609 = vmatprep.subr.mxu0 0.0
    %3610 = vmatpush1.msra.mxu0 0.0
    %3611 = vmatprep.subr.mxu0 0.0
    %3612 = vmatpush1.msra.mxu0 0.0
    %3613 = vmatprep.subr.mxu0 0.0
    %3614 = vmatpush1.msra.mxu0 0.0
    %3615 = vmatprep.subr.mxu0 0.0
    %3616 = vmatpush1.msra.mxu0 0.0
    %3617 = vmatprep.subr.mxu0 0.0
    %3618 = vmatpush1.msra.mxu0 0.0
    %3619 = vmatprep.subr.mxu0 0.0
    %3620 = vmatpush1.msra.mxu0 0.0
    %3621 = vmatprep.subr.mxu0 0.0
    %3622 = vmatpush1.msra.mxu0 0.0
    %3623 = vmatprep.subr.mxu0 0.0
    %3624 = vmatpush1.msra.mxu0 0.0
    %3625 = vmatprep.subr.mxu0 0.0
    %3626 = vmatpush1.msra.mxu0 0.0
    %3627 = vmatprep.subr.mxu0 0.0
    %3628 = vmatpush1.msra.mxu0 0.0
    %3629 = vmatprep.subr.mxu0 0.0
    %3630 = vmatpush1.msra.mxu0 0.0
    %3631 = vmatprep.subr.mxu0 0.0
    %3632 = vmatpush1.msra.mxu0 0.0
    %3633 = vmatprep.subr.mxu0 0.0
    %3634 = vmatpush1.msra.mxu0 0.0
    %3635 = vmatprep.subr.mxu0 0.0
    %3636 = vmatpush1.msra.mxu0 0.0
    %3637 = vmatprep.mubr.f32.mxu0 0.0
    %3638 = vmatmul.mubr.f32.gmra.mrb[0].mxu0 %v892
    %v3639 = vpop.f32.mrb[0].mxu0
    %v3640 = vadd.f32 0.0, %v3639
    %v3641 = vpop.f32.mrb[0].mxu0
    %3642 = vmatprep.mubr.f32.mxu0 0.0
    %3643 = vmatmul.mubr.f32.gmra.mrb[0].mxu0 %v895
    %v3644 = vpop.f32.mrb[0].mxu0
    %v3645 = vadd.f32 0.0, %v3644
    %v3646 = vpop.f32.mrb[0].mxu0
    %3647 = vmatprep.mubr.f32.mxu0 0.0
    %3648 = vmatmul.mubr.f32.gmra.mrb[0].mxu0 %v898
    %v3649 = vpop.f32.mrb[0].mxu0
    %v3650 = vadd.f32 0.0, %v3649
    %v3651 = vpop.f32.mrb[0].mxu0
    %3652 = vdwg.mxu0
    %v3653 = vadd.f32 %v3567, %v3640
    %v3654 = vadd.f32 %v3568, %v3645
    %v3655 = vadd.f32 %v3569, %v3650
    %v3656 = vmax.f32 %v3653, 0.0
    %v3657 = vmax.f32 %v3654, 0.0
    %v3658 = vmax.f32 %v3655, 0.0
    %v3659 = vadd.f32 %v3656, %v1452
    %v3660 = vadd.f32 %v3657, %v1453
    %v3661 = vadd.f32 %v3658, %v1454
    %v3663 = vsel %vm320, %v2551, 0
    %v3666 = vsel %vm320, %v2552, 0
    %v3669 = vsel %vm320, %v2553, 0
    %3671 = vmatprep.subr.mxu0 %v2555
    %3672 = vmatpush1.msra.mxu0 %v2554
    %3673 = vmatprep.subr.mxu0 %v2558
    %3674 = vmatpush1.msra.mxu0 %v2557
    %3675 = vmatprep.subr.mxu0 %v2561
    %3676 = vmatpush1.msra.mxu0 %v2560
    %3677 = vmatprep.subr.mxu0 %v2564
    %3678 = vmatpush1.msra.mxu0 %v2563
    %3679 = vmatprep.subr.mxu0 0.0
    %3680 = vmatpush1.msra.mxu0 0.0
    %3681 = vmatprep.subr.mxu0 0.0
    %3682 = vmatpush1.msra.mxu0 0.0
    %3683 = vmatprep.subr.mxu0 0.0
    %3684 = vmatpush1.msra.mxu0 0.0
    %3685 = vmatprep.subr.mxu0 0.0
    %3686 = vmatpush1.msra.mxu0 0.0
    %3687 = vmatprep.subr.mxu0 0.0
    %3688 = vmatpush1.msra.mxu0 0.0
    %3689 = vmatprep.subr.mxu0 0.0
    %3690 = vmatpush1.msra.mxu0 0.0
    %3691 = vmatprep.subr.mxu0 0.0
    %3692 = vmatpush1.msra.mxu0 0.0
    %3693 = vmatprep.subr.mxu0 0.0
    %3694 = vmatpush1.msra.mxu0 0.0
    %3695 = vmatprep.subr.mxu0 0.0
    %3696 = vmatpush1.msra.mxu0 0.0
    %3697 = vmatprep.subr.mxu0 0.0
    %3698 = vmatpush1.msra.mxu0 0.0
    %3699 = vmatprep.subr.mxu0 0.0
    %3700 = vmatpush1.msra.mxu0 0.0
    %3701 = vmatprep.subr.mxu0 0.0
    %3702 = vmatpush1.msra.mxu0 0.0
    %3703 = vmatprep.subr.mxu0 0.0
    %3704 = vmatpush1.msra.mxu0 0.0
    %3705 = vmatprep.subr.mxu0 0.0
    %3706 = vmatpush1.msra.mxu0 0.0
    %3707 = vmatprep.subr.mxu0 0.0
    %3708 = vmatpush1.msra.mxu0 0.0
    %3709 = vmatprep.subr.mxu0 0.0
    %3710 = vmatpush1.msra.mxu0 0.0
    %3711 = vmatprep.subr.mxu0 0.0
    %3712 = vmatpush1.msra.mxu0 0.0
    %3713 = vmatprep.subr.mxu0 0.0
    %3714 = vmatpush1.msra.mxu0 0.0
    %3715 = vmatprep.subr.mxu0 0.0
    %3716 = vmatpush1.msra.mxu0 0.0
    %3717 = vmatprep.subr.mxu0 0.0
    %3718 = vmatpush1.msra.mxu0 0.0
    %3719 = vmatprep.subr.mxu0 0.0
    %3720 = vmatpush1.msra.mxu0 0.0
    %3721 = vmatprep.subr.mxu0 0.0
    %3722 = vmatpush1.msra.mxu0 0.0
    %3723 = vmatprep.subr.mxu0 0.0
    %3724 = vmatpush1.msra.mxu0 0.0
    %3725 = vmatprep.subr.mxu0 0.0
    %3726 = vmatpush1.msra.mxu0 0.0
    %3727 = vmatprep.subr.mxu0 0.0
    %3728 = vmatpush1.msra.mxu0 0.0
    %3729 = vmatprep.subr.mxu0 0.0
    %3730 = vmatpush1.msra.mxu0 0.0
    %3731 = vmatprep.subr.mxu0 0.0
    %3732 = vmatpush1.msra.mxu0 0.0
    %3733 = vmatprep.subr.mxu0 0.0
    %3734 = vmatpush1.msra.mxu0 0.0
    %3735 = vmatprep.mubr.f32.mxu0 0.0
    %3736 = vmatmul.mubr.f32.gmra.mrb[0].mxu0 %v3663
    %v3737 = vpop.f32.mrb[0].mxu0
    %v3738 = vadd.f32 0.0, %v3737
    %v3739 = vpop.f32.mrb[0].mxu0
    %v3740 = vadd.f32 0.0, %v3739
    %3741 = vmatprep.mubr.f32.mxu0 0.0
    %3742 = vmatmul.mubr.f32.gmra.mrb[0].mxu0 %v3666
    %v3743 = vpop.f32.mrb[0].mxu0
    %v3744 = vadd.f32 0.0, %v3743
    %v3745 = vpop.f32.mrb[0].mxu0
    %v3746 = vadd.f32 0.0, %v3745
    %3747 = vmatprep.mubr.f32.mxu0 0.0
    %3748 = vmatmul.mubr.f32.gmra.mrb[0].mxu0 %v3669
    %v3749 = vpop.f32.mrb[0].mxu0
    %v3750 = vadd.f32 0.0, %v3749
    %v3751 = vpop.f32.mrb[0].mxu0
    %v3752 = vadd.f32 0.0, %v3751
    %3753 = vdwg.mxu0
    %3754 = vmatprep.subr.mxu0 0.0
    %3755 = vmatpush1.msra.mxu0 %v2556
    %3756 = vmatprep.subr.mxu0 0.0
    %3757 = vmatpush1.msra.mxu0 %v2559
    %3758 = vmatprep.subr.mxu0 0.0
    %3759 = vmatpush1.msra.mxu0 %v2562
    %3760 = vmatprep.subr.mxu0 0.0
    %3761 = vmatpush1.msra.mxu0 %v2565
    %3762 = vmatprep.subr.mxu0 0.0
    %3763 = vmatpush1.msra.mxu0 0.0
    %3764 = vmatprep.subr.mxu0 0.0
    %3765 = vmatpush1.msra.mxu0 0.0
    %3766 = vmatprep.subr.mxu0 0.0
    %3767 = vmatpush1.msra.mxu0 0.0
    %3768 = vmatprep.subr.mxu0 0.0
    %3769 = vmatpush1.msra.mxu0 0.0
    %3770 = vmatprep.subr.mxu0 0.0
    %3771 = vmatpush1.msra.mxu0 0.0
    %3772 = vmatprep.subr.mxu0 0.0
    %3773 = vmatpush1.msra.mxu0 0.0
    %3774 = vmatprep.subr.mxu0 0.0
    %3775 = vmatpush1.msra.mxu0 0.0
    %3776 = vmatprep.subr.mxu0 0.0
    %3777 = vmatpush1.msra.mxu0 0.0
    %3778 = vmatprep.subr.mxu0 0.0
    %3779 = vmatpush1.msra.mxu0 0.0
    %3780 = vmatprep.subr.mxu0 0.0
    %3781 = vmatpush1.msra.mxu0 0.0
    %3782 = vmatprep.subr.mxu0 0.0
    %3783 = vmatpush1.msra.mxu0 0.0
    %3784 = vmatprep.subr.mxu0 0.0
    %3785 = vmatpush1.msra.mxu0 0.0
    %3786 = vmatprep.subr.mxu0 0.0
    %3787 = vmatpush1.msra.mxu0 0.0
    %3788 = vmatprep.subr.mxu0 0.0
    %3789 = vmatpush1.msra.mxu0 0.0
    %3790 = vmatprep.subr.mxu0 0.0
    %3791 = vmatpush1.msra.mxu0 0.0
    %3792 = vmatprep.subr.mxu0 0.0
    %3793 = vmatpush1.msra.mxu0 0.0
    %3794 = vmatprep.subr.mxu0 0.0
    %3795 = vmatpush1.msra.mxu0 0.0
    %3796 = vmatprep.subr.mxu0 0.0
    %3797 = vmatpush1.msra.mxu0 0.0
    %3798 = vmatprep.subr.mxu0 0.0
    %3799 = vmatpush1.msra.mxu0 0.0
    %3800 = vmatprep.subr.mxu0 0.0
    %3801 = vmatpush1.msra.mxu0 0.0
    %3802 = vmatprep.subr.mxu0 0.0
    %3803 = vmatpush1.msra.mxu0 0.0
    %3804 = vmatprep.subr.mxu0 0.0
    %3805 = vmatpush1.msra.mxu0 0.0
    %3806 = vmatprep.subr.mxu0 0.0
    %3807 = vmatpush1.msra.mxu0 0.0
    %3808 = vmatprep.subr.mxu0 0.0
    %3809 = vmatpush1.msra.mxu0 0.0
    %3810 = vmatprep.subr.mxu0 0.0
    %3811 = vmatpush1.msra.mxu0 0.0
    %3812 = vmatprep.subr.mxu0 0.0
    %3813 = vmatpush1.msra.mxu0 0.0
    %3814 = vmatprep.subr.mxu0 0.0
    %3815 = vmatpush1.msra.mxu0 0.0
    %3816 = vmatprep.subr.mxu0 0.0
    %3817 = vmatpush1.msra.mxu0 0.0
    %3818 = vmatprep.mubr.f32.mxu0 0.0
    %3819 = vmatmul.mubr.f32.gmra.mrb[0].mxu0 %v3663
    %v3820 = vpop.f32.mrb[0].mxu0
    %v3821 = vadd.f32 0.0, %v3820
    %v3822 = vpop.f32.mrb[0].mxu0
    %3823 = vmatprep.mubr.f32.mxu0 0.0
    %3824 = vmatmul.mubr.f32.gmra.mrb[0].mxu0 %v3666
    %v3825 = vpop.f32.mrb[0].mxu0
    %v3826 = vadd.f32 0.0, %v3825
    %v3827 = vpop.f32.mrb[0].mxu0
    %3828 = vmatprep.mubr.f32.mxu0 0.0
    %3829 = vmatmul.mubr.f32.gmra.mrb[0].mxu0 %v3669
    %v3830 = vpop.f32.mrb[0].mxu0
    %v3831 = vadd.f32 0.0, %v3830
    %v3832 = vpop.f32.mrb[0].mxu0
    %3833 = vdwg.mxu0
    %v3834 = vadd.f32 %v3821, %v2743
    %v3835 = vadd.f32 %v3826, %v2743
    %v3836 = vadd.f32 %v3831, %v2743
    %v3838 = vsel %vm513, %v3752, 0
    %3840 = vmatprep.subr.mxu0 0.0
    %3841 = vmatpush1.msra.mxu0 %v3740
    %3842 = vmatprep.subr.mxu0 0.0
    %3843 = vmatpush1.msra.mxu0 %v3746
    %3844 = vmatprep.subr.mxu0 0.0
    %3845 = vmatpush1.msra.mxu0 %v3838
    %3846 = vmatprep.subr.mxu0 0.0
    %3847 = vmatpush1.msra.mxu0 0.0
    %3848 = vmatprep.subr.mxu0 0.0
    %3849 = vmatpush1.msra.mxu0 0.0
    %3850 = vmatprep.subr.mxu0 0.0
    %3851 = vmatpush1.msra.mxu0 0.0
    %3852 = vmatprep.subr.mxu0 0.0
    %3853 = vmatpush1.msra.mxu0 0.0
    %3854 = vmatprep.subr.mxu0 0.0
    %3855 = vmatpush1.msra.mxu0 0.0
    %3856 = vmatprep.subr.mxu0 0.0
    %3857 = vmatpush1.msra.mxu0 0.0
    %3858 = vmatprep.subr.mxu0 0.0
    %3859 = vmatpush1.msra.mxu0 0.0
    %3860 = vmatprep.subr.mxu0 0.0
    %3861 = vmatpush1.msra.mxu0 0.0
    %3862 = vmatprep.subr.mxu0 0.0
    %3863 = vmatpush1.msra.mxu0 0.0
    %3864 = vmatprep.subr.mxu0 0.0
    %3865 = vmatpush1.msra.mxu0 0.0
    %3866 = vmatprep.subr.mxu0 0.0
    %3867 = vmatpush1.msra.mxu0 0.0
    %3868 = vmatprep.subr.mxu0 0.0
    %3869 = vmatpush1.msra.mxu0 0.0
    %3870 = vmatprep.subr.mxu0 0.0
    %3871 = vmatpush1.msra.mxu0 0.0
    %3872 = vmatprep.subr.mxu0 0.0
    %3873 = vmatpush1.msra.mxu0 0.0
    %3874 = vmatprep.subr.mxu0 0.0
    %3875 = vmatpush1.msra.mxu0 0.0
    %3876 = vmatprep.subr.mxu0 0.0
    %3877 = vmatpush1.msra.mxu0 0.0
    %3878 = vmatprep.subr.mxu0 0.0
    %3879 = vmatpush1.msra.mxu0 0.0
    %3880 = vmatprep.subr.mxu0 0.0
    %3881 = vmatpush1.msra.mxu0 0.0
    %3882 = vmatprep.subr.mxu0 0.0
    %3883 = vmatpush1.msra.mxu0 0.0
    %3884 = vmatprep.subr.mxu0 0.0
    %3885 = vmatpush1.msra.mxu0 0.0
    %3886 = vmatprep.subr.mxu0 0.0
    %3887 = vmatpush1.msra.mxu0 0.0
    %3888 = vmatprep.subr.mxu0 0.0
    %3889 = vmatpush1.msra.mxu0 0.0
    %3890 = vmatprep.subr.mxu0 0.0
    %3891 = vmatpush1.msra.mxu0 0.0
    %3892 = vmatprep.subr.mxu0 0.0
    %3893 = vmatpush1.msra.mxu0 0.0
    %3894 = vmatprep.subr.mxu0 0.0
    %3895 = vmatpush1.msra.mxu0 0.0
    %3896 = vmatprep.subr.mxu0 0.0
    %3897 = vmatpush1.msra.mxu0 0.0
    %3898 = vmatprep.subr.mxu0 0.0
    %3899 = vmatpush1.msra.mxu0 0.0
    %3900 = vmatprep.subr.mxu0 0.0
    %3901 = vmatpush1.msra.mxu0 0.0
    %3902 = vmatprep.subr.mxu0 0.0
    %3903 = vmatpush1.msra.mxu0 0.0
    %3904 = vmatprep.mubr.f32.mxu0 0.0
    %3905 = vmatmul.mubr.f32.gmra.mrb[0].mxu0 %v505
    %v3906 = vpop.f32.mrb[0].mxu0
    %v3907 = vadd.f32 0.0, %v3906
    %v3908 = vpop.f32.mrb[0].mxu0
    %3909 = vmatprep.mubr.f32.mxu0 0.0
    %3910 = vmatmul.mubr.f32.gmra.mrb[0].mxu0 %v508
    %v3911 = vpop.f32.mrb[0].mxu0
    %v3912 = vadd.f32 0.0, %v3911
    %v3913 = vpop.f32.mrb[0].mxu0
    %3914 = vmatprep.mubr.f32.mxu0 0.0
    %3915 = vmatmul.mubr.f32.gmra.mrb[0].mxu0 %v511
    %v3916 = vpop.f32.mrb[0].mxu0
    %v3917 = vadd.f32 0.0, %v3916
    %v3918 = vpop.f32.mrb[0].mxu0
    %3919 = vdwg.mxu0
    %v3920 = vadd.f32 %v3834, %v3907
    %v3921 = vadd.f32 %v3835, %v3912
    %v3922 = vadd.f32 %v3836, %v3917
    %v3924 = vsel %vm513, %v3750, 0
    %3926 = vmatprep.subr.mxu0 0.0
    %3927 = vmatpush1.msra.mxu0 %v3738
    %3928 = vmatprep.subr.mxu0 0.0
    %3929 = vmatpush1.msra.mxu0 %v3744
    %3930 = vmatprep.subr.mxu0 0.0
    %3931 = vmatpush1.msra.mxu0 %v3924
    %3932 = vmatprep.subr.mxu0 0.0
    %3933 = vmatpush1.msra.mxu0 0.0
    %3934 = vmatprep.subr.mxu0 0.0
    %3935 = vmatpush1.msra.mxu0 0.0
    %3936 = vmatprep.subr.mxu0 0.0
    %3937 = vmatpush1.msra.mxu0 0.0
    %3938 = vmatprep.subr.mxu0 0.0
    %3939 = vmatpush1.msra.mxu0 0.0
    %3940 = vmatprep.subr.mxu0 0.0
    %3941 = vmatpush1.msra.mxu0 0.0
    %3942 = vmatprep.subr.mxu0 0.0
    %3943 = vmatpush1.msra.mxu0 0.0
    %3944 = vmatprep.subr.mxu0 0.0
    %3945 = vmatpush1.msra.mxu0 0.0
    %3946 = vmatprep.subr.mxu0 0.0
    %3947 = vmatpush1.msra.mxu0 0.0
    %3948 = vmatprep.subr.mxu0 0.0
    %3949 = vmatpush1.msra.mxu0 0.0
    %3950 = vmatprep.subr.mxu0 0.0
    %3951 = vmatpush1.msra.mxu0 0.0
    %3952 = vmatprep.subr.mxu0 0.0
    %3953 = vmatpush1.msra.mxu0 0.0
    %3954 = vmatprep.subr.mxu0 0.0
    %3955 = vmatpush1.msra.mxu0 0.0
    %3956 = vmatprep.subr.mxu0 0.0
    %3957 = vmatpush1.msra.mxu0 0.0
    %3958 = vmatprep.subr.mxu0 0.0
    %3959 = vmatpush1.msra.mxu0 0.0
    %3960 = vmatprep.subr.mxu0 0.0
    %3961 = vmatpush1.msra.mxu0 0.0
    %3962 = vmatprep.subr.mxu0 0.0
    %3963 = vmatpush1.msra.mxu0 0.0
    %3964 = vmatprep.subr.mxu0 0.0
    %3965 = vmatpush1.msra.mxu0 0.0
    %3966 = vmatprep.subr.mxu0 0.0
    %3967 = vmatpush1.msra.mxu0 0.0
    %3968 = vmatprep.subr.mxu0 0.0
    %3969 = vmatpush1.msra.mxu0 0.0
    %3970 = vmatprep.subr.mxu0 0.0
    %3971 = vmatpush1.msra.mxu0 0.0
    %3972 = vmatprep.subr.mxu0 0.0
    %3973 = vmatpush1.msra.mxu0 0.0
    %3974 = vmatprep.subr.mxu0 0.0
    %3975 = vmatpush1.msra.mxu0 0.0
    %3976 = vmatprep.subr.mxu0 0.0
    %3977 = vmatpush1.msra.mxu0 0.0
    %3978 = vmatprep.subr.mxu0 0.0
    %3979 = vmatpush1.msra.mxu0 0.0
    %3980 = vmatprep.subr.mxu0 0.0
    %3981 = vmatpush1.msra.mxu0 0.0
    %3982 = vmatprep.subr.mxu0 0.0
    %3983 = vmatpush1.msra.mxu0 0.0
    %3984 = vmatprep.subr.mxu0 0.0
    %3985 = vmatpush1.msra.mxu0 0.0
    %3986 = vmatprep.subr.mxu0 0.0
    %3987 = vmatpush1.msra.mxu0 0.0
    %3988 = vmatprep.subr.mxu0 0.0
    %3989 = vmatpush1.msra.mxu0 0.0
    %3990 = vmatprep.mubr.f32.mxu0 0.0
    %3991 = vmatmul.mubr.f32.gmra.mrb[0].mxu0 %v601
    %v3992 = vpop.f32.mrb[0].mxu0
    %v3993 = vadd.f32 0.0, %v3992
    %v3994 = vpop.f32.mrb[0].mxu0
    %3995 = vmatprep.mubr.f32.mxu0 0.0
    %3996 = vmatmul.mubr.f32.gmra.mrb[0].mxu0 %v604
    %v3997 = vpop.f32.mrb[0].mxu0
    %v3998 = vadd.f32 0.0, %v3997
    %v3999 = vpop.f32.mrb[0].mxu0
    %4000 = vmatprep.mubr.f32.mxu0 0.0
    %4001 = vmatmul.mubr.f32.gmra.mrb[0].mxu0 %v607
    %v4002 = vpop.f32.mrb[0].mxu0
    %v4003 = vadd.f32 0.0, %v4002
    %v4004 = vpop.f32.mrb[0].mxu0
    %4005 = vdwg.mxu0
    %v4006 = vadd.f32 %v3920, %v3993
    %v4007 = vadd.f32 %v3921, %v3998
    %v4008 = vadd.f32 %v3922, %v4003
    %v4010 = vsel %vm320, %v4006, 0
    %v4013 = vsel %vm320, %v4007, 0
    %v4016 = vsel %vm320, %v4008, 0
    %4018 = vmatprep.subr.mxu0 %v2922
    %4019 = vmatpush1.msra.mxu0 %v2921
    %4020 = vmatprep.subr.mxu0 %v2925
    %4021 = vmatpush1.msra.mxu0 %v2924
    %4022 = vmatprep.subr.mxu0 %v2928
    %4023 = vmatpush1.msra.mxu0 %v2927
    %4024 = vmatprep.subr.mxu0 %v2931
    %4025 = vmatpush1.msra.mxu0 %v2930
    %4026 = vmatprep.subr.mxu0 0.0
    %4027 = vmatpush1.msra.mxu0 0.0
    %4028 = vmatprep.subr.mxu0 0.0
    %4029 = vmatpush1.msra.mxu0 0.0
    %4030 = vmatprep.subr.mxu0 0.0
    %4031 = vmatpush1.msra.mxu0 0.0
    %4032 = vmatprep.subr.mxu0 0.0
    %4033 = vmatpush1.msra.mxu0 0.0
    %4034 = vmatprep.subr.mxu0 0.0
    %4035 = vmatpush1.msra.mxu0 0.0
    %4036 = vmatprep.subr.mxu0 0.0
    %4037 = vmatpush1.msra.mxu0 0.0
    %4038 = vmatprep.subr.mxu0 0.0
    %4039 = vmatpush1.msra.mxu0 0.0
    %4040 = vmatprep.subr.mxu0 0.0
    %4041 = vmatpush1.msra.mxu0 0.0
    %4042 = vmatprep.subr.mxu0 0.0
    %4043 = vmatpush1.msra.mxu0 0.0
    %4044 = vmatprep.subr.mxu0 0.0
    %4045 = vmatpush1.msra.mxu0 0.0
    %4046 = vmatprep.subr.mxu0 0.0
    %4047 = vmatpush1.msra.mxu0 0.0
    %4048 = vmatprep.subr.mxu0 0.0
    %4049 = vmatpush1.msra.mxu0 0.0
    %4050 = vmatprep.subr.mxu0 0.0
    %4051 = vmatpush1.msra.mxu0 0.0
    %4052 = vmatprep.subr.mxu0 0.0
    %4053 = vmatpush1.msra.mxu0 0.0
    %4054 = vmatprep.subr.mxu0 0.0
    %4055 = vmatpush1.msra.mxu0 0.0
    %4056 = vmatprep.subr.mxu0 0.0
    %4057 = vmatpush1.msra.mxu0 0.0
    %4058 = vmatprep.subr.mxu0 0.0
    %4059 = vmatpush1.msra.mxu0 0.0
    %4060 = vmatprep.subr.mxu0 0.0
    %4061 = vmatpush1.msra.mxu0 0.0
    %4062 = vmatprep.subr.mxu0 0.0
    %4063 = vmatpush1.msra.mxu0 0.0
    %4064 = vmatprep.subr.mxu0 0.0
    %4065 = vmatpush1.msra.mxu0 0.0
    %4066 = vmatprep.subr.mxu0 0.0
    %4067 = vmatpush1.msra.mxu0 0.0
    %4068 = vmatprep.subr.mxu0 0.0
    %4069 = vmatpush1.msra.mxu0 0.0
    %4070 = vmatprep.subr.mxu0 0.0
    %4071 = vmatpush1.msra.mxu0 0.0
    %4072 = vmatprep.subr.mxu0 0.0
    %4073 = vmatpush1.msra.mxu0 0.0
    %4074 = vmatprep.subr.mxu0 0.0
    %4075 = vmatpush1.msra.mxu0 0.0
    %4076 = vmatprep.subr.mxu0 0.0
    %4077 = vmatpush1.msra.mxu0 0.0
    %4078 = vmatprep.subr.mxu0 0.0
    %4079 = vmatpush1.msra.mxu0 0.0
    %4080 = vmatprep.subr.mxu0 0.0
    %4081 = vmatpush1.msra.mxu0 0.0
    %4082 = vmatprep.mubr.f32.mxu0 0.0
    %4083 = vmatmul.mubr.f32.gmra.mrb[0].mxu0 %v4010
    %v4084 = vpop.f32.mrb[0].mxu0
    %v4085 = vadd.f32 0.0, %v4084
    %v4086 = vpop.f32.mrb[0].mxu0
    %v4087 = vadd.f32 0.0, %v4086
    %4088 = vmatprep.mubr.f32.mxu0 0.0
    %4089 = vmatmul.mubr.f32.gmra.mrb[0].mxu0 %v4013
    %v4090 = vpop.f32.mrb[0].mxu0
    %v4091 = vadd.f32 0.0, %v4090
    %v4092 = vpop.f32.mrb[0].mxu0
    %v4093 = vadd.f32 0.0, %v4092
    %4094 = vmatprep.mubr.f32.mxu0 0.0
    %4095 = vmatmul.mubr.f32.gmra.mrb[0].mxu0 %v4016
    %v4096 = vpop.f32.mrb[0].mxu0
    %v4097 = vadd.f32 0.0, %v4096
    %v4098 = vpop.f32.mrb[0].mxu0
    %v4099 = vadd.f32 0.0, %v4098
    %4100 = vdwg.mxu0
    %4101 = vmatprep.subr.mxu0 0.0
    %4102 = vmatpush1.msra.mxu0 %v2923
    %4103 = vmatprep.subr.mxu0 0.0
    %4104 = vmatpush1.msra.mxu0 %v2926
    %4105 = vmatprep.subr.mxu0 0.0
    %4106 = vmatpush1.msra.mxu0 %v2929
    %4107 = vmatprep.subr.mxu0 0.0
    %4108 = vmatpush1.msra.mxu0 %v2932
    %4109 = vmatprep.subr.mxu0 0.0
    %4110 = vmatpush1.msra.mxu0 0.0
    %4111 = vmatprep.subr.mxu0 0.0
    %4112 = vmatpush1.msra.mxu0 0.0
    %4113 = vmatprep.subr.mxu0 0.0
    %4114 = vmatpush1.msra.mxu0 0.0
    %4115 = vmatprep.subr.mxu0 0.0
    %4116 = vmatpush1.msra.mxu0 0.0
    %4117 = vmatprep.subr.mxu0 0.0
    %4118 = vmatpush1.msra.mxu0 0.0
    %4119 = vmatprep.subr.mxu0 0.0
    %4120 = vmatpush1.msra.mxu0 0.0
    %4121 = vmatprep.subr.mxu0 0.0
    %4122 = vmatpush1.msra.mxu0 0.0
    %4123 = vmatprep.subr.mxu0 0.0
    %4124 = vmatpush1.msra.mxu0 0.0
    %4125 = vmatprep.subr.mxu0 0.0
    %4126 = vmatpush1.msra.mxu0 0.0
    %4127 = vmatprep.subr.mxu0 0.0
    %4128 = vmatpush1.msra.mxu0 0.0
    %4129 = vmatprep.subr.mxu0 0.0
    %4130 = vmatpush1.msra.mxu0 0.0
    %4131 = vmatprep.subr.mxu0 0.0
    %4132 = vmatpush1.msra.mxu0 0.0
    %4133 = vmatprep.subr.mxu0 0.0
    %4134 = vmatpush1.msra.mxu0 0.0
    %4135 = vmatprep.subr.mxu0 0.0
    %4136 = vmatpush1.msra.mxu0 0.0
    %4137 = vmatprep.subr.mxu0 0.0
    %4138 = vmatpush1.msra.mxu0 0.0
    %4139 = vmatprep.subr.mxu0 0.0
    %4140 = vmatpush1.msra.mxu0 0.0
    %4141 = vmatprep.subr.mxu0 0.0
    %4142 = vmatpush1.msra.mxu0 0.0
    %4143 = vmatprep.subr.mxu0 0.0
    %4144 = vmatpush1.msra.mxu0 0.0
    %4145 = vmatprep.subr.mxu0 0.0
    %4146 = vmatpush1.msra.mxu0 0.0
    %4147 = vmatprep.subr.mxu0 0.0
    %4148 = vmatpush1.msra.mxu0 0.0
    %4149 = vmatprep.subr.mxu0 0.0
    %4150 = vmatpush1.msra.mxu0 0.0
    %4151 = vmatprep.subr.mxu0 0.0
    %4152 = vmatpush1.msra.mxu0 0.0
    %4153 = vmatprep.subr.mxu0 0.0
    %4154 = vmatpush1.msra.mxu0 0.0
    %4155 = vmatprep.subr.mxu0 0.0
    %4156 = vmatpush1.msra.mxu0 0.0
    %4157 = vmatprep.subr.mxu0 0.0
    %4158 = vmatpush1.msra.mxu0 0.0
    %4159 = vmatprep.subr.mxu0 0.0
    %4160 = vmatpush1.msra.mxu0 0.0
    %4161 = vmatprep.subr.mxu0 0.0
    %4162 = vmatpush1.msra.mxu0 0.0
    %4163 = vmatprep.subr.mxu0 0.0
    %4164 = vmatpush1.msra.mxu0 0.0
    %4165 = vmatprep.mubr.f32.mxu0 0.0
    %4166 = vmatmul.mubr.f32.gmra.mrb[0].mxu0 %v4010
    %v4167 = vpop.f32.mrb[0].mxu0
    %v4168 = vadd.f32 0.0, %v4167
    %v4169 = vpop.f32.mrb[0].mxu0
    %4170 = vmatprep.mubr.f32.mxu0 0.0
    %4171 = vmatmul.mubr.f32.gmra.mrb[0].mxu0 %v4013
    %v4172 = vpop.f32.mrb[0].mxu0
    %v4173 = vadd.f32 0.0, %v4172
    %v4174 = vpop.f32.mrb[0].mxu0
    %4175 = vmatprep.mubr.f32.mxu0 0.0
    %4176 = vmatmul.mubr.f32.gmra.mrb[0].mxu0 %v4016
    %v4177 = vpop.f32.mrb[0].mxu0
    %v4178 = vadd.f32 0.0, %v4177
    %v4179 = vpop.f32.mrb[0].mxu0
    %4180 = vdwg.mxu0
    %v4181 = vadd.f32 %v4168, %v3111
    %v4182 = vadd.f32 %v4173, %v3111
    %v4183 = vadd.f32 %v4178, %v3111
    %v4185 = vsel %vm513, %v4099, 0
    %4187 = vmatprep.subr.mxu0 0.0
    %4188 = vmatpush1.msra.mxu0 %v4087
    %4189 = vmatprep.subr.mxu0 0.0
    %4190 = vmatpush1.msra.mxu0 %v4093
    %4191 = vmatprep.subr.mxu0 0.0
    %4192 = vmatpush1.msra.mxu0 %v4185
    %4193 = vmatprep.subr.mxu0 0.0
    %4194 = vmatpush1.msra.mxu0 0.0
    %4195 = vmatprep.subr.mxu0 0.0
    %4196 = vmatpush1.msra.mxu0 0.0
    %4197 = vmatprep.subr.mxu0 0.0
    %4198 = vmatpush1.msra.mxu0 0.0
    %4199 = vmatprep.subr.mxu0 0.0
    %4200 = vmatpush1.msra.mxu0 0.0
    %4201 = vmatprep.subr.mxu0 0.0
    %4202 = vmatpush1.msra.mxu0 0.0
    %4203 = vmatprep.subr.mxu0 0.0
    %4204 = vmatpush1.msra.mxu0 0.0
    %4205 = vmatprep.subr.mxu0 0.0
    %4206 = vmatpush1.msra.mxu0 0.0
    %4207 = vmatprep.subr.mxu0 0.0
    %4208 = vmatpush1.msra.mxu0 0.0
    %4209 = vmatprep.subr.mxu0 0.0
    %4210 = vmatpush1.msra.mxu0 0.0
    %4211 = vmatprep.subr.mxu0 0.0
    %4212 = vmatpush1.msra.mxu0 0.0
    %4213 = vmatprep.subr.mxu0 0.0
    %4214 = vmatpush1.msra.mxu0 0.0
    %4215 = vmatprep.subr.mxu0 0.0
    %4216 = vmatpush1.msra.mxu0 0.0
    %4217 = vmatprep.subr.mxu0 0.0
    %4218 = vmatpush1.msra.mxu0 0.0
    %4219 = vmatprep.subr.mxu0 0.0
    %4220 = vmatpush1.msra.mxu0 0.0
    %4221 = vmatprep.subr.mxu0 0.0
    %4222 = vmatpush1.msra.mxu0 0.0
    %4223 = vmatprep.subr.mxu0 0.0
    %4224 = vmatpush1.msra.mxu0 0.0
    %4225 = vmatprep.subr.mxu0 0.0
    %4226 = vmatpush1.msra.mxu0 0.0
    %4227 = vmatprep.subr.mxu0 0.0
    %4228 = vmatpush1.msra.mxu0 0.0
    %4229 = vmatprep.subr.mxu0 0.0
    %4230 = vmatpush1.msra.mxu0 0.0
    %4231 = vmatprep.subr.mxu0 0.0
    %4232 = vmatpush1.msra.mxu0 0.0
    %4233 = vmatprep.subr.mxu0 0.0
    %4234 = vmatpush1.msra.mxu0 0.0
    %4235 = vmatprep.subr.mxu0 0.0
    %4236 = vmatpush1.msra.mxu0 0.0
    %4237 = vmatprep.subr.mxu0 0.0
    %4238 = vmatpush1.msra.mxu0 0.0
    %4239 = vmatprep.subr.mxu0 0.0
    %4240 = vmatpush1.msra.mxu0 0.0
    %4241 = vmatprep.subr.mxu0 0.0
    %4242 = vmatpush1.msra.mxu0 0.0
    %4243 = vmatprep.subr.mxu0 0.0
    %4244 = vmatpush1.msra.mxu0 0.0
    %4245 = vmatprep.subr.mxu0 0.0
    %4246 = vmatpush1.msra.mxu0 0.0
    %4247 = vmatprep.subr.mxu0 0.0
    %4248 = vmatpush1.msra.mxu0 0.0
    %4249 = vmatprep.subr.mxu0 0.0
    %4250 = vmatpush1.msra.mxu0 0.0
    %4251 = vmatprep.mubr.f32.mxu0 0.0
    %4252 = vmatmul.mubr.f32.gmra.mrb[0].mxu0 %v892
    %v4253 = vpop.f32.mrb[0].mxu0
    %v4254 = vadd.f32 0.0, %v4253
    %v4255 = vpop.f32.mrb[0].mxu0
    %4256 = vmatprep.mubr.f32.mxu0 0.0
    %4257 = vmatmul.mubr.f32.gmra.mrb[0].mxu0 %v895
    %v4258 = vpop.f32.mrb[0].mxu0
    %v4259 = vadd.f32 0.0, %v4258
    %v4260 = vpop.f32.mrb[0].mxu0
    %4261 = vmatprep.mubr.f32.mxu0 0.0
    %4262 = vmatmul.mubr.f32.gmra.mrb[0].mxu0 %v898
    %v4263 = vpop.f32.mrb[0].mxu0
    %v4264 = vadd.f32 0.0, %v4263
    %v4265 = vpop.f32.mrb[0].mxu0
    %4266 = vdwg.mxu0
    %v4267 = vadd.f32 %v4181, %v4254
    %v4268 = vadd.f32 %v4182, %v4259
    %v4269 = vadd.f32 %v4183, %v4264
    %v4271 = vsel %vm513, %v4097, 0
    %4273 = vmatprep.subr.mxu0 0.0
    %4274 = vmatpush1.msra.mxu0 %v4085
    %4275 = vmatprep.subr.mxu0 0.0
    %4276 = vmatpush1.msra.mxu0 %v4091
    %4277 = vmatprep.subr.mxu0 0.0
    %4278 = vmatpush1.msra.mxu0 %v4271
    %4279 = vmatprep.subr.mxu0 0.0
    %4280 = vmatpush1.msra.mxu0 0.0
    %4281 = vmatprep.subr.mxu0 0.0
    %4282 = vmatpush1.msra.mxu0 0.0
    %4283 = vmatprep.subr.mxu0 0.0
    %4284 = vmatpush1.msra.mxu0 0.0
    %4285 = vmatprep.subr.mxu0 0.0
    %4286 = vmatpush1.msra.mxu0 0.0
    %4287 = vmatprep.subr.mxu0 0.0
    %4288 = vmatpush1.msra.mxu0 0.0
    %4289 = vmatprep.subr.mxu0 0.0
    %4290 = vmatpush1.msra.mxu0 0.0
    %4291 = vmatprep.subr.mxu0 0.0
    %4292 = vmatpush1.msra.mxu0 0.0
    %4293 = vmatprep.subr.mxu0 0.0
    %4294 = vmatpush1.msra.mxu0 0.0
    %4295 = vmatprep.subr.mxu0 0.0
    %4296 = vmatpush1.msra.mxu0 0.0
    %4297 = vmatprep.subr.mxu0 0.0
    %4298 = vmatpush1.msra.mxu0 0.0
    %4299 = vmatprep.subr.mxu0 0.0
    %4300 = vmatpush1.msra.mxu0 0.0
    %4301 = vmatprep.subr.mxu0 0.0
    %4302 = vmatpush1.msra.mxu0 0.0
    %4303 = vmatprep.subr.mxu0 0.0
    %4304 = vmatpush1.msra.mxu0 0.0
    %4305 = vmatprep.subr.mxu0 0.0
    %4306 = vmatpush1.msra.mxu0 0.0
    %4307 = vmatprep.subr.mxu0 0.0
    %4308 = vmatpush1.msra.mxu0 0.0
    %4309 = vmatprep.subr.mxu0 0.0
    %4310 = vmatpush1.msra.mxu0 0.0
    %4311 = vmatprep.subr.mxu0 0.0
    %4312 = vmatpush1.msra.mxu0 0.0
    %4313 = vmatprep.subr.mxu0 0.0
    %4314 = vmatpush1.msra.mxu0 0.0
    %4315 = vmatprep.subr.mxu0 0.0
    %4316 = vmatpush1.msra.mxu0 0.0
    %4317 = vmatprep.subr.mxu0 0.0
    %4318 = vmatpush1.msra.mxu0 0.0
    %4319 = vmatprep.subr.mxu0 0.0
    %4320 = vmatpush1.msra.mxu0 0.0
    %4321 = vmatprep.subr.mxu0 0.0
    %4322 = vmatpush1.msra.mxu0 0.0
    %4323 = vmatprep.subr.mxu0 0.0
    %4324 = vmatpush1.msra.mxu0 0.0
    %4325 = vmatprep.subr.mxu0 0.0
    %4326 = vmatpush1.msra.mxu0 0.0
    %4327 = vmatprep.subr.mxu0 0.0
    %4328 = vmatpush1.msra.mxu0 0.0
    %4329 = vmatprep.subr.mxu0 0.0
    %4330 = vmatpush1.msra.mxu0 0.0
    %4331 = vmatprep.subr.mxu0 0.0
    %4332 = vmatpush1.msra.mxu0 0.0
    %4333 = vmatprep.subr.mxu0 0.0
    %4334 = vmatpush1.msra.mxu0 0.0
    %4335 = vmatprep.subr.mxu0 0.0
    %4336 = vmatpush1.msra.mxu0 0.0
    %4337 = vmatprep.mubr.f32.mxu0 0.0
    %4338 = vmatmul.mubr.f32.gmra.mrb[0].mxu0 %v505
    %v4339 = vpop.f32.mrb[0].mxu0
    %v4340 = vadd.f32 0.0, %v4339
    %v4341 = vpop.f32.mrb[0].mxu0
    %4342 = vmatprep.mubr.f32.mxu0 0.0
    %4343 = vmatmul.mubr.f32.gmra.mrb[0].mxu0 %v508
    %v4344 = vpop.f32.mrb[0].mxu0
    %v4345 = vadd.f32 0.0, %v4344
    %v4346 = vpop.f32.mrb[0].mxu0
    %4347 = vmatprep.mubr.f32.mxu0 0.0
    %4348 = vmatmul.mubr.f32.gmra.mrb[0].mxu0 %v511
    %v4349 = vpop.f32.mrb[0].mxu0
    %v4350 = vadd.f32 0.0, %v4349
    %v4351 = vpop.f32.mrb[0].mxu0
    %4352 = vdwg.mxu0
    %v4353 = vadd.f32 %v4267, %v4340
    %v4354 = vadd.f32 %v4268, %v4345
    %v4355 = vadd.f32 %v4269, %v4350
    %v4357 = vsel %vm320, %v4353, 0
    %v4360 = vsel %vm320, %v4354, 0
    %v4363 = vsel %vm320, %v4355, 0
    %4365 = vmatprep.subr.mxu0 %v3290
    %4366 = vmatpush1.msra.mxu0 %v3289
    %4367 = vmatprep.subr.mxu0 %v3293
    %4368 = vmatpush1.msra.mxu0 %v3292
    %4369 = vmatprep.subr.mxu0 %v3296
    %4370 = vmatpush1.msra.mxu0 %v3295
    %4371 = vmatprep.subr.mxu0 %v3299
    %4372 = vmatpush1.msra.mxu0 %v3298
    %4373 = vmatprep.subr.mxu0 0.0
    %4374 = vmatpush1.msra.mxu0 0.0
    %4375 = vmatprep.subr.mxu0 0.0
    %4376 = vmatpush1.msra.mxu0 0.0
    %4377 = vmatprep.subr.mxu0 0.0
    %4378 = vmatpush1.msra.mxu0 0.0
    %4379 = vmatprep.subr.mxu0 0.0
    %4380 = vmatpush1.msra.mxu0 0.0
    %4381 = vmatprep.subr.mxu0 0.0
    %4382 = vmatpush1.msra.mxu0 0.0
    %4383 = vmatprep.subr.mxu0 0.0
    %4384 = vmatpush1.msra.mxu0 0.0
    %4385 = vmatprep.subr.mxu0 0.0
    %4386 = vmatpush1.msra.mxu0 0.0
    %4387 = vmatprep.subr.mxu0 0.0
    %4388 = vmatpush1.msra.mxu0 0.0
    %4389 = vmatprep.subr.mxu0 0.0
    %4390 = vmatpush1.msra.mxu0 0.0
    %4391 = vmatprep.subr.mxu0 0.0
    %4392 = vmatpush1.msra.mxu0 0.0
    %4393 = vmatprep.subr.mxu0 0.0
    %4394 = vmatpush1.msra.mxu0 0.0
    %4395 = vmatprep.subr.mxu0 0.0
    %4396 = vmatpush1.msra.mxu0 0.0
    %4397 = vmatprep.subr.mxu0 0.0
    %4398 = vmatpush1.msra.mxu0 0.0
    %4399 = vmatprep.subr.mxu0 0.0
    %4400 = vmatpush1.msra.mxu0 0.0
    %4401 = vmatprep.subr.mxu0 0.0
    %4402 = vmatpush1.msra.mxu0 0.0
    %4403 = vmatprep.subr.mxu0 0.0
    %4404 = vmatpush1.msra.mxu0 0.0
    %4405 = vmatprep.subr.mxu0 0.0
    %4406 = vmatpush1.msra.mxu0 0.0
    %4407 = vmatprep.subr.mxu0 0.0
    %4408 = vmatpush1.msra.mxu0 0.0
    %4409 = vmatprep.subr.mxu0 0.0
    %4410 = vmatpush1.msra.mxu0 0.0
    %4411 = vmatprep.subr.mxu0 0.0
    %4412 = vmatpush1.msra.mxu0 0.0
    %4413 = vmatprep.subr.mxu0 0.0
    %4414 = vmatpush1.msra.mxu0 0.0
    %4415 = vmatprep.subr.mxu0 0.0
    %4416 = vmatpush1.msra.mxu0 0.0
    %4417 = vmatprep.subr.mxu0 0.0
    %4418 = vmatpush1.msra.mxu0 0.0
    %4419 = vmatprep.subr.mxu0 0.0
    %4420 = vmatpush1.msra.mxu0 0.0
    %4421 = vmatprep.subr.mxu0 0.0
    %4422 = vmatpush1.msra.mxu0 0.0
    %4423 = vmatprep.subr.mxu0 0.0
    %4424 = vmatpush1.msra.mxu0 0.0
    %4425 = vmatprep.subr.mxu0 0.0
    %4426 = vmatpush1.msra.mxu0 0.0
    %4427 = vmatprep.subr.mxu0 0.0
    %4428 = vmatpush1.msra.mxu0 0.0
    %4429 = vmatprep.mubr.f32.mxu0 0.0
    %4430 = vmatmul.mubr.f32.gmra.mrb[0].mxu0 %v4357
    %v4431 = vpop.f32.mrb[0].mxu0
    %v4432 = vadd.f32 0.0, %v4431
    %v4433 = vpop.f32.mrb[0].mxu0
    %v4434 = vadd.f32 0.0, %v4433
    %4435 = vmatprep.mubr.f32.mxu0 0.0
    %4436 = vmatmul.mubr.f32.gmra.mrb[0].mxu0 %v4360
    %v4437 = vpop.f32.mrb[0].mxu0
    %v4438 = vadd.f32 0.0, %v4437
    %v4439 = vpop.f32.mrb[0].mxu0
    %v4440 = vadd.f32 0.0, %v4439
    %4441 = vmatprep.mubr.f32.mxu0 0.0
    %4442 = vmatmul.mubr.f32.gmra.mrb[0].mxu0 %v4363
    %v4443 = vpop.f32.mrb[0].mxu0
    %v4444 = vadd.f32 0.0, %v4443
    %v4445 = vpop.f32.mrb[0].mxu0
    %v4446 = vadd.f32 0.0, %v4445
    %4447 = vdwg.mxu0
    %4448 = vmatprep.subr.mxu0 0.0
    %4449 = vmatpush1.msra.mxu0 %v3291
    %4450 = vmatprep.subr.mxu0 0.0
    %4451 = vmatpush1.msra.mxu0 %v3294
    %4452 = vmatprep.subr.mxu0 0.0
    %4453 = vmatpush1.msra.mxu0 %v3297
    %4454 = vmatprep.subr.mxu0 0.0
    %4455 = vmatpush1.msra.mxu0 %v3300
    %4456 = vmatprep.subr.mxu0 0.0
    %4457 = vmatpush1.msra.mxu0 0.0
    %4458 = vmatprep.subr.mxu0 0.0
    %4459 = vmatpush1.msra.mxu0 0.0
    %4460 = vmatprep.subr.mxu0 0.0
    %4461 = vmatpush1.msra.mxu0 0.0
    %4462 = vmatprep.subr.mxu0 0.0
    %4463 = vmatpush1.msra.mxu0 0.0
    %4464 = vmatprep.subr.mxu0 0.0
    %4465 = vmatpush1.msra.mxu0 0.0
    %4466 = vmatprep.subr.mxu0 0.0
    %4467 = vmatpush1.msra.mxu0 0.0
    %4468 = vmatprep.subr.mxu0 0.0
    %4469 = vmatpush1.msra.mxu0 0.0
    %4470 = vmatprep.subr.mxu0 0.0
    %4471 = vmatpush1.msra.mxu0 0.0
    %4472 = vmatprep.subr.mxu0 0.0
    %4473 = vmatpush1.msra.mxu0 0.0
    %4474 = vmatprep.subr.mxu0 0.0
    %4475 = vmatpush1.msra.mxu0 0.0
    %4476 = vmatprep.subr.mxu0 0.0
    %4477 = vmatpush1.msra.mxu0 0.0
    %4478 = vmatprep.subr.mxu0 0.0
    %4479 = vmatpush1.msra.mxu0 0.0
    %4480 = vmatprep.subr.mxu0 0.0
    %4481 = vmatpush1.msra.mxu0 0.0
    %4482 = vmatprep.subr.mxu0 0.0
    %4483 = vmatpush1.msra.mxu0 0.0
    %4484 = vmatprep.subr.mxu0 0.0
    %4485 = vmatpush1.msra.mxu0 0.0
    %4486 = vmatprep.subr.mxu0 0.0
    %4487 = vmatpush1.msra.mxu0 0.0
    %4488 = vmatprep.subr.mxu0 0.0
    %4489 = vmatpush1.msra.mxu0 0.0
    %4490 = vmatprep.subr.mxu0 0.0
    %4491 = vmatpush1.msra.mxu0 0.0
    %4492 = vmatprep.subr.mxu0 0.0
    %4493 = vmatpush1.msra.mxu0 0.0
    %4494 = vmatprep.subr.mxu0 0.0
    %4495 = vmatpush1.msra.mxu0 0.0
    %4496 = vmatprep.subr.mxu0 0.0
    %4497 = vmatpush1.msra.mxu0 0.0
    %4498 = vmatprep.subr.mxu0 0.0
    %4499 = vmatpush1.msra.mxu0 0.0
    %4500 = vmatprep.subr.mxu0 0.0
    %4501 = vmatpush1.msra.mxu0 0.0
    %4502 = vmatprep.subr.mxu0 0.0
    %4503 = vmatpush1.msra.mxu0 0.0
    %4504 = vmatprep.subr.mxu0 0.0
    %4505 = vmatpush1.msra.mxu0 0.0
    %4506 = vmatprep.subr.mxu0 0.0
    %4507 = vmatpush1.msra.mxu0 0.0
    %4508 = vmatprep.subr.mxu0 0.0
    %4509 = vmatpush1.msra.mxu0 0.0
    %4510 = vmatprep.subr.mxu0 0.0
    %4511 = vmatpush1.msra.mxu0 0.0
    %4512 = vmatprep.mubr.f32.mxu0 0.0
    %4513 = vmatmul.mubr.f32.gmra.mrb[0].mxu0 %v4357
    %v4514 = vpop.f32.mrb[0].mxu0
    %v4515 = vadd.f32 0.0, %v4514
    %v4516 = vpop.f32.mrb[0].mxu0
    %4517 = vmatprep.mubr.f32.mxu0 0.0
    %4518 = vmatmul.mubr.f32.gmra.mrb[0].mxu0 %v4360
    %v4519 = vpop.f32.mrb[0].mxu0
    %v4520 = vadd.f32 0.0, %v4519
    %v4521 = vpop.f32.mrb[0].mxu0
    %4522 = vmatprep.mubr.f32.mxu0 0.0
    %4523 = vmatmul.mubr.f32.gmra.mrb[0].mxu0 %v4363
    %v4524 = vpop.f32.mrb[0].mxu0
    %v4525 = vadd.f32 0.0, %v4524
    %v4526 = vpop.f32.mrb[0].mxu0
    %4527 = vdwg.mxu0
    %v4528 = vadd.f32 %v4515, %v3479
    %v4529 = vadd.f32 %v4520, %v3479
    %v4530 = vadd.f32 %v4525, %v3479
    %v4532 = vsel %vm513, %v4446, 0
    %4534 = vmatprep.subr.mxu0 0.0
    %4535 = vmatpush1.msra.mxu0 %v4434
    %4536 = vmatprep.subr.mxu0 0.0
    %4537 = vmatpush1.msra.mxu0 %v4440
    %4538 = vmatprep.subr.mxu0 0.0
    %4539 = vmatpush1.msra.mxu0 %v4532
    %4540 = vmatprep.subr.mxu0 0.0
    %4541 = vmatpush1.msra.mxu0 0.0
    %4542 = vmatprep.subr.mxu0 0.0
    %4543 = vmatpush1.msra.mxu0 0.0
    %4544 = vmatprep.subr.mxu0 0.0
    %4545 = vmatpush1.msra.mxu0 0.0
    %4546 = vmatprep.subr.mxu0 0.0
    %4547 = vmatpush1.msra.mxu0 0.0
    %4548 = vmatprep.subr.mxu0 0.0
    %4549 = vmatpush1.msra.mxu0 0.0
    %4550 = vmatprep.subr.mxu0 0.0
    %4551 = vmatpush1.msra.mxu0 0.0
    %4552 = vmatprep.subr.mxu0 0.0
    %4553 = vmatpush1.msra.mxu0 0.0
    %4554 = vmatprep.subr.mxu0 0.0
    %4555 = vmatpush1.msra.mxu0 0.0
    %4556 = vmatprep.subr.mxu0 0.0
    %4557 = vmatpush1.msra.mxu0 0.0
    %4558 = vmatprep.subr.mxu0 0.0
    %4559 = vmatpush1.msra.mxu0 0.0
    %4560 = vmatprep.subr.mxu0 0.0
    %4561 = vmatpush1.msra.mxu0 0.0
    %4562 = vmatprep.subr.mxu0 0.0
    %4563 = vmatpush1.msra.mxu0 0.0
    %4564 = vmatprep.subr.mxu0 0.0
    %4565 = vmatpush1.msra.mxu0 0.0
    %4566 = vmatprep.subr.mxu0 0.0
    %4567 = vmatpush1.msra.mxu0 0.0
    %4568 = vmatprep.subr.mxu0 0.0
    %4569 = vmatpush1.msra.mxu0 0.0
    %4570 = vmatprep.subr.mxu0 0.0
    %4571 = vmatpush1.msra.mxu0 0.0
    %4572 = vmatprep.subr.mxu0 0.0
    %4573 = vmatpush1.msra.mxu0 0.0
    %4574 = vmatprep.subr.mxu0 0.0
    %4575 = vmatpush1.msra.mxu0 0.0
    %4576 = vmatprep.subr.mxu0 0.0
    %4577 = vmatpush1.msra.mxu0 0.0
    %4578 = vmatprep.subr.mxu0 0.0
    %4579 = vmatpush1.msra.mxu0 0.0
    %4580 = vmatprep.subr.mxu0 0.0
    %4581 = vmatpush1.msra.mxu0 0.0
    %4582 = vmatprep.subr.mxu0 0.0
    %4583 = vmatpush1.msra.mxu0 0.0
    %4584 = vmatprep.subr.mxu0 0.0
    %4585 = vmatpush1.msra.mxu0 0.0
    %4586 = vmatprep.subr.mxu0 0.0
    %4587 = vmatpush1.msra.mxu0 0.0
    %4588 = vmatprep.subr.mxu0 0.0
    %4589 = vmatpush1.msra.mxu0 0.0
    %4590 = vmatprep.subr.mxu0 0.0
    %4591 = vmatpush1.msra.mxu0 0.0
    %4592 = vmatprep.subr.mxu0 0.0
    %4593 = vmatpush1.msra.mxu0 0.0
    %4594 = vmatprep.subr.mxu0 0.0
    %4595 = vmatpush1.msra.mxu0 0.0
    %4596 = vmatprep.subr.mxu0 0.0
    %4597 = vmatpush1.msra.mxu0 0.0
    %4598 = vmatprep.mubr.f32.mxu0 0.0
    %4599 = vmatmul.mubr.f32.gmra.mrb[0].mxu0 %v1269
    %v4600 = vpop.f32.mrb[0].mxu0
    %v4601 = vadd.f32 0.0, %v4600
    %v4602 = vpop.f32.mrb[0].mxu0
    %4603 = vmatprep.mubr.f32.mxu0 0.0
    %4604 = vmatmul.mubr.f32.gmra.mrb[0].mxu0 %v1272
    %v4605 = vpop.f32.mrb[0].mxu0
    %v4606 = vadd.f32 0.0, %v4605
    %v4607 = vpop.f32.mrb[0].mxu0
    %4608 = vmatprep.mubr.f32.mxu0 0.0
    %4609 = vmatmul.mubr.f32.gmra.mrb[0].mxu0 %v1275
    %v4610 = vpop.f32.mrb[0].mxu0
    %v4611 = vadd.f32 0.0, %v4610
    %v4612 = vpop.f32.mrb[0].mxu0
    %4613 = vdwg.mxu0
    %v4614 = vadd.f32 %v4528, %v4601
    %v4615 = vadd.f32 %v4529, %v4606
    %v4616 = vadd.f32 %v4530, %v4611
    %v4618 = vsel %vm513, %v4444, 0
    %4620 = vmatprep.subr.mxu0 0.0
    %4621 = vmatpush1.msra.mxu0 %v4432
    %4622 = vmatprep.subr.mxu0 0.0
    %4623 = vmatpush1.msra.mxu0 %v4438
    %4624 = vmatprep.subr.mxu0 0.0
    %4625 = vmatpush1.msra.mxu0 %v4618
    %4626 = vmatprep.subr.mxu0 0.0
    %4627 = vmatpush1.msra.mxu0 0.0
    %4628 = vmatprep.subr.mxu0 0.0
    %4629 = vmatpush1.msra.mxu0 0.0
    %4630 = vmatprep.subr.mxu0 0.0
    %4631 = vmatpush1.msra.mxu0 0.0
    %4632 = vmatprep.subr.mxu0 0.0
    %4633 = vmatpush1.msra.mxu0 0.0
    %4634 = vmatprep.subr.mxu0 0.0
    %4635 = vmatpush1.msra.mxu0 0.0
    %4636 = vmatprep.subr.mxu0 0.0
    %4637 = vmatpush1.msra.mxu0 0.0
    %4638 = vmatprep.subr.mxu0 0.0
    %4639 = vmatpush1.msra.mxu0 0.0
    %4640 = vmatprep.subr.mxu0 0.0
    %4641 = vmatpush1.msra.mxu0 0.0
    %4642 = vmatprep.subr.mxu0 0.0
    %4643 = vmatpush1.msra.mxu0 0.0
    %4644 = vmatprep.subr.mxu0 0.0
    %4645 = vmatpush1.msra.mxu0 0.0
    %4646 = vmatprep.subr.mxu0 0.0
    %4647 = vmatpush1.msra.mxu0 0.0
    %4648 = vmatprep.subr.mxu0 0.0
    %4649 = vmatpush1.msra.mxu0 0.0
    %4650 = vmatprep.subr.mxu0 0.0
    %4651 = vmatpush1.msra.mxu0 0.0
    %4652 = vmatprep.subr.mxu0 0.0
    %4653 = vmatpush1.msra.mxu0 0.0
    %4654 = vmatprep.subr.mxu0 0.0
    %4655 = vmatpush1.msra.mxu0 0.0
    %4656 = vmatprep.subr.mxu0 0.0
    %4657 = vmatpush1.msra.mxu0 0.0
    %4658 = vmatprep.subr.mxu0 0.0
    %4659 = vmatpush1.msra.mxu0 0.0
    %4660 = vmatprep.subr.mxu0 0.0
    %4661 = vmatpush1.msra.mxu0 0.0
    %4662 = vmatprep.subr.mxu0 0.0
    %4663 = vmatpush1.msra.mxu0 0.0
    %4664 = vmatprep.subr.mxu0 0.0
    %4665 = vmatpush1.msra.mxu0 0.0
    %4666 = vmatprep.subr.mxu0 0.0
    %4667 = vmatpush1.msra.mxu0 0.0
    %4668 = vmatprep.subr.mxu0 0.0
    %4669 = vmatpush1.msra.mxu0 0.0
    %4670 = vmatprep.subr.mxu0 0.0
    %4671 = vmatpush1.msra.mxu0 0.0
    %4672 = vmatprep.subr.mxu0 0.0
    %4673 = vmatpush1.msra.mxu0 0.0
    %4674 = vmatprep.subr.mxu0 0.0
    %4675 = vmatpush1.msra.mxu0 0.0
    %4676 = vmatprep.subr.mxu0 0.0
    %4677 = vmatpush1.msra.mxu0 0.0
    %4678 = vmatprep.subr.mxu0 0.0
    %4679 = vmatpush1.msra.mxu0 0.0
    %4680 = vmatprep.subr.mxu0 0.0
    %4681 = vmatpush1.msra.mxu0 0.0
    %4682 = vmatprep.subr.mxu0 0.0
    %4683 = vmatpush1.msra.mxu0 0.0
    %4684 = vmatprep.mubr.f32.mxu0 0.0
    %4685 = vmatmul.mubr.f32.gmra.mrb[0].mxu0 %v892
    %v4686 = vpop.f32.mrb[0].mxu0
    %v4687 = vadd.f32 0.0, %v4686
    %v4688 = vpop.f32.mrb[0].mxu0
    %4689 = vmatprep.mubr.f32.mxu0 0.0
    %4690 = vmatmul.mubr.f32.gmra.mrb[0].mxu0 %v895
    %v4691 = vpop.f32.mrb[0].mxu0
    %v4692 = vadd.f32 0.0, %v4691
    %v4693 = vpop.f32.mrb[0].mxu0
    %4694 = vmatprep.mubr.f32.mxu0 0.0
    %4695 = vmatmul.mubr.f32.gmra.mrb[0].mxu0 %v898
    %v4696 = vpop.f32.mrb[0].mxu0
    %v4697 = vadd.f32 0.0, %v4696
    %v4698 = vpop.f32.mrb[0].mxu0
    %4699 = vdwg.mxu0
    %v4700 = vadd.f32 %v4614, %v4687
    %v4701 = vadd.f32 %v4615, %v4692
    %v4702 = vadd.f32 %v4616, %v4697
    %v4703 = vmax.f32 %v4700, 0.0
    %v4704 = vmax.f32 %v4701, 0.0
    %v4705 = vmax.f32 %v4702, 0.0
    %v4706 = vadd.f32 %v4703, %v2551
    %v4707 = vadd.f32 %v4704, %v2552
    %v4708 = vadd.f32 %v4705, %v2553
    %v4709 = vld [vmem:[%s12] sm:$0xff]
    %v4710 = vld [vmem:[%s12 + $0x8] sm:$0xff]
    %v4711 = vld [vmem:[%s12 + $0x10] sm:$0xff]
    %v4712 = vld [vmem:[%s12 + $0x18] sm:$0xff]
    %v4713 = vld [vmem:[%s12 + $0x20] sm:$0xff]
    %v4714 = vld [vmem:[%s12 + $0x28] sm:$0xff]
    %v4715 = vld [vmem:[%s12 + $0x30] sm:$0xff]
    %v4716 = vld [vmem:[%s12 + $0x38] sm:$0xff]
    %v4717 = vld [vmem:[%s12 + $0x40] sm:$0xff]
    %v4718 = vld [vmem:[%s12 + $0x48] sm:$0xff]
    %v4719 = vld [vmem:[%s12 + $0x50] sm:$0xff]
    %v4720 = vld [vmem:[%s12 + $0x58] sm:$0xff]
    %v4722 = vsel %vm320, %v3659, 0
    %v4725 = vsel %vm320, %v3660, 0
    %v4728 = vsel %vm320, %v3661, 0
    %4730 = vmatprep.subr.mxu0 %v4710
    %4731 = vmatpush1.msra.mxu0 %v4709
    %4732 = vmatprep.subr.mxu0 %v4713
    %4733 = vmatpush1.msra.mxu0 %v4712
    %4734 = vmatprep.subr.mxu0 %v4716
    %4735 = vmatpush1.msra.mxu0 %v4715
    %4736 = vmatprep.subr.mxu0 %v4719
    %4737 = vmatpush1.msra.mxu0 %v4718
    %4738 = vmatprep.subr.mxu0 0.0
    %4739 = vmatpush1.msra.mxu0 0.0
    %4740 = vmatprep.subr.mxu0 0.0
    %4741 = vmatpush1.msra.mxu0 0.0
    %4742 = vmatprep.subr.mxu0 0.0
    %4743 = vmatpush1.msra.mxu0 0.0
    %4744 = vmatprep.subr.mxu0 0.0
    %4745 = vmatpush1.msra.mxu0 0.0
    %4746 = vmatprep.subr.mxu0 0.0
    %4747 = vmatpush1.msra.mxu0 0.0
    %4748 = vmatprep.subr.mxu0 0.0
    %4749 = vmatpush1.msra.mxu0 0.0
    %4750 = vmatprep.subr.mxu0 0.0
    %4751 = vmatpush1.msra.mxu0 0.0
    %4752 = vmatprep.subr.mxu0 0.0
    %4753 = vmatpush1.msra.mxu0 0.0
    %4754 = vmatprep.subr.mxu0 0.0
    %4755 = vmatpush1.msra.mxu0 0.0
    %4756 = vmatprep.subr.mxu0 0.0
    %4757 = vmatpush1.msra.mxu0 0.0
    %4758 = vmatprep.subr.mxu0 0.0
    %4759 = vmatpush1.msra.mxu0 0.0
    %4760 = vmatprep.subr.mxu0 0.0
    %4761 = vmatpush1.msra.mxu0 0.0
    %4762 = vmatprep.subr.mxu0 0.0
    %4763 = vmatpush1.msra.mxu0 0.0
    %4764 = vmatprep.subr.mxu0 0.0
    %4765 = vmatpush1.msra.mxu0 0.0
    %4766 = vmatprep.subr.mxu0 0.0
    %4767 = vmatpush1.msra.mxu0 0.0
    %4768 = vmatprep.subr.mxu0 0.0
    %4769 = vmatpush1.msra.mxu0 0.0
    %4770 = vmatprep.subr.mxu0 0.0
    %4771 = vmatpush1.msra.mxu0 0.0
    %4772 = vmatprep.subr.mxu0 0.0
    %4773 = vmatpush1.msra.mxu0 0.0
    %4774 = vmatprep.subr.mxu0 0.0
    %4775 = vmatpush1.msra.mxu0 0.0
    %4776 = vmatprep.subr.mxu0 0.0
    %4777 = vmatpush1.msra.mxu0 0.0
    %4778 = vmatprep.subr.mxu0 0.0
    %4779 = vmatpush1.msra.mxu0 0.0
    %4780 = vmatprep.subr.mxu0 0.0
    %4781 = vmatpush1.msra.mxu0 0.0
    %4782 = vmatprep.subr.mxu0 0.0
    %4783 = vmatpush1.msra.mxu0 0.0
    %4784 = vmatprep.subr.mxu0 0.0
    %4785 = vmatpush1.msra.mxu0 0.0
    %4786 = vmatprep.subr.mxu0 0.0
    %4787 = vmatpush1.msra.mxu0 0.0
    %4788 = vmatprep.subr.mxu0 0.0
    %4789 = vmatpush1.msra.mxu0 0.0
    %4790 = vmatprep.subr.mxu0 0.0
    %4791 = vmatpush1.msra.mxu0 0.0
    %4792 = vmatprep.subr.mxu0 0.0
    %4793 = vmatpush1.msra.mxu0 0.0
    %4794 = vmatprep.mubr.f32.mxu0 0.0
    %4795 = vmatmul.mubr.f32.gmra.mrb[0].mxu0 %v4722
    %v4796 = vpop.f32.mrb[0].mxu0
    %v4797 = vadd.f32 0.0, %v4796
    %v4798 = vpop.f32.mrb[0].mxu0
    %v4799 = vadd.f32 0.0, %v4798
    %4800 = vmatprep.mubr.f32.mxu0 0.0
    %4801 = vmatmul.mubr.f32.gmra.mrb[0].mxu0 %v4725
    %v4802 = vpop.f32.mrb[0].mxu0
    %v4803 = vadd.f32 0.0, %v4802
    %v4804 = vpop.f32.mrb[0].mxu0
    %v4805 = vadd.f32 0.0, %v4804
    %4806 = vmatprep.mubr.f32.mxu0 0.0
    %4807 = vmatmul.mubr.f32.gmra.mrb[0].mxu0 %v4728
    %v4808 = vpop.f32.mrb[0].mxu0
    %v4809 = vadd.f32 0.0, %v4808
    %v4810 = vpop.f32.mrb[0].mxu0
    %v4811 = vadd.f32 0.0, %v4810
    %4812 = vdwg.mxu0
    %4813 = vmatprep.subr.mxu0 0.0
    %4814 = vmatpush1.msra.mxu0 %v4711
    %4815 = vmatprep.subr.mxu0 0.0
    %4816 = vmatpush1.msra.mxu0 %v4714
    %4817 = vmatprep.subr.mxu0 0.0
    %4818 = vmatpush1.msra.mxu0 %v4717
    %4819 = vmatprep.subr.mxu0 0.0
    %4820 = vmatpush1.msra.mxu0 %v4720
    %4821 = vmatprep.subr.mxu0 0.0
    %4822 = vmatpush1.msra.mxu0 0.0
    %4823 = vmatprep.subr.mxu0 0.0
    %4824 = vmatpush1.msra.mxu0 0.0
    %4825 = vmatprep.subr.mxu0 0.0
    %4826 = vmatpush1.msra.mxu0 0.0
    %4827 = vmatprep.subr.mxu0 0.0
    %4828 = vmatpush1.msra.mxu0 0.0
    %4829 = vmatprep.subr.mxu0 0.0
    %4830 = vmatpush1.msra.mxu0 0.0
    %4831 = vmatprep.subr.mxu0 0.0
    %4832 = vmatpush1.msra.mxu0 0.0
    %4833 = vmatprep.subr.mxu0 0.0
    %4834 = vmatpush1.msra.mxu0 0.0
    %4835 = vmatprep.subr.mxu0 0.0
    %4836 = vmatpush1.msra.mxu0 0.0
    %4837 = vmatprep.subr.mxu0 0.0
    %4838 = vmatpush1.msra.mxu0 0.0
    %4839 = vmatprep.subr.mxu0 0.0
    %4840 = vmatpush1.msra.mxu0 0.0
    %4841 = vmatprep.subr.mxu0 0.0
    %4842 = vmatpush1.msra.mxu0 0.0
    %4843 = vmatprep.subr.mxu0 0.0
    %4844 = vmatpush1.msra.mxu0 0.0
    %4845 = vmatprep.subr.mxu0 0.0
    %4846 = vmatpush1.msra.mxu0 0.0
    %4847 = vmatprep.subr.mxu0 0.0
    %4848 = vmatpush1.msra.mxu0 0.0
    %4849 = vmatprep.subr.mxu0 0.0
    %4850 = vmatpush1.msra.mxu0 0.0
    %4851 = vmatprep.subr.mxu0 0.0
    %4852 = vmatpush1.msra.mxu0 0.0
    %4853 = vmatprep.subr.mxu0 0.0
    %4854 = vmatpush1.msra.mxu0 0.0
    %4855 = vmatprep.subr.mxu0 0.0
    %4856 = vmatpush1.msra.mxu0 0.0
    %4857 = vmatprep.subr.mxu0 0.0
    %4858 = vmatpush1.msra.mxu0 0.0
    %4859 = vmatprep.subr.mxu0 0.0
    %4860 = vmatpush1.msra.mxu0 0.0
    %4861 = vmatprep.subr.mxu0 0.0
    %4862 = vmatpush1.msra.mxu0 0.0
    %4863 = vmatprep.subr.mxu0 0.0
    %4864 = vmatpush1.msra.mxu0 0.0
    %4865 = vmatprep.subr.mxu0 0.0
    %4866 = vmatpush1.msra.mxu0 0.0
    %4867 = vmatprep.subr.mxu0 0.0
    %4868 = vmatpush1.msra.mxu0 0.0
    %4869 = vmatprep.subr.mxu0 0.0
    %4870 = vmatpush1.msra.mxu0 0.0
    %4871 = vmatprep.subr.mxu0 0.0
    %4872 = vmatpush1.msra.mxu0 0.0
    %4873 = vmatprep.subr.mxu0 0.0
    %4874 = vmatpush1.msra.mxu0 0.0
    %4875 = vmatprep.subr.mxu0 0.0
    %4876 = vmatpush1.msra.mxu0 0.0
    %4877 = vmatprep.mubr.f32.mxu0 0.0
    %4878 = vmatmul.mubr.f32.gmra.mrb[0].mxu0 %v4722
    %v4879 = vpop.f32.mrb[0].mxu0
    %v4880 = vadd.f32 0.0, %v4879
    %v4881 = vpop.f32.mrb[0].mxu0
    %4882 = vmatprep.mubr.f32.mxu0 0.0
    %4883 = vmatmul.mubr.f32.gmra.mrb[0].mxu0 %v4725
    %v4884 = vpop.f32.mrb[0].mxu0
    %v4885 = vadd.f32 0.0, %v4884
    %v4886 = vpop.f32.mrb[0].mxu0
    %4887 = vmatprep.mubr.f32.mxu0 0.0
    %4888 = vmatmul.mubr.f32.gmra.mrb[0].mxu0 %v4728
    %v4889 = vpop.f32.mrb[0].mxu0
    %v4890 = vadd.f32 0.0, %v4889
    %v4891 = vpop.f32.mrb[0].mxu0
    %4892 = vdwg.mxu0
    %v4893 = vld [vmem:[#allocation20] sm:$0x1]
    %v4895 = vlaneseq
    %v4896 = vshrl.u32 %v4895, 7
    %v4897 = vsub.s32 0, %v4896
    %v4898 = vrot.slane %v4893, %v4897
    %v4900 = vadd.f32 %v4880, %v4898
    %v4901 = vadd.f32 %v4885, %v4898
    %v4902 = vadd.f32 %v4890, %v4898
    %v4904 = vsel %vm513, %v4811, 0
    %4906 = vmatprep.subr.mxu0 0.0
    %4907 = vmatpush1.msra.mxu0 %v4799
    %4908 = vmatprep.subr.mxu0 0.0
    %4909 = vmatpush1.msra.mxu0 %v4805
    %4910 = vmatprep.subr.mxu0 0.0
    %4911 = vmatpush1.msra.mxu0 %v4904
    %4912 = vmatprep.subr.mxu0 0.0
    %4913 = vmatpush1.msra.mxu0 0.0
    %4914 = vmatprep.subr.mxu0 0.0
    %4915 = vmatpush1.msra.mxu0 0.0
    %4916 = vmatprep.subr.mxu0 0.0
    %4917 = vmatpush1.msra.mxu0 0.0
    %4918 = vmatprep.subr.mxu0 0.0
    %4919 = vmatpush1.msra.mxu0 0.0
    %4920 = vmatprep.subr.mxu0 0.0
    %4921 = vmatpush1.msra.mxu0 0.0
    %4922 = vmatprep.subr.mxu0 0.0
    %4923 = vmatpush1.msra.mxu0 0.0
    %4924 = vmatprep.subr.mxu0 0.0
    %4925 = vmatpush1.msra.mxu0 0.0
    %4926 = vmatprep.subr.mxu0 0.0
    %4927 = vmatpush1.msra.mxu0 0.0
    %4928 = vmatprep.subr.mxu0 0.0
    %4929 = vmatpush1.msra.mxu0 0.0
    %4930 = vmatprep.subr.mxu0 0.0
    %4931 = vmatpush1.msra.mxu0 0.0
    %4932 = vmatprep.subr.mxu0 0.0
    %4933 = vmatpush1.msra.mxu0 0.0
    %4934 = vmatprep.subr.mxu0 0.0
    %4935 = vmatpush1.msra.mxu0 0.0
    %4936 = vmatprep.subr.mxu0 0.0
    %4937 = vmatpush1.msra.mxu0 0.0
    %4938 = vmatprep.subr.mxu0 0.0
    %4939 = vmatpush1.msra.mxu0 0.0
    %4940 = vmatprep.subr.mxu0 0.0
    %4941 = vmatpush1.msra.mxu0 0.0
    %4942 = vmatprep.subr.mxu0 0.0
    %4943 = vmatpush1.msra.mxu0 0.0
    %4944 = vmatprep.subr.mxu0 0.0
    %4945 = vmatpush1.msra.mxu0 0.0
    %4946 = vmatprep.subr.mxu0 0.0
    %4947 = vmatpush1.msra.mxu0 0.0
    %4948 = vmatprep.subr.mxu0 0.0
    %4949 = vmatpush1.msra.mxu0 0.0
    %4950 = vmatprep.subr.mxu0 0.0
    %4951 = vmatpush1.msra.mxu0 0.0
    %4952 = vmatprep.subr.mxu0 0.0
    %4953 = vmatpush1.msra.mxu0 0.0
    %4954 = vmatprep.subr.mxu0 0.0
    %4955 = vmatpush1.msra.mxu0 0.0
    %4956 = vmatprep.subr.mxu0 0.0
    %4957 = vmatpush1.msra.mxu0 0.0
    %4958 = vmatprep.subr.mxu0 0.0
    %4959 = vmatpush1.msra.mxu0 0.0
    %4960 = vmatprep.subr.mxu0 0.0
    %4961 = vmatpush1.msra.mxu0 0.0
    %4962 = vmatprep.subr.mxu0 0.0
    %4963 = vmatpush1.msra.mxu0 0.0
    %4964 = vmatprep.subr.mxu0 0.0
    %4965 = vmatpush1.msra.mxu0 0.0
    %4966 = vmatprep.subr.mxu0 0.0
    %4967 = vmatpush1.msra.mxu0 0.0
    %4968 = vmatprep.subr.mxu0 0.0
    %4969 = vmatpush1.msra.mxu0 0.0
    %4970 = vmatprep.mubr.f32.mxu0 0.0
    %4971 = vmatmul.mubr.f32.gmra.mrb[0].mxu0 %v505
    %v4972 = vpop.f32.mrb[0].mxu0
    %v4973 = vadd.f32 0.0, %v4972
    %v4974 = vpop.f32.mrb[0].mxu0
    %4975 = vmatprep.mubr.f32.mxu0 0.0
    %4976 = vmatmul.mubr.f32.gmra.mrb[0].mxu0 %v508
    %v4977 = vpop.f32.mrb[0].mxu0
    %v4978 = vadd.f32 0.0, %v4977
    %v4979 = vpop.f32.mrb[0].mxu0
    %4980 = vmatprep.mubr.f32.mxu0 0.0
    %4981 = vmatmul.mubr.f32.gmra.mrb[0].mxu0 %v511
    %v4982 = vpop.f32.mrb[0].mxu0
    %v4983 = vadd.f32 0.0, %v4982
    %v4984 = vpop.f32.mrb[0].mxu0
    %4985 = vdwg.mxu0
    %v4986 = vadd.f32 %v4900, %v4973
    %v4987 = vadd.f32 %v4901, %v4978
    %v4988 = vadd.f32 %v4902, %v4983
    %v4990 = vsel %vm513, %v4809, 0
    %4992 = vmatprep.subr.mxu0 0.0
    %4993 = vmatpush1.msra.mxu0 %v4797
    %4994 = vmatprep.subr.mxu0 0.0
    %4995 = vmatpush1.msra.mxu0 %v4803
    %4996 = vmatprep.subr.mxu0 0.0
    %4997 = vmatpush1.msra.mxu0 %v4990
    %4998 = vmatprep.subr.mxu0 0.0
    %4999 = vmatpush1.msra.mxu0 0.0
    %5000 = vmatprep.subr.mxu0 0.0
    %5001 = vmatpush1.msra.mxu0 0.0
    %5002 = vmatprep.subr.mxu0 0.0
    %5003 = vmatpush1.msra.mxu0 0.0
    %5004 = vmatprep.subr.mxu0 0.0
    %5005 = vmatpush1.msra.mxu0 0.0
    %5006 = vmatprep.subr.mxu0 0.0
    %5007 = vmatpush1.msra.mxu0 0.0
    %5008 = vmatprep.subr.mxu0 0.0
    %5009 = vmatpush1.msra.mxu0 0.0
    %5010 = vmatprep.subr.mxu0 0.0
    %5011 = vmatpush1.msra.mxu0 0.0
    %5012 = vmatprep.subr.mxu0 0.0
    %5013 = vmatpush1.msra.mxu0 0.0
    %5014 = vmatprep.subr.mxu0 0.0
    %5015 = vmatpush1.msra.mxu0 0.0
    %5016 = vmatprep.subr.mxu0 0.0
    %5017 = vmatpush1.msra.mxu0 0.0
    %5018 = vmatprep.subr.mxu0 0.0
    %5019 = vmatpush1.msra.mxu0 0.0
    %5020 = vmatprep.subr.mxu0 0.0
    %5021 = vmatpush1.msra.mxu0 0.0
    %5022 = vmatprep.subr.mxu0 0.0
    %5023 = vmatpush1.msra.mxu0 0.0
    %5024 = vmatprep.subr.mxu0 0.0
    %5025 = vmatpush1.msra.mxu0 0.0
    %5026 = vmatprep.subr.mxu0 0.0
    %5027 = vmatpush1.msra.mxu0 0.0
    %5028 = vmatprep.subr.mxu0 0.0
    %5029 = vmatpush1.msra.mxu0 0.0
    %5030 = vmatprep.subr.mxu0 0.0
    %5031 = vmatpush1.msra.mxu0 0.0
    %5032 = vmatprep.subr.mxu0 0.0
    %5033 = vmatpush1.msra.mxu0 0.0
    %5034 = vmatprep.subr.mxu0 0.0
    %5035 = vmatpush1.msra.mxu0 0.0
    %5036 = vmatprep.subr.mxu0 0.0
    %5037 = vmatpush1.msra.mxu0 0.0
    %5038 = vmatprep.subr.mxu0 0.0
    %5039 = vmatpush1.msra.mxu0 0.0
    %5040 = vmatprep.subr.mxu0 0.0
    %5041 = vmatpush1.msra.mxu0 0.0
    %5042 = vmatprep.subr.mxu0 0.0
    %5043 = vmatpush1.msra.mxu0 0.0
    %5044 = vmatprep.subr.mxu0 0.0
    %5045 = vmatpush1.msra.mxu0 0.0
    %5046 = vmatprep.subr.mxu0 0.0
    %5047 = vmatpush1.msra.mxu0 0.0
    %5048 = vmatprep.subr.mxu0 0.0
    %5049 = vmatpush1.msra.mxu0 0.0
    %5050 = vmatprep.subr.mxu0 0.0
    %5051 = vmatpush1.msra.mxu0 0.0
    %5052 = vmatprep.subr.mxu0 0.0
    %5053 = vmatpush1.msra.mxu0 0.0
    %5054 = vmatprep.subr.mxu0 0.0
    %5055 = vmatpush1.msra.mxu0 0.0
    %5056 = vmatprep.mubr.f32.mxu0 0.0
    %5057 = vmatmul.mubr.f32.gmra.mrb[0].mxu0 %v601
    %v5058 = vpop.f32.mrb[0].mxu0
    %v5059 = vadd.f32 0.0, %v5058
    %v5060 = vpop.f32.mrb[0].mxu0
    %5061 = vmatprep.mubr.f32.mxu0 0.0
    %5062 = vmatmul.mubr.f32.gmra.mrb[0].mxu0 %v604
    %v5063 = vpop.f32.mrb[0].mxu0
    %v5064 = vadd.f32 0.0, %v5063
    %v5065 = vpop.f32.mrb[0].mxu0
    %5066 = vmatprep.mubr.f32.mxu0 0.0
    %5067 = vmatmul.mubr.f32.gmra.mrb[0].mxu0 %v607
    %v5068 = vpop.f32.mrb[0].mxu0
    %v5069 = vadd.f32 0.0, %v5068
    %v5070 = vpop.f32.mrb[0].mxu0
    %5071 = vdwg.mxu0
    %v5072 = vadd.f32 %v4986, %v5059
    %v5073 = vadd.f32 %v4987, %v5064
    %v5074 = vadd.f32 %v4988, %v5069
    %s5075 = scalar_lea.vmem %s12, 96
    %v5076 = vld [vmem:[%s5075] sm:$0xff]
    %v5077 = vld [vmem:[%s5075 + $0x8] sm:$0xff]
    %v5078 = vld [vmem:[%s5075 + $0x10] sm:$0xff]
    %v5079 = vld [vmem:[%s5075 + $0x18] sm:$0xff]
    %v5080 = vld [vmem:[%s5075 + $0x20] sm:$0xff]
    %v5081 = vld [vmem:[%s5075 + $0x28] sm:$0xff]
    %v5082 = vld [vmem:[%s5075 + $0x30] sm:$0xff]
    %v5083 = vld [vmem:[%s5075 + $0x38] sm:$0xff]
    %v5084 = vld [vmem:[%s5075 + $0x40] sm:$0xff]
    %v5085 = vld [vmem:[%s5075 + $0x48] sm:$0xff]
    %v5086 = vld [vmem:[%s5075 + $0x50] sm:$0xff]
    %v5087 = vld [vmem:[%s5075 + $0x58] sm:$0xff]
    %v5089 = vsel %vm320, %v5072, 0
    %v5092 = vsel %vm320, %v5073, 0
    %v5095 = vsel %vm320, %v5074, 0
    %5097 = vmatprep.subr.mxu0 %v5077
    %5098 = vmatpush1.msra.mxu0 %v5076
    %5099 = vmatprep.subr.mxu0 %v5080
    %5100 = vmatpush1.msra.mxu0 %v5079
    %5101 = vmatprep.subr.mxu0 %v5083
    %5102 = vmatpush1.msra.mxu0 %v5082
    %5103 = vmatprep.subr.mxu0 %v5086
    %5104 = vmatpush1.msra.mxu0 %v5085
    %5105 = vmatprep.subr.mxu0 0.0
    %5106 = vmatpush1.msra.mxu0 0.0
    %5107 = vmatprep.subr.mxu0 0.0
    %5108 = vmatpush1.msra.mxu0 0.0
    %5109 = vmatprep.subr.mxu0 0.0
    %5110 = vmatpush1.msra.mxu0 0.0
    %5111 = vmatprep.subr.mxu0 0.0
    %5112 = vmatpush1.msra.mxu0 0.0
    %5113 = vmatprep.subr.mxu0 0.0
    %5114 = vmatpush1.msra.mxu0 0.0
    %5115 = vmatprep.subr.mxu0 0.0
    %5116 = vmatpush1.msra.mxu0 0.0
    %5117 = vmatprep.subr.mxu0 0.0
    %5118 = vmatpush1.msra.mxu0 0.0
    %5119 = vmatprep.subr.mxu0 0.0
    %5120 = vmatpush1.msra.mxu0 0.0
    %5121 = vmatprep.subr.mxu0 0.0
    %5122 = vmatpush1.msra.mxu0 0.0
    %5123 = vmatprep.subr.mxu0 0.0
    %5124 = vmatpush1.msra.mxu0 0.0
    %5125 = vmatprep.subr.mxu0 0.0
    %5126 = vmatpush1.msra.mxu0 0.0
    %5127 = vmatprep.subr.mxu0 0.0
    %5128 = vmatpush1.msra.mxu0 0.0
    %5129 = vmatprep.subr.mxu0 0.0
    %5130 = vmatpush1.msra.mxu0 0.0
    %5131 = vmatprep.subr.mxu0 0.0
    %5132 = vmatpush1.msra.mxu0 0.0
    %5133 = vmatprep.subr.mxu0 0.0
    %5134 = vmatpush1.msra.mxu0 0.0
    %5135 = vmatprep.subr.mxu0 0.0
    %5136 = vmatpush1.msra.mxu0 0.0
    %5137 = vmatprep.subr.mxu0 0.0
    %5138 = vmatpush1.msra.mxu0 0.0
    %5139 = vmatprep.subr.mxu0 0.0
    %5140 = vmatpush1.msra.mxu0 0.0
    %5141 = vmatprep.subr.mxu0 0.0
    %5142 = vmatpush1.msra.mxu0 0.0
    %5143 = vmatprep.subr.mxu0 0.0
    %5144 = vmatpush1.msra.mxu0 0.0
    %5145 = vmatprep.subr.mxu0 0.0
    %5146 = vmatpush1.msra.mxu0 0.0
    %5147 = vmatprep.subr.mxu0 0.0
    %5148 = vmatpush1.msra.mxu0 0.0
    %5149 = vmatprep.subr.mxu0 0.0
    %5150 = vmatpush1.msra.mxu0 0.0
    %5151 = vmatprep.subr.mxu0 0.0
    %5152 = vmatpush1.msra.mxu0 0.0
    %5153 = vmatprep.subr.mxu0 0.0
    %5154 = vmatpush1.msra.mxu0 0.0
    %5155 = vmatprep.subr.mxu0 0.0
    %5156 = vmatpush1.msra.mxu0 0.0
    %5157 = vmatprep.subr.mxu0 0.0
    %5158 = vmatpush1.msra.mxu0 0.0
    %5159 = vmatprep.subr.mxu0 0.0
    %5160 = vmatpush1.msra.mxu0 0.0
    %5161 = vmatprep.mubr.f32.mxu0 0.0
    %5162 = vmatmul.mubr.f32.gmra.mrb[0].mxu0 %v5089
    %v5163 = vpop.f32.mrb[0].mxu0
    %v5164 = vadd.f32 0.0, %v5163
    %v5165 = vpop.f32.mrb[0].mxu0
    %v5166 = vadd.f32 0.0, %v5165
    %5167 = vmatprep.mubr.f32.mxu0 0.0
    %5168 = vmatmul.mubr.f32.gmra.mrb[0].mxu0 %v5092
    %v5169 = vpop.f32.mrb[0].mxu0
    %v5170 = vadd.f32 0.0, %v5169
    %v5171 = vpop.f32.mrb[0].mxu0
    %v5172 = vadd.f32 0.0, %v5171
    %5173 = vmatprep.mubr.f32.mxu0 0.0
    %5174 = vmatmul.mubr.f32.gmra.mrb[0].mxu0 %v5095
    %v5175 = vpop.f32.mrb[0].mxu0
    %v5176 = vadd.f32 0.0, %v5175
    %v5177 = vpop.f32.mrb[0].mxu0
    %v5178 = vadd.f32 0.0, %v5177
    %5179 = vdwg.mxu0
    %5180 = vmatprep.subr.mxu0 0.0
    %5181 = vmatpush1.msra.mxu0 %v5078
    %5182 = vmatprep.subr.mxu0 0.0
    %5183 = vmatpush1.msra.mxu0 %v5081
    %5184 = vmatprep.subr.mxu0 0.0
    %5185 = vmatpush1.msra.mxu0 %v5084
    %5186 = vmatprep.subr.mxu0 0.0
    %5187 = vmatpush1.msra.mxu0 %v5087
    %5188 = vmatprep.subr.mxu0 0.0
    %5189 = vmatpush1.msra.mxu0 0.0
    %5190 = vmatprep.subr.mxu0 0.0
    %5191 = vmatpush1.msra.mxu0 0.0
    %5192 = vmatprep.subr.mxu0 0.0
    %5193 = vmatpush1.msra.mxu0 0.0
    %5194 = vmatprep.subr.mxu0 0.0
    %5195 = vmatpush1.msra.mxu0 0.0
    %5196 = vmatprep.subr.mxu0 0.0
    %5197 = vmatpush1.msra.mxu0 0.0
    %5198 = vmatprep.subr.mxu0 0.0
    %5199 = vmatpush1.msra.mxu0 0.0
    %5200 = vmatprep.subr.mxu0 0.0
    %5201 = vmatpush1.msra.mxu0 0.0
    %5202 = vmatprep.subr.mxu0 0.0
    %5203 = vmatpush1.msra.mxu0 0.0
    %5204 = vmatprep.subr.mxu0 0.0
    %5205 = vmatpush1.msra.mxu0 0.0
    %5206 = vmatprep.subr.mxu0 0.0
    %5207 = vmatpush1.msra.mxu0 0.0
    %5208 = vmatprep.subr.mxu0 0.0
    %5209 = vmatpush1.msra.mxu0 0.0
    %5210 = vmatprep.subr.mxu0 0.0
    %5211 = vmatpush1.msra.mxu0 0.0
    %5212 = vmatprep.subr.mxu0 0.0
    %5213 = vmatpush1.msra.mxu0 0.0
    %5214 = vmatprep.subr.mxu0 0.0
    %5215 = vmatpush1.msra.mxu0 0.0
    %5216 = vmatprep.subr.mxu0 0.0
    %5217 = vmatpush1.msra.mxu0 0.0
    %5218 = vmatprep.subr.mxu0 0.0
    %5219 = vmatpush1.msra.mxu0 0.0
    %5220 = vmatprep.subr.mxu0 0.0
    %5221 = vmatpush1.msra.mxu0 0.0
    %5222 = vmatprep.subr.mxu0 0.0
    %5223 = vmatpush1.msra.mxu0 0.0
    %5224 = vmatprep.subr.mxu0 0.0
    %5225 = vmatpush1.msra.mxu0 0.0
    %5226 = vmatprep.subr.mxu0 0.0
    %5227 = vmatpush1.msra.mxu0 0.0
    %5228 = vmatprep.subr.mxu0 0.0
    %5229 = vmatpush1.msra.mxu0 0.0
    %5230 = vmatprep.subr.mxu0 0.0
    %5231 = vmatpush1.msra.mxu0 0.0
    %5232 = vmatprep.subr.mxu0 0.0
    %5233 = vmatpush1.msra.mxu0 0.0
    %5234 = vmatprep.subr.mxu0 0.0
    %5235 = vmatpush1.msra.mxu0 0.0
    %5236 = vmatprep.subr.mxu0 0.0
    %5237 = vmatpush1.msra.mxu0 0.0
    %5238 = vmatprep.subr.mxu0 0.0
    %5239 = vmatpush1.msra.mxu0 0.0
    %5240 = vmatprep.subr.mxu0 0.0
    %5241 = vmatpush1.msra.mxu0 0.0
    %5242 = vmatprep.subr.mxu0 0.0
    %5243 = vmatpush1.msra.mxu0 0.0
    %5244 = vmatprep.mubr.f32.mxu0 0.0
    %5245 = vmatmul.mubr.f32.gmra.mrb[0].mxu0 %v5089
    %v5246 = vpop.f32.mrb[0].mxu0
    %v5247 = vadd.f32 0.0, %v5246
    %v5248 = vpop.f32.mrb[0].mxu0
    %5249 = vmatprep.mubr.f32.mxu0 0.0
    %5250 = vmatmul.mubr.f32.gmra.mrb[0].mxu0 %v5092
    %v5251 = vpop.f32.mrb[0].mxu0
    %v5252 = vadd.f32 0.0, %v5251
    %v5253 = vpop.f32.mrb[0].mxu0
    %5254 = vmatprep.mubr.f32.mxu0 0.0
    %5255 = vmatmul.mubr.f32.gmra.mrb[0].mxu0 %v5095
    %v5256 = vpop.f32.mrb[0].mxu0
    %v5257 = vadd.f32 0.0, %v5256
    %v5258 = vpop.f32.mrb[0].mxu0
    %5259 = vdwg.mxu0
    %s5260 = scalar_lea.vmem [#allocation20], 1
    %v5261 = vld [vmem:[%s5260] sm:$0x1]
    %v5263 = vlaneseq
    %v5264 = vshrl.u32 %v5263, 7
    %v5265 = vsub.s32 0, %v5264
    %v5266 = vrot.slane %v5261, %v5265
    %v5268 = vadd.f32 %v5247, %v5266
    %v5269 = vadd.f32 %v5252, %v5266
    %v5270 = vadd.f32 %v5257, %v5266
    %v5272 = vsel %vm513, %v5178, 0
    %5274 = vmatprep.subr.mxu0 0.0
    %5275 = vmatpush1.msra.mxu0 %v5166
    %5276 = vmatprep.subr.mxu0 0.0
    %5277 = vmatpush1.msra.mxu0 %v5172
    %5278 = vmatprep.subr.mxu0 0.0
    %5279 = vmatpush1.msra.mxu0 %v5272
    %5280 = vmatprep.subr.mxu0 0.0
    %5281 = vmatpush1.msra.mxu0 0.0
    %5282 = vmatprep.subr.mxu0 0.0
    %5283 = vmatpush1.msra.mxu0 0.0
    %5284 = vmatprep.subr.mxu0 0.0
    %5285 = vmatpush1.msra.mxu0 0.0
    %5286 = vmatprep.subr.mxu0 0.0
    %5287 = vmatpush1.msra.mxu0 0.0
    %5288 = vmatprep.subr.mxu0 0.0
    %5289 = vmatpush1.msra.mxu0 0.0
    %5290 = vmatprep.subr.mxu0 0.0
    %5291 = vmatpush1.msra.mxu0 0.0
    %5292 = vmatprep.subr.mxu0 0.0
    %5293 = vmatpush1.msra.mxu0 0.0
    %5294 = vmatprep.subr.mxu0 0.0
    %5295 = vmatpush1.msra.mxu0 0.0
    %5296 = vmatprep.subr.mxu0 0.0
    %5297 = vmatpush1.msra.mxu0 0.0
    %5298 = vmatprep.subr.mxu0 0.0
    %5299 = vmatpush1.msra.mxu0 0.0
    %5300 = vmatprep.subr.mxu0 0.0
    %5301 = vmatpush1.msra.mxu0 0.0
    %5302 = vmatprep.subr.mxu0 0.0
    %5303 = vmatpush1.msra.mxu0 0.0
    %5304 = vmatprep.subr.mxu0 0.0
    %5305 = vmatpush1.msra.mxu0 0.0
    %5306 = vmatprep.subr.mxu0 0.0
    %5307 = vmatpush1.msra.mxu0 0.0
    %5308 = vmatprep.subr.mxu0 0.0
    %5309 = vmatpush1.msra.mxu0 0.0
    %5310 = vmatprep.subr.mxu0 0.0
    %5311 = vmatpush1.msra.mxu0 0.0
    %5312 = vmatprep.subr.mxu0 0.0
    %5313 = vmatpush1.msra.mxu0 0.0
    %5314 = vmatprep.subr.mxu0 0.0
    %5315 = vmatpush1.msra.mxu0 0.0
    %5316 = vmatprep.subr.mxu0 0.0
    %5317 = vmatpush1.msra.mxu0 0.0
    %5318 = vmatprep.subr.mxu0 0.0
    %5319 = vmatpush1.msra.mxu0 0.0
    %5320 = vmatprep.subr.mxu0 0.0
    %5321 = vmatpush1.msra.mxu0 0.0
    %5322 = vmatprep.subr.mxu0 0.0
    %5323 = vmatpush1.msra.mxu0 0.0
    %5324 = vmatprep.subr.mxu0 0.0
    %5325 = vmatpush1.msra.mxu0 0.0
    %5326 = vmatprep.subr.mxu0 0.0
    %5327 = vmatpush1.msra.mxu0 0.0
    %5328 = vmatprep.subr.mxu0 0.0
    %5329 = vmatpush1.msra.mxu0 0.0
    %5330 = vmatprep.subr.mxu0 0.0
    %5331 = vmatpush1.msra.mxu0 0.0
    %5332 = vmatprep.subr.mxu0 0.0
    %5333 = vmatpush1.msra.mxu0 0.0
    %5334 = vmatprep.subr.mxu0 0.0
    %5335 = vmatpush1.msra.mxu0 0.0
    %5336 = vmatprep.subr.mxu0 0.0
    %5337 = vmatpush1.msra.mxu0 0.0
    %5338 = vmatprep.mubr.f32.mxu0 0.0
    %5339 = vmatmul.mubr.f32.gmra.mrb[0].mxu0 %v892
    %v5340 = vpop.f32.mrb[0].mxu0
    %v5341 = vadd.f32 0.0, %v5340
    %v5342 = vpop.f32.mrb[0].mxu0
    %5343 = vmatprep.mubr.f32.mxu0 0.0
    %5344 = vmatmul.mubr.f32.gmra.mrb[0].mxu0 %v895
    %v5345 = vpop.f32.mrb[0].mxu0
    %v5346 = vadd.f32 0.0, %v5345
    %v5347 = vpop.f32.mrb[0].mxu0
    %5348 = vmatprep.mubr.f32.mxu0 0.0
    %5349 = vmatmul.mubr.f32.gmra.mrb[0].mxu0 %v898
    %v5350 = vpop.f32.mrb[0].mxu0
    %v5351 = vadd.f32 0.0, %v5350
    %v5352 = vpop.f32.mrb[0].mxu0
    %5353 = vdwg.mxu0
    %v5354 = vadd.f32 %v5268, %v5341
    %v5355 = vadd.f32 %v5269, %v5346
    %v5356 = vadd.f32 %v5270, %v5351
    %v5358 = vsel %vm513, %v5176, 0
    %5360 = vmatprep.subr.mxu0 0.0
    %5361 = vmatpush1.msra.mxu0 %v5164
    %5362 = vmatprep.subr.mxu0 0.0
    %5363 = vmatpush1.msra.mxu0 %v5170
    %5364 = vmatprep.subr.mxu0 0.0
    %5365 = vmatpush1.msra.mxu0 %v5358
    %5366 = vmatprep.subr.mxu0 0.0
    %5367 = vmatpush1.msra.mxu0 0.0
    %5368 = vmatprep.subr.mxu0 0.0
    %5369 = vmatpush1.msra.mxu0 0.0
    %5370 = vmatprep.subr.mxu0 0.0
    %5371 = vmatpush1.msra.mxu0 0.0
    %5372 = vmatprep.subr.mxu0 0.0
    %5373 = vmatpush1.msra.mxu0 0.0
    %5374 = vmatprep.subr.mxu0 0.0
    %5375 = vmatpush1.msra.mxu0 0.0
    %5376 = vmatprep.subr.mxu0 0.0
    %5377 = vmatpush1.msra.mxu0 0.0
    %5378 = vmatprep.subr.mxu0 0.0
    %5379 = vmatpush1.msra.mxu0 0.0
    %5380 = vmatprep.subr.mxu0 0.0
    %5381 = vmatpush1.msra.mxu0 0.0
    %5382 = vmatprep.subr.mxu0 0.0
    %5383 = vmatpush1.msra.mxu0 0.0
    %5384 = vmatprep.subr.mxu0 0.0
    %5385 = vmatpush1.msra.mxu0 0.0
    %5386 = vmatprep.subr.mxu0 0.0
    %5387 = vmatpush1.msra.mxu0 0.0
    %5388 = vmatprep.subr.mxu0 0.0
    %5389 = vmatpush1.msra.mxu0 0.0
    %5390 = vmatprep.subr.mxu0 0.0
    %5391 = vmatpush1.msra.mxu0 0.0
    %5392 = vmatprep.subr.mxu0 0.0
    %5393 = vmatpush1.msra.mxu0 0.0
    %5394 = vmatprep.subr.mxu0 0.0
    %5395 = vmatpush1.msra.mxu0 0.0
    %5396 = vmatprep.subr.mxu0 0.0
    %5397 = vmatpush1.msra.mxu0 0.0
    %5398 = vmatprep.subr.mxu0 0.0
    %5399 = vmatpush1.msra.mxu0 0.0
    %5400 = vmatprep.subr.mxu0 0.0
    %5401 = vmatpush1.msra.mxu0 0.0
    %5402 = vmatprep.subr.mxu0 0.0
    %5403 = vmatpush1.msra.mxu0 0.0
    %5404 = vmatprep.subr.mxu0 0.0
    %5405 = vmatpush1.msra.mxu0 0.0
    %5406 = vmatprep.subr.mxu0 0.0
    %5407 = vmatpush1.msra.mxu0 0.0
    %5408 = vmatprep.subr.mxu0 0.0
    %5409 = vmatpush1.msra.mxu0 0.0
    %5410 = vmatprep.subr.mxu0 0.0
    %5411 = vmatpush1.msra.mxu0 0.0
    %5412 = vmatprep.subr.mxu0 0.0
    %5413 = vmatpush1.msra.mxu0 0.0
    %5414 = vmatprep.subr.mxu0 0.0
    %5415 = vmatpush1.msra.mxu0 0.0
    %5416 = vmatprep.subr.mxu0 0.0
    %5417 = vmatpush1.msra.mxu0 0.0
    %5418 = vmatprep.subr.mxu0 0.0
    %5419 = vmatpush1.msra.mxu0 0.0
    %5420 = vmatprep.subr.mxu0 0.0
    %5421 = vmatpush1.msra.mxu0 0.0
    %5422 = vmatprep.subr.mxu0 0.0
    %5423 = vmatpush1.msra.mxu0 0.0
    %5424 = vmatprep.mubr.f32.mxu0 0.0
    %5425 = vmatmul.mubr.f32.gmra.mrb[0].mxu0 %v505
    %v5426 = vpop.f32.mrb[0].mxu0
    %v5427 = vadd.f32 0.0, %v5426
    %v5428 = vpop.f32.mrb[0].mxu0
    %5429 = vmatprep.mubr.f32.mxu0 0.0
    %5430 = vmatmul.mubr.f32.gmra.mrb[0].mxu0 %v508
    %v5431 = vpop.f32.mrb[0].mxu0
    %v5432 = vadd.f32 0.0, %v5431
    %v5433 = vpop.f32.mrb[0].mxu0
    %5434 = vmatprep.mubr.f32.mxu0 0.0
    %5435 = vmatmul.mubr.f32.gmra.mrb[0].mxu0 %v511
    %v5436 = vpop.f32.mrb[0].mxu0
    %v5437 = vadd.f32 0.0, %v5436
    %v5438 = vpop.f32.mrb[0].mxu0
    %5439 = vdwg.mxu0
    %v5440 = vadd.f32 %v5354, %v5427
    %v5441 = vadd.f32 %v5355, %v5432
    %v5442 = vadd.f32 %v5356, %v5437
    %s5443 = scalar_lea.vmem %s12, 192
    %v5444 = vld [vmem:[%s5443] sm:$0xff]
    %v5445 = vld [vmem:[%s5443 + $0x8] sm:$0xff]
    %v5446 = vld [vmem:[%s5443 + $0x10] sm:$0xff]
    %v5447 = vld [vmem:[%s5443 + $0x18] sm:$0xff]
    %v5448 = vld [vmem:[%s5443 + $0x20] sm:$0xff]
    %v5449 = vld [vmem:[%s5443 + $0x28] sm:$0xff]
    %v5450 = vld [vmem:[%s5443 + $0x30] sm:$0xff]
    %v5451 = vld [vmem:[%s5443 + $0x38] sm:$0xff]
    %v5452 = vld [vmem:[%s5443 + $0x40] sm:$0xff]
    %v5453 = vld [vmem:[%s5443 + $0x48] sm:$0xff]
    %v5454 = vld [vmem:[%s5443 + $0x50] sm:$0xff]
    %v5455 = vld [vmem:[%s5443 + $0x58] sm:$0xff]
    %v5457 = vsel %vm320, %v5440, 0
    %v5460 = vsel %vm320, %v5441, 0
    %v5463 = vsel %vm320, %v5442, 0
    %5465 = vmatprep.subr.mxu0 %v5445
    %5466 = vmatpush1.msra.mxu0 %v5444
    %5467 = vmatprep.subr.mxu0 %v5448
    %5468 = vmatpush1.msra.mxu0 %v5447
    %5469 = vmatprep.subr.mxu0 %v5451
    %5470 = vmatpush1.msra.mxu0 %v5450
    %5471 = vmatprep.subr.mxu0 %v5454
    %5472 = vmatpush1.msra.mxu0 %v5453
    %5473 = vmatprep.subr.mxu0 0.0
    %5474 = vmatpush1.msra.mxu0 0.0
    %5475 = vmatprep.subr.mxu0 0.0
    %5476 = vmatpush1.msra.mxu0 0.0
    %5477 = vmatprep.subr.mxu0 0.0
    %5478 = vmatpush1.msra.mxu0 0.0
    %5479 = vmatprep.subr.mxu0 0.0
    %5480 = vmatpush1.msra.mxu0 0.0
    %5481 = vmatprep.subr.mxu0 0.0
    %5482 = vmatpush1.msra.mxu0 0.0
    %5483 = vmatprep.subr.mxu0 0.0
    %5484 = vmatpush1.msra.mxu0 0.0
    %5485 = vmatprep.subr.mxu0 0.0
    %5486 = vmatpush1.msra.mxu0 0.0
    %5487 = vmatprep.subr.mxu0 0.0
    %5488 = vmatpush1.msra.mxu0 0.0
    %5489 = vmatprep.subr.mxu0 0.0
    %5490 = vmatpush1.msra.mxu0 0.0
    %5491 = vmatprep.subr.mxu0 0.0
    %5492 = vmatpush1.msra.mxu0 0.0
    %5493 = vmatprep.subr.mxu0 0.0
    %5494 = vmatpush1.msra.mxu0 0.0
    %5495 = vmatprep.subr.mxu0 0.0
    %5496 = vmatpush1.msra.mxu0 0.0
    %5497 = vmatprep.subr.mxu0 0.0
    %5498 = vmatpush1.msra.mxu0 0.0
    %5499 = vmatprep.subr.mxu0 0.0
    %5500 = vmatpush1.msra.mxu0 0.0
    %5501 = vmatprep.subr.mxu0 0.0
    %5502 = vmatpush1.msra.mxu0 0.0
    %5503 = vmatprep.subr.mxu0 0.0
    %5504 = vmatpush1.msra.mxu0 0.0
    %5505 = vmatprep.subr.mxu0 0.0
    %5506 = vmatpush1.msra.mxu0 0.0
    %5507 = vmatprep.subr.mxu0 0.0
    %5508 = vmatpush1.msra.mxu0 0.0
    %5509 = vmatprep.subr.mxu0 0.0
    %5510 = vmatpush1.msra.mxu0 0.0
    %5511 = vmatprep.subr.mxu0 0.0
    %5512 = vmatpush1.msra.mxu0 0.0
    %5513 = vmatprep.subr.mxu0 0.0
    %5514 = vmatpush1.msra.mxu0 0.0
    %5515 = vmatprep.subr.mxu0 0.0
    %5516 = vmatpush1.msra.mxu0 0.0
    %5517 = vmatprep.subr.mxu0 0.0
    %5518 = vmatpush1.msra.mxu0 0.0
    %5519 = vmatprep.subr.mxu0 0.0
    %5520 = vmatpush1.msra.mxu0 0.0
    %5521 = vmatprep.subr.mxu0 0.0
    %5522 = vmatpush1.msra.mxu0 0.0
    %5523 = vmatprep.subr.mxu0 0.0
    %5524 = vmatpush1.msra.mxu0 0.0
    %5525 = vmatprep.subr.mxu0 0.0
    %5526 = vmatpush1.msra.mxu0 0.0
    %5527 = vmatprep.subr.mxu0 0.0
    %5528 = vmatpush1.msra.mxu0 0.0
    %5529 = vmatprep.mubr.f32.mxu0 0.0
    %5530 = vmatmul.mubr.f32.gmra.mrb[0].mxu0 %v5457
    %v5531 = vpop.f32.mrb[0].mxu0
    %v5532 = vadd.f32 0.0, %v5531
    %v5533 = vpop.f32.mrb[0].mxu0
    %v5534 = vadd.f32 0.0, %v5533
    %5535 = vmatprep.mubr.f32.mxu0 0.0
    %5536 = vmatmul.mubr.f32.gmra.mrb[0].mxu0 %v5460
    %v5537 = vpop.f32.mrb[0].mxu0
    %v5538 = vadd.f32 0.0, %v5537
    %v5539 = vpop.f32.mrb[0].mxu0
    %v5540 = vadd.f32 0.0, %v5539
    %5541 = vmatprep.mubr.f32.mxu0 0.0
    %5542 = vmatmul.mubr.f32.gmra.mrb[0].mxu0 %v5463
    %v5543 = vpop.f32.mrb[0].mxu0
    %v5544 = vadd.f32 0.0, %v5543
    %v5545 = vpop.f32.mrb[0].mxu0
    %v5546 = vadd.f32 0.0, %v5545
    %5547 = vdwg.mxu0
    %5548 = vmatprep.subr.mxu0 0.0
    %5549 = vmatpush1.msra.mxu0 %v5446
    %5550 = vmatprep.subr.mxu0 0.0
    %5551 = vmatpush1.msra.mxu0 %v5449
    %5552 = vmatprep.subr.mxu0 0.0
    %5553 = vmatpush1.msra.mxu0 %v5452
    %5554 = vmatprep.subr.mxu0 0.0
    %5555 = vmatpush1.msra.mxu0 %v5455
    %5556 = vmatprep.subr.mxu0 0.0
    %5557 = vmatpush1.msra.mxu0 0.0
    %5558 = vmatprep.subr.mxu0 0.0
    %5559 = vmatpush1.msra.mxu0 0.0
    %5560 = vmatprep.subr.mxu0 0.0
    %5561 = vmatpush1.msra.mxu0 0.0
    %5562 = vmatprep.subr.mxu0 0.0
    %5563 = vmatpush1.msra.mxu0 0.0
    %5564 = vmatprep.subr.mxu0 0.0
    %5565 = vmatpush1.msra.mxu0 0.0
    %5566 = vmatprep.subr.mxu0 0.0
    %5567 = vmatpush1.msra.mxu0 0.0
    %5568 = vmatprep.subr.mxu0 0.0
    %5569 = vmatpush1.msra.mxu0 0.0
    %5570 = vmatprep.subr.mxu0 0.0
    %5571 = vmatpush1.msra.mxu0 0.0
    %5572 = vmatprep.subr.mxu0 0.0
    %5573 = vmatpush1.msra.mxu0 0.0
    %5574 = vmatprep.subr.mxu0 0.0
    %5575 = vmatpush1.msra.mxu0 0.0
    %5576 = vmatprep.subr.mxu0 0.0
    %5577 = vmatpush1.msra.mxu0 0.0
    %5578 = vmatprep.subr.mxu0 0.0
    %5579 = vmatpush1.msra.mxu0 0.0
    %5580 = vmatprep.subr.mxu0 0.0
    %5581 = vmatpush1.msra.mxu0 0.0
    %5582 = vmatprep.subr.mxu0 0.0
    %5583 = vmatpush1.msra.mxu0 0.0
    %5584 = vmatprep.subr.mxu0 0.0
    %5585 = vmatpush1.msra.mxu0 0.0
    %5586 = vmatprep.subr.mxu0 0.0
    %5587 = vmatpush1.msra.mxu0 0.0
    %5588 = vmatprep.subr.mxu0 0.0
    %5589 = vmatpush1.msra.mxu0 0.0
    %5590 = vmatprep.subr.mxu0 0.0
    %5591 = vmatpush1.msra.mxu0 0.0
    %5592 = vmatprep.subr.mxu0 0.0
    %5593 = vmatpush1.msra.mxu0 0.0
    %5594 = vmatprep.subr.mxu0 0.0
    %5595 = vmatpush1.msra.mxu0 0.0
    %5596 = vmatprep.subr.mxu0 0.0
    %5597 = vmatpush1.msra.mxu0 0.0
    %5598 = vmatprep.subr.mxu0 0.0
    %5599 = vmatpush1.msra.mxu0 0.0
    %5600 = vmatprep.subr.mxu0 0.0
    %5601 = vmatpush1.msra.mxu0 0.0
    %5602 = vmatprep.subr.mxu0 0.0
    %5603 = vmatpush1.msra.mxu0 0.0
    %5604 = vmatprep.subr.mxu0 0.0
    %5605 = vmatpush1.msra.mxu0 0.0
    %5606 = vmatprep.subr.mxu0 0.0
    %5607 = vmatpush1.msra.mxu0 0.0
    %5608 = vmatprep.subr.mxu0 0.0
    %5609 = vmatpush1.msra.mxu0 0.0
    %5610 = vmatprep.subr.mxu0 0.0
    %5611 = vmatpush1.msra.mxu0 0.0
    %5612 = vmatprep.mubr.f32.mxu0 0.0
    %5613 = vmatmul.mubr.f32.gmra.mrb[0].mxu0 %v5457
    %v5614 = vpop.f32.mrb[0].mxu0
    %v5615 = vadd.f32 0.0, %v5614
    %v5616 = vpop.f32.mrb[0].mxu0
    %5617 = vmatprep.mubr.f32.mxu0 0.0
    %5618 = vmatmul.mubr.f32.gmra.mrb[0].mxu0 %v5460
    %v5619 = vpop.f32.mrb[0].mxu0
    %v5620 = vadd.f32 0.0, %v5619
    %v5621 = vpop.f32.mrb[0].mxu0
    %5622 = vmatprep.mubr.f32.mxu0 0.0
    %5623 = vmatmul.mubr.f32.gmra.mrb[0].mxu0 %v5463
    %v5624 = vpop.f32.mrb[0].mxu0
    %v5625 = vadd.f32 0.0, %v5624
    %v5626 = vpop.f32.mrb[0].mxu0
    %5627 = vdwg.mxu0
    %s5628 = scalar_lea.vmem [#allocation20], 2
    %v5629 = vld [vmem:[%s5628] sm:$0x1]
    %v5631 = vlaneseq
    %v5632 = vshrl.u32 %v5631, 7
    %v5633 = vsub.s32 0, %v5632
    %v5634 = vrot.slane %v5629, %v5633
    %v5636 = vadd.f32 %v5615, %v5634
    %v5637 = vadd.f32 %v5620, %v5634
    %v5638 = vadd.f32 %v5625, %v5634
    %v5640 = vsel %vm513, %v5546, 0
    %5642 = vmatprep.subr.mxu0 0.0
    %5643 = vmatpush1.msra.mxu0 %v5534
    %5644 = vmatprep.subr.mxu0 0.0
    %5645 = vmatpush1.msra.mxu0 %v5540
    %5646 = vmatprep.subr.mxu0 0.0
    %5647 = vmatpush1.msra.mxu0 %v5640
    %5648 = vmatprep.subr.mxu0 0.0
    %5649 = vmatpush1.msra.mxu0 0.0
    %5650 = vmatprep.subr.mxu0 0.0
    %5651 = vmatpush1.msra.mxu0 0.0
    %5652 = vmatprep.subr.mxu0 0.0
    %5653 = vmatpush1.msra.mxu0 0.0
    %5654 = vmatprep.subr.mxu0 0.0
    %5655 = vmatpush1.msra.mxu0 0.0
    %5656 = vmatprep.subr.mxu0 0.0
    %5657 = vmatpush1.msra.mxu0 0.0
    %5658 = vmatprep.subr.mxu0 0.0
    %5659 = vmatpush1.msra.mxu0 0.0
    %5660 = vmatprep.subr.mxu0 0.0
    %5661 = vmatpush1.msra.mxu0 0.0
    %5662 = vmatprep.subr.mxu0 0.0
    %5663 = vmatpush1.msra.mxu0 0.0
    %5664 = vmatprep.subr.mxu0 0.0
    %5665 = vmatpush1.msra.mxu0 0.0
    %5666 = vmatprep.subr.mxu0 0.0
    %5667 = vmatpush1.msra.mxu0 0.0
    %5668 = vmatprep.subr.mxu0 0.0
    %5669 = vmatpush1.msra.mxu0 0.0
    %5670 = vmatprep.subr.mxu0 0.0
    %5671 = vmatpush1.msra.mxu0 0.0
    %5672 = vmatprep.subr.mxu0 0.0
    %5673 = vmatpush1.msra.mxu0 0.0
    %5674 = vmatprep.subr.mxu0 0.0
    %5675 = vmatpush1.msra.mxu0 0.0
    %5676 = vmatprep.subr.mxu0 0.0
    %5677 = vmatpush1.msra.mxu0 0.0
    %5678 = vmatprep.subr.mxu0 0.0
    %5679 = vmatpush1.msra.mxu0 0.0
    %5680 = vmatprep.subr.mxu0 0.0
    %5681 = vmatpush1.msra.mxu0 0.0
    %5682 = vmatprep.subr.mxu0 0.0
    %5683 = vmatpush1.msra.mxu0 0.0
    %5684 = vmatprep.subr.mxu0 0.0
    %5685 = vmatpush1.msra.mxu0 0.0
    %5686 = vmatprep.subr.mxu0 0.0
    %5687 = vmatpush1.msra.mxu0 0.0
    %5688 = vmatprep.subr.mxu0 0.0
    %5689 = vmatpush1.msra.mxu0 0.0
    %5690 = vmatprep.subr.mxu0 0.0
    %5691 = vmatpush1.msra.mxu0 0.0
    %5692 = vmatprep.subr.mxu0 0.0
    %5693 = vmatpush1.msra.mxu0 0.0
    %5694 = vmatprep.subr.mxu0 0.0
    %5695 = vmatpush1.msra.mxu0 0.0
    %5696 = vmatprep.subr.mxu0 0.0
    %5697 = vmatpush1.msra.mxu0 0.0
    %5698 = vmatprep.subr.mxu0 0.0
    %5699 = vmatpush1.msra.mxu0 0.0
    %5700 = vmatprep.subr.mxu0 0.0
    %5701 = vmatpush1.msra.mxu0 0.0
    %5702 = vmatprep.subr.mxu0 0.0
    %5703 = vmatpush1.msra.mxu0 0.0
    %5704 = vmatprep.subr.mxu0 0.0
    %5705 = vmatpush1.msra.mxu0 0.0
    %5706 = vmatprep.mubr.f32.mxu0 0.0
    %5707 = vmatmul.mubr.f32.gmra.mrb[0].mxu0 %v1269
    %v5708 = vpop.f32.mrb[0].mxu0
    %v5709 = vadd.f32 0.0, %v5708
    %v5710 = vpop.f32.mrb[0].mxu0
    %5711 = vmatprep.mubr.f32.mxu0 0.0
    %5712 = vmatmul.mubr.f32.gmra.mrb[0].mxu0 %v1272
    %v5713 = vpop.f32.mrb[0].mxu0
    %v5714 = vadd.f32 0.0, %v5713
    %v5715 = vpop.f32.mrb[0].mxu0
    %5716 = vmatprep.mubr.f32.mxu0 0.0
    %5717 = vmatmul.mubr.f32.gmra.mrb[0].mxu0 %v1275
    %v5718 = vpop.f32.mrb[0].mxu0
    %v5719 = vadd.f32 0.0, %v5718
    %v5720 = vpop.f32.mrb[0].mxu0
    %5721 = vdwg.mxu0
    %v5722 = vadd.f32 %v5636, %v5709
    %v5723 = vadd.f32 %v5637, %v5714
    %v5724 = vadd.f32 %v5638, %v5719
    %v5726 = vsel %vm513, %v5544, 0
    %5728 = vmatprep.subr.mxu0 0.0
    %5729 = vmatpush1.msra.mxu0 %v5532
    %5730 = vmatprep.subr.mxu0 0.0
    %5731 = vmatpush1.msra.mxu0 %v5538
    %5732 = vmatprep.subr.mxu0 0.0
    %5733 = vmatpush1.msra.mxu0 %v5726
    %5734 = vmatprep.subr.mxu0 0.0
    %5735 = vmatpush1.msra.mxu0 0.0
    %5736 = vmatprep.subr.mxu0 0.0
    %5737 = vmatpush1.msra.mxu0 0.0
    %5738 = vmatprep.subr.mxu0 0.0
    %5739 = vmatpush1.msra.mxu0 0.0
    %5740 = vmatprep.subr.mxu0 0.0
    %5741 = vmatpush1.msra.mxu0 0.0
    %5742 = vmatprep.subr.mxu0 0.0
    %5743 = vmatpush1.msra.mxu0 0.0
    %5744 = vmatprep.subr.mxu0 0.0
    %5745 = vmatpush1.msra.mxu0 0.0
    %5746 = vmatprep.subr.mxu0 0.0
    %5747 = vmatpush1.msra.mxu0 0.0
    %5748 = vmatprep.subr.mxu0 0.0
    %5749 = vmatpush1.msra.mxu0 0.0
    %5750 = vmatprep.subr.mxu0 0.0
    %5751 = vmatpush1.msra.mxu0 0.0
    %5752 = vmatprep.subr.mxu0 0.0
    %5753 = vmatpush1.msra.mxu0 0.0
    %5754 = vmatprep.subr.mxu0 0.0
    %5755 = vmatpush1.msra.mxu0 0.0
    %5756 = vmatprep.subr.mxu0 0.0
    %5757 = vmatpush1.msra.mxu0 0.0
    %5758 = vmatprep.subr.mxu0 0.0
    %5759 = vmatpush1.msra.mxu0 0.0
    %5760 = vmatprep.subr.mxu0 0.0
    %5761 = vmatpush1.msra.mxu0 0.0
    %5762 = vmatprep.subr.mxu0 0.0
    %5763 = vmatpush1.msra.mxu0 0.0
    %5764 = vmatprep.subr.mxu0 0.0
    %5765 = vmatpush1.msra.mxu0 0.0
    %5766 = vmatprep.subr.mxu0 0.0
    %5767 = vmatpush1.msra.mxu0 0.0
    %5768 = vmatprep.subr.mxu0 0.0
    %5769 = vmatpush1.msra.mxu0 0.0
    %5770 = vmatprep.subr.mxu0 0.0
    %5771 = vmatpush1.msra.mxu0 0.0
    %5772 = vmatprep.subr.mxu0 0.0
    %5773 = vmatpush1.msra.mxu0 0.0
    %5774 = vmatprep.subr.mxu0 0.0
    %5775 = vmatpush1.msra.mxu0 0.0
    %5776 = vmatprep.subr.mxu0 0.0
    %5777 = vmatpush1.msra.mxu0 0.0
    %5778 = vmatprep.subr.mxu0 0.0
    %5779 = vmatpush1.msra.mxu0 0.0
    %5780 = vmatprep.subr.mxu0 0.0
    %5781 = vmatpush1.msra.mxu0 0.0
    %5782 = vmatprep.subr.mxu0 0.0
    %5783 = vmatpush1.msra.mxu0 0.0
    %5784 = vmatprep.subr.mxu0 0.0
    %5785 = vmatpush1.msra.mxu0 0.0
    %5786 = vmatprep.subr.mxu0 0.0
    %5787 = vmatpush1.msra.mxu0 0.0
    %5788 = vmatprep.subr.mxu0 0.0
    %5789 = vmatpush1.msra.mxu0 0.0
    %5790 = vmatprep.subr.mxu0 0.0
    %5791 = vmatpush1.msra.mxu0 0.0
    %5792 = vmatprep.mubr.f32.mxu0 0.0
    %5793 = vmatmul.mubr.f32.gmra.mrb[0].mxu0 %v892
    %v5794 = vpop.f32.mrb[0].mxu0
    %v5795 = vadd.f32 0.0, %v5794
    %v5796 = vpop.f32.mrb[0].mxu0
    %5797 = vmatprep.mubr.f32.mxu0 0.0
    %5798 = vmatmul.mubr.f32.gmra.mrb[0].mxu0 %v895
    %v5799 = vpop.f32.mrb[0].mxu0
    %v5800 = vadd.f32 0.0, %v5799
    %v5801 = vpop.f32.mrb[0].mxu0
    %5802 = vmatprep.mubr.f32.mxu0 0.0
    %5803 = vmatmul.mubr.f32.gmra.mrb[0].mxu0 %v898
    %v5804 = vpop.f32.mrb[0].mxu0
    %v5805 = vadd.f32 0.0, %v5804
    %v5806 = vpop.f32.mrb[0].mxu0
    %5807 = vdwg.mxu0
    %v5808 = vadd.f32 %v5722, %v5795
    %v5809 = vadd.f32 %v5723, %v5800
    %v5810 = vadd.f32 %v5724, %v5805
    %v5811 = vmax.f32 %v5808, 0.0
    %v5812 = vmax.f32 %v5809, 0.0
    %v5813 = vmax.f32 %v5810, 0.0
    %v5814 = vadd.f32 %v5811, %v3659
    %v5815 = vadd.f32 %v5812, %v3660
    %v5816 = vadd.f32 %v5813, %v3661
    %v5818 = vsel %vm320, %v4706, 0
    %v5821 = vsel %vm320, %v4707, 0
    %v5824 = vsel %vm320, %v4708, 0
    %5826 = vmatprep.subr.mxu0 %v4710
    %5827 = vmatpush1.msra.mxu0 %v4709
    %5828 = vmatprep.subr.mxu0 %v4713
    %5829 = vmatpush1.msra.mxu0 %v4712
    %5830 = vmatprep.subr.mxu0 %v4716
    %5831 = vmatpush1.msra.mxu0 %v4715
    %5832 = vmatprep.subr.mxu0 %v4719
    %5833 = vmatpush1.msra.mxu0 %v4718
    %5834 = vmatprep.subr.mxu0 0.0
    %5835 = vmatpush1.msra.mxu0 0.0
    %5836 = vmatprep.subr.mxu0 0.0
    %5837 = vmatpush1.msra.mxu0 0.0
    %5838 = vmatprep.subr.mxu0 0.0
    %5839 = vmatpush1.msra.mxu0 0.0
    %5840 = vmatprep.subr.mxu0 0.0
    %5841 = vmatpush1.msra.mxu0 0.0
    %5842 = vmatprep.subr.mxu0 0.0
    %5843 = vmatpush1.msra.mxu0 0.0
    %5844 = vmatprep.subr.mxu0 0.0
    %5845 = vmatpush1.msra.mxu0 0.0
    %5846 = vmatprep.subr.mxu0 0.0
    %5847 = vmatpush1.msra.mxu0 0.0
    %5848 = vmatprep.subr.mxu0 0.0
    %5849 = vmatpush1.msra.mxu0 0.0
    %5850 = vmatprep.subr.mxu0 0.0
    %5851 = vmatpush1.msra.mxu0 0.0
    %5852 = vmatprep.subr.mxu0 0.0
    %5853 = vmatpush1.msra.mxu0 0.0
    %5854 = vmatprep.subr.mxu0 0.0
    %5855 = vmatpush1.msra.mxu0 0.0
    %5856 = vmatprep.subr.mxu0 0.0
    %5857 = vmatpush1.msra.mxu0 0.0
    %5858 = vmatprep.subr.mxu0 0.0
    %5859 = vmatpush1.msra.mxu0 0.0
    %5860 = vmatprep.subr.mxu0 0.0
    %5861 = vmatpush1.msra.mxu0 0.0
    %5862 = vmatprep.subr.mxu0 0.0
    %5863 = vmatpush1.msra.mxu0 0.0
    %5864 = vmatprep.subr.mxu0 0.0
    %5865 = vmatpush1.msra.mxu0 0.0
    %5866 = vmatprep.subr.mxu0 0.0
    %5867 = vmatpush1.msra.mxu0 0.0
    %5868 = vmatprep.subr.mxu0 0.0
    %5869 = vmatpush1.msra.mxu0 0.0
    %5870 = vmatprep.subr.mxu0 0.0
    %5871 = vmatpush1.msra.mxu0 0.0
    %5872 = vmatprep.subr.mxu0 0.0
    %5873 = vmatpush1.msra.mxu0 0.0
    %5874 = vmatprep.subr.mxu0 0.0
    %5875 = vmatpush1.msra.mxu0 0.0
    %5876 = vmatprep.subr.mxu0 0.0
    %5877 = vmatpush1.msra.mxu0 0.0
    %5878 = vmatprep.subr.mxu0 0.0
    %5879 = vmatpush1.msra.mxu0 0.0
    %5880 = vmatprep.subr.mxu0 0.0
    %5881 = vmatpush1.msra.mxu0 0.0
    %5882 = vmatprep.subr.mxu0 0.0
    %5883 = vmatpush1.msra.mxu0 0.0
    %5884 = vmatprep.subr.mxu0 0.0
    %5885 = vmatpush1.msra.mxu0 0.0
    %5886 = vmatprep.subr.mxu0 0.0
    %5887 = vmatpush1.msra.mxu0 0.0
    %5888 = vmatprep.subr.mxu0 0.0
    %5889 = vmatpush1.msra.mxu0 0.0
    %5890 = vmatprep.mubr.f32.mxu0 0.0
    %5891 = vmatmul.mubr.f32.gmra.mrb[0].mxu0 %v5818
    %v5892 = vpop.f32.mrb[0].mxu0
    %v5893 = vadd.f32 0.0, %v5892
    %v5894 = vpop.f32.mrb[0].mxu0
    %v5895 = vadd.f32 0.0, %v5894
    %5896 = vmatprep.mubr.f32.mxu0 0.0
    %5897 = vmatmul.mubr.f32.gmra.mrb[0].mxu0 %v5821
    %v5898 = vpop.f32.mrb[0].mxu0
    %v5899 = vadd.f32 0.0, %v5898
    %v5900 = vpop.f32.mrb[0].mxu0
    %v5901 = vadd.f32 0.0, %v5900
    %5902 = vmatprep.mubr.f32.mxu0 0.0
    %5903 = vmatmul.mubr.f32.gmra.mrb[0].mxu0 %v5824
    %v5904 = vpop.f32.mrb[0].mxu0
    %v5905 = vadd.f32 0.0, %v5904
    %v5906 = vpop.f32.mrb[0].mxu0
    %v5907 = vadd.f32 0.0, %v5906
    %5908 = vdwg.mxu0
    %5909 = vmatprep.subr.mxu0 0.0
    %5910 = vmatpush1.msra.mxu0 %v4711
    %5911 = vmatprep.subr.mxu0 0.0
    %5912 = vmatpush1.msra.mxu0 %v4714
    %5913 = vmatprep.subr.mxu0 0.0
    %5914 = vmatpush1.msra.mxu0 %v4717
    %5915 = vmatprep.subr.mxu0 0.0
    %5916 = vmatpush1.msra.mxu0 %v4720
    %5917 = vmatprep.subr.mxu0 0.0
    %5918 = vmatpush1.msra.mxu0 0.0
    %5919 = vmatprep.subr.mxu0 0.0
    %5920 = vmatpush1.msra.mxu0 0.0
    %5921 = vmatprep.subr.mxu0 0.0
    %5922 = vmatpush1.msra.mxu0 0.0
    %5923 = vmatprep.subr.mxu0 0.0
    %5924 = vmatpush1.msra.mxu0 0.0
    %5925 = vmatprep.subr.mxu0 0.0
    %5926 = vmatpush1.msra.mxu0 0.0
    %5927 = vmatprep.subr.mxu0 0.0
    %5928 = vmatpush1.msra.mxu0 0.0
    %5929 = vmatprep.subr.mxu0 0.0
    %5930 = vmatpush1.msra.mxu0 0.0
    %5931 = vmatprep.subr.mxu0 0.0
    %5932 = vmatpush1.msra.mxu0 0.0
    %5933 = vmatprep.subr.mxu0 0.0
    %5934 = vmatpush1.msra.mxu0 0.0
    %5935 = vmatprep.subr.mxu0 0.0
    %5936 = vmatpush1.msra.mxu0 0.0
    %5937 = vmatprep.subr.mxu0 0.0
    %5938 = vmatpush1.msra.mxu0 0.0
    %5939 = vmatprep.subr.mxu0 0.0
    %5940 = vmatpush1.msra.mxu0 0.0
    %5941 = vmatprep.subr.mxu0 0.0
    %5942 = vmatpush1.msra.mxu0 0.0
    %5943 = vmatprep.subr.mxu0 0.0
    %5944 = vmatpush1.msra.mxu0 0.0
    %5945 = vmatprep.subr.mxu0 0.0
    %5946 = vmatpush1.msra.mxu0 0.0
    %5947 = vmatprep.subr.mxu0 0.0
    %5948 = vmatpush1.msra.mxu0 0.0
    %5949 = vmatprep.subr.mxu0 0.0
    %5950 = vmatpush1.msra.mxu0 0.0
    %5951 = vmatprep.subr.mxu0 0.0
    %5952 = vmatpush1.msra.mxu0 0.0
    %5953 = vmatprep.subr.mxu0 0.0
    %5954 = vmatpush1.msra.mxu0 0.0
    %5955 = vmatprep.subr.mxu0 0.0
    %5956 = vmatpush1.msra.mxu0 0.0
    %5957 = vmatprep.subr.mxu0 0.0
    %5958 = vmatpush1.msra.mxu0 0.0
    %5959 = vmatprep.subr.mxu0 0.0
    %5960 = vmatpush1.msra.mxu0 0.0
    %5961 = vmatprep.subr.mxu0 0.0
    %5962 = vmatpush1.msra.mxu0 0.0
    %5963 = vmatprep.subr.mxu0 0.0
    %5964 = vmatpush1.msra.mxu0 0.0
    %5965 = vmatprep.subr.mxu0 0.0
    %5966 = vmatpush1.msra.mxu0 0.0
    %5967 = vmatprep.subr.mxu0 0.0
    %5968 = vmatpush1.msra.mxu0 0.0
    %5969 = vmatprep.subr.mxu0 0.0
    %5970 = vmatpush1.msra.mxu0 0.0
    %5971 = vmatprep.subr.mxu0 0.0
    %5972 = vmatpush1.msra.mxu0 0.0
    %5973 = vmatprep.mubr.f32.mxu0 0.0
    %5974 = vmatmul.mubr.f32.gmra.mrb[0].mxu0 %v5818
    %v5975 = vpop.f32.mrb[0].mxu0
    %v5976 = vadd.f32 0.0, %v5975
    %v5977 = vpop.f32.mrb[0].mxu0
    %5978 = vmatprep.mubr.f32.mxu0 0.0
    %5979 = vmatmul.mubr.f32.gmra.mrb[0].mxu0 %v5821
    %v5980 = vpop.f32.mrb[0].mxu0
    %v5981 = vadd.f32 0.0, %v5980
    %v5982 = vpop.f32.mrb[0].mxu0
    %5983 = vmatprep.mubr.f32.mxu0 0.0
    %5984 = vmatmul.mubr.f32.gmra.mrb[0].mxu0 %v5824
    %v5985 = vpop.f32.mrb[0].mxu0
    %v5986 = vadd.f32 0.0, %v5985
    %v5987 = vpop.f32.mrb[0].mxu0
    %5988 = vdwg.mxu0
    %v5989 = vadd.f32 %v5976, %v4898
    %v5990 = vadd.f32 %v5981, %v4898
    %v5991 = vadd.f32 %v5986, %v4898
    %v5993 = vsel %vm513, %v5907, 0
    %5995 = vmatprep.subr.mxu0 0.0
    %5996 = vmatpush1.msra.mxu0 %v5895
    %5997 = vmatprep.subr.mxu0 0.0
    %5998 = vmatpush1.msra.mxu0 %v5901
    %5999 = vmatprep.subr.mxu0 0.0
    %6000 = vmatpush1.msra.mxu0 %v5993
    %6001 = vmatprep.subr.mxu0 0.0
    %6002 = vmatpush1.msra.mxu0 0.0
    %6003 = vmatprep.subr.mxu0 0.0
    %6004 = vmatpush1.msra.mxu0 0.0
    %6005 = vmatprep.subr.mxu0 0.0
    %6006 = vmatpush1.msra.mxu0 0.0
    %6007 = vmatprep.subr.mxu0 0.0
    %6008 = vmatpush1.msra.mxu0 0.0
    %6009 = vmatprep.subr.mxu0 0.0
    %6010 = vmatpush1.msra.mxu0 0.0
    %6011 = vmatprep.subr.mxu0 0.0
    %6012 = vmatpush1.msra.mxu0 0.0
    %6013 = vmatprep.subr.mxu0 0.0
    %6014 = vmatpush1.msra.mxu0 0.0
    %6015 = vmatprep.subr.mxu0 0.0
    %6016 = vmatpush1.msra.mxu0 0.0
    %6017 = vmatprep.subr.mxu0 0.0
    %6018 = vmatpush1.msra.mxu0 0.0
    %6019 = vmatprep.subr.mxu0 0.0
    %6020 = vmatpush1.msra.mxu0 0.0
    %6021 = vmatprep.subr.mxu0 0.0
    %6022 = vmatpush1.msra.mxu0 0.0
    %6023 = vmatprep.subr.mxu0 0.0
    %6024 = vmatpush1.msra.mxu0 0.0
    %6025 = vmatprep.subr.mxu0 0.0
    %6026 = vmatpush1.msra.mxu0 0.0
    %6027 = vmatprep.subr.mxu0 0.0
    %6028 = vmatpush1.msra.mxu0 0.0
    %6029 = vmatprep.subr.mxu0 0.0
    %6030 = vmatpush1.msra.mxu0 0.0
    %6031 = vmatprep.subr.mxu0 0.0
    %6032 = vmatpush1.msra.mxu0 0.0
    %6033 = vmatprep.subr.mxu0 0.0
    %6034 = vmatpush1.msra.mxu0 0.0
    %6035 = vmatprep.subr.mxu0 0.0
    %6036 = vmatpush1.msra.mxu0 0.0
    %6037 = vmatprep.subr.mxu0 0.0
    %6038 = vmatpush1.msra.mxu0 0.0
    %6039 = vmatprep.subr.mxu0 0.0
    %6040 = vmatpush1.msra.mxu0 0.0
    %6041 = vmatprep.subr.mxu0 0.0
    %6042 = vmatpush1.msra.mxu0 0.0
    %6043 = vmatprep.subr.mxu0 0.0
    %6044 = vmatpush1.msra.mxu0 0.0
    %6045 = vmatprep.subr.mxu0 0.0
    %6046 = vmatpush1.msra.mxu0 0.0
    %6047 = vmatprep.subr.mxu0 0.0
    %6048 = vmatpush1.msra.mxu0 0.0
    %6049 = vmatprep.subr.mxu0 0.0
    %6050 = vmatpush1.msra.mxu0 0.0
    %6051 = vmatprep.subr.mxu0 0.0
    %6052 = vmatpush1.msra.mxu0 0.0
    %6053 = vmatprep.subr.mxu0 0.0
    %6054 = vmatpush1.msra.mxu0 0.0
    %6055 = vmatprep.subr.mxu0 0.0
    %6056 = vmatpush1.msra.mxu0 0.0
    %6057 = vmatprep.subr.mxu0 0.0
    %6058 = vmatpush1.msra.mxu0 0.0
    %6059 = vmatprep.mubr.f32.mxu0 0.0
    %6060 = vmatmul.mubr.f32.gmra.mrb[0].mxu0 %v505
    %v6061 = vpop.f32.mrb[0].mxu0
    %v6062 = vadd.f32 0.0, %v6061
    %v6063 = vpop.f32.mrb[0].mxu0
    %6064 = vmatprep.mubr.f32.mxu0 0.0
    %6065 = vmatmul.mubr.f32.gmra.mrb[0].mxu0 %v508
    %v6066 = vpop.f32.mrb[0].mxu0
    %v6067 = vadd.f32 0.0, %v6066
    %v6068 = vpop.f32.mrb[0].mxu0
    %6069 = vmatprep.mubr.f32.mxu0 0.0
    %6070 = vmatmul.mubr.f32.gmra.mrb[0].mxu0 %v511
    %v6071 = vpop.f32.mrb[0].mxu0
    %v6072 = vadd.f32 0.0, %v6071
    %v6073 = vpop.f32.mrb[0].mxu0
    %6074 = vdwg.mxu0
    %v6075 = vadd.f32 %v5989, %v6062
    %v6076 = vadd.f32 %v5990, %v6067
    %v6077 = vadd.f32 %v5991, %v6072
    %v6079 = vsel %vm513, %v5905, 0
    %6081 = vmatprep.subr.mxu0 0.0
    %6082 = vmatpush1.msra.mxu0 %v5893
    %6083 = vmatprep.subr.mxu0 0.0
    %6084 = vmatpush1.msra.mxu0 %v5899
    %6085 = vmatprep.subr.mxu0 0.0
    %6086 = vmatpush1.msra.mxu0 %v6079
    %6087 = vmatprep.subr.mxu0 0.0
    %6088 = vmatpush1.msra.mxu0 0.0
    %6089 = vmatprep.subr.mxu0 0.0
    %6090 = vmatpush1.msra.mxu0 0.0
    %6091 = vmatprep.subr.mxu0 0.0
    %6092 = vmatpush1.msra.mxu0 0.0
    %6093 = vmatprep.subr.mxu0 0.0
    %6094 = vmatpush1.msra.mxu0 0.0
    %6095 = vmatprep.subr.mxu0 0.0
    %6096 = vmatpush1.msra.mxu0 0.0
    %6097 = vmatprep.subr.mxu0 0.0
    %6098 = vmatpush1.msra.mxu0 0.0
    %6099 = vmatprep.subr.mxu0 0.0
    %6100 = vmatpush1.msra.mxu0 0.0
    %6101 = vmatprep.subr.mxu0 0.0
    %6102 = vmatpush1.msra.mxu0 0.0
    %6103 = vmatprep.subr.mxu0 0.0
    %6104 = vmatpush1.msra.mxu0 0.0
    %6105 = vmatprep.subr.mxu0 0.0
    %6106 = vmatpush1.msra.mxu0 0.0
    %6107 = vmatprep.subr.mxu0 0.0
    %6108 = vmatpush1.msra.mxu0 0.0
    %6109 = vmatprep.subr.mxu0 0.0
    %6110 = vmatpush1.msra.mxu0 0.0
    %6111 = vmatprep.subr.mxu0 0.0
    %6112 = vmatpush1.msra.mxu0 0.0
    %6113 = vmatprep.subr.mxu0 0.0
    %6114 = vmatpush1.msra.mxu0 0.0
    %6115 = vmatprep.subr.mxu0 0.0
    %6116 = vmatpush1.msra.mxu0 0.0
    %6117 = vmatprep.subr.mxu0 0.0
    %6118 = vmatpush1.msra.mxu0 0.0
    %6119 = vmatprep.subr.mxu0 0.0
    %6120 = vmatpush1.msra.mxu0 0.0
    %6121 = vmatprep.subr.mxu0 0.0
    %6122 = vmatpush1.msra.mxu0 0.0
    %6123 = vmatprep.subr.mxu0 0.0
    %6124 = vmatpush1.msra.mxu0 0.0
    %6125 = vmatprep.subr.mxu0 0.0
    %6126 = vmatpush1.msra.mxu0 0.0
    %6127 = vmatprep.subr.mxu0 0.0
    %6128 = vmatpush1.msra.mxu0 0.0
    %6129 = vmatprep.subr.mxu0 0.0
    %6130 = vmatpush1.msra.mxu0 0.0
    %6131 = vmatprep.subr.mxu0 0.0
    %6132 = vmatpush1.msra.mxu0 0.0
    %6133 = vmatprep.subr.mxu0 0.0
    %6134 = vmatpush1.msra.mxu0 0.0
    %6135 = vmatprep.subr.mxu0 0.0
    %6136 = vmatpush1.msra.mxu0 0.0
    %6137 = vmatprep.subr.mxu0 0.0
    %6138 = vmatpush1.msra.mxu0 0.0
    %6139 = vmatprep.subr.mxu0 0.0
    %6140 = vmatpush1.msra.mxu0 0.0
    %6141 = vmatprep.subr.mxu0 0.0
    %6142 = vmatpush1.msra.mxu0 0.0
    %6143 = vmatprep.subr.mxu0 0.0
    %6144 = vmatpush1.msra.mxu0 0.0
    %6145 = vmatprep.mubr.f32.mxu0 0.0
    %6146 = vmatmul.mubr.f32.gmra.mrb[0].mxu0 %v601
    %v6147 = vpop.f32.mrb[0].mxu0
    %v6148 = vadd.f32 0.0, %v6147
    %v6149 = vpop.f32.mrb[0].mxu0
    %6150 = vmatprep.mubr.f32.mxu0 0.0
    %6151 = vmatmul.mubr.f32.gmra.mrb[0].mxu0 %v604
    %v6152 = vpop.f32.mrb[0].mxu0
    %v6153 = vadd.f32 0.0, %v6152
    %v6154 = vpop.f32.mrb[0].mxu0
    %6155 = vmatprep.mubr.f32.mxu0 0.0
    %6156 = vmatmul.mubr.f32.gmra.mrb[0].mxu0 %v607
    %v6157 = vpop.f32.mrb[0].mxu0
    %v6158 = vadd.f32 0.0, %v6157
    %v6159 = vpop.f32.mrb[0].mxu0
    %6160 = vdwg.mxu0
    %v6161 = vadd.f32 %v6075, %v6148
    %v6162 = vadd.f32 %v6076, %v6153
    %v6163 = vadd.f32 %v6077, %v6158
    %v6165 = vsel %vm320, %v6161, 0
    %v6168 = vsel %vm320, %v6162, 0
    %v6171 = vsel %vm320, %v6163, 0
    %6173 = vmatprep.subr.mxu0 %v5077
    %6174 = vmatpush1.msra.mxu0 %v5076
    %6175 = vmatprep.subr.mxu0 %v5080
    %6176 = vmatpush1.msra.mxu0 %v5079
    %6177 = vmatprep.subr.mxu0 %v5083
    %6178 = vmatpush1.msra.mxu0 %v5082
    %6179 = vmatprep.subr.mxu0 %v5086
    %6180 = vmatpush1.msra.mxu0 %v5085
    %6181 = vmatprep.subr.mxu0 0.0
    %6182 = vmatpush1.msra.mxu0 0.0
    %6183 = vmatprep.subr.mxu0 0.0
    %6184 = vmatpush1.msra.mxu0 0.0
    %6185 = vmatprep.subr.mxu0 0.0
    %6186 = vmatpush1.msra.mxu0 0.0
    %6187 = vmatprep.subr.mxu0 0.0
    %6188 = vmatpush1.msra.mxu0 0.0
    %6189 = vmatprep.subr.mxu0 0.0
    %6190 = vmatpush1.msra.mxu0 0.0
    %6191 = vmatprep.subr.mxu0 0.0
    %6192 = vmatpush1.msra.mxu0 0.0
    %6193 = vmatprep.subr.mxu0 0.0
    %6194 = vmatpush1.msra.mxu0 0.0
    %6195 = vmatprep.subr.mxu0 0.0
    %6196 = vmatpush1.msra.mxu0 0.0
    %6197 = vmatprep.subr.mxu0 0.0
    %6198 = vmatpush1.msra.mxu0 0.0
    %6199 = vmatprep.subr.mxu0 0.0
    %6200 = vmatpush1.msra.mxu0 0.0
    %6201 = vmatprep.subr.mxu0 0.0
    %6202 = vmatpush1.msra.mxu0 0.0
    %6203 = vmatprep.subr.mxu0 0.0
    %6204 = vmatpush1.msra.mxu0 0.0
    %6205 = vmatprep.subr.mxu0 0.0
    %6206 = vmatpush1.msra.mxu0 0.0
    %6207 = vmatprep.subr.mxu0 0.0
    %6208 = vmatpush1.msra.mxu0 0.0
    %6209 = vmatprep.subr.mxu0 0.0
    %6210 = vmatpush1.msra.mxu0 0.0
    %6211 = vmatprep.subr.mxu0 0.0
    %6212 = vmatpush1.msra.mxu0 0.0
    %6213 = vmatprep.subr.mxu0 0.0
    %6214 = vmatpush1.msra.mxu0 0.0
    %6215 = vmatprep.subr.mxu0 0.0
    %6216 = vmatpush1.msra.mxu0 0.0
    %6217 = vmatprep.subr.mxu0 0.0
    %6218 = vmatpush1.msra.mxu0 0.0
    %6219 = vmatprep.subr.mxu0 0.0
    %6220 = vmatpush1.msra.mxu0 0.0
    %6221 = vmatprep.subr.mxu0 0.0
    %6222 = vmatpush1.msra.mxu0 0.0
    %6223 = vmatprep.subr.mxu0 0.0
    %6224 = vmatpush1.msra.mxu0 0.0
    %6225 = vmatprep.subr.mxu0 0.0
    %6226 = vmatpush1.msra.mxu0 0.0
    %6227 = vmatprep.subr.mxu0 0.0
    %6228 = vmatpush1.msra.mxu0 0.0
    %6229 = vmatprep.subr.mxu0 0.0
    %6230 = vmatpush1.msra.mxu0 0.0
    %6231 = vmatprep.subr.mxu0 0.0
    %6232 = vmatpush1.msra.mxu0 0.0
    %6233 = vmatprep.subr.mxu0 0.0
    %6234 = vmatpush1.msra.mxu0 0.0
    %6235 = vmatprep.subr.mxu0 0.0
    %6236 = vmatpush1.msra.mxu0 0.0
    %6237 = vmatprep.mubr.f32.mxu0 0.0
    %6238 = vmatmul.mubr.f32.gmra.mrb[0].mxu0 %v6165
    %v6239 = vpop.f32.mrb[0].mxu0
    %v6240 = vadd.f32 0.0, %v6239
    %v6241 = vpop.f32.mrb[0].mxu0
    %v6242 = vadd.f32 0.0, %v6241
    %6243 = vmatprep.mubr.f32.mxu0 0.0
    %6244 = vmatmul.mubr.f32.gmra.mrb[0].mxu0 %v6168
    %v6245 = vpop.f32.mrb[0].mxu0
    %v6246 = vadd.f32 0.0, %v6245
    %v6247 = vpop.f32.mrb[0].mxu0
    %v6248 = vadd.f32 0.0, %v6247
    %6249 = vmatprep.mubr.f32.mxu0 0.0
    %6250 = vmatmul.mubr.f32.gmra.mrb[0].mxu0 %v6171
    %v6251 = vpop.f32.mrb[0].mxu0
    %v6252 = vadd.f32 0.0, %v6251
    %v6253 = vpop.f32.mrb[0].mxu0
    %v6254 = vadd.f32 0.0, %v6253
    %6255 = vdwg.mxu0
    %6256 = vmatprep.subr.mxu0 0.0
    %6257 = vmatpush1.msra.mxu0 %v5078
    %6258 = vmatprep.subr.mxu0 0.0
    %6259 = vmatpush1.msra.mxu0 %v5081
    %6260 = vmatprep.subr.mxu0 0.0
    %6261 = vmatpush1.msra.mxu0 %v5084
    %6262 = vmatprep.subr.mxu0 0.0
    %6263 = vmatpush1.msra.mxu0 %v5087
    %6264 = vmatprep.subr.mxu0 0.0
    %6265 = vmatpush1.msra.mxu0 0.0
    %6266 = vmatprep.subr.mxu0 0.0
    %6267 = vmatpush1.msra.mxu0 0.0
    %6268 = vmatprep.subr.mxu0 0.0
    %6269 = vmatpush1.msra.mxu0 0.0
    %6270 = vmatprep.subr.mxu0 0.0
    %6271 = vmatpush1.msra.mxu0 0.0
    %6272 = vmatprep.subr.mxu0 0.0
    %6273 = vmatpush1.msra.mxu0 0.0
    %6274 = vmatprep.subr.mxu0 0.0
    %6275 = vmatpush1.msra.mxu0 0.0
    %6276 = vmatprep.subr.mxu0 0.0
    %6277 = vmatpush1.msra.mxu0 0.0
    %6278 = vmatprep.subr.mxu0 0.0
    %6279 = vmatpush1.msra.mxu0 0.0
    %6280 = vmatprep.subr.mxu0 0.0
    %6281 = vmatpush1.msra.mxu0 0.0
    %6282 = vmatprep.subr.mxu0 0.0
    %6283 = vmatpush1.msra.mxu0 0.0
    %6284 = vmatprep.subr.mxu0 0.0
    %6285 = vmatpush1.msra.mxu0 0.0
    %6286 = vmatprep.subr.mxu0 0.0
    %6287 = vmatpush1.msra.mxu0 0.0
    %6288 = vmatprep.subr.mxu0 0.0
    %6289 = vmatpush1.msra.mxu0 0.0
    %6290 = vmatprep.subr.mxu0 0.0
    %6291 = vmatpush1.msra.mxu0 0.0
    %6292 = vmatprep.subr.mxu0 0.0
    %6293 = vmatpush1.msra.mxu0 0.0
    %6294 = vmatprep.subr.mxu0 0.0
    %6295 = vmatpush1.msra.mxu0 0.0
    %6296 = vmatprep.subr.mxu0 0.0
    %6297 = vmatpush1.msra.mxu0 0.0
    %6298 = vmatprep.subr.mxu0 0.0
    %6299 = vmatpush1.msra.mxu0 0.0
    %6300 = vmatprep.subr.mxu0 0.0
    %6301 = vmatpush1.msra.mxu0 0.0
    %6302 = vmatprep.subr.mxu0 0.0
    %6303 = vmatpush1.msra.mxu0 0.0
    %6304 = vmatprep.subr.mxu0 0.0
    %6305 = vmatpush1.msra.mxu0 0.0
    %6306 = vmatprep.subr.mxu0 0.0
    %6307 = vmatpush1.msra.mxu0 0.0
    %6308 = vmatprep.subr.mxu0 0.0
    %6309 = vmatpush1.msra.mxu0 0.0
    %6310 = vmatprep.subr.mxu0 0.0
    %6311 = vmatpush1.msra.mxu0 0.0
    %6312 = vmatprep.subr.mxu0 0.0
    %6313 = vmatpush1.msra.mxu0 0.0
    %6314 = vmatprep.subr.mxu0 0.0
    %6315 = vmatpush1.msra.mxu0 0.0
    %6316 = vmatprep.subr.mxu0 0.0
    %6317 = vmatpush1.msra.mxu0 0.0
    %6318 = vmatprep.subr.mxu0 0.0
    %6319 = vmatpush1.msra.mxu0 0.0
    %6320 = vmatprep.mubr.f32.mxu0 0.0
    %6321 = vmatmul.mubr.f32.gmra.mrb[0].mxu0 %v6165
    %v6322 = vpop.f32.mrb[0].mxu0
    %v6323 = vadd.f32 0.0, %v6322
    %v6324 = vpop.f32.mrb[0].mxu0
    %6325 = vmatprep.mubr.f32.mxu0 0.0
    %6326 = vmatmul.mubr.f32.gmra.mrb[0].mxu0 %v6168
    %v6327 = vpop.f32.mrb[0].mxu0
    %v6328 = vadd.f32 0.0, %v6327
    %v6329 = vpop.f32.mrb[0].mxu0
    %6330 = vmatprep.mubr.f32.mxu0 0.0
    %6331 = vmatmul.mubr.f32.gmra.mrb[0].mxu0 %v6171
    %v6332 = vpop.f32.mrb[0].mxu0
    %v6333 = vadd.f32 0.0, %v6332
    %v6334 = vpop.f32.mrb[0].mxu0
    %6335 = vdwg.mxu0
    %v6336 = vadd.f32 %v6323, %v5266
    %v6337 = vadd.f32 %v6328, %v5266
    %v6338 = vadd.f32 %v6333, %v5266
    %v6340 = vsel %vm513, %v6254, 0
    %6342 = vmatprep.subr.mxu0 0.0
    %6343 = vmatpush1.msra.mxu0 %v6242
    %6344 = vmatprep.subr.mxu0 0.0
    %6345 = vmatpush1.msra.mxu0 %v6248
    %6346 = vmatprep.subr.mxu0 0.0
    %6347 = vmatpush1.msra.mxu0 %v6340
    %6348 = vmatprep.subr.mxu0 0.0
    %6349 = vmatpush1.msra.mxu0 0.0
    %6350 = vmatprep.subr.mxu0 0.0
    %6351 = vmatpush1.msra.mxu0 0.0
    %6352 = vmatprep.subr.mxu0 0.0
    %6353 = vmatpush1.msra.mxu0 0.0
    %6354 = vmatprep.subr.mxu0 0.0
    %6355 = vmatpush1.msra.mxu0 0.0
    %6356 = vmatprep.subr.mxu0 0.0
    %6357 = vmatpush1.msra.mxu0 0.0
    %6358 = vmatprep.subr.mxu0 0.0
    %6359 = vmatpush1.msra.mxu0 0.0
    %6360 = vmatprep.subr.mxu0 0.0
    %6361 = vmatpush1.msra.mxu0 0.0
    %6362 = vmatprep.subr.mxu0 0.0
    %6363 = vmatpush1.msra.mxu0 0.0
    %6364 = vmatprep.subr.mxu0 0.0
    %6365 = vmatpush1.msra.mxu0 0.0
    %6366 = vmatprep.subr.mxu0 0.0
    %6367 = vmatpush1.msra.mxu0 0.0
    %6368 = vmatprep.subr.mxu0 0.0
    %6369 = vmatpush1.msra.mxu0 0.0
    %6370 = vmatprep.subr.mxu0 0.0
    %6371 = vmatpush1.msra.mxu0 0.0
    %6372 = vmatprep.subr.mxu0 0.0
    %6373 = vmatpush1.msra.mxu0 0.0
    %6374 = vmatprep.subr.mxu0 0.0
    %6375 = vmatpush1.msra.mxu0 0.0
    %6376 = vmatprep.subr.mxu0 0.0
    %6377 = vmatpush1.msra.mxu0 0.0
    %6378 = vmatprep.subr.mxu0 0.0
    %6379 = vmatpush1.msra.mxu0 0.0
    %6380 = vmatprep.subr.mxu0 0.0
    %6381 = vmatpush1.msra.mxu0 0.0
    %6382 = vmatprep.subr.mxu0 0.0
    %6383 = vmatpush1.msra.mxu0 0.0
    %6384 = vmatprep.subr.mxu0 0.0
    %6385 = vmatpush1.msra.mxu0 0.0
    %6386 = vmatprep.subr.mxu0 0.0
    %6387 = vmatpush1.msra.mxu0 0.0
    %6388 = vmatprep.subr.mxu0 0.0
    %6389 = vmatpush1.msra.mxu0 0.0
    %6390 = vmatprep.subr.mxu0 0.0
    %6391 = vmatpush1.msra.mxu0 0.0
    %6392 = vmatprep.subr.mxu0 0.0
    %6393 = vmatpush1.msra.mxu0 0.0
    %6394 = vmatprep.subr.mxu0 0.0
    %6395 = vmatpush1.msra.mxu0 0.0
    %6396 = vmatprep.subr.mxu0 0.0
    %6397 = vmatpush1.msra.mxu0 0.0
    %6398 = vmatprep.subr.mxu0 0.0
    %6399 = vmatpush1.msra.mxu0 0.0
    %6400 = vmatprep.subr.mxu0 0.0
    %6401 = vmatpush1.msra.mxu0 0.0
    %6402 = vmatprep.subr.mxu0 0.0
    %6403 = vmatpush1.msra.mxu0 0.0
    %6404 = vmatprep.subr.mxu0 0.0
    %6405 = vmatpush1.msra.mxu0 0.0
    %6406 = vmatprep.mubr.f32.mxu0 0.0
    %6407 = vmatmul.mubr.f32.gmra.mrb[0].mxu0 %v892
    %v6408 = vpop.f32.mrb[0].mxu0
    %v6409 = vadd.f32 0.0, %v6408
    %v6410 = vpop.f32.mrb[0].mxu0
    %6411 = vmatprep.mubr.f32.mxu0 0.0
    %6412 = vmatmul.mubr.f32.gmra.mrb[0].mxu0 %v895
    %v6413 = vpop.f32.mrb[0].mxu0
    %v6414 = vadd.f32 0.0, %v6413
    %v6415 = vpop.f32.mrb[0].mxu0
    %6416 = vmatprep.mubr.f32.mxu0 0.0
    %6417 = vmatmul.mubr.f32.gmra.mrb[0].mxu0 %v898
    %v6418 = vpop.f32.mrb[0].mxu0
    %v6419 = vadd.f32 0.0, %v6418
    %v6420 = vpop.f32.mrb[0].mxu0
    %6421 = vdwg.mxu0
    %v6422 = vadd.f32 %v6336, %v6409
    %v6423 = vadd.f32 %v6337, %v6414
    %v6424 = vadd.f32 %v6338, %v6419
    %v6426 = vsel %vm513, %v6252, 0
    %6428 = vmatprep.subr.mxu0 0.0
    %6429 = vmatpush1.msra.mxu0 %v6240
    %6430 = vmatprep.subr.mxu0 0.0
    %6431 = vmatpush1.msra.mxu0 %v6246
    %6432 = vmatprep.subr.mxu0 0.0
    %6433 = vmatpush1.msra.mxu0 %v6426
    %6434 = vmatprep.subr.mxu0 0.0
    %6435 = vmatpush1.msra.mxu0 0.0
    %6436 = vmatprep.subr.mxu0 0.0
    %6437 = vmatpush1.msra.mxu0 0.0
    %6438 = vmatprep.subr.mxu0 0.0
    %6439 = vmatpush1.msra.mxu0 0.0
    %6440 = vmatprep.subr.mxu0 0.0
    %6441 = vmatpush1.msra.mxu0 0.0
    %6442 = vmatprep.subr.mxu0 0.0
    %6443 = vmatpush1.msra.mxu0 0.0
    %6444 = vmatprep.subr.mxu0 0.0
    %6445 = vmatpush1.msra.mxu0 0.0
    %6446 = vmatprep.subr.mxu0 0.0
    %6447 = vmatpush1.msra.mxu0 0.0
    %6448 = vmatprep.subr.mxu0 0.0
    %6449 = vmatpush1.msra.mxu0 0.0
    %6450 = vmatprep.subr.mxu0 0.0
    %6451 = vmatpush1.msra.mxu0 0.0
    %6452 = vmatprep.subr.mxu0 0.0
    %6453 = vmatpush1.msra.mxu0 0.0
    %6454 = vmatprep.subr.mxu0 0.0
    %6455 = vmatpush1.msra.mxu0 0.0
    %6456 = vmatprep.subr.mxu0 0.0
    %6457 = vmatpush1.msra.mxu0 0.0
    %6458 = vmatprep.subr.mxu0 0.0
    %6459 = vmatpush1.msra.mxu0 0.0
    %6460 = vmatprep.subr.mxu0 0.0
    %6461 = vmatpush1.msra.mxu0 0.0
    %6462 = vmatprep.subr.mxu0 0.0
    %6463 = vmatpush1.msra.mxu0 0.0
    %6464 = vmatprep.subr.mxu0 0.0
    %6465 = vmatpush1.msra.mxu0 0.0
    %6466 = vmatprep.subr.mxu0 0.0
    %6467 = vmatpush1.msra.mxu0 0.0
    %6468 = vmatprep.subr.mxu0 0.0
    %6469 = vmatpush1.msra.mxu0 0.0
    %6470 = vmatprep.subr.mxu0 0.0
    %6471 = vmatpush1.msra.mxu0 0.0
    %6472 = vmatprep.subr.mxu0 0.0
    %6473 = vmatpush1.msra.mxu0 0.0
    %6474 = vmatprep.subr.mxu0 0.0
    %6475 = vmatpush1.msra.mxu0 0.0
    %6476 = vmatprep.subr.mxu0 0.0
    %6477 = vmatpush1.msra.mxu0 0.0
    %6478 = vmatprep.subr.mxu0 0.0
    %6479 = vmatpush1.msra.mxu0 0.0
    %6480 = vmatprep.subr.mxu0 0.0
    %6481 = vmatpush1.msra.mxu0 0.0
    %6482 = vmatprep.subr.mxu0 0.0
    %6483 = vmatpush1.msra.mxu0 0.0
    %6484 = vmatprep.subr.mxu0 0.0
    %6485 = vmatpush1.msra.mxu0 0.0
    %6486 = vmatprep.subr.mxu0 0.0
    %6487 = vmatpush1.msra.mxu0 0.0
    %6488 = vmatprep.subr.mxu0 0.0
    %6489 = vmatpush1.msra.mxu0 0.0
    %6490 = vmatprep.subr.mxu0 0.0
    %6491 = vmatpush1.msra.mxu0 0.0
    %6492 = vmatprep.mubr.f32.mxu0 0.0
    %6493 = vmatmul.mubr.f32.gmra.mrb[0].mxu0 %v505
    %v6494 = vpop.f32.mrb[0].mxu0
    %v6495 = vadd.f32 0.0, %v6494
    %v6496 = vpop.f32.mrb[0].mxu0
    %6497 = vmatprep.mubr.f32.mxu0 0.0
    %6498 = vmatmul.mubr.f32.gmra.mrb[0].mxu0 %v508
    %v6499 = vpop.f32.mrb[0].mxu0
    %v6500 = vadd.f32 0.0, %v6499
    %v6501 = vpop.f32.mrb[0].mxu0
    %6502 = vmatprep.mubr.f32.mxu0 0.0
    %6503 = vmatmul.mubr.f32.gmra.mrb[0].mxu0 %v511
    %v6504 = vpop.f32.mrb[0].mxu0
    %v6505 = vadd.f32 0.0, %v6504
    %v6506 = vpop.f32.mrb[0].mxu0
    %6507 = vdwg.mxu0
    %v6508 = vadd.f32 %v6422, %v6495
    %v6509 = vadd.f32 %v6423, %v6500
    %v6510 = vadd.f32 %v6424, %v6505
    %v6512 = vsel %vm320, %v6508, 0
    %v6515 = vsel %vm320, %v6509, 0
    %v6518 = vsel %vm320, %v6510, 0
    %6520 = vmatprep.subr.mxu0 %v5445
    %6521 = vmatpush1.msra.mxu0 %v5444
    %6522 = vmatprep.subr.mxu0 %v5448
    %6523 = vmatpush1.msra.mxu0 %v5447
    %6524 = vmatprep.subr.mxu0 %v5451
    %6525 = vmatpush1.msra.mxu0 %v5450
    %6526 = vmatprep.subr.mxu0 %v5454
    %6527 = vmatpush1.msra.mxu0 %v5453
    %6528 = vmatprep.subr.mxu0 0.0
    %6529 = vmatpush1.msra.mxu0 0.0
    %6530 = vmatprep.subr.mxu0 0.0
    %6531 = vmatpush1.msra.mxu0 0.0
    %6532 = vmatprep.subr.mxu0 0.0
    %6533 = vmatpush1.msra.mxu0 0.0
    %6534 = vmatprep.subr.mxu0 0.0
    %6535 = vmatpush1.msra.mxu0 0.0
    %6536 = vmatprep.subr.mxu0 0.0
    %6537 = vmatpush1.msra.mxu0 0.0
    %6538 = vmatprep.subr.mxu0 0.0
    %6539 = vmatpush1.msra.mxu0 0.0
    %6540 = vmatprep.subr.mxu0 0.0
    %6541 = vmatpush1.msra.mxu0 0.0
    %6542 = vmatprep.subr.mxu0 0.0
    %6543 = vmatpush1.msra.mxu0 0.0
    %6544 = vmatprep.subr.mxu0 0.0
    %6545 = vmatpush1.msra.mxu0 0.0
    %6546 = vmatprep.subr.mxu0 0.0
    %6547 = vmatpush1.msra.mxu0 0.0
    %6548 = vmatprep.subr.mxu0 0.0
    %6549 = vmatpush1.msra.mxu0 0.0
    %6550 = vmatprep.subr.mxu0 0.0
    %6551 = vmatpush1.msra.mxu0 0.0
    %6552 = vmatprep.subr.mxu0 0.0
    %6553 = vmatpush1.msra.mxu0 0.0
    %6554 = vmatprep.subr.mxu0 0.0
    %6555 = vmatpush1.msra.mxu0 0.0
    %6556 = vmatprep.subr.mxu0 0.0
    %6557 = vmatpush1.msra.mxu0 0.0
    %6558 = vmatprep.subr.mxu0 0.0
    %6559 = vmatpush1.msra.mxu0 0.0
    %6560 = vmatprep.subr.mxu0 0.0
    %6561 = vmatpush1.msra.mxu0 0.0
    %6562 = vmatprep.subr.mxu0 0.0
    %6563 = vmatpush1.msra.mxu0 0.0
    %6564 = vmatprep.subr.mxu0 0.0
    %6565 = vmatpush1.msra.mxu0 0.0
    %6566 = vmatprep.subr.mxu0 0.0
    %6567 = vmatpush1.msra.mxu0 0.0
    %6568 = vmatprep.subr.mxu0 0.0
    %6569 = vmatpush1.msra.mxu0 0.0
    %6570 = vmatprep.subr.mxu0 0.0
    %6571 = vmatpush1.msra.mxu0 0.0
    %6572 = vmatprep.subr.mxu0 0.0
    %6573 = vmatpush1.msra.mxu0 0.0
    %6574 = vmatprep.subr.mxu0 0.0
    %6575 = vmatpush1.msra.mxu0 0.0
    %6576 = vmatprep.subr.mxu0 0.0
    %6577 = vmatpush1.msra.mxu0 0.0
    %6578 = vmatprep.subr.mxu0 0.0
    %6579 = vmatpush1.msra.mxu0 0.0
    %6580 = vmatprep.subr.mxu0 0.0
    %6581 = vmatpush1.msra.mxu0 0.0
    %6582 = vmatprep.subr.mxu0 0.0
    %6583 = vmatpush1.msra.mxu0 0.0
    %6584 = vmatprep.mubr.f32.mxu0 0.0
    %6585 = vmatmul.mubr.f32.gmra.mrb[0].mxu0 %v6512
    %v6586 = vpop.f32.mrb[0].mxu0
    %v6587 = vadd.f32 0.0, %v6586
    %v6588 = vpop.f32.mrb[0].mxu0
    %v6589 = vadd.f32 0.0, %v6588
    %6590 = vmatprep.mubr.f32.mxu0 0.0
    %6591 = vmatmul.mubr.f32.gmra.mrb[0].mxu0 %v6515
    %v6592 = vpop.f32.mrb[0].mxu0
    %v6593 = vadd.f32 0.0, %v6592
    %v6594 = vpop.f32.mrb[0].mxu0
    %v6595 = vadd.f32 0.0, %v6594
    %6596 = vmatprep.mubr.f32.mxu0 0.0
    %6597 = vmatmul.mubr.f32.gmra.mrb[0].mxu0 %v6518
    %v6598 = vpop.f32.mrb[0].mxu0
    %v6599 = vadd.f32 0.0, %v6598
    %v6600 = vpop.f32.mrb[0].mxu0
    %v6601 = vadd.f32 0.0, %v6600
    %6602 = vdwg.mxu0
    %6603 = vmatprep.subr.mxu0 0.0
    %6604 = vmatpush1.msra.mxu0 %v5446
    %6605 = vmatprep.subr.mxu0 0.0
    %6606 = vmatpush1.msra.mxu0 %v5449
    %6607 = vmatprep.subr.mxu0 0.0
    %6608 = vmatpush1.msra.mxu0 %v5452
    %6609 = vmatprep.subr.mxu0 0.0
    %6610 = vmatpush1.msra.mxu0 %v5455
    %6611 = vmatprep.subr.mxu0 0.0
    %6612 = vmatpush1.msra.mxu0 0.0
    %6613 = vmatprep.subr.mxu0 0.0
    %6614 = vmatpush1.msra.mxu0 0.0
    %6615 = vmatprep.subr.mxu0 0.0
    %6616 = vmatpush1.msra.mxu0 0.0
    %6617 = vmatprep.subr.mxu0 0.0
    %6618 = vmatpush1.msra.mxu0 0.0
    %6619 = vmatprep.subr.mxu0 0.0
    %6620 = vmatpush1.msra.mxu0 0.0
    %6621 = vmatprep.subr.mxu0 0.0
    %6622 = vmatpush1.msra.mxu0 0.0
    %6623 = vmatprep.subr.mxu0 0.0
    %6624 = vmatpush1.msra.mxu0 0.0
    %6625 = vmatprep.subr.mxu0 0.0
    %6626 = vmatpush1.msra.mxu0 0.0
    %6627 = vmatprep.subr.mxu0 0.0
    %6628 = vmatpush1.msra.mxu0 0.0
    %6629 = vmatprep.subr.mxu0 0.0
    %6630 = vmatpush1.msra.mxu0 0.0
    %6631 = vmatprep.subr.mxu0 0.0
    %6632 = vmatpush1.msra.mxu0 0.0
    %6633 = vmatprep.subr.mxu0 0.0
    %6634 = vmatpush1.msra.mxu0 0.0
    %6635 = vmatprep.subr.mxu0 0.0
    %6636 = vmatpush1.msra.mxu0 0.0
    %6637 = vmatprep.subr.mxu0 0.0
    %6638 = vmatpush1.msra.mxu0 0.0
    %6639 = vmatprep.subr.mxu0 0.0
    %6640 = vmatpush1.msra.mxu0 0.0
    %6641 = vmatprep.subr.mxu0 0.0
    %6642 = vmatpush1.msra.mxu0 0.0
    %6643 = vmatprep.subr.mxu0 0.0
    %6644 = vmatpush1.msra.mxu0 0.0
    %6645 = vmatprep.subr.mxu0 0.0
    %6646 = vmatpush1.msra.mxu0 0.0
    %6647 = vmatprep.subr.mxu0 0.0
    %6648 = vmatpush1.msra.mxu0 0.0
    %6649 = vmatprep.subr.mxu0 0.0
    %6650 = vmatpush1.msra.mxu0 0.0
    %6651 = vmatprep.subr.mxu0 0.0
    %6652 = vmatpush1.msra.mxu0 0.0
    %6653 = vmatprep.subr.mxu0 0.0
    %6654 = vmatpush1.msra.mxu0 0.0
    %6655 = vmatprep.subr.mxu0 0.0
    %6656 = vmatpush1.msra.mxu0 0.0
    %6657 = vmatprep.subr.mxu0 0.0
    %6658 = vmatpush1.msra.mxu0 0.0
    %6659 = vmatprep.subr.mxu0 0.0
    %6660 = vmatpush1.msra.mxu0 0.0
    %6661 = vmatprep.subr.mxu0 0.0
    %6662 = vmatpush1.msra.mxu0 0.0
    %6663 = vmatprep.subr.mxu0 0.0
    %6664 = vmatpush1.msra.mxu0 0.0
    %6665 = vmatprep.subr.mxu0 0.0
    %6666 = vmatpush1.msra.mxu0 0.0
    %6667 = vmatprep.mubr.f32.mxu0 0.0
    %6668 = vmatmul.mubr.f32.gmra.mrb[0].mxu0 %v6512
    %v6669 = vpop.f32.mrb[0].mxu0
    %v6670 = vadd.f32 0.0, %v6669
    %v6671 = vpop.f32.mrb[0].mxu0
    %6672 = vmatprep.mubr.f32.mxu0 0.0
    %6673 = vmatmul.mubr.f32.gmra.mrb[0].mxu0 %v6515
    %v6674 = vpop.f32.mrb[0].mxu0
    %v6675 = vadd.f32 0.0, %v6674
    %v6676 = vpop.f32.mrb[0].mxu0
    %6677 = vmatprep.mubr.f32.mxu0 0.0
    %6678 = vmatmul.mubr.f32.gmra.mrb[0].mxu0 %v6518
    %v6679 = vpop.f32.mrb[0].mxu0
    %v6680 = vadd.f32 0.0, %v6679
    %v6681 = vpop.f32.mrb[0].mxu0
    %6682 = vdwg.mxu0
    %v6683 = vadd.f32 %v6670, %v5634
    %v6684 = vadd.f32 %v6675, %v5634
    %v6685 = vadd.f32 %v6680, %v5634
    %v6687 = vsel %vm513, %v6601, 0
    %6689 = vmatprep.subr.mxu0 0.0
    %6690 = vmatpush1.msra.mxu0 %v6589
    %6691 = vmatprep.subr.mxu0 0.0
    %6692 = vmatpush1.msra.mxu0 %v6595
    %6693 = vmatprep.subr.mxu0 0.0
    %6694 = vmatpush1.msra.mxu0 %v6687
    %6695 = vmatprep.subr.mxu0 0.0
    %6696 = vmatpush1.msra.mxu0 0.0
    %6697 = vmatprep.subr.mxu0 0.0
    %6698 = vmatpush1.msra.mxu0 0.0
    %6699 = vmatprep.subr.mxu0 0.0
    %6700 = vmatpush1.msra.mxu0 0.0
    %6701 = vmatprep.subr.mxu0 0.0
    %6702 = vmatpush1.msra.mxu0 0.0
    %6703 = vmatprep.subr.mxu0 0.0
    %6704 = vmatpush1.msra.mxu0 0.0
    %6705 = vmatprep.subr.mxu0 0.0
    %6706 = vmatpush1.msra.mxu0 0.0
    %6707 = vmatprep.subr.mxu0 0.0
    %6708 = vmatpush1.msra.mxu0 0.0
    %6709 = vmatprep.subr.mxu0 0.0
    %6710 = vmatpush1.msra.mxu0 0.0
    %6711 = vmatprep.subr.mxu0 0.0
    %6712 = vmatpush1.msra.mxu0 0.0
    %6713 = vmatprep.subr.mxu0 0.0
    %6714 = vmatpush1.msra.mxu0 0.0
    %6715 = vmatprep.subr.mxu0 0.0
    %6716 = vmatpush1.msra.mxu0 0.0
    %6717 = vmatprep.subr.mxu0 0.0
    %6718 = vmatpush1.msra.mxu0 0.0
    %6719 = vmatprep.subr.mxu0 0.0
    %6720 = vmatpush1.msra.mxu0 0.0
    %6721 = vmatprep.subr.mxu0 0.0
    %6722 = vmatpush1.msra.mxu0 0.0
    %6723 = vmatprep.subr.mxu0 0.0
    %6724 = vmatpush1.msra.mxu0 0.0
    %6725 = vmatprep.subr.mxu0 0.0
    %6726 = vmatpush1.msra.mxu0 0.0
    %6727 = vmatprep.subr.mxu0 0.0
    %6728 = vmatpush1.msra.mxu0 0.0
    %6729 = vmatprep.subr.mxu0 0.0
    %6730 = vmatpush1.msra.mxu0 0.0
    %6731 = vmatprep.subr.mxu0 0.0
    %6732 = vmatpush1.msra.mxu0 0.0
    %6733 = vmatprep.subr.mxu0 0.0
    %6734 = vmatpush1.msra.mxu0 0.0
    %6735 = vmatprep.subr.mxu0 0.0
    %6736 = vmatpush1.msra.mxu0 0.0
    %6737 = vmatprep.subr.mxu0 0.0
    %6738 = vmatpush1.msra.mxu0 0.0
    %6739 = vmatprep.subr.mxu0 0.0
    %6740 = vmatpush1.msra.mxu0 0.0
    %6741 = vmatprep.subr.mxu0 0.0
    %6742 = vmatpush1.msra.mxu0 0.0
    %6743 = vmatprep.subr.mxu0 0.0
    %6744 = vmatpush1.msra.mxu0 0.0
    %6745 = vmatprep.subr.mxu0 0.0
    %6746 = vmatpush1.msra.mxu0 0.0
    %6747 = vmatprep.subr.mxu0 0.0
    %6748 = vmatpush1.msra.mxu0 0.0
    %6749 = vmatprep.subr.mxu0 0.0
    %6750 = vmatpush1.msra.mxu0 0.0
    %6751 = vmatprep.subr.mxu0 0.0
    %6752 = vmatpush1.msra.mxu0 0.0
    %6753 = vmatprep.mubr.f32.mxu0 0.0
    %6754 = vmatmul.mubr.f32.gmra.mrb[0].mxu0 %v1269
    %v6755 = vpop.f32.mrb[0].mxu0
    %v6756 = vadd.f32 0.0, %v6755
    %v6757 = vpop.f32.mrb[0].mxu0
    %6758 = vmatprep.mubr.f32.mxu0 0.0
    %6759 = vmatmul.mubr.f32.gmra.mrb[0].mxu0 %v1272
    %v6760 = vpop.f32.mrb[0].mxu0
    %v6761 = vadd.f32 0.0, %v6760
    %v6762 = vpop.f32.mrb[0].mxu0
    %6763 = vmatprep.mubr.f32.mxu0 0.0
    %6764 = vmatmul.mubr.f32.gmra.mrb[0].mxu0 %v1275
    %v6765 = vpop.f32.mrb[0].mxu0
    %v6766 = vadd.f32 0.0, %v6765
    %v6767 = vpop.f32.mrb[0].mxu0
    %6768 = vdwg.mxu0
    %v6769 = vadd.f32 %v6683, %v6756
    %v6770 = vadd.f32 %v6684, %v6761
    %v6771 = vadd.f32 %v6685, %v6766
    %v6773 = vsel %vm513, %v6599, 0
    %6775 = vmatprep.subr.mxu0 0.0
    %6776 = vmatpush1.msra.mxu0 %v6587
    %6777 = vmatprep.subr.mxu0 0.0
    %6778 = vmatpush1.msra.mxu0 %v6593
    %6779 = vmatprep.subr.mxu0 0.0
    %6780 = vmatpush1.msra.mxu0 %v6773
    %6781 = vmatprep.subr.mxu0 0.0
    %6782 = vmatpush1.msra.mxu0 0.0
    %6783 = vmatprep.subr.mxu0 0.0
    %6784 = vmatpush1.msra.mxu0 0.0
    %6785 = vmatprep.subr.mxu0 0.0
    %6786 = vmatpush1.msra.mxu0 0.0
    %6787 = vmatprep.subr.mxu0 0.0
    %6788 = vmatpush1.msra.mxu0 0.0
    %6789 = vmatprep.subr.mxu0 0.0
    %6790 = vmatpush1.msra.mxu0 0.0
    %6791 = vmatprep.subr.mxu0 0.0
    %6792 = vmatpush1.msra.mxu0 0.0
    %6793 = vmatprep.subr.mxu0 0.0
    %6794 = vmatpush1.msra.mxu0 0.0
    %6795 = vmatprep.subr.mxu0 0.0
    %6796 = vmatpush1.msra.mxu0 0.0
    %6797 = vmatprep.subr.mxu0 0.0
    %6798 = vmatpush1.msra.mxu0 0.0
    %6799 = vmatprep.subr.mxu0 0.0
    %6800 = vmatpush1.msra.mxu0 0.0
    %6801 = vmatprep.subr.mxu0 0.0
    %6802 = vmatpush1.msra.mxu0 0.0
    %6803 = vmatprep.subr.mxu0 0.0
    %6804 = vmatpush1.msra.mxu0 0.0
    %6805 = vmatprep.subr.mxu0 0.0
    %6806 = vmatpush1.msra.mxu0 0.0
    %6807 = vmatprep.subr.mxu0 0.0
    %6808 = vmatpush1.msra.mxu0 0.0
    %6809 = vmatprep.subr.mxu0 0.0
    %6810 = vmatpush1.msra.mxu0 0.0
    %6811 = vmatprep.subr.mxu0 0.0
    %6812 = vmatpush1.msra.mxu0 0.0
    %6813 = vmatprep.subr.mxu0 0.0
    %6814 = vmatpush1.msra.mxu0 0.0
    %6815 = vmatprep.subr.mxu0 0.0
    %6816 = vmatpush1.msra.mxu0 0.0
    %6817 = vmatprep.subr.mxu0 0.0
    %6818 = vmatpush1.msra.mxu0 0.0
    %6819 = vmatprep.subr.mxu0 0.0
    %6820 = vmatpush1.msra.mxu0 0.0
    %6821 = vmatprep.subr.mxu0 0.0
    %6822 = vmatpush1.msra.mxu0 0.0
    %6823 = vmatprep.subr.mxu0 0.0
    %6824 = vmatpush1.msra.mxu0 0.0
    %6825 = vmatprep.subr.mxu0 0.0
    %6826 = vmatpush1.msra.mxu0 0.0
    %6827 = vmatprep.subr.mxu0 0.0
    %6828 = vmatpush1.msra.mxu0 0.0
    %6829 = vmatprep.subr.mxu0 0.0
    %6830 = vmatpush1.msra.mxu0 0.0
    %6831 = vmatprep.subr.mxu0 0.0
    %6832 = vmatpush1.msra.mxu0 0.0
    %6833 = vmatprep.subr.mxu0 0.0
    %6834 = vmatpush1.msra.mxu0 0.0
    %6835 = vmatprep.subr.mxu0 0.0
    %6836 = vmatpush1.msra.mxu0 0.0
    %6837 = vmatprep.subr.mxu0 0.0
    %6838 = vmatpush1.msra.mxu0 0.0
    %6839 = vmatprep.mubr.f32.mxu0 0.0
    %6840 = vmatmul.mubr.f32.gmra.mrb[0].mxu0 %v892
    %v6841 = vpop.f32.mrb[0].mxu0
    %v6842 = vadd.f32 0.0, %v6841
    %v6843 = vpop.f32.mrb[0].mxu0
    %6844 = vmatprep.mubr.f32.mxu0 0.0
    %6845 = vmatmul.mubr.f32.gmra.mrb[0].mxu0 %v895
    %v6846 = vpop.f32.mrb[0].mxu0
    %v6847 = vadd.f32 0.0, %v6846
    %v6848 = vpop.f32.mrb[0].mxu0
    %6849 = vmatprep.mubr.f32.mxu0 0.0
    %6850 = vmatmul.mubr.f32.gmra.mrb[0].mxu0 %v898
    %v6851 = vpop.f32.mrb[0].mxu0
    %v6852 = vadd.f32 0.0, %v6851
    %v6853 = vpop.f32.mrb[0].mxu0
    %6854 = vdwg.mxu0
    %v6855 = vadd.f32 %v6769, %v6842
    %v6856 = vadd.f32 %v6770, %v6847
    %v6857 = vadd.f32 %v6771, %v6852
    %v6858 = vmax.f32 %v6855, 0.0
    %v6859 = vmax.f32 %v6856, 0.0
    %v6860 = vmax.f32 %v6857, 0.0
    %v6861 = vadd.f32 %v6858, %v4706
    %v6862 = vadd.f32 %v6859, %v4707
    %v6863 = vadd.f32 %v6860, %v4708
    %v6864 = vld [vmem:[#allocation22] sm:$0xff]
    %v6865 = vld [vmem:[#allocation22 + $0x8] sm:$0xff]
    %v6866 = vld [vmem:[#allocation22 + $0x10] sm:$0xff]
    %v6867 = vld [vmem:[#allocation22 + $0x18] sm:$0xff]
    %v6868 = vld [vmem:[#allocation22 + $0x20] sm:$0xff]
    %v6869 = vld [vmem:[#allocation22 + $0x28] sm:$0xff]
    %v6870 = vld [vmem:[#allocation22 + $0x30] sm:$0xff]
    %v6871 = vld [vmem:[#allocation22 + $0x38] sm:$0xff]
    %v6872 = vld [vmem:[#allocation22 + $0x40] sm:$0xff]
    %v6873 = vld [vmem:[#allocation22 + $0x48] sm:$0xff]
    %v6874 = vld [vmem:[#allocation22 + $0x50] sm:$0xff]
    %v6875 = vld [vmem:[#allocation22 + $0x58] sm:$0xff]
    %v6876 = vld [vmem:[#allocation22 + $0x60] sm:$0xff]
    %v6877 = vld [vmem:[#allocation22 + $0x68] sm:$0xff]
    %v6878 = vld [vmem:[#allocation22 + $0x70] sm:$0xff]
    %v6879 = vld [vmem:[#allocation22 + $0x78] sm:$0xff]
    %v6880 = vld [vmem:[#allocation22 + $0x80] sm:$0xff]
    %v6881 = vld [vmem:[#allocation22 + $0x88] sm:$0xff]
    %v6882 = vld [vmem:[#allocation22 + $0x90] sm:$0xff]
    %v6883 = vld [vmem:[#allocation22 + $0x98] sm:$0xff]
    %v6884 = vld [vmem:[#allocation22 + $0xa0] sm:$0xff]
    %v6885 = vld [vmem:[#allocation22 + $0xa8] sm:$0xff]
    %v6886 = vld [vmem:[#allocation22 + $0xb0] sm:$0xff]
    %v6887 = vld [vmem:[#allocation22 + $0xb8] sm:$0xff]
    %v6888 = vld [vmem:[#allocation22 + $0xc0] sm:$0xff]
    %v6889 = vld [vmem:[#allocation22 + $0xc8] sm:$0xff]
    %v6890 = vld [vmem:[#allocation22 + $0xd0] sm:$0xff]
    %v6891 = vld [vmem:[#allocation22 + $0xd8] sm:$0xff]
    %v6892 = vld [vmem:[#allocation22 + $0xe0] sm:$0xff]
    %v6893 = vld [vmem:[#allocation22 + $0xe8] sm:$0xff]
    %v6894 = vld [vmem:[#allocation22 + $0xf0] sm:$0xff]
    %v6895 = vld [vmem:[#allocation22 + $0xf8] sm:$0xff]
    %v6896 = vld [vmem:[#allocation22 + $0x100] sm:$0xff]
    %v6897 = vld [vmem:[#allocation22 + $0x108] sm:$0xff]
    %v6898 = vld [vmem:[#allocation22 + $0x110] sm:$0xff]
    %v6899 = vld [vmem:[#allocation22 + $0x118] sm:$0xff]
    %v6900 = vld [vmem:[#allocation22 + $0x120] sm:$0xff]
    %v6901 = vld [vmem:[#allocation22 + $0x128] sm:$0xff]
    %v6902 = vld [vmem:[#allocation22 + $0x130] sm:$0xff]
    %v6903 = vld [vmem:[#allocation22 + $0x138] sm:$0xff]
    %v6904 = vld [vmem:[#allocation22 + $0x140] sm:$0xff]
    %v6905 = vld [vmem:[#allocation22 + $0x148] sm:$0xff]
    %v6906 = vld [vmem:[#allocation22 + $0x150] sm:$0xff]
    %v6907 = vld [vmem:[#allocation22 + $0x158] sm:$0xff]
    %v6908 = vld [vmem:[#allocation22 + $0x160] sm:$0xff]
    %v6909 = vld [vmem:[#allocation22 + $0x168] sm:$0xff]
    %v6910 = vld [vmem:[#allocation22 + $0x170] sm:$0xff]
    %v6911 = vld [vmem:[#allocation22 + $0x178] sm:$0xff]
    %v6912 = vld [vmem:[#allocation22 + $0x180] sm:$0xff]
    %v6913 = vld [vmem:[#allocation22 + $0x188] sm:$0xff]
    %v6914 = vld [vmem:[#allocation22 + $0x190] sm:$0xff]
    %v6915 = vld [vmem:[#allocation22 + $0x198] sm:$0xff]
    %v6916 = vld [vmem:[#allocation22 + $0x1a0] sm:$0xff]
    %v6917 = vld [vmem:[#allocation22 + $0x1a8] sm:$0xff]
    %v6918 = vld [vmem:[#allocation22 + $0x1b0] sm:$0xff]
    %v6919 = vld [vmem:[#allocation22 + $0x1b8] sm:$0xff]
    %v6920 = vld [vmem:[#allocation22 + $0x1c0] sm:$0xff]
    %v6921 = vld [vmem:[#allocation22 + $0x1c8] sm:$0xff]
    %v6922 = vld [vmem:[#allocation22 + $0x1d0] sm:$0xff]
    %v6923 = vld [vmem:[#allocation22 + $0x1d8] sm:$0xff]
    %v6924 = vld [vmem:[#allocation22 + $0x1e0] sm:$0xff]
    %v6925 = vld [vmem:[#allocation22 + $0x1e8] sm:$0xff]
    %v6926 = vld [vmem:[#allocation22 + $0x1f0] sm:$0xff]
    %v6927 = vld [vmem:[#allocation22 + $0x1f8] sm:$0xff]
    %v6928 = vld [vmem:[#allocation22 + $0x200] sm:$0xff]
    %v6929 = vld [vmem:[#allocation22 + $0x208] sm:$0xff]
    %v6930 = vld [vmem:[#allocation22 + $0x210] sm:$0xff]
    %v6931 = vld [vmem:[#allocation22 + $0x218] sm:$0xff]
    %v6932 = vld [vmem:[#allocation22 + $0x220] sm:$0xff]
    %v6933 = vld [vmem:[#allocation22 + $0x228] sm:$0xff]
    %v6934 = vld [vmem:[#allocation22 + $0x230] sm:$0xff]
    %v6935 = vld [vmem:[#allocation22 + $0x238] sm:$0xff]
    %v6936 = vld [vmem:[#allocation22 + $0x240] sm:$0xff]
    %v6937 = vld [vmem:[#allocation22 + $0x248] sm:$0xff]
    %v6938 = vld [vmem:[#allocation22 + $0x250] sm:$0xff]
    %v6939 = vld [vmem:[#allocation22 + $0x258] sm:$0xff]
    %v6940 = vld [vmem:[#allocation22 + $0x260] sm:$0xff]
    %v6941 = vld [vmem:[#allocation22 + $0x268] sm:$0xff]
    %v6942 = vld [vmem:[#allocation22 + $0x270] sm:$0xff]
    %v6943 = vld [vmem:[#allocation22 + $0x278] sm:$0xff]
    %v6944 = vld [vmem:[#allocation23] sm:$0xff]
    %v6945 = vld [vmem:[#allocation23 + $0x8] sm:$0xff]
    %v6946 = vld [vmem:[#allocation23 + $0x10] sm:$0xff]
    %v6947 = vld [vmem:[#allocation23 + $0x18] sm:$0xff]
    %v6948 = vld [vmem:[#allocation23 + $0x20] sm:$0xff]
    %v6949 = vld [vmem:[#allocation23 + $0x28] sm:$0xff]
    %v6950 = vld [vmem:[#allocation23 + $0x30] sm:$0xff]
    %v6951 = vld [vmem:[#allocation23 + $0x38] sm:$0xff]
    %v6952 = vld [vmem:[#allocation23 + $0x40] sm:$0xff]
    %v6953 = vld [vmem:[#allocation23 + $0x48] sm:$0xff]
    %v6954 = vld [vmem:[#allocation23 + $0x50] sm:$0xff]
    %v6955 = vld [vmem:[#allocation23 + $0x58] sm:$0xff]
    %v6956 = vld [vmem:[#allocation23 + $0x60] sm:$0xff]
    %v6957 = vld [vmem:[#allocation23 + $0x68] sm:$0xff]
    %v6958 = vld [vmem:[#allocation23 + $0x70] sm:$0xff]
    %v6959 = vld [vmem:[#allocation23 + $0x78] sm:$0xff]
    %v6960 = vld [vmem:[#allocation23 + $0x80] sm:$0xff]
    %v6961 = vld [vmem:[#allocation23 + $0x88] sm:$0xff]
    %v6962 = vld [vmem:[#allocation23 + $0x90] sm:$0xff]
    %v6963 = vld [vmem:[#allocation23 + $0x98] sm:$0xff]
    %v6964 = vld [vmem:[#allocation23 + $0xa0] sm:$0xff]
    %v6965 = vld [vmem:[#allocation23 + $0xa8] sm:$0xff]
    %v6966 = vld [vmem:[#allocation23 + $0xb0] sm:$0xff]
    %v6967 = vld [vmem:[#allocation23 + $0xb8] sm:$0xff]
    %v6968 = vld [vmem:[#allocation23 + $0xc0] sm:$0xff]
    %v6969 = vld [vmem:[#allocation23 + $0xc8] sm:$0xff]
    %v6970 = vld [vmem:[#allocation23 + $0xd0] sm:$0xff]
    %v6971 = vld [vmem:[#allocation23 + $0xd8] sm:$0xff]
    %v6972 = vld [vmem:[#allocation23 + $0xe0] sm:$0xff]
    %v6973 = vld [vmem:[#allocation23 + $0xe8] sm:$0xff]
    %v6974 = vld [vmem:[#allocation23 + $0xf0] sm:$0xff]
    %v6975 = vld [vmem:[#allocation23 + $0xf8] sm:$0xff]
    %v6976 = vld [vmem:[#allocation23 + $0x100] sm:$0xff]
    %v6977 = vld [vmem:[#allocation23 + $0x108] sm:$0xff]
    %v6978 = vld [vmem:[#allocation23 + $0x110] sm:$0xff]
    %v6979 = vld [vmem:[#allocation23 + $0x118] sm:$0xff]
    %v6980 = vld [vmem:[#allocation23 + $0x120] sm:$0xff]
    %v6981 = vld [vmem:[#allocation23 + $0x128] sm:$0xff]
    %v6982 = vld [vmem:[#allocation23 + $0x130] sm:$0xff]
    %v6983 = vld [vmem:[#allocation23 + $0x138] sm:$0xff]
    %v6984 = vld [vmem:[#allocation23 + $0x140] sm:$0xff]
    %v6985 = vld [vmem:[#allocation23 + $0x148] sm:$0xff]
    %v6986 = vld [vmem:[#allocation23 + $0x150] sm:$0xff]
    %v6987 = vld [vmem:[#allocation23 + $0x158] sm:$0xff]
    %v6988 = vld [vmem:[#allocation23 + $0x160] sm:$0xff]
    %v6989 = vld [vmem:[#allocation23 + $0x168] sm:$0xff]
    %v6990 = vld [vmem:[#allocation23 + $0x170] sm:$0xff]
    %v6991 = vld [vmem:[#allocation23 + $0x178] sm:$0xff]
    %v6992 = vld [vmem:[#allocation23 + $0x180] sm:$0xff]
    %v6993 = vld [vmem:[#allocation23 + $0x188] sm:$0xff]
    %v6994 = vld [vmem:[#allocation23 + $0x190] sm:$0xff]
    %v6995 = vld [vmem:[#allocation23 + $0x198] sm:$0xff]
    %v6996 = vld [vmem:[#allocation23 + $0x1a0] sm:$0xff]
    %v6997 = vld [vmem:[#allocation23 + $0x1a8] sm:$0xff]
    %v6998 = vld [vmem:[#allocation23 + $0x1b0] sm:$0xff]
    %v6999 = vld [vmem:[#allocation23 + $0x1b8] sm:$0xff]
    %v7000 = vld [vmem:[#allocation23 + $0x1c0] sm:$0xff]
    %v7001 = vld [vmem:[#allocation23 + $0x1c8] sm:$0xff]
    %v7002 = vld [vmem:[#allocation23 + $0x1d0] sm:$0xff]
    %v7003 = vld [vmem:[#allocation23 + $0x1d8] sm:$0xff]
    %v7004 = vld [vmem:[#allocation23 + $0x1e0] sm:$0xff]
    %v7005 = vld [vmem:[#allocation23 + $0x1e8] sm:$0xff]
    %v7006 = vld [vmem:[#allocation23 + $0x1f0] sm:$0xff]
    %v7007 = vld [vmem:[#allocation23 + $0x1f8] sm:$0xff]
    %v7008 = vld [vmem:[#allocation23 + $0x200] sm:$0xff]
    %v7009 = vld [vmem:[#allocation23 + $0x208] sm:$0xff]
    %v7010 = vld [vmem:[#allocation23 + $0x210] sm:$0xff]
    %v7011 = vld [vmem:[#allocation23 + $0x218] sm:$0xff]
    %v7012 = vld [vmem:[#allocation23 + $0x220] sm:$0xff]
    %v7013 = vld [vmem:[#allocation23 + $0x228] sm:$0xff]
    %v7014 = vld [vmem:[#allocation23 + $0x230] sm:$0xff]
    %v7015 = vld [vmem:[#allocation23 + $0x238] sm:$0xff]
    %v7016 = vld [vmem:[#allocation23 + $0x240] sm:$0xff]
    %v7017 = vld [vmem:[#allocation23 + $0x248] sm:$0xff]
    %v7018 = vld [vmem:[#allocation23 + $0x250] sm:$0xff]
    %v7019 = vld [vmem:[#allocation23 + $0x258] sm:$0xff]
    %v7020 = vld [vmem:[#allocation23 + $0x260] sm:$0xff]
    %v7021 = vld [vmem:[#allocation23 + $0x268] sm:$0xff]
    %v7022 = vld [vmem:[#allocation23 + $0x270] sm:$0xff]
    %v7023 = vld [vmem:[#allocation23 + $0x278] sm:$0xff]
    %v7025 = vsel %vm320, %v5814, 0
    %v7028 = vsel %vm320, %v5815, 0
    %v7031 = vsel %vm320, %v5816, 0
    %7033 = vmatprep.subr.mxu0 %v6945
    %7034 = vmatpush1.msra.mxu0 %v6944
    %7035 = vmatprep.subr.mxu0 %v6965
    %7036 = vmatpush1.msra.mxu0 %v6964
    %7037 = vmatprep.subr.mxu0 %v6985
    %7038 = vmatpush1.msra.mxu0 %v6984
    %7039 = vmatprep.subr.mxu0 %v7005
    %7040 = vmatpush1.msra.mxu0 %v7004
    %7041 = vmatprep.subr.mxu0 0.0
    %7042 = vmatpush1.msra.mxu0 0.0
    %7043 = vmatprep.subr.mxu0 0.0
    %7044 = vmatpush1.msra.mxu0 0.0
    %7045 = vmatprep.subr.mxu0 0.0
    %7046 = vmatpush1.msra.mxu0 0.0
    %7047 = vmatprep.subr.mxu0 0.0
    %7048 = vmatpush1.msra.mxu0 0.0
    %7049 = vmatprep.subr.mxu0 0.0
    %7050 = vmatpush1.msra.mxu0 0.0
    %7051 = vmatprep.subr.mxu0 0.0
    %7052 = vmatpush1.msra.mxu0 0.0
    %7053 = vmatprep.subr.mxu0 0.0
    %7054 = vmatpush1.msra.mxu0 0.0
    %7055 = vmatprep.subr.mxu0 0.0
    %7056 = vmatpush1.msra.mxu0 0.0
    %7057 = vmatprep.subr.mxu0 0.0
    %7058 = vmatpush1.msra.mxu0 0.0
    %7059 = vmatprep.subr.mxu0 0.0
    %7060 = vmatpush1.msra.mxu0 0.0
    %7061 = vmatprep.subr.mxu0 0.0
    %7062 = vmatpush1.msra.mxu0 0.0
    %7063 = vmatprep.subr.mxu0 0.0
    %7064 = vmatpush1.msra.mxu0 0.0
    %7065 = vmatprep.subr.mxu0 0.0
    %7066 = vmatpush1.msra.mxu0 0.0
    %7067 = vmatprep.subr.mxu0 0.0
    %7068 = vmatpush1.msra.mxu0 0.0
    %7069 = vmatprep.subr.mxu0 0.0
    %7070 = vmatpush1.msra.mxu0 0.0
    %7071 = vmatprep.subr.mxu0 0.0
    %7072 = vmatpush1.msra.mxu0 0.0
    %7073 = vmatprep.subr.mxu0 0.0
    %7074 = vmatpush1.msra.mxu0 0.0
    %7075 = vmatprep.subr.mxu0 0.0
    %7076 = vmatpush1.msra.mxu0 0.0
    %7077 = vmatprep.subr.mxu0 0.0
    %7078 = vmatpush1.msra.mxu0 0.0
    %7079 = vmatprep.subr.mxu0 0.0
    %7080 = vmatpush1.msra.mxu0 0.0
    %7081 = vmatprep.subr.mxu0 0.0
    %7082 = vmatpush1.msra.mxu0 0.0
    %7083 = vmatprep.subr.mxu0 0.0
    %7084 = vmatpush1.msra.mxu0 0.0
    %7085 = vmatprep.subr.mxu0 0.0
    %7086 = vmatpush1.msra.mxu0 0.0
    %7087 = vmatprep.subr.mxu0 0.0
    %7088 = vmatpush1.msra.mxu0 0.0
    %7089 = vmatprep.subr.mxu0 0.0
    %7090 = vmatpush1.msra.mxu0 0.0
    %7091 = vmatprep.subr.mxu0 0.0
    %7092 = vmatpush1.msra.mxu0 0.0
    %7093 = vmatprep.subr.mxu0 0.0
    %7094 = vmatpush1.msra.mxu0 0.0
    %7095 = vmatprep.subr.mxu0 0.0
    %7096 = vmatpush1.msra.mxu0 0.0
    %7097 = vmatprep.mubr.f32.mxu0 0.0
    %7098 = vmatmul.mubr.f32.gmra.mrb[0].mxu0 %v7025
    %v7099 = vpop.f32.mrb[0].mxu0
    %v7100 = vadd.f32 0.0, %v7099
    %v7101 = vpop.f32.mrb[0].mxu0
    %v7102 = vadd.f32 0.0, %v7101
    %7103 = vmatprep.mubr.f32.mxu0 0.0
    %7104 = vmatmul.mubr.f32.gmra.mrb[0].mxu0 %v7028
    %v7105 = vpop.f32.mrb[0].mxu0
    %v7106 = vadd.f32 0.0, %v7105
    %v7107 = vpop.f32.mrb[0].mxu0
    %v7108 = vadd.f32 0.0, %v7107
    %7109 = vmatprep.mubr.f32.mxu0 0.0
    %7110 = vmatmul.mubr.f32.gmra.mrb[0].mxu0 %v7031
    %v7111 = vpop.f32.mrb[0].mxu0
    %v7112 = vadd.f32 0.0, %v7111
    %v7113 = vpop.f32.mrb[0].mxu0
    %v7114 = vadd.f32 0.0, %v7113
    %7115 = vdwg.mxu0
    %7116 = vmatprep.subr.mxu0 %v6947
    %7117 = vmatpush1.msra.mxu0 %v6946
    %7118 = vmatprep.subr.mxu0 %v6967
    %7119 = vmatpush1.msra.mxu0 %v6966
    %7120 = vmatprep.subr.mxu0 %v6987
    %7121 = vmatpush1.msra.mxu0 %v6986
    %7122 = vmatprep.subr.mxu0 %v7007
    %7123 = vmatpush1.msra.mxu0 %v7006
    %7124 = vmatprep.subr.mxu0 0.0
    %7125 = vmatpush1.msra.mxu0 0.0
    %7126 = vmatprep.subr.mxu0 0.0
    %7127 = vmatpush1.msra.mxu0 0.0
    %7128 = vmatprep.subr.mxu0 0.0
    %7129 = vmatpush1.msra.mxu0 0.0
    %7130 = vmatprep.subr.mxu0 0.0
    %7131 = vmatpush1.msra.mxu0 0.0
    %7132 = vmatprep.subr.mxu0 0.0
    %7133 = vmatpush1.msra.mxu0 0.0
    %7134 = vmatprep.subr.mxu0 0.0
    %7135 = vmatpush1.msra.mxu0 0.0
    %7136 = vmatprep.subr.mxu0 0.0
    %7137 = vmatpush1.msra.mxu0 0.0
    %7138 = vmatprep.subr.mxu0 0.0
    %7139 = vmatpush1.msra.mxu0 0.0
    %7140 = vmatprep.subr.mxu0 0.0
    %7141 = vmatpush1.msra.mxu0 0.0
    %7142 = vmatprep.subr.mxu0 0.0
    %7143 = vmatpush1.msra.mxu0 0.0
    %7144 = vmatprep.subr.mxu0 0.0
    %7145 = vmatpush1.msra.mxu0 0.0
    %7146 = vmatprep.subr.mxu0 0.0
    %7147 = vmatpush1.msra.mxu0 0.0
    %7148 = vmatprep.subr.mxu0 0.0
    %7149 = vmatpush1.msra.mxu0 0.0
    %7150 = vmatprep.subr.mxu0 0.0
    %7151 = vmatpush1.msra.mxu0 0.0
    %7152 = vmatprep.subr.mxu0 0.0
    %7153 = vmatpush1.msra.mxu0 0.0
    %7154 = vmatprep.subr.mxu0 0.0
    %7155 = vmatpush1.msra.mxu0 0.0
    %7156 = vmatprep.subr.mxu0 0.0
    %7157 = vmatpush1.msra.mxu0 0.0
    %7158 = vmatprep.subr.mxu0 0.0
    %7159 = vmatpush1.msra.mxu0 0.0
    %7160 = vmatprep.subr.mxu0 0.0
    %7161 = vmatpush1.msra.mxu0 0.0
    %7162 = vmatprep.subr.mxu0 0.0
    %7163 = vmatpush1.msra.mxu0 0.0
    %7164 = vmatprep.subr.mxu0 0.0
    %7165 = vmatpush1.msra.mxu0 0.0
    %7166 = vmatprep.subr.mxu0 0.0
    %7167 = vmatpush1.msra.mxu0 0.0
    %7168 = vmatprep.subr.mxu0 0.0
    %7169 = vmatpush1.msra.mxu0 0.0
    %7170 = vmatprep.subr.mxu0 0.0
    %7171 = vmatpush1.msra.mxu0 0.0
    %7172 = vmatprep.subr.mxu0 0.0
    %7173 = vmatpush1.msra.mxu0 0.0
    %7174 = vmatprep.subr.mxu0 0.0
    %7175 = vmatpush1.msra.mxu0 0.0
    %7176 = vmatprep.subr.mxu0 0.0
    %7177 = vmatpush1.msra.mxu0 0.0
    %7178 = vmatprep.subr.mxu0 0.0
    %7179 = vmatpush1.msra.mxu0 0.0
    %7180 = vmatprep.mubr.f32.mxu0 0.0
    %7181 = vmatmul.mubr.f32.gmra.mrb[0].mxu0 %v7025
    %v7182 = vpop.f32.mrb[0].mxu0
    %v7183 = vadd.f32 0.0, %v7182
    %v7184 = vpop.f32.mrb[0].mxu0
    %v7185 = vadd.f32 0.0, %v7184
    %7186 = vmatprep.mubr.f32.mxu0 0.0
    %7187 = vmatmul.mubr.f32.gmra.mrb[0].mxu0 %v7028
    %v7188 = vpop.f32.mrb[0].mxu0
    %v7189 = vadd.f32 0.0, %v7188
    %v7190 = vpop.f32.mrb[0].mxu0
    %v7191 = vadd.f32 0.0, %v7190
    %7192 = vmatprep.mubr.f32.mxu0 0.0
    %7193 = vmatmul.mubr.f32.gmra.mrb[0].mxu0 %v7031
    %v7194 = vpop.f32.mrb[0].mxu0
    %v7195 = vadd.f32 0.0, %v7194
    %v7196 = vpop.f32.mrb[0].mxu0
    %v7197 = vadd.f32 0.0, %v7196
    %7198 = vdwg.mxu0
    %7199 = vmatprep.subr.mxu0 %v6949
    %7200 = vmatpush1.msra.mxu0 %v6948
    %7201 = vmatprep.subr.mxu0 %v6969
    %7202 = vmatpush1.msra.mxu0 %v6968
    %7203 = vmatprep.subr.mxu0 %v6989
    %7204 = vmatpush1.msra.mxu0 %v6988
    %7205 = vmatprep.subr.mxu0 %v7009
    %7206 = vmatpush1.msra.mxu0 %v7008
    %7207 = vmatprep.subr.mxu0 0.0
    %7208 = vmatpush1.msra.mxu0 0.0
    %7209 = vmatprep.subr.mxu0 0.0
    %7210 = vmatpush1.msra.mxu0 0.0
    %7211 = vmatprep.subr.mxu0 0.0
    %7212 = vmatpush1.msra.mxu0 0.0
    %7213 = vmatprep.subr.mxu0 0.0
    %7214 = vmatpush1.msra.mxu0 0.0
    %7215 = vmatprep.subr.mxu0 0.0
    %7216 = vmatpush1.msra.mxu0 0.0
    %7217 = vmatprep.subr.mxu0 0.0
    %7218 = vmatpush1.msra.mxu0 0.0
    %7219 = vmatprep.subr.mxu0 0.0
    %7220 = vmatpush1.msra.mxu0 0.0
    %7221 = vmatprep.subr.mxu0 0.0
    %7222 = vmatpush1.msra.mxu0 0.0
    %7223 = vmatprep.subr.mxu0 0.0
    %7224 = vmatpush1.msra.mxu0 0.0
    %7225 = vmatprep.subr.mxu0 0.0
    %7226 = vmatpush1.msra.mxu0 0.0
    %7227 = vmatprep.subr.mxu0 0.0
    %7228 = vmatpush1.msra.mxu0 0.0
    %7229 = vmatprep.subr.mxu0 0.0
    %7230 = vmatpush1.msra.mxu0 0.0
    %7231 = vmatprep.subr.mxu0 0.0
    %7232 = vmatpush1.msra.mxu0 0.0
    %7233 = vmatprep.subr.mxu0 0.0
    %7234 = vmatpush1.msra.mxu0 0.0
    %7235 = vmatprep.subr.mxu0 0.0
    %7236 = vmatpush1.msra.mxu0 0.0
    %7237 = vmatprep.subr.mxu0 0.0
    %7238 = vmatpush1.msra.mxu0 0.0
    %7239 = vmatprep.subr.mxu0 0.0
    %7240 = vmatpush1.msra.mxu0 0.0
    %7241 = vmatprep.subr.mxu0 0.0
    %7242 = vmatpush1.msra.mxu0 0.0
    %7243 = vmatprep.subr.mxu0 0.0
    %7244 = vmatpush1.msra.mxu0 0.0
    %7245 = vmatprep.subr.mxu0 0.0
    %7246 = vmatpush1.msra.mxu0 0.0
    %7247 = vmatprep.subr.mxu0 0.0
    %7248 = vmatpush1.msra.mxu0 0.0
    %7249 = vmatprep.subr.mxu0 0.0
    %7250 = vmatpush1.msra.mxu0 0.0
    %7251 = vmatprep.subr.mxu0 0.0
    %7252 = vmatpush1.msra.mxu0 0.0
    %7253 = vmatprep.subr.mxu0 0.0
    %7254 = vmatpush1.msra.mxu0 0.0
    %7255 = vmatprep.subr.mxu0 0.0
    %7256 = vmatpush1.msra.mxu0 0.0
    %7257 = vmatprep.subr.mxu0 0.0
    %7258 = vmatpush1.msra.mxu0 0.0
    %7259 = vmatprep.subr.mxu0 0.0
    %7260 = vmatpush1.msra.mxu0 0.0
    %7261 = vmatprep.subr.mxu0 0.0
    %7262 = vmatpush1.msra.mxu0 0.0
    %7263 = vmatprep.mubr.f32.mxu0 0.0
    %7264 = vmatmul.mubr.f32.gmra.mrb[0].mxu0 %v7025
    %v7265 = vpop.f32.mrb[0].mxu0
    %v7266 = vadd.f32 0.0, %v7265
    %v7267 = vpop.f32.mrb[0].mxu0
    %v7268 = vadd.f32 0.0, %v7267
    %7269 = vmatprep.mubr.f32.mxu0 0.0
    %7270 = vmatmul.mubr.f32.gmra.mrb[0].mxu0 %v7028
    %v7271 = vpop.f32.mrb[0].mxu0
    %v7272 = vadd.f32 0.0, %v7271
    %v7273 = vpop.f32.mrb[0].mxu0
    %v7274 = vadd.f32 0.0, %v7273
    %7275 = vmatprep.mubr.f32.mxu0 0.0
    %7276 = vmatmul.mubr.f32.gmra.mrb[0].mxu0 %v7031
    %v7277 = vpop.f32.mrb[0].mxu0
    %v7278 = vadd.f32 0.0, %v7277
    %v7279 = vpop.f32.mrb[0].mxu0
    %v7280 = vadd.f32 0.0, %v7279
    %7281 = vdwg.mxu0
    %7282 = vmatprep.subr.mxu0 %v6951
    %7283 = vmatpush1.msra.mxu0 %v6950
    %7284 = vmatprep.subr.mxu0 %v6971
    %7285 = vmatpush1.msra.mxu0 %v6970
    %7286 = vmatprep.subr.mxu0 %v6991
    %7287 = vmatpush1.msra.mxu0 %v6990
    %7288 = vmatprep.subr.mxu0 %v7011
    %7289 = vmatpush1.msra.mxu0 %v7010
    %7290 = vmatprep.subr.mxu0 0.0
    %7291 = vmatpush1.msra.mxu0 0.0
    %7292 = vmatprep.subr.mxu0 0.0
    %7293 = vmatpush1.msra.mxu0 0.0
    %7294 = vmatprep.subr.mxu0 0.0
    %7295 = vmatpush1.msra.mxu0 0.0
    %7296 = vmatprep.subr.mxu0 0.0
    %7297 = vmatpush1.msra.mxu0 0.0
    %7298 = vmatprep.subr.mxu0 0.0
    %7299 = vmatpush1.msra.mxu0 0.0
    %7300 = vmatprep.subr.mxu0 0.0
    %7301 = vmatpush1.msra.mxu0 0.0
    %7302 = vmatprep.subr.mxu0 0.0
    %7303 = vmatpush1.msra.mxu0 0.0
    %7304 = vmatprep.subr.mxu0 0.0
    %7305 = vmatpush1.msra.mxu0 0.0
    %7306 = vmatprep.subr.mxu0 0.0
    %7307 = vmatpush1.msra.mxu0 0.0
    %7308 = vmatprep.subr.mxu0 0.0
    %7309 = vmatpush1.msra.mxu0 0.0
    %7310 = vmatprep.subr.mxu0 0.0
    %7311 = vmatpush1.msra.mxu0 0.0
    %7312 = vmatprep.subr.mxu0 0.0
    %7313 = vmatpush1.msra.mxu0 0.0
    %7314 = vmatprep.subr.mxu0 0.0
    %7315 = vmatpush1.msra.mxu0 0.0
    %7316 = vmatprep.subr.mxu0 0.0
    %7317 = vmatpush1.msra.mxu0 0.0
    %7318 = vmatprep.subr.mxu0 0.0
    %7319 = vmatpush1.msra.mxu0 0.0
    %7320 = vmatprep.subr.mxu0 0.0
    %7321 = vmatpush1.msra.mxu0 0.0
    %7322 = vmatprep.subr.mxu0 0.0
    %7323 = vmatpush1.msra.mxu0 0.0
    %7324 = vmatprep.subr.mxu0 0.0
    %7325 = vmatpush1.msra.mxu0 0.0
    %7326 = vmatprep.subr.mxu0 0.0
    %7327 = vmatpush1.msra.mxu0 0.0
    %7328 = vmatprep.subr.mxu0 0.0
    %7329 = vmatpush1.msra.mxu0 0.0
    %7330 = vmatprep.subr.mxu0 0.0
    %7331 = vmatpush1.msra.mxu0 0.0
    %7332 = vmatprep.subr.mxu0 0.0
    %7333 = vmatpush1.msra.mxu0 0.0
    %7334 = vmatprep.subr.mxu0 0.0
    %7335 = vmatpush1.msra.mxu0 0.0
    %7336 = vmatprep.subr.mxu0 0.0
    %7337 = vmatpush1.msra.mxu0 0.0
    %7338 = vmatprep.subr.mxu0 0.0
    %7339 = vmatpush1.msra.mxu0 0.0
    %7340 = vmatprep.subr.mxu0 0.0
    %7341 = vmatpush1.msra.mxu0 0.0
    %7342 = vmatprep.subr.mxu0 0.0
    %7343 = vmatpush1.msra.mxu0 0.0
    %7344 = vmatprep.subr.mxu0 0.0
    %7345 = vmatpush1.msra.mxu0 0.0
    %7346 = vmatprep.mubr.f32.mxu0 0.0
    %7347 = vmatmul.mubr.f32.gmra.mrb[0].mxu0 %v7025
    %v7348 = vpop.f32.mrb[0].mxu0
    %v7349 = vadd.f32 0.0, %v7348
    %v7350 = vpop.f32.mrb[0].mxu0
    %v7351 = vadd.f32 0.0, %v7350
    %7352 = vmatprep.mubr.f32.mxu0 0.0
    %7353 = vmatmul.mubr.f32.gmra.mrb[0].mxu0 %v7028
    %v7354 = vpop.f32.mrb[0].mxu0
    %v7355 = vadd.f32 0.0, %v7354
    %v7356 = vpop.f32.mrb[0].mxu0
    %v7357 = vadd.f32 0.0, %v7356
    %7358 = vmatprep.mubr.f32.mxu0 0.0
    %7359 = vmatmul.mubr.f32.gmra.mrb[0].mxu0 %v7031
    %v7360 = vpop.f32.mrb[0].mxu0
    %v7361 = vadd.f32 0.0, %v7360
    %v7362 = vpop.f32.mrb[0].mxu0
    %v7363 = vadd.f32 0.0, %v7362
    %7364 = vdwg.mxu0
    %7365 = vmatprep.subr.mxu0 %v6953
    %7366 = vmatpush1.msra.mxu0 %v6952
    %7367 = vmatprep.subr.mxu0 %v6973
    %7368 = vmatpush1.msra.mxu0 %v6972
    %7369 = vmatprep.subr.mxu0 %v6993
    %7370 = vmatpush1.msra.mxu0 %v6992
    %7371 = vmatprep.subr.mxu0 %v7013
    %7372 = vmatpush1.msra.mxu0 %v7012
    %7373 = vmatprep.subr.mxu0 0.0
    %7374 = vmatpush1.msra.mxu0 0.0
    %7375 = vmatprep.subr.mxu0 0.0
    %7376 = vmatpush1.msra.mxu0 0.0
    %7377 = vmatprep.subr.mxu0 0.0
    %7378 = vmatpush1.msra.mxu0 0.0
    %7379 = vmatprep.subr.mxu0 0.0
    %7380 = vmatpush1.msra.mxu0 0.0
    %7381 = vmatprep.subr.mxu0 0.0
    %7382 = vmatpush1.msra.mxu0 0.0
    %7383 = vmatprep.subr.mxu0 0.0
    %7384 = vmatpush1.msra.mxu0 0.0
    %7385 = vmatprep.subr.mxu0 0.0
    %7386 = vmatpush1.msra.mxu0 0.0
    %7387 = vmatprep.subr.mxu0 0.0
    %7388 = vmatpush1.msra.mxu0 0.0
    %7389 = vmatprep.subr.mxu0 0.0
    %7390 = vmatpush1.msra.mxu0 0.0
    %7391 = vmatprep.subr.mxu0 0.0
    %7392 = vmatpush1.msra.mxu0 0.0
    %7393 = vmatprep.subr.mxu0 0.0
    %7394 = vmatpush1.msra.mxu0 0.0
    %7395 = vmatprep.subr.mxu0 0.0
    %7396 = vmatpush1.msra.mxu0 0.0
    %7397 = vmatprep.subr.mxu0 0.0
    %7398 = vmatpush1.msra.mxu0 0.0
    %7399 = vmatprep.subr.mxu0 0.0
    %7400 = vmatpush1.msra.mxu0 0.0
    %7401 = vmatprep.subr.mxu0 0.0
    %7402 = vmatpush1.msra.mxu0 0.0
    %7403 = vmatprep.subr.mxu0 0.0
    %7404 = vmatpush1.msra.mxu0 0.0
    %7405 = vmatprep.subr.mxu0 0.0
    %7406 = vmatpush1.msra.mxu0 0.0
    %7407 = vmatprep.subr.mxu0 0.0
    %7408 = vmatpush1.msra.mxu0 0.0
    %7409 = vmatprep.subr.mxu0 0.0
    %7410 = vmatpush1.msra.mxu0 0.0
    %7411 = vmatprep.subr.mxu0 0.0
    %7412 = vmatpush1.msra.mxu0 0.0
    %7413 = vmatprep.subr.mxu0 0.0
    %7414 = vmatpush1.msra.mxu0 0.0
    %7415 = vmatprep.subr.mxu0 0.0
    %7416 = vmatpush1.msra.mxu0 0.0
    %7417 = vmatprep.subr.mxu0 0.0
    %7418 = vmatpush1.msra.mxu0 0.0
    %7419 = vmatprep.subr.mxu0 0.0
    %7420 = vmatpush1.msra.mxu0 0.0
    %7421 = vmatprep.subr.mxu0 0.0
    %7422 = vmatpush1.msra.mxu0 0.0
    %7423 = vmatprep.subr.mxu0 0.0
    %7424 = vmatpush1.msra.mxu0 0.0
    %7425 = vmatprep.subr.mxu0 0.0
    %7426 = vmatpush1.msra.mxu0 0.0
    %7427 = vmatprep.subr.mxu0 0.0
    %7428 = vmatpush1.msra.mxu0 0.0
    %7429 = vmatprep.mubr.f32.mxu0 0.0
    %7430 = vmatmul.mubr.f32.gmra.mrb[0].mxu0 %v7025
    %v7431 = vpop.f32.mrb[0].mxu0
    %v7432 = vadd.f32 0.0, %v7431
    %v7433 = vpop.f32.mrb[0].mxu0
    %v7434 = vadd.f32 0.0, %v7433
    %7435 = vmatprep.mubr.f32.mxu0 0.0
    %7436 = vmatmul.mubr.f32.gmra.mrb[0].mxu0 %v7028
    %v7437 = vpop.f32.mrb[0].mxu0
    %v7438 = vadd.f32 0.0, %v7437
    %v7439 = vpop.f32.mrb[0].mxu0
    %v7440 = vadd.f32 0.0, %v7439
    %7441 = vmatprep.mubr.f32.mxu0 0.0
    %7442 = vmatmul.mubr.f32.gmra.mrb[0].mxu0 %v7031
    %v7443 = vpop.f32.mrb[0].mxu0
    %v7444 = vadd.f32 0.0, %v7443
    %v7445 = vpop.f32.mrb[0].mxu0
    %v7446 = vadd.f32 0.0, %v7445
    %7447 = vdwg.mxu0
    %7448 = vmatprep.subr.mxu0 %v6955
    %7449 = vmatpush1.msra.mxu0 %v6954
    %7450 = vmatprep.subr.mxu0 %v6975
    %7451 = vmatpush1.msra.mxu0 %v6974
    %7452 = vmatprep.subr.mxu0 %v6995
    %7453 = vmatpush1.msra.mxu0 %v6994
    %7454 = vmatprep.subr.mxu0 %v7015
    %7455 = vmatpush1.msra.mxu0 %v7014
    %7456 = vmatprep.subr.mxu0 0.0
    %7457 = vmatpush1.msra.mxu0 0.0
    %7458 = vmatprep.subr.mxu0 0.0
    %7459 = vmatpush1.msra.mxu0 0.0
    %7460 = vmatprep.subr.mxu0 0.0
    %7461 = vmatpush1.msra.mxu0 0.0
    %7462 = vmatprep.subr.mxu0 0.0
    %7463 = vmatpush1.msra.mxu0 0.0
    %7464 = vmatprep.subr.mxu0 0.0
    %7465 = vmatpush1.msra.mxu0 0.0
    %7466 = vmatprep.subr.mxu0 0.0
    %7467 = vmatpush1.msra.mxu0 0.0
    %7468 = vmatprep.subr.mxu0 0.0
    %7469 = vmatpush1.msra.mxu0 0.0
    %7470 = vmatprep.subr.mxu0 0.0
    %7471 = vmatpush1.msra.mxu0 0.0
    %7472 = vmatprep.subr.mxu0 0.0
    %7473 = vmatpush1.msra.mxu0 0.0
    %7474 = vmatprep.subr.mxu0 0.0
    %7475 = vmatpush1.msra.mxu0 0.0
    %7476 = vmatprep.subr.mxu0 0.0
    %7477 = vmatpush1.msra.mxu0 0.0
    %7478 = vmatprep.subr.mxu0 0.0
    %7479 = vmatpush1.msra.mxu0 0.0
    %7480 = vmatprep.subr.mxu0 0.0
    %7481 = vmatpush1.msra.mxu0 0.0
    %7482 = vmatprep.subr.mxu0 0.0
    %7483 = vmatpush1.msra.mxu0 0.0
    %7484 = vmatprep.subr.mxu0 0.0
    %7485 = vmatpush1.msra.mxu0 0.0
    %7486 = vmatprep.subr.mxu0 0.0
    %7487 = vmatpush1.msra.mxu0 0.0
    %7488 = vmatprep.subr.mxu0 0.0
    %7489 = vmatpush1.msra.mxu0 0.0
    %7490 = vmatprep.subr.mxu0 0.0
    %7491 = vmatpush1.msra.mxu0 0.0
    %7492 = vmatprep.subr.mxu0 0.0
    %7493 = vmatpush1.msra.mxu0 0.0
    %7494 = vmatprep.subr.mxu0 0.0
    %7495 = vmatpush1.msra.mxu0 0.0
    %7496 = vmatprep.subr.mxu0 0.0
    %7497 = vmatpush1.msra.mxu0 0.0
    %7498 = vmatprep.subr.mxu0 0.0
    %7499 = vmatpush1.msra.mxu0 0.0
    %7500 = vmatprep.subr.mxu0 0.0
    %7501 = vmatpush1.msra.mxu0 0.0
    %7502 = vmatprep.subr.mxu0 0.0
    %7503 = vmatpush1.msra.mxu0 0.0
    %7504 = vmatprep.subr.mxu0 0.0
    %7505 = vmatpush1.msra.mxu0 0.0
    %7506 = vmatprep.subr.mxu0 0.0
    %7507 = vmatpush1.msra.mxu0 0.0
    %7508 = vmatprep.subr.mxu0 0.0
    %7509 = vmatpush1.msra.mxu0 0.0
    %7510 = vmatprep.subr.mxu0 0.0
    %7511 = vmatpush1.msra.mxu0 0.0
    %7512 = vmatprep.mubr.f32.mxu0 0.0
    %7513 = vmatmul.mubr.f32.gmra.mrb[0].mxu0 %v7025
    %v7514 = vpop.f32.mrb[0].mxu0
    %v7515 = vadd.f32 0.0, %v7514
    %v7516 = vpop.f32.mrb[0].mxu0
    %v7517 = vadd.f32 0.0, %v7516
    %7518 = vmatprep.mubr.f32.mxu0 0.0
    %7519 = vmatmul.mubr.f32.gmra.mrb[0].mxu0 %v7028
    %v7520 = vpop.f32.mrb[0].mxu0
    %v7521 = vadd.f32 0.0, %v7520
    %v7522 = vpop.f32.mrb[0].mxu0
    %v7523 = vadd.f32 0.0, %v7522
    %7524 = vmatprep.mubr.f32.mxu0 0.0
    %7525 = vmatmul.mubr.f32.gmra.mrb[0].mxu0 %v7031
    %v7526 = vpop.f32.mrb[0].mxu0
    %v7527 = vadd.f32 0.0, %v7526
    %v7528 = vpop.f32.mrb[0].mxu0
    %v7529 = vadd.f32 0.0, %v7528
    %7530 = vdwg.mxu0
    %7531 = vmatprep.subr.mxu0 %v6957
    %7532 = vmatpush1.msra.mxu0 %v6956
    %7533 = vmatprep.subr.mxu0 %v6977
    %7534 = vmatpush1.msra.mxu0 %v6976
    %7535 = vmatprep.subr.mxu0 %v6997
    %7536 = vmatpush1.msra.mxu0 %v6996
    %7537 = vmatprep.subr.mxu0 %v7017
    %7538 = vmatpush1.msra.mxu0 %v7016
    %7539 = vmatprep.subr.mxu0 0.0
    %7540 = vmatpush1.msra.mxu0 0.0
    %7541 = vmatprep.subr.mxu0 0.0
    %7542 = vmatpush1.msra.mxu0 0.0
    %7543 = vmatprep.subr.mxu0 0.0
    %7544 = vmatpush1.msra.mxu0 0.0
    %7545 = vmatprep.subr.mxu0 0.0
    %7546 = vmatpush1.msra.mxu0 0.0
    %7547 = vmatprep.subr.mxu0 0.0
    %7548 = vmatpush1.msra.mxu0 0.0
    %7549 = vmatprep.subr.mxu0 0.0
    %7550 = vmatpush1.msra.mxu0 0.0
    %7551 = vmatprep.subr.mxu0 0.0
    %7552 = vmatpush1.msra.mxu0 0.0
    %7553 = vmatprep.subr.mxu0 0.0
    %7554 = vmatpush1.msra.mxu0 0.0
    %7555 = vmatprep.subr.mxu0 0.0
    %7556 = vmatpush1.msra.mxu0 0.0
    %7557 = vmatprep.subr.mxu0 0.0
    %7558 = vmatpush1.msra.mxu0 0.0
    %7559 = vmatprep.subr.mxu0 0.0
    %7560 = vmatpush1.msra.mxu0 0.0
    %7561 = vmatprep.subr.mxu0 0.0
    %7562 = vmatpush1.msra.mxu0 0.0
    %7563 = vmatprep.subr.mxu0 0.0
    %7564 = vmatpush1.msra.mxu0 0.0
    %7565 = vmatprep.subr.mxu0 0.0
    %7566 = vmatpush1.msra.mxu0 0.0
    %7567 = vmatprep.subr.mxu0 0.0
    %7568 = vmatpush1.msra.mxu0 0.0
    %7569 = vmatprep.subr.mxu0 0.0
    %7570 = vmatpush1.msra.mxu0 0.0
    %7571 = vmatprep.subr.mxu0 0.0
    %7572 = vmatpush1.msra.mxu0 0.0
    %7573 = vmatprep.subr.mxu0 0.0
    %7574 = vmatpush1.msra.mxu0 0.0
    %7575 = vmatprep.subr.mxu0 0.0
    %7576 = vmatpush1.msra.mxu0 0.0
    %7577 = vmatprep.subr.mxu0 0.0
    %7578 = vmatpush1.msra.mxu0 0.0
    %7579 = vmatprep.subr.mxu0 0.0
    %7580 = vmatpush1.msra.mxu0 0.0
    %7581 = vmatprep.subr.mxu0 0.0
    %7582 = vmatpush1.msra.mxu0 0.0
    %7583 = vmatprep.subr.mxu0 0.0
    %7584 = vmatpush1.msra.mxu0 0.0
    %7585 = vmatprep.subr.mxu0 0.0
    %7586 = vmatpush1.msra.mxu0 0.0
    %7587 = vmatprep.subr.mxu0 0.0
    %7588 = vmatpush1.msra.mxu0 0.0
    %7589 = vmatprep.subr.mxu0 0.0
    %7590 = vmatpush1.msra.mxu0 0.0
    %7591 = vmatprep.subr.mxu0 0.0
    %7592 = vmatpush1.msra.mxu0 0.0
    %7593 = vmatprep.subr.mxu0 0.0
    %7594 = vmatpush1.msra.mxu0 0.0
    %7595 = vmatprep.mubr.f32.mxu0 0.0
    %7596 = vmatmul.mubr.f32.gmra.mrb[0].mxu0 %v7025
    %v7597 = vpop.f32.mrb[0].mxu0
    %v7598 = vadd.f32 0.0, %v7597
    %v7599 = vpop.f32.mrb[0].mxu0
    %v7600 = vadd.f32 0.0, %v7599
    %7601 = vmatprep.mubr.f32.mxu0 0.0
    %7602 = vmatmul.mubr.f32.gmra.mrb[0].mxu0 %v7028
    %v7603 = vpop.f32.mrb[0].mxu0
    %v7604 = vadd.f32 0.0, %v7603
    %v7605 = vpop.f32.mrb[0].mxu0
    %v7606 = vadd.f32 0.0, %v7605
    %7607 = vmatprep.mubr.f32.mxu0 0.0
    %7608 = vmatmul.mubr.f32.gmra.mrb[0].mxu0 %v7031
    %v7609 = vpop.f32.mrb[0].mxu0
    %v7610 = vadd.f32 0.0, %v7609
    %v7611 = vpop.f32.mrb[0].mxu0
    %v7612 = vadd.f32 0.0, %v7611
    %7613 = vdwg.mxu0
    %7614 = vmatprep.subr.mxu0 %v6959
    %7615 = vmatpush1.msra.mxu0 %v6958
    %7616 = vmatprep.subr.mxu0 %v6979
    %7617 = vmatpush1.msra.mxu0 %v6978
    %7618 = vmatprep.subr.mxu0 %v6999
    %7619 = vmatpush1.msra.mxu0 %v6998
    %7620 = vmatprep.subr.mxu0 %v7019
    %7621 = vmatpush1.msra.mxu0 %v7018
    %7622 = vmatprep.subr.mxu0 0.0
    %7623 = vmatpush1.msra.mxu0 0.0
    %7624 = vmatprep.subr.mxu0 0.0
    %7625 = vmatpush1.msra.mxu0 0.0
    %7626 = vmatprep.subr.mxu0 0.0
    %7627 = vmatpush1.msra.mxu0 0.0
    %7628 = vmatprep.subr.mxu0 0.0
    %7629 = vmatpush1.msra.mxu0 0.0
    %7630 = vmatprep.subr.mxu0 0.0
    %7631 = vmatpush1.msra.mxu0 0.0
    %7632 = vmatprep.subr.mxu0 0.0
    %7633 = vmatpush1.msra.mxu0 0.0
    %7634 = vmatprep.subr.mxu0 0.0
    %7635 = vmatpush1.msra.mxu0 0.0
    %7636 = vmatprep.subr.mxu0 0.0
    %7637 = vmatpush1.msra.mxu0 0.0
    %7638 = vmatprep.subr.mxu0 0.0
    %7639 = vmatpush1.msra.mxu0 0.0
    %7640 = vmatprep.subr.mxu0 0.0
    %7641 = vmatpush1.msra.mxu0 0.0
    %7642 = vmatprep.subr.mxu0 0.0
    %7643 = vmatpush1.msra.mxu0 0.0
    %7644 = vmatprep.subr.mxu0 0.0
    %7645 = vmatpush1.msra.mxu0 0.0
    %7646 = vmatprep.subr.mxu0 0.0
    %7647 = vmatpush1.msra.mxu0 0.0
    %7648 = vmatprep.subr.mxu0 0.0
    %7649 = vmatpush1.msra.mxu0 0.0
    %7650 = vmatprep.subr.mxu0 0.0
    %7651 = vmatpush1.msra.mxu0 0.0
    %7652 = vmatprep.subr.mxu0 0.0
    %7653 = vmatpush1.msra.mxu0 0.0
    %7654 = vmatprep.subr.mxu0 0.0
    %7655 = vmatpush1.msra.mxu0 0.0
    %7656 = vmatprep.subr.mxu0 0.0
    %7657 = vmatpush1.msra.mxu0 0.0
    %7658 = vmatprep.subr.mxu0 0.0
    %7659 = vmatpush1.msra.mxu0 0.0
    %7660 = vmatprep.subr.mxu0 0.0
    %7661 = vmatpush1.msra.mxu0 0.0
    %7662 = vmatprep.subr.mxu0 0.0
    %7663 = vmatpush1.msra.mxu0 0.0
    %7664 = vmatprep.subr.mxu0 0.0
    %7665 = vmatpush1.msra.mxu0 0.0
    %7666 = vmatprep.subr.mxu0 0.0
    %7667 = vmatpush1.msra.mxu0 0.0
    %7668 = vmatprep.subr.mxu0 0.0
    %7669 = vmatpush1.msra.mxu0 0.0
    %7670 = vmatprep.subr.mxu0 0.0
    %7671 = vmatpush1.msra.mxu0 0.0
    %7672 = vmatprep.subr.mxu0 0.0
    %7673 = vmatpush1.msra.mxu0 0.0
    %7674 = vmatprep.subr.mxu0 0.0
    %7675 = vmatpush1.msra.mxu0 0.0
    %7676 = vmatprep.subr.mxu0 0.0
    %7677 = vmatpush1.msra.mxu0 0.0
    %7678 = vmatprep.mubr.f32.mxu0 0.0
    %7679 = vmatmul.mubr.f32.gmra.mrb[0].mxu0 %v7025
    %v7680 = vpop.f32.mrb[0].mxu0
    %v7681 = vadd.f32 0.0, %v7680
    %v7682 = vpop.f32.mrb[0].mxu0
    %v7683 = vadd.f32 0.0, %v7682
    %7684 = vmatprep.mubr.f32.mxu0 0.0
    %7685 = vmatmul.mubr.f32.gmra.mrb[0].mxu0 %v7028
    %v7686 = vpop.f32.mrb[0].mxu0
    %v7687 = vadd.f32 0.0, %v7686
    %v7688 = vpop.f32.mrb[0].mxu0
    %v7689 = vadd.f32 0.0, %v7688
    %7690 = vmatprep.mubr.f32.mxu0 0.0
    %7691 = vmatmul.mubr.f32.gmra.mrb[0].mxu0 %v7031
    %v7692 = vpop.f32.mrb[0].mxu0
    %v7693 = vadd.f32 0.0, %v7692
    %v7694 = vpop.f32.mrb[0].mxu0
    %v7695 = vadd.f32 0.0, %v7694
    %7696 = vdwg.mxu0
    %7697 = vmatprep.subr.mxu0 %v6961
    %7698 = vmatpush1.msra.mxu0 %v6960
    %7699 = vmatprep.subr.mxu0 %v6981
    %7700 = vmatpush1.msra.mxu0 %v6980
    %7701 = vmatprep.subr.mxu0 %v7001
    %7702 = vmatpush1.msra.mxu0 %v7000
    %7703 = vmatprep.subr.mxu0 %v7021
    %7704 = vmatpush1.msra.mxu0 %v7020
    %7705 = vmatprep.subr.mxu0 0.0
    %7706 = vmatpush1.msra.mxu0 0.0
    %7707 = vmatprep.subr.mxu0 0.0
    %7708 = vmatpush1.msra.mxu0 0.0
    %7709 = vmatprep.subr.mxu0 0.0
    %7710 = vmatpush1.msra.mxu0 0.0
    %7711 = vmatprep.subr.mxu0 0.0
    %7712 = vmatpush1.msra.mxu0 0.0
    %7713 = vmatprep.subr.mxu0 0.0
    %7714 = vmatpush1.msra.mxu0 0.0
    %7715 = vmatprep.subr.mxu0 0.0
    %7716 = vmatpush1.msra.mxu0 0.0
    %7717 = vmatprep.subr.mxu0 0.0
    %7718 = vmatpush1.msra.mxu0 0.0
    %7719 = vmatprep.subr.mxu0 0.0
    %7720 = vmatpush1.msra.mxu0 0.0
    %7721 = vmatprep.subr.mxu0 0.0
    %7722 = vmatpush1.msra.mxu0 0.0
    %7723 = vmatprep.subr.mxu0 0.0
    %7724 = vmatpush1.msra.mxu0 0.0
    %7725 = vmatprep.subr.mxu0 0.0
    %7726 = vmatpush1.msra.mxu0 0.0
    %7727 = vmatprep.subr.mxu0 0.0
    %7728 = vmatpush1.msra.mxu0 0.0
    %7729 = vmatprep.subr.mxu0 0.0
    %7730 = vmatpush1.msra.mxu0 0.0
    %7731 = vmatprep.subr.mxu0 0.0
    %7732 = vmatpush1.msra.mxu0 0.0
    %7733 = vmatprep.subr.mxu0 0.0
    %7734 = vmatpush1.msra.mxu0 0.0
    %7735 = vmatprep.subr.mxu0 0.0
    %7736 = vmatpush1.msra.mxu0 0.0
    %7737 = vmatprep.subr.mxu0 0.0
    %7738 = vmatpush1.msra.mxu0 0.0
    %7739 = vmatprep.subr.mxu0 0.0
    %7740 = vmatpush1.msra.mxu0 0.0
    %7741 = vmatprep.subr.mxu0 0.0
    %7742 = vmatpush1.msra.mxu0 0.0
    %7743 = vmatprep.subr.mxu0 0.0
    %7744 = vmatpush1.msra.mxu0 0.0
    %7745 = vmatprep.subr.mxu0 0.0
    %7746 = vmatpush1.msra.mxu0 0.0
    %7747 = vmatprep.subr.mxu0 0.0
    %7748 = vmatpush1.msra.mxu0 0.0
    %7749 = vmatprep.subr.mxu0 0.0
    %7750 = vmatpush1.msra.mxu0 0.0
    %7751 = vmatprep.subr.mxu0 0.0
    %7752 = vmatpush1.msra.mxu0 0.0
    %7753 = vmatprep.subr.mxu0 0.0
    %7754 = vmatpush1.msra.mxu0 0.0
    %7755 = vmatprep.subr.mxu0 0.0
    %7756 = vmatpush1.msra.mxu0 0.0
    %7757 = vmatprep.subr.mxu0 0.0
    %7758 = vmatpush1.msra.mxu0 0.0
    %7759 = vmatprep.subr.mxu0 0.0
    %7760 = vmatpush1.msra.mxu0 0.0
    %7761 = vmatprep.mubr.f32.mxu0 0.0
    %7762 = vmatmul.mubr.f32.gmra.mrb[0].mxu0 %v7025
    %v7763 = vpop.f32.mrb[0].mxu0
    %v7764 = vadd.f32 0.0, %v7763
    %v7765 = vpop.f32.mrb[0].mxu0
    %v7766 = vadd.f32 0.0, %v7765
    %7767 = vmatprep.mubr.f32.mxu0 0.0
    %7768 = vmatmul.mubr.f32.gmra.mrb[0].mxu0 %v7028
    %v7769 = vpop.f32.mrb[0].mxu0
    %v7770 = vadd.f32 0.0, %v7769
    %v7771 = vpop.f32.mrb[0].mxu0
    %v7772 = vadd.f32 0.0, %v7771
    %7773 = vmatprep.mubr.f32.mxu0 0.0
    %7774 = vmatmul.mubr.f32.gmra.mrb[0].mxu0 %v7031
    %v7775 = vpop.f32.mrb[0].mxu0
    %v7776 = vadd.f32 0.0, %v7775
    %v7777 = vpop.f32.mrb[0].mxu0
    %v7778 = vadd.f32 0.0, %v7777
    %7779 = vdwg.mxu0
    %7780 = vmatprep.subr.mxu0 %v6963
    %7781 = vmatpush1.msra.mxu0 %v6962
    %7782 = vmatprep.subr.mxu0 %v6983
    %7783 = vmatpush1.msra.mxu0 %v6982
    %7784 = vmatprep.subr.mxu0 %v7003
    %7785 = vmatpush1.msra.mxu0 %v7002
    %7786 = vmatprep.subr.mxu0 %v7023
    %7787 = vmatpush1.msra.mxu0 %v7022
    %7788 = vmatprep.subr.mxu0 0.0
    %7789 = vmatpush1.msra.mxu0 0.0
    %7790 = vmatprep.subr.mxu0 0.0
    %7791 = vmatpush1.msra.mxu0 0.0
    %7792 = vmatprep.subr.mxu0 0.0
    %7793 = vmatpush1.msra.mxu0 0.0
    %7794 = vmatprep.subr.mxu0 0.0
    %7795 = vmatpush1.msra.mxu0 0.0
    %7796 = vmatprep.subr.mxu0 0.0
    %7797 = vmatpush1.msra.mxu0 0.0
    %7798 = vmatprep.subr.mxu0 0.0
    %7799 = vmatpush1.msra.mxu0 0.0
    %7800 = vmatprep.subr.mxu0 0.0
    %7801 = vmatpush1.msra.mxu0 0.0
    %7802 = vmatprep.subr.mxu0 0.0
    %7803 = vmatpush1.msra.mxu0 0.0
    %7804 = vmatprep.subr.mxu0 0.0
    %7805 = vmatpush1.msra.mxu0 0.0
    %7806 = vmatprep.subr.mxu0 0.0
    %7807 = vmatpush1.msra.mxu0 0.0
    %7808 = vmatprep.subr.mxu0 0.0
    %7809 = vmatpush1.msra.mxu0 0.0
    %7810 = vmatprep.subr.mxu0 0.0
    %7811 = vmatpush1.msra.mxu0 0.0
    %7812 = vmatprep.subr.mxu0 0.0
    %7813 = vmatpush1.msra.mxu0 0.0
    %7814 = vmatprep.subr.mxu0 0.0
    %7815 = vmatpush1.msra.mxu0 0.0
    %7816 = vmatprep.subr.mxu0 0.0
    %7817 = vmatpush1.msra.mxu0 0.0
    %7818 = vmatprep.subr.mxu0 0.0
    %7819 = vmatpush1.msra.mxu0 0.0
    %7820 = vmatprep.subr.mxu0 0.0
    %7821 = vmatpush1.msra.mxu0 0.0
    %7822 = vmatprep.subr.mxu0 0.0
    %7823 = vmatpush1.msra.mxu0 0.0
    %7824 = vmatprep.subr.mxu0 0.0
    %7825 = vmatpush1.msra.mxu0 0.0
    %7826 = vmatprep.subr.mxu0 0.0
    %7827 = vmatpush1.msra.mxu0 0.0
    %7828 = vmatprep.subr.mxu0 0.0
    %7829 = vmatpush1.msra.mxu0 0.0
    %7830 = vmatprep.subr.mxu0 0.0
    %7831 = vmatpush1.msra.mxu0 0.0
    %7832 = vmatprep.subr.mxu0 0.0
    %7833 = vmatpush1.msra.mxu0 0.0
    %7834 = vmatprep.subr.mxu0 0.0
    %7835 = vmatpush1.msra.mxu0 0.0
    %7836 = vmatprep.subr.mxu0 0.0
    %7837 = vmatpush1.msra.mxu0 0.0
    %7838 = vmatprep.subr.mxu0 0.0
    %7839 = vmatpush1.msra.mxu0 0.0
    %7840 = vmatprep.subr.mxu0 0.0
    %7841 = vmatpush1.msra.mxu0 0.0
    %7842 = vmatprep.subr.mxu0 0.0
    %7843 = vmatpush1.msra.mxu0 0.0
    %7844 = vmatprep.mubr.f32.mxu0 0.0
    %7845 = vmatmul.mubr.f32.gmra.mrb[0].mxu0 %v7025
    %v7846 = vpop.f32.mrb[0].mxu0
    %v7847 = vadd.f32 0.0, %v7846
    %v7848 = vpop.f32.mrb[0].mxu0
    %v7849 = vadd.f32 0.0, %v7848
    %7850 = vmatprep.mubr.f32.mxu0 0.0
    %7851 = vmatmul.mubr.f32.gmra.mrb[0].mxu0 %v7028
    %v7852 = vpop.f32.mrb[0].mxu0
    %v7853 = vadd.f32 0.0, %v7852
    %v7854 = vpop.f32.mrb[0].mxu0
    %v7855 = vadd.f32 0.0, %v7854
    %7856 = vmatprep.mubr.f32.mxu0 0.0
    %7857 = vmatmul.mubr.f32.gmra.mrb[0].mxu0 %v7031
    %v7858 = vpop.f32.mrb[0].mxu0
    %v7859 = vadd.f32 0.0, %v7858
    %v7860 = vpop.f32.mrb[0].mxu0
    %v7861 = vadd.f32 0.0, %v7860
    %7862 = vdwg.mxu0
    %v7864 = vsel %vm320, %v6861, 0
    %v7867 = vsel %vm320, %v6862, 0
    %v7870 = vsel %vm320, %v6863, 0
    %7872 = vmatprep.subr.mxu0 %v6865
    %7873 = vmatpush1.msra.mxu0 %v6864
    %7874 = vmatprep.subr.mxu0 %v6885
    %7875 = vmatpush1.msra.mxu0 %v6884
    %7876 = vmatprep.subr.mxu0 %v6905
    %7877 = vmatpush1.msra.mxu0 %v6904
    %7878 = vmatprep.subr.mxu0 %v6925
    %7879 = vmatpush1.msra.mxu0 %v6924
    %7880 = vmatprep.subr.mxu0 0.0
    %7881 = vmatpush1.msra.mxu0 0.0
    %7882 = vmatprep.subr.mxu0 0.0
    %7883 = vmatpush1.msra.mxu0 0.0
    %7884 = vmatprep.subr.mxu0 0.0
    %7885 = vmatpush1.msra.mxu0 0.0
    %7886 = vmatprep.subr.mxu0 0.0
    %7887 = vmatpush1.msra.mxu0 0.0
    %7888 = vmatprep.subr.mxu0 0.0
    %7889 = vmatpush1.msra.mxu0 0.0
    %7890 = vmatprep.subr.mxu0 0.0
    %7891 = vmatpush1.msra.mxu0 0.0
    %7892 = vmatprep.subr.mxu0 0.0
    %7893 = vmatpush1.msra.mxu0 0.0
    %7894 = vmatprep.subr.mxu0 0.0
    %7895 = vmatpush1.msra.mxu0 0.0
    %7896 = vmatprep.subr.mxu0 0.0
    %7897 = vmatpush1.msra.mxu0 0.0
    %7898 = vmatprep.subr.mxu0 0.0
    %7899 = vmatpush1.msra.mxu0 0.0
    %7900 = vmatprep.subr.mxu0 0.0
    %7901 = vmatpush1.msra.mxu0 0.0
    %7902 = vmatprep.subr.mxu0 0.0
    %7903 = vmatpush1.msra.mxu0 0.0
    %7904 = vmatprep.subr.mxu0 0.0
    %7905 = vmatpush1.msra.mxu0 0.0
    %7906 = vmatprep.subr.mxu0 0.0
    %7907 = vmatpush1.msra.mxu0 0.0
    %7908 = vmatprep.subr.mxu0 0.0
    %7909 = vmatpush1.msra.mxu0 0.0
    %7910 = vmatprep.subr.mxu0 0.0
    %7911 = vmatpush1.msra.mxu0 0.0
    %7912 = vmatprep.subr.mxu0 0.0
    %7913 = vmatpush1.msra.mxu0 0.0
    %7914 = vmatprep.subr.mxu0 0.0
    %7915 = vmatpush1.msra.mxu0 0.0
    %7916 = vmatprep.subr.mxu0 0.0
    %7917 = vmatpush1.msra.mxu0 0.0
    %7918 = vmatprep.subr.mxu0 0.0
    %7919 = vmatpush1.msra.mxu0 0.0
    %7920 = vmatprep.subr.mxu0 0.0
    %7921 = vmatpush1.msra.mxu0 0.0
    %7922 = vmatprep.subr.mxu0 0.0
    %7923 = vmatpush1.msra.mxu0 0.0
    %7924 = vmatprep.subr.mxu0 0.0
    %7925 = vmatpush1.msra.mxu0 0.0
    %7926 = vmatprep.subr.mxu0 0.0
    %7927 = vmatpush1.msra.mxu0 0.0
    %7928 = vmatprep.subr.mxu0 0.0
    %7929 = vmatpush1.msra.mxu0 0.0
    %7930 = vmatprep.subr.mxu0 0.0
    %7931 = vmatpush1.msra.mxu0 0.0
    %7932 = vmatprep.subr.mxu0 0.0
    %7933 = vmatpush1.msra.mxu0 0.0
    %7934 = vmatprep.subr.mxu0 0.0
    %7935 = vmatpush1.msra.mxu0 0.0
    %7936 = vmatprep.mubr.f32.mxu0 0.0
    %7937 = vmatmul.mubr.f32.gmra.mrb[0].mxu0 %v7864
    %v7938 = vpop.f32.mrb[0].mxu0
    %v7939 = vadd.f32 %v7100, %v7938
    %v7940 = vpop.f32.mrb[0].mxu0
    %v7941 = vadd.f32 %v7102, %v7940
    %7942 = vmatprep.mubr.f32.mxu0 0.0
    %7943 = vmatmul.mubr.f32.gmra.mrb[0].mxu0 %v7867
    %v7944 = vpop.f32.mrb[0].mxu0
    %v7945 = vadd.f32 %v7106, %v7944
    %v7946 = vpop.f32.mrb[0].mxu0
    %v7947 = vadd.f32 %v7108, %v7946
    %7948 = vmatprep.mubr.f32.mxu0 0.0
    %7949 = vmatmul.mubr.f32.gmra.mrb[0].mxu0 %v7870
    %v7950 = vpop.f32.mrb[0].mxu0
    %v7951 = vadd.f32 %v7112, %v7950
    %v7952 = vpop.f32.mrb[0].mxu0
    %v7953 = vadd.f32 %v7114, %v7952
    %7954 = vdwg.mxu0
    %7955 = vmatprep.subr.mxu0 %v6867
    %7956 = vmatpush1.msra.mxu0 %v6866
    %7957 = vmatprep.subr.mxu0 %v6887
    %7958 = vmatpush1.msra.mxu0 %v6886
    %7959 = vmatprep.subr.mxu0 %v6907
    %7960 = vmatpush1.msra.mxu0 %v6906
    %7961 = vmatprep.subr.mxu0 %v6927
    %7962 = vmatpush1.msra.mxu0 %v6926
    %7963 = vmatprep.subr.mxu0 0.0
    %7964 = vmatpush1.msra.mxu0 0.0
    %7965 = vmatprep.subr.mxu0 0.0
    %7966 = vmatpush1.msra.mxu0 0.0
    %7967 = vmatprep.subr.mxu0 0.0
    %7968 = vmatpush1.msra.mxu0 0.0
    %7969 = vmatprep.subr.mxu0 0.0
    %7970 = vmatpush1.msra.mxu0 0.0
    %7971 = vmatprep.subr.mxu0 0.0
    %7972 = vmatpush1.msra.mxu0 0.0
    %7973 = vmatprep.subr.mxu0 0.0
    %7974 = vmatpush1.msra.mxu0 0.0
    %7975 = vmatprep.subr.mxu0 0.0
    %7976 = vmatpush1.msra.mxu0 0.0
    %7977 = vmatprep.subr.mxu0 0.0
    %7978 = vmatpush1.msra.mxu0 0.0
    %7979 = vmatprep.subr.mxu0 0.0
    %7980 = vmatpush1.msra.mxu0 0.0
    %7981 = vmatprep.subr.mxu0 0.0
    %7982 = vmatpush1.msra.mxu0 0.0
    %7983 = vmatprep.subr.mxu0 0.0
    %7984 = vmatpush1.msra.mxu0 0.0
    %7985 = vmatprep.subr.mxu0 0.0
    %7986 = vmatpush1.msra.mxu0 0.0
    %7987 = vmatprep.subr.mxu0 0.0
    %7988 = vmatpush1.msra.mxu0 0.0
    %7989 = vmatprep.subr.mxu0 0.0
    %7990 = vmatpush1.msra.mxu0 0.0
    %7991 = vmatprep.subr.mxu0 0.0
    %7992 = vmatpush1.msra.mxu0 0.0
    %7993 = vmatprep.subr.mxu0 0.0
    %7994 = vmatpush1.msra.mxu0 0.0
    %7995 = vmatprep.subr.mxu0 0.0
    %7996 = vmatpush1.msra.mxu0 0.0
    %7997 = vmatprep.subr.mxu0 0.0
    %7998 = vmatpush1.msra.mxu0 0.0
    %7999 = vmatprep.subr.mxu0 0.0
    %8000 = vmatpush1.msra.mxu0 0.0
    %8001 = vmatprep.subr.mxu0 0.0
    %8002 = vmatpush1.msra.mxu0 0.0
    %8003 = vmatprep.subr.mxu0 0.0
    %8004 = vmatpush1.msra.mxu0 0.0
    %8005 = vmatprep.subr.mxu0 0.0
    %8006 = vmatpush1.msra.mxu0 0.0
    %8007 = vmatprep.subr.mxu0 0.0
    %8008 = vmatpush1.msra.mxu0 0.0
    %8009 = vmatprep.subr.mxu0 0.0
    %8010 = vmatpush1.msra.mxu0 0.0
    %8011 = vmatprep.subr.mxu0 0.0
    %8012 = vmatpush1.msra.mxu0 0.0
    %8013 = vmatprep.subr.mxu0 0.0
    %8014 = vmatpush1.msra.mxu0 0.0
    %8015 = vmatprep.subr.mxu0 0.0
    %8016 = vmatpush1.msra.mxu0 0.0
    %8017 = vmatprep.subr.mxu0 0.0
    %8018 = vmatpush1.msra.mxu0 0.0
    %8019 = vmatprep.mubr.f32.mxu0 0.0
    %8020 = vmatmul.mubr.f32.gmra.mrb[0].mxu0 %v7864
    %v8021 = vpop.f32.mrb[0].mxu0
    %v8022 = vadd.f32 %v7183, %v8021
    %v8023 = vpop.f32.mrb[0].mxu0
    %v8024 = vadd.f32 %v7185, %v8023
    %8025 = vmatprep.mubr.f32.mxu0 0.0
    %8026 = vmatmul.mubr.f32.gmra.mrb[0].mxu0 %v7867
    %v8027 = vpop.f32.mrb[0].mxu0
    %v8028 = vadd.f32 %v7189, %v8027
    %v8029 = vpop.f32.mrb[0].mxu0
    %v8030 = vadd.f32 %v7191, %v8029
    %8031 = vmatprep.mubr.f32.mxu0 0.0
    %8032 = vmatmul.mubr.f32.gmra.mrb[0].mxu0 %v7870
    %v8033 = vpop.f32.mrb[0].mxu0
    %v8034 = vadd.f32 %v7195, %v8033
    %v8035 = vpop.f32.mrb[0].mxu0
    %v8036 = vadd.f32 %v7197, %v8035
    %8037 = vdwg.mxu0
    %8038 = vmatprep.subr.mxu0 %v6869
    %8039 = vmatpush1.msra.mxu0 %v6868
    %8040 = vmatprep.subr.mxu0 %v6889
    %8041 = vmatpush1.msra.mxu0 %v6888
    %8042 = vmatprep.subr.mxu0 %v6909
    %8043 = vmatpush1.msra.mxu0 %v6908
    %8044 = vmatprep.subr.mxu0 %v6929
    %8045 = vmatpush1.msra.mxu0 %v6928
    %8046 = vmatprep.subr.mxu0 0.0
    %8047 = vmatpush1.msra.mxu0 0.0
    %8048 = vmatprep.subr.mxu0 0.0
    %8049 = vmatpush1.msra.mxu0 0.0
    %8050 = vmatprep.subr.mxu0 0.0
    %8051 = vmatpush1.msra.mxu0 0.0
    %8052 = vmatprep.subr.mxu0 0.0
    %8053 = vmatpush1.msra.mxu0 0.0
    %8054 = vmatprep.subr.mxu0 0.0
    %8055 = vmatpush1.msra.mxu0 0.0
    %8056 = vmatprep.subr.mxu0 0.0
    %8057 = vmatpush1.msra.mxu0 0.0
    %8058 = vmatprep.subr.mxu0 0.0
    %8059 = vmatpush1.msra.mxu0 0.0
    %8060 = vmatprep.subr.mxu0 0.0
    %8061 = vmatpush1.msra.mxu0 0.0
    %8062 = vmatprep.subr.mxu0 0.0
    %8063 = vmatpush1.msra.mxu0 0.0
    %8064 = vmatprep.subr.mxu0 0.0
    %8065 = vmatpush1.msra.mxu0 0.0
    %8066 = vmatprep.subr.mxu0 0.0
    %8067 = vmatpush1.msra.mxu0 0.0
    %8068 = vmatprep.subr.mxu0 0.0
    %8069 = vmatpush1.msra.mxu0 0.0
    %8070 = vmatprep.subr.mxu0 0.0
    %8071 = vmatpush1.msra.mxu0 0.0
    %8072 = vmatprep.subr.mxu0 0.0
    %8073 = vmatpush1.msra.mxu0 0.0
    %8074 = vmatprep.subr.mxu0 0.0
    %8075 = vmatpush1.msra.mxu0 0.0
    %8076 = vmatprep.subr.mxu0 0.0
    %8077 = vmatpush1.msra.mxu0 0.0
    %8078 = vmatprep.subr.mxu0 0.0
    %8079 = vmatpush1.msra.mxu0 0.0
    %8080 = vmatprep.subr.mxu0 0.0
    %8081 = vmatpush1.msra.mxu0 0.0
    %8082 = vmatprep.subr.mxu0 0.0
    %8083 = vmatpush1.msra.mxu0 0.0
    %8084 = vmatprep.subr.mxu0 0.0
    %8085 = vmatpush1.msra.mxu0 0.0
    %8086 = vmatprep.subr.mxu0 0.0
    %8087 = vmatpush1.msra.mxu0 0.0
    %8088 = vmatprep.subr.mxu0 0.0
    %8089 = vmatpush1.msra.mxu0 0.0
    %8090 = vmatprep.subr.mxu0 0.0
    %8091 = vmatpush1.msra.mxu0 0.0
    %8092 = vmatprep.subr.mxu0 0.0
    %8093 = vmatpush1.msra.mxu0 0.0
    %8094 = vmatprep.subr.mxu0 0.0
    %8095 = vmatpush1.msra.mxu0 0.0
    %8096 = vmatprep.subr.mxu0 0.0
    %8097 = vmatpush1.msra.mxu0 0.0
    %8098 = vmatprep.subr.mxu0 0.0
    %8099 = vmatpush1.msra.mxu0 0.0
    %8100 = vmatprep.subr.mxu0 0.0
    %8101 = vmatpush1.msra.mxu0 0.0
    %8102 = vmatprep.mubr.f32.mxu0 0.0
    %8103 = vmatmul.mubr.f32.gmra.mrb[0].mxu0 %v7864
    %v8104 = vpop.f32.mrb[0].mxu0
    %v8105 = vadd.f32 %v7266, %v8104
    %v8106 = vpop.f32.mrb[0].mxu0
    %v8107 = vadd.f32 %v7268, %v8106
    %8108 = vmatprep.mubr.f32.mxu0 0.0
    %8109 = vmatmul.mubr.f32.gmra.mrb[0].mxu0 %v7867
    %v8110 = vpop.f32.mrb[0].mxu0
    %v8111 = vadd.f32 %v7272, %v8110
    %v8112 = vpop.f32.mrb[0].mxu0
    %v8113 = vadd.f32 %v7274, %v8112
    %8114 = vmatprep.mubr.f32.mxu0 0.0
    %8115 = vmatmul.mubr.f32.gmra.mrb[0].mxu0 %v7870
    %v8116 = vpop.f32.mrb[0].mxu0
    %v8117 = vadd.f32 %v7278, %v8116
    %v8118 = vpop.f32.mrb[0].mxu0
    %v8119 = vadd.f32 %v7280, %v8118
    %8120 = vdwg.mxu0
    %8121 = vmatprep.subr.mxu0 %v6871
    %8122 = vmatpush1.msra.mxu0 %v6870
    %8123 = vmatprep.subr.mxu0 %v6891
    %8124 = vmatpush1.msra.mxu0 %v6890
    %8125 = vmatprep.subr.mxu0 %v6911
    %8126 = vmatpush1.msra.mxu0 %v6910
    %8127 = vmatprep.subr.mxu0 %v6931
    %8128 = vmatpush1.msra.mxu0 %v6930
    %8129 = vmatprep.subr.mxu0 0.0
    %8130 = vmatpush1.msra.mxu0 0.0
    %8131 = vmatprep.subr.mxu0 0.0
    %8132 = vmatpush1.msra.mxu0 0.0
    %8133 = vmatprep.subr.mxu0 0.0
    %8134 = vmatpush1.msra.mxu0 0.0
    %8135 = vmatprep.subr.mxu0 0.0
    %8136 = vmatpush1.msra.mxu0 0.0
    %8137 = vmatprep.subr.mxu0 0.0
    %8138 = vmatpush1.msra.mxu0 0.0
    %8139 = vmatprep.subr.mxu0 0.0
    %8140 = vmatpush1.msra.mxu0 0.0
    %8141 = vmatprep.subr.mxu0 0.0
    %8142 = vmatpush1.msra.mxu0 0.0
    %8143 = vmatprep.subr.mxu0 0.0
    %8144 = vmatpush1.msra.mxu0 0.0
    %8145 = vmatprep.subr.mxu0 0.0
    %8146 = vmatpush1.msra.mxu0 0.0
    %8147 = vmatprep.subr.mxu0 0.0
    %8148 = vmatpush1.msra.mxu0 0.0
    %8149 = vmatprep.subr.mxu0 0.0
    %8150 = vmatpush1.msra.mxu0 0.0
    %8151 = vmatprep.subr.mxu0 0.0
    %8152 = vmatpush1.msra.mxu0 0.0
    %8153 = vmatprep.subr.mxu0 0.0
    %8154 = vmatpush1.msra.mxu0 0.0
    %8155 = vmatprep.subr.mxu0 0.0
    %8156 = vmatpush1.msra.mxu0 0.0
    %8157 = vmatprep.subr.mxu0 0.0
    %8158 = vmatpush1.msra.mxu0 0.0
    %8159 = vmatprep.subr.mxu0 0.0
    %8160 = vmatpush1.msra.mxu0 0.0
    %8161 = vmatprep.subr.mxu0 0.0
    %8162 = vmatpush1.msra.mxu0 0.0
    %8163 = vmatprep.subr.mxu0 0.0
    %8164 = vmatpush1.msra.mxu0 0.0
    %8165 = vmatprep.subr.mxu0 0.0
    %8166 = vmatpush1.msra.mxu0 0.0
    %8167 = vmatprep.subr.mxu0 0.0
    %8168 = vmatpush1.msra.mxu0 0.0
    %8169 = vmatprep.subr.mxu0 0.0
    %8170 = vmatpush1.msra.mxu0 0.0
    %8171 = vmatprep.subr.mxu0 0.0
    %8172 = vmatpush1.msra.mxu0 0.0
    %8173 = vmatprep.subr.mxu0 0.0
    %8174 = vmatpush1.msra.mxu0 0.0
    %8175 = vmatprep.subr.mxu0 0.0
    %8176 = vmatpush1.msra.mxu0 0.0
    %8177 = vmatprep.subr.mxu0 0.0
    %8178 = vmatpush1.msra.mxu0 0.0
    %8179 = vmatprep.subr.mxu0 0.0
    %8180 = vmatpush1.msra.mxu0 0.0
    %8181 = vmatprep.subr.mxu0 0.0
    %8182 = vmatpush1.msra.mxu0 0.0
    %8183 = vmatprep.subr.mxu0 0.0
    %8184 = vmatpush1.msra.mxu0 0.0
    %8185 = vmatprep.mubr.f32.mxu0 0.0
    %8186 = vmatmul.mubr.f32.gmra.mrb[0].mxu0 %v7864
    %v8187 = vpop.f32.mrb[0].mxu0
    %v8188 = vadd.f32 %v7349, %v8187
    %v8189 = vpop.f32.mrb[0].mxu0
    %v8190 = vadd.f32 %v7351, %v8189
    %8191 = vmatprep.mubr.f32.mxu0 0.0
    %8192 = vmatmul.mubr.f32.gmra.mrb[0].mxu0 %v7867
    %v8193 = vpop.f32.mrb[0].mxu0
    %v8194 = vadd.f32 %v7355, %v8193
    %v8195 = vpop.f32.mrb[0].mxu0
    %v8196 = vadd.f32 %v7357, %v8195
    %8197 = vmatprep.mubr.f32.mxu0 0.0
    %8198 = vmatmul.mubr.f32.gmra.mrb[0].mxu0 %v7870
    %v8199 = vpop.f32.mrb[0].mxu0
    %v8200 = vadd.f32 %v7361, %v8199
    %v8201 = vpop.f32.mrb[0].mxu0
    %v8202 = vadd.f32 %v7363, %v8201
    %8203 = vdwg.mxu0
    %8204 = vmatprep.subr.mxu0 %v6873
    %8205 = vmatpush1.msra.mxu0 %v6872
    %8206 = vmatprep.subr.mxu0 %v6893
    %8207 = vmatpush1.msra.mxu0 %v6892
    %8208 = vmatprep.subr.mxu0 %v6913
    %8209 = vmatpush1.msra.mxu0 %v6912
    %8210 = vmatprep.subr.mxu0 %v6933
    %8211 = vmatpush1.msra.mxu0 %v6932
    %8212 = vmatprep.subr.mxu0 0.0
    %8213 = vmatpush1.msra.mxu0 0.0
    %8214 = vmatprep.subr.mxu0 0.0
    %8215 = vmatpush1.msra.mxu0 0.0
    %8216 = vmatprep.subr.mxu0 0.0
    %8217 = vmatpush1.msra.mxu0 0.0
    %8218 = vmatprep.subr.mxu0 0.0
    %8219 = vmatpush1.msra.mxu0 0.0
    %8220 = vmatprep.subr.mxu0 0.0
    %8221 = vmatpush1.msra.mxu0 0.0
    %8222 = vmatprep.subr.mxu0 0.0
    %8223 = vmatpush1.msra.mxu0 0.0
    %8224 = vmatprep.subr.mxu0 0.0
    %8225 = vmatpush1.msra.mxu0 0.0
    %8226 = vmatprep.subr.mxu0 0.0
    %8227 = vmatpush1.msra.mxu0 0.0
    %8228 = vmatprep.subr.mxu0 0.0
    %8229 = vmatpush1.msra.mxu0 0.0
    %8230 = vmatprep.subr.mxu0 0.0
    %8231 = vmatpush1.msra.mxu0 0.0
    %8232 = vmatprep.subr.mxu0 0.0
    %8233 = vmatpush1.msra.mxu0 0.0
    %8234 = vmatprep.subr.mxu0 0.0
    %8235 = vmatpush1.msra.mxu0 0.0
    %8236 = vmatprep.subr.mxu0 0.0
    %8237 = vmatpush1.msra.mxu0 0.0
    %8238 = vmatprep.subr.mxu0 0.0
    %8239 = vmatpush1.msra.mxu0 0.0
    %8240 = vmatprep.subr.mxu0 0.0
    %8241 = vmatpush1.msra.mxu0 0.0
    %8242 = vmatprep.subr.mxu0 0.0
    %8243 = vmatpush1.msra.mxu0 0.0
    %8244 = vmatprep.subr.mxu0 0.0
    %8245 = vmatpush1.msra.mxu0 0.0
    %8246 = vmatprep.subr.mxu0 0.0
    %8247 = vmatpush1.msra.mxu0 0.0
    %8248 = vmatprep.subr.mxu0 0.0
    %8249 = vmatpush1.msra.mxu0 0.0
    %8250 = vmatprep.subr.mxu0 0.0
    %8251 = vmatpush1.msra.mxu0 0.0
    %8252 = vmatprep.subr.mxu0 0.0
    %8253 = vmatpush1.msra.mxu0 0.0
    %8254 = vmatprep.subr.mxu0 0.0
    %8255 = vmatpush1.msra.mxu0 0.0
    %8256 = vmatprep.subr.mxu0 0.0
    %8257 = vmatpush1.msra.mxu0 0.0
    %8258 = vmatprep.subr.mxu0 0.0
    %8259 = vmatpush1.msra.mxu0 0.0
    %8260 = vmatprep.subr.mxu0 0.0
    %8261 = vmatpush1.msra.mxu0 0.0
    %8262 = vmatprep.subr.mxu0 0.0
    %8263 = vmatpush1.msra.mxu0 0.0
    %8264 = vmatprep.subr.mxu0 0.0
    %8265 = vmatpush1.msra.mxu0 0.0
    %8266 = vmatprep.subr.mxu0 0.0
    %8267 = vmatpush1.msra.mxu0 0.0
    %8268 = vmatprep.mubr.f32.mxu0 0.0
    %8269 = vmatmul.mubr.f32.gmra.mrb[0].mxu0 %v7864
    %v8270 = vpop.f32.mrb[0].mxu0
    %v8271 = vadd.f32 %v7432, %v8270
    %v8272 = vpop.f32.mrb[0].mxu0
    %v8273 = vadd.f32 %v7434, %v8272
    %8274 = vmatprep.mubr.f32.mxu0 0.0
    %8275 = vmatmul.mubr.f32.gmra.mrb[0].mxu0 %v7867
    %v8276 = vpop.f32.mrb[0].mxu0
    %v8277 = vadd.f32 %v7438, %v8276
    %v8278 = vpop.f32.mrb[0].mxu0
    %v8279 = vadd.f32 %v7440, %v8278
    %8280 = vmatprep.mubr.f32.mxu0 0.0
    %8281 = vmatmul.mubr.f32.gmra.mrb[0].mxu0 %v7870
    %v8282 = vpop.f32.mrb[0].mxu0
    %v8283 = vadd.f32 %v7444, %v8282
    %v8284 = vpop.f32.mrb[0].mxu0
    %v8285 = vadd.f32 %v7446, %v8284
    %8286 = vdwg.mxu0
    %8287 = vmatprep.subr.mxu0 %v6875
    %8288 = vmatpush1.msra.mxu0 %v6874
    %8289 = vmatprep.subr.mxu0 %v6895
    %8290 = vmatpush1.msra.mxu0 %v6894
    %8291 = vmatprep.subr.mxu0 %v6915
    %8292 = vmatpush1.msra.mxu0 %v6914
    %8293 = vmatprep.subr.mxu0 %v6935
    %8294 = vmatpush1.msra.mxu0 %v6934
    %8295 = vmatprep.subr.mxu0 0.0
    %8296 = vmatpush1.msra.mxu0 0.0
    %8297 = vmatprep.subr.mxu0 0.0
    %8298 = vmatpush1.msra.mxu0 0.0
    %8299 = vmatprep.subr.mxu0 0.0
    %8300 = vmatpush1.msra.mxu0 0.0
    %8301 = vmatprep.subr.mxu0 0.0
    %8302 = vmatpush1.msra.mxu0 0.0
    %8303 = vmatprep.subr.mxu0 0.0
    %8304 = vmatpush1.msra.mxu0 0.0
    %8305 = vmatprep.subr.mxu0 0.0
    %8306 = vmatpush1.msra.mxu0 0.0
    %8307 = vmatprep.subr.mxu0 0.0
    %8308 = vmatpush1.msra.mxu0 0.0
    %8309 = vmatprep.subr.mxu0 0.0
    %8310 = vmatpush1.msra.mxu0 0.0
    %8311 = vmatprep.subr.mxu0 0.0
    %8312 = vmatpush1.msra.mxu0 0.0
    %8313 = vmatprep.subr.mxu0 0.0
    %8314 = vmatpush1.msra.mxu0 0.0
    %8315 = vmatprep.subr.mxu0 0.0
    %8316 = vmatpush1.msra.mxu0 0.0
    %8317 = vmatprep.subr.mxu0 0.0
    %8318 = vmatpush1.msra.mxu0 0.0
    %8319 = vmatprep.subr.mxu0 0.0
    %8320 = vmatpush1.msra.mxu0 0.0
    %8321 = vmatprep.subr.mxu0 0.0
    %8322 = vmatpush1.msra.mxu0 0.0
    %8323 = vmatprep.subr.mxu0 0.0
    %8324 = vmatpush1.msra.mxu0 0.0
    %8325 = vmatprep.subr.mxu0 0.0
    %8326 = vmatpush1.msra.mxu0 0.0
    %8327 = vmatprep.subr.mxu0 0.0
    %8328 = vmatpush1.msra.mxu0 0.0
    %8329 = vmatprep.subr.mxu0 0.0
    %8330 = vmatpush1.msra.mxu0 0.0
    %8331 = vmatprep.subr.mxu0 0.0
    %8332 = vmatpush1.msra.mxu0 0.0
    %8333 = vmatprep.subr.mxu0 0.0
    %8334 = vmatpush1.msra.mxu0 0.0
    %8335 = vmatprep.subr.mxu0 0.0
    %8336 = vmatpush1.msra.mxu0 0.0
    %8337 = vmatprep.subr.mxu0 0.0
    %8338 = vmatpush1.msra.mxu0 0.0
    %8339 = vmatprep.subr.mxu0 0.0
    %8340 = vmatpush1.msra.mxu0 0.0
    %8341 = vmatprep.subr.mxu0 0.0
    %8342 = vmatpush1.msra.mxu0 0.0
    %8343 = vmatprep.subr.mxu0 0.0
    %8344 = vmatpush1.msra.mxu0 0.0
    %8345 = vmatprep.subr.mxu0 0.0
    %8346 = vmatpush1.msra.mxu0 0.0
    %8347 = vmatprep.subr.mxu0 0.0
    %8348 = vmatpush1.msra.mxu0 0.0
    %8349 = vmatprep.subr.mxu0 0.0
    %8350 = vmatpush1.msra.mxu0 0.0
    %8351 = vmatprep.mubr.f32.mxu0 0.0
    %8352 = vmatmul.mubr.f32.gmra.mrb[0].mxu0 %v7864
    %v8353 = vpop.f32.mrb[0].mxu0
    %v8354 = vadd.f32 %v7515, %v8353
    %v8355 = vpop.f32.mrb[0].mxu0
    %v8356 = vadd.f32 %v7517, %v8355
    %8357 = vmatprep.mubr.f32.mxu0 0.0
    %8358 = vmatmul.mubr.f32.gmra.mrb[0].mxu0 %v7867
    %v8359 = vpop.f32.mrb[0].mxu0
    %v8360 = vadd.f32 %v7521, %v8359
    %v8361 = vpop.f32.mrb[0].mxu0
    %v8362 = vadd.f32 %v7523, %v8361
    %8363 = vmatprep.mubr.f32.mxu0 0.0
    %8364 = vmatmul.mubr.f32.gmra.mrb[0].mxu0 %v7870
    %v8365 = vpop.f32.mrb[0].mxu0
    %v8366 = vadd.f32 %v7527, %v8365
    %v8367 = vpop.f32.mrb[0].mxu0
    %v8368 = vadd.f32 %v7529, %v8367
    %8369 = vdwg.mxu0
    %8370 = vmatprep.subr.mxu0 %v6877
    %8371 = vmatpush1.msra.mxu0 %v6876
    %8372 = vmatprep.subr.mxu0 %v6897
    %8373 = vmatpush1.msra.mxu0 %v6896
    %8374 = vmatprep.subr.mxu0 %v6917
    %8375 = vmatpush1.msra.mxu0 %v6916
    %8376 = vmatprep.subr.mxu0 %v6937
    %8377 = vmatpush1.msra.mxu0 %v6936
    %8378 = vmatprep.subr.mxu0 0.0
    %8379 = vmatpush1.msra.mxu0 0.0
    %8380 = vmatprep.subr.mxu0 0.0
    %8381 = vmatpush1.msra.mxu0 0.0
    %8382 = vmatprep.subr.mxu0 0.0
    %8383 = vmatpush1.msra.mxu0 0.0
    %8384 = vmatprep.subr.mxu0 0.0
    %8385 = vmatpush1.msra.mxu0 0.0
    %8386 = vmatprep.subr.mxu0 0.0
    %8387 = vmatpush1.msra.mxu0 0.0
    %8388 = vmatprep.subr.mxu0 0.0
    %8389 = vmatpush1.msra.mxu0 0.0
    %8390 = vmatprep.subr.mxu0 0.0
    %8391 = vmatpush1.msra.mxu0 0.0
    %8392 = vmatprep.subr.mxu0 0.0
    %8393 = vmatpush1.msra.mxu0 0.0
    %8394 = vmatprep.subr.mxu0 0.0
    %8395 = vmatpush1.msra.mxu0 0.0
    %8396 = vmatprep.subr.mxu0 0.0
    %8397 = vmatpush1.msra.mxu0 0.0
    %8398 = vmatprep.subr.mxu0 0.0
    %8399 = vmatpush1.msra.mxu0 0.0
    %8400 = vmatprep.subr.mxu0 0.0
    %8401 = vmatpush1.msra.mxu0 0.0
    %8402 = vmatprep.subr.mxu0 0.0
    %8403 = vmatpush1.msra.mxu0 0.0
    %8404 = vmatprep.subr.mxu0 0.0
    %8405 = vmatpush1.msra.mxu0 0.0
    %8406 = vmatprep.subr.mxu0 0.0
    %8407 = vmatpush1.msra.mxu0 0.0
    %8408 = vmatprep.subr.mxu0 0.0
    %8409 = vmatpush1.msra.mxu0 0.0
    %8410 = vmatprep.subr.mxu0 0.0
    %8411 = vmatpush1.msra.mxu0 0.0
    %8412 = vmatprep.subr.mxu0 0.0
    %8413 = vmatpush1.msra.mxu0 0.0
    %8414 = vmatprep.subr.mxu0 0.0
    %8415 = vmatpush1.msra.mxu0 0.0
    %8416 = vmatprep.subr.mxu0 0.0
    %8417 = vmatpush1.msra.mxu0 0.0
    %8418 = vmatprep.subr.mxu0 0.0
    %8419 = vmatpush1.msra.mxu0 0.0
    %8420 = vmatprep.subr.mxu0 0.0
    %8421 = vmatpush1.msra.mxu0 0.0
    %8422 = vmatprep.subr.mxu0 0.0
    %8423 = vmatpush1.msra.mxu0 0.0
    %8424 = vmatprep.subr.mxu0 0.0
    %8425 = vmatpush1.msra.mxu0 0.0
    %8426 = vmatprep.subr.mxu0 0.0
    %8427 = vmatpush1.msra.mxu0 0.0
    %8428 = vmatprep.subr.mxu0 0.0
    %8429 = vmatpush1.msra.mxu0 0.0
    %8430 = vmatprep.subr.mxu0 0.0
    %8431 = vmatpush1.msra.mxu0 0.0
    %8432 = vmatprep.subr.mxu0 0.0
    %8433 = vmatpush1.msra.mxu0 0.0
    %8434 = vmatprep.mubr.f32.mxu0 0.0
    %8435 = vmatmul.mubr.f32.gmra.mrb[0].mxu0 %v7864
    %v8436 = vpop.f32.mrb[0].mxu0
    %v8437 = vadd.f32 %v7598, %v8436
    %v8438 = vpop.f32.mrb[0].mxu0
    %v8439 = vadd.f32 %v7600, %v8438
    %8440 = vmatprep.mubr.f32.mxu0 0.0
    %8441 = vmatmul.mubr.f32.gmra.mrb[0].mxu0 %v7867
    %v8442 = vpop.f32.mrb[0].mxu0
    %v8443 = vadd.f32 %v7604, %v8442
    %v8444 = vpop.f32.mrb[0].mxu0
    %v8445 = vadd.f32 %v7606, %v8444
    %8446 = vmatprep.mubr.f32.mxu0 0.0
    %8447 = vmatmul.mubr.f32.gmra.mrb[0].mxu0 %v7870
    %v8448 = vpop.f32.mrb[0].mxu0
    %v8449 = vadd.f32 %v7610, %v8448
    %v8450 = vpop.f32.mrb[0].mxu0
    %v8451 = vadd.f32 %v7612, %v8450
    %8452 = vdwg.mxu0
    %8453 = vmatprep.subr.mxu0 %v6879
    %8454 = vmatpush1.msra.mxu0 %v6878
    %8455 = vmatprep.subr.mxu0 %v6899
    %8456 = vmatpush1.msra.mxu0 %v6898
    %8457 = vmatprep.subr.mxu0 %v6919
    %8458 = vmatpush1.msra.mxu0 %v6918
    %8459 = vmatprep.subr.mxu0 %v6939
    %8460 = vmatpush1.msra.mxu0 %v6938
    %8461 = vmatprep.subr.mxu0 0.0
    %8462 = vmatpush1.msra.mxu0 0.0
    %8463 = vmatprep.subr.mxu0 0.0
    %8464 = vmatpush1.msra.mxu0 0.0
    %8465 = vmatprep.subr.mxu0 0.0
    %8466 = vmatpush1.msra.mxu0 0.0
    %8467 = vmatprep.subr.mxu0 0.0
    %8468 = vmatpush1.msra.mxu0 0.0
    %8469 = vmatprep.subr.mxu0 0.0
    %8470 = vmatpush1.msra.mxu0 0.0
    %8471 = vmatprep.subr.mxu0 0.0
    %8472 = vmatpush1.msra.mxu0 0.0
    %8473 = vmatprep.subr.mxu0 0.0
    %8474 = vmatpush1.msra.mxu0 0.0
    %8475 = vmatprep.subr.mxu0 0.0
    %8476 = vmatpush1.msra.mxu0 0.0
    %8477 = vmatprep.subr.mxu0 0.0
    %8478 = vmatpush1.msra.mxu0 0.0
    %8479 = vmatprep.subr.mxu0 0.0
    %8480 = vmatpush1.msra.mxu0 0.0
    %8481 = vmatprep.subr.mxu0 0.0
    %8482 = vmatpush1.msra.mxu0 0.0
    %8483 = vmatprep.subr.mxu0 0.0
    %8484 = vmatpush1.msra.mxu0 0.0
    %8485 = vmatprep.subr.mxu0 0.0
    %8486 = vmatpush1.msra.mxu0 0.0
    %8487 = vmatprep.subr.mxu0 0.0
    %8488 = vmatpush1.msra.mxu0 0.0
    %8489 = vmatprep.subr.mxu0 0.0
    %8490 = vmatpush1.msra.mxu0 0.0
    %8491 = vmatprep.subr.mxu0 0.0
    %8492 = vmatpush1.msra.mxu0 0.0
    %8493 = vmatprep.subr.mxu0 0.0
    %8494 = vmatpush1.msra.mxu0 0.0
    %8495 = vmatprep.subr.mxu0 0.0
    %8496 = vmatpush1.msra.mxu0 0.0
    %8497 = vmatprep.subr.mxu0 0.0
    %8498 = vmatpush1.msra.mxu0 0.0
    %8499 = vmatprep.subr.mxu0 0.0
    %8500 = vmatpush1.msra.mxu0 0.0
    %8501 = vmatprep.subr.mxu0 0.0
    %8502 = vmatpush1.msra.mxu0 0.0
    %8503 = vmatprep.subr.mxu0 0.0
    %8504 = vmatpush1.msra.mxu0 0.0
    %8505 = vmatprep.subr.mxu0 0.0
    %8506 = vmatpush1.msra.mxu0 0.0
    %8507 = vmatprep.subr.mxu0 0.0
    %8508 = vmatpush1.msra.mxu0 0.0
    %8509 = vmatprep.subr.mxu0 0.0
    %8510 = vmatpush1.msra.mxu0 0.0
    %8511 = vmatprep.subr.mxu0 0.0
    %8512 = vmatpush1.msra.mxu0 0.0
    %8513 = vmatprep.subr.mxu0 0.0
    %8514 = vmatpush1.msra.mxu0 0.0
    %8515 = vmatprep.subr.mxu0 0.0
    %8516 = vmatpush1.msra.mxu0 0.0
    %8517 = vmatprep.mubr.f32.mxu0 0.0
    %8518 = vmatmul.mubr.f32.gmra.mrb[0].mxu0 %v7864
    %v8519 = vpop.f32.mrb[0].mxu0
    %v8520 = vadd.f32 %v7681, %v8519
    %v8521 = vpop.f32.mrb[0].mxu0
    %v8522 = vadd.f32 %v7683, %v8521
    %8523 = vmatprep.mubr.f32.mxu0 0.0
    %8524 = vmatmul.mubr.f32.gmra.mrb[0].mxu0 %v7867
    %v8525 = vpop.f32.mrb[0].mxu0
    %v8526 = vadd.f32 %v7687, %v8525
    %v8527 = vpop.f32.mrb[0].mxu0
    %v8528 = vadd.f32 %v7689, %v8527
    %8529 = vmatprep.mubr.f32.mxu0 0.0
    %8530 = vmatmul.mubr.f32.gmra.mrb[0].mxu0 %v7870
    %v8531 = vpop.f32.mrb[0].mxu0
    %v8532 = vadd.f32 %v7693, %v8531
    %v8533 = vpop.f32.mrb[0].mxu0
    %v8534 = vadd.f32 %v7695, %v8533
    %8535 = vdwg.mxu0
    %8536 = vmatprep.subr.mxu0 %v6881
    %8537 = vmatpush1.msra.mxu0 %v6880
    %8538 = vmatprep.subr.mxu0 %v6901
    %8539 = vmatpush1.msra.mxu0 %v6900
    %8540 = vmatprep.subr.mxu0 %v6921
    %8541 = vmatpush1.msra.mxu0 %v6920
    %8542 = vmatprep.subr.mxu0 %v6941
    %8543 = vmatpush1.msra.mxu0 %v6940
    %8544 = vmatprep.subr.mxu0 0.0
    %8545 = vmatpush1.msra.mxu0 0.0
    %8546 = vmatprep.subr.mxu0 0.0
    %8547 = vmatpush1.msra.mxu0 0.0
    %8548 = vmatprep.subr.mxu0 0.0
    %8549 = vmatpush1.msra.mxu0 0.0
    %8550 = vmatprep.subr.mxu0 0.0
    %8551 = vmatpush1.msra.mxu0 0.0
    %8552 = vmatprep.subr.mxu0 0.0
    %8553 = vmatpush1.msra.mxu0 0.0
    %8554 = vmatprep.subr.mxu0 0.0
    %8555 = vmatpush1.msra.mxu0 0.0
    %8556 = vmatprep.subr.mxu0 0.0
    %8557 = vmatpush1.msra.mxu0 0.0
    %8558 = vmatprep.subr.mxu0 0.0
    %8559 = vmatpush1.msra.mxu0 0.0
    %8560 = vmatprep.subr.mxu0 0.0
    %8561 = vmatpush1.msra.mxu0 0.0
    %8562 = vmatprep.subr.mxu0 0.0
    %8563 = vmatpush1.msra.mxu0 0.0
    %8564 = vmatprep.subr.mxu0 0.0
    %8565 = vmatpush1.msra.mxu0 0.0
    %8566 = vmatprep.subr.mxu0 0.0
    %8567 = vmatpush1.msra.mxu0 0.0
    %8568 = vmatprep.subr.mxu0 0.0
    %8569 = vmatpush1.msra.mxu0 0.0
    %8570 = vmatprep.subr.mxu0 0.0
    %8571 = vmatpush1.msra.mxu0 0.0
    %8572 = vmatprep.subr.mxu0 0.0
    %8573 = vmatpush1.msra.mxu0 0.0
    %8574 = vmatprep.subr.mxu0 0.0
    %8575 = vmatpush1.msra.mxu0 0.0
    %8576 = vmatprep.subr.mxu0 0.0
    %8577 = vmatpush1.msra.mxu0 0.0
    %8578 = vmatprep.subr.mxu0 0.0
    %8579 = vmatpush1.msra.mxu0 0.0
    %8580 = vmatprep.subr.mxu0 0.0
    %8581 = vmatpush1.msra.mxu0 0.0
    %8582 = vmatprep.subr.mxu0 0.0
    %8583 = vmatpush1.msra.mxu0 0.0
    %8584 = vmatprep.subr.mxu0 0.0
    %8585 = vmatpush1.msra.mxu0 0.0
    %8586 = vmatprep.subr.mxu0 0.0
    %8587 = vmatpush1.msra.mxu0 0.0
    %8588 = vmatprep.subr.mxu0 0.0
    %8589 = vmatpush1.msra.mxu0 0.0
    %8590 = vmatprep.subr.mxu0 0.0
    %8591 = vmatpush1.msra.mxu0 0.0
    %8592 = vmatprep.subr.mxu0 0.0
    %8593 = vmatpush1.msra.mxu0 0.0
    %8594 = vmatprep.subr.mxu0 0.0
    %8595 = vmatpush1.msra.mxu0 0.0
    %8596 = vmatprep.subr.mxu0 0.0
    %8597 = vmatpush1.msra.mxu0 0.0
    %8598 = vmatprep.subr.mxu0 0.0
    %8599 = vmatpush1.msra.mxu0 0.0
    %8600 = vmatprep.mubr.f32.mxu0 0.0
    %8601 = vmatmul.mubr.f32.gmra.mrb[0].mxu0 %v7864
    %v8602 = vpop.f32.mrb[0].mxu0
    %v8603 = vadd.f32 %v7764, %v8602
    %v8604 = vpop.f32.mrb[0].mxu0
    %v8605 = vadd.f32 %v7766, %v8604
    %8606 = vmatprep.mubr.f32.mxu0 0.0
    %8607 = vmatmul.mubr.f32.gmra.mrb[0].mxu0 %v7867
    %v8608 = vpop.f32.mrb[0].mxu0
    %v8609 = vadd.f32 %v7770, %v8608
    %v8610 = vpop.f32.mrb[0].mxu0
    %v8611 = vadd.f32 %v7772, %v8610
    %8612 = vmatprep.mubr.f32.mxu0 0.0
    %8613 = vmatmul.mubr.f32.gmra.mrb[0].mxu0 %v7870
    %v8614 = vpop.f32.mrb[0].mxu0
    %v8615 = vadd.f32 %v7776, %v8614
    %v8616 = vpop.f32.mrb[0].mxu0
    %v8617 = vadd.f32 %v7778, %v8616
    %8618 = vdwg.mxu0
    %8619 = vmatprep.subr.mxu0 %v6883
    %8620 = vmatpush1.msra.mxu0 %v6882
    %8621 = vmatprep.subr.mxu0 %v6903
    %8622 = vmatpush1.msra.mxu0 %v6902
    %8623 = vmatprep.subr.mxu0 %v6923
    %8624 = vmatpush1.msra.mxu0 %v6922
    %8625 = vmatprep.subr.mxu0 %v6943
    %8626 = vmatpush1.msra.mxu0 %v6942
    %8627 = vmatprep.subr.mxu0 0.0
    %8628 = vmatpush1.msra.mxu0 0.0
    %8629 = vmatprep.subr.mxu0 0.0
    %8630 = vmatpush1.msra.mxu0 0.0
    %8631 = vmatprep.subr.mxu0 0.0
    %8632 = vmatpush1.msra.mxu0 0.0
    %8633 = vmatprep.subr.mxu0 0.0
    %8634 = vmatpush1.msra.mxu0 0.0
    %8635 = vmatprep.subr.mxu0 0.0
    %8636 = vmatpush1.msra.mxu0 0.0
    %8637 = vmatprep.subr.mxu0 0.0
    %8638 = vmatpush1.msra.mxu0 0.0
    %8639 = vmatprep.subr.mxu0 0.0
    %8640 = vmatpush1.msra.mxu0 0.0
    %8641 = vmatprep.subr.mxu0 0.0
    %8642 = vmatpush1.msra.mxu0 0.0
    %8643 = vmatprep.subr.mxu0 0.0
    %8644 = vmatpush1.msra.mxu0 0.0
    %8645 = vmatprep.subr.mxu0 0.0
    %8646 = vmatpush1.msra.mxu0 0.0
    %8647 = vmatprep.subr.mxu0 0.0
    %8648 = vmatpush1.msra.mxu0 0.0
    %8649 = vmatprep.subr.mxu0 0.0
    %8650 = vmatpush1.msra.mxu0 0.0
    %8651 = vmatprep.subr.mxu0 0.0
    %8652 = vmatpush1.msra.mxu0 0.0
    %8653 = vmatprep.subr.mxu0 0.0
    %8654 = vmatpush1.msra.mxu0 0.0
    %8655 = vmatprep.subr.mxu0 0.0
    %8656 = vmatpush1.msra.mxu0 0.0
    %8657 = vmatprep.subr.mxu0 0.0
    %8658 = vmatpush1.msra.mxu0 0.0
    %8659 = vmatprep.subr.mxu0 0.0
    %8660 = vmatpush1.msra.mxu0 0.0
    %8661 = vmatprep.subr.mxu0 0.0
    %8662 = vmatpush1.msra.mxu0 0.0
    %8663 = vmatprep.subr.mxu0 0.0
    %8664 = vmatpush1.msra.mxu0 0.0
    %8665 = vmatprep.subr.mxu0 0.0
    %8666 = vmatpush1.msra.mxu0 0.0
    %8667 = vmatprep.subr.mxu0 0.0
    %8668 = vmatpush1.msra.mxu0 0.0
    %8669 = vmatprep.subr.mxu0 0.0
    %8670 = vmatpush1.msra.mxu0 0.0
    %8671 = vmatprep.subr.mxu0 0.0
    %8672 = vmatpush1.msra.mxu0 0.0
    %8673 = vmatprep.subr.mxu0 0.0
    %8674 = vmatpush1.msra.mxu0 0.0
    %8675 = vmatprep.subr.mxu0 0.0
    %8676 = vmatpush1.msra.mxu0 0.0
    %8677 = vmatprep.subr.mxu0 0.0
    %8678 = vmatpush1.msra.mxu0 0.0
    %8679 = vmatprep.subr.mxu0 0.0
    %8680 = vmatpush1.msra.mxu0 0.0
    %8681 = vmatprep.subr.mxu0 0.0
    %8682 = vmatpush1.msra.mxu0 0.0
    %8683 = vmatprep.mubr.f32.mxu0 0.0
    %8684 = vmatmul.mubr.f32.gmra.mrb[0].mxu0 %v7864
    %v8685 = vpop.f32.mrb[0].mxu0
    %v8686 = vadd.f32 %v7847, %v8685
    %v8687 = vpop.f32.mrb[0].mxu0
    %v8688 = vadd.f32 %v7849, %v8687
    %8689 = vmatprep.mubr.f32.mxu0 0.0
    %8690 = vmatmul.mubr.f32.gmra.mrb[0].mxu0 %v7867
    %v8691 = vpop.f32.mrb[0].mxu0
    %v8692 = vadd.f32 %v7853, %v8691
    %v8693 = vpop.f32.mrb[0].mxu0
    %v8694 = vadd.f32 %v7855, %v8693
    %8695 = vmatprep.mubr.f32.mxu0 0.0
    %8696 = vmatmul.mubr.f32.gmra.mrb[0].mxu0 %v7870
    %v8697 = vpop.f32.mrb[0].mxu0
    %v8698 = vadd.f32 %v7859, %v8697
    %v8699 = vpop.f32.mrb[0].mxu0
    %v8700 = vadd.f32 %v7861, %v8699
    %8701 = vdwg.mxu0
    %v8702 = vld [vmem:[#allocation10] sm:$0x3]
    %v8703 = vld [vmem:[%s16] sm:$0x3]
    %v8705 = vlaneseq
    %v8706 = vshrl.u32 %v8705, 7
    %v8707 = vsub.s32 0, %v8706
    %v8708 = vrot.slane %v8703, %v8707
    %v8709 = vlaneseq
    %v8710 = vshrl.u32 %v8709, 7
    %v8711 = vsub.s32 1, %v8710
    %v8712 = vrot.slane %v8703, %v8711
    %v8716 = vsel %vm503, %v8702, 0
    %v8719 = vsel %vm513, %v7951, 0
    %v8722 = vsel %vm513, %v7953, 0
    %8724 = vmatprep.subr.mxu0 %v7941
    %8725 = vmatpush1.msra.mxu0 %v7939
    %8726 = vmatprep.subr.mxu0 %v7947
    %8727 = vmatpush1.msra.mxu0 %v7945
    %8728 = vmatprep.subr.mxu0 %v8722
    %8729 = vmatpush1.msra.mxu0 %v8719
    %8730 = vmatprep.subr.mxu0 0.0
    %8731 = vmatpush1.msra.mxu0 0.0
    %8732 = vmatprep.subr.mxu0 0.0
    %8733 = vmatpush1.msra.mxu0 0.0
    %8734 = vmatprep.subr.mxu0 0.0
    %8735 = vmatpush1.msra.mxu0 0.0
    %8736 = vmatprep.subr.mxu0 0.0
    %8737 = vmatpush1.msra.mxu0 0.0
    %8738 = vmatprep.subr.mxu0 0.0
    %8739 = vmatpush1.msra.mxu0 0.0
    %8740 = vmatprep.subr.mxu0 0.0
    %8741 = vmatpush1.msra.mxu0 0.0
    %8742 = vmatprep.subr.mxu0 0.0
    %8743 = vmatpush1.msra.mxu0 0.0
    %8744 = vmatprep.subr.mxu0 0.0
    %8745 = vmatpush1.msra.mxu0 0.0
    %8746 = vmatprep.subr.mxu0 0.0
    %8747 = vmatpush1.msra.mxu0 0.0
    %8748 = vmatprep.subr.mxu0 0.0
    %8749 = vmatpush1.msra.mxu0 0.0
    %8750 = vmatprep.subr.mxu0 0.0
    %8751 = vmatpush1.msra.mxu0 0.0
    %8752 = vmatprep.subr.mxu0 0.0
    %8753 = vmatpush1.msra.mxu0 0.0
    %8754 = vmatprep.subr.mxu0 0.0
    %8755 = vmatpush1.msra.mxu0 0.0
    %8756 = vmatprep.subr.mxu0 0.0
    %8757 = vmatpush1.msra.mxu0 0.0
    %8758 = vmatprep.subr.mxu0 0.0
    %8759 = vmatpush1.msra.mxu0 0.0
    %8760 = vmatprep.subr.mxu0 0.0
    %8761 = vmatpush1.msra.mxu0 0.0
    %8762 = vmatprep.subr.mxu0 0.0
    %8763 = vmatpush1.msra.mxu0 0.0
    %8764 = vmatprep.subr.mxu0 0.0
    %8765 = vmatpush1.msra.mxu0 0.0
    %8766 = vmatprep.subr.mxu0 0.0
    %8767 = vmatpush1.msra.mxu0 0.0
    %8768 = vmatprep.subr.mxu0 0.0
    %8769 = vmatpush1.msra.mxu0 0.0
    %8770 = vmatprep.subr.mxu0 0.0
    %8771 = vmatpush1.msra.mxu0 0.0
    %8772 = vmatprep.subr.mxu0 0.0
    %8773 = vmatpush1.msra.mxu0 0.0
    %8774 = vmatprep.subr.mxu0 0.0
    %8775 = vmatpush1.msra.mxu0 0.0
    %8776 = vmatprep.subr.mxu0 0.0
    %8777 = vmatpush1.msra.mxu0 0.0
    %8778 = vmatprep.subr.mxu0 0.0
    %8779 = vmatpush1.msra.mxu0 0.0
    %8780 = vmatprep.subr.mxu0 0.0
    %8781 = vmatpush1.msra.mxu0 0.0
    %8782 = vmatprep.subr.mxu0 0.0
    %8783 = vmatpush1.msra.mxu0 0.0
    %8784 = vmatprep.subr.mxu0 0.0
    %8785 = vmatpush1.msra.mxu0 0.0
    %8786 = vmatprep.subr.mxu0 0.0
    %8787 = vmatpush1.msra.mxu0 0.0
    %8788 = vmatprep.mubr.f32.mxu0 0.0
    %8789 = vmatmul.mubr.f32.gmra.mrb[0].mxu0 %v8716
    %v8790 = vpop.f32.mrb[0].mxu0
    %v8791 = vadd.f32 %v8708, %v8790
    %v8792 = vpop.f32.mrb[0].mxu0
    %v8793 = vadd.f32 %v8712, %v8792
    %8794 = vdwg.mxu0
    %s8795 = scalar_lea.vmem [#allocation10], 2
    %v8796 = vld [vmem:[%s8795] sm:$0x3]
    %v8798 = vsel %vm503, %v8796, 0
    %v8801 = vsel %vm513, %v8034, 0
    %v8804 = vsel %vm513, %v8036, 0
    %8806 = vmatprep.subr.mxu0 %v8024
    %8807 = vmatpush1.msra.mxu0 %v8022
    %8808 = vmatprep.subr.mxu0 %v8030
    %8809 = vmatpush1.msra.mxu0 %v8028
    %8810 = vmatprep.subr.mxu0 %v8804
    %8811 = vmatpush1.msra.mxu0 %v8801
    %8812 = vmatprep.subr.mxu0 0.0
    %8813 = vmatpush1.msra.mxu0 0.0
    %8814 = vmatprep.subr.mxu0 0.0
    %8815 = vmatpush1.msra.mxu0 0.0
    %8816 = vmatprep.subr.mxu0 0.0
    %8817 = vmatpush1.msra.mxu0 0.0
    %8818 = vmatprep.subr.mxu0 0.0
    %8819 = vmatpush1.msra.mxu0 0.0
    %8820 = vmatprep.subr.mxu0 0.0
    %8821 = vmatpush1.msra.mxu0 0.0
    %8822 = vmatprep.subr.mxu0 0.0
    %8823 = vmatpush1.msra.mxu0 0.0
    %8824 = vmatprep.subr.mxu0 0.0
    %8825 = vmatpush1.msra.mxu0 0.0
    %8826 = vmatprep.subr.mxu0 0.0
    %8827 = vmatpush1.msra.mxu0 0.0
    %8828 = vmatprep.subr.mxu0 0.0
    %8829 = vmatpush1.msra.mxu0 0.0
    %8830 = vmatprep.subr.mxu0 0.0
    %8831 = vmatpush1.msra.mxu0 0.0
    %8832 = vmatprep.subr.mxu0 0.0
    %8833 = vmatpush1.msra.mxu0 0.0
    %8834 = vmatprep.subr.mxu0 0.0
    %8835 = vmatpush1.msra.mxu0 0.0
    %8836 = vmatprep.subr.mxu0 0.0
    %8837 = vmatpush1.msra.mxu0 0.0
    %8838 = vmatprep.subr.mxu0 0.0
    %8839 = vmatpush1.msra.mxu0 0.0
    %8840 = vmatprep.subr.mxu0 0.0
    %8841 = vmatpush1.msra.mxu0 0.0
    %8842 = vmatprep.subr.mxu0 0.0
    %8843 = vmatpush1.msra.mxu0 0.0
    %8844 = vmatprep.subr.mxu0 0.0
    %8845 = vmatpush1.msra.mxu0 0.0
    %8846 = vmatprep.subr.mxu0 0.0
    %8847 = vmatpush1.msra.mxu0 0.0
    %8848 = vmatprep.subr.mxu0 0.0
    %8849 = vmatpush1.msra.mxu0 0.0
    %8850 = vmatprep.subr.mxu0 0.0
    %8851 = vmatpush1.msra.mxu0 0.0
    %8852 = vmatprep.subr.mxu0 0.0
    %8853 = vmatpush1.msra.mxu0 0.0
    %8854 = vmatprep.subr.mxu0 0.0
    %8855 = vmatpush1.msra.mxu0 0.0
    %8856 = vmatprep.subr.mxu0 0.0
    %8857 = vmatpush1.msra.mxu0 0.0
    %8858 = vmatprep.subr.mxu0 0.0
    %8859 = vmatpush1.msra.mxu0 0.0
    %8860 = vmatprep.subr.mxu0 0.0
    %8861 = vmatpush1.msra.mxu0 0.0
    %8862 = vmatprep.subr.mxu0 0.0
    %8863 = vmatpush1.msra.mxu0 0.0
    %8864 = vmatprep.subr.mxu0 0.0
    %8865 = vmatpush1.msra.mxu0 0.0
    %8866 = vmatprep.subr.mxu0 0.0
    %8867 = vmatpush1.msra.mxu0 0.0
    %8868 = vmatprep.subr.mxu0 0.0
    %8869 = vmatpush1.msra.mxu0 0.0
    %8870 = vmatprep.mubr.f32.mxu0 0.0
    %8871 = vmatmul.mubr.f32.gmra.mrb[0].mxu0 %v8798
    %v8872 = vpop.f32.mrb[0].mxu0
    %v8873 = vadd.f32 0.0, %v8872
    %v8874 = vpop.f32.mrb[0].mxu0
    %v8875 = vadd.f32 0.0, %v8874
    %8876 = vdwg.mxu0
    %v8877 = vadd.f32 %v8791, %v8873
    %v8878 = vadd.f32 %v8793, %v8875
    %s8879 = scalar_lea.vmem [#allocation10], 4
    %v8880 = vld [vmem:[%s8879] sm:$0x3]
    %v8882 = vsel %vm503, %v8880, 0
    %v8885 = vsel %vm513, %v8117, 0
    %v8888 = vsel %vm513, %v8119, 0
    %8890 = vmatprep.subr.mxu0 %v8107
    %8891 = vmatpush1.msra.mxu0 %v8105
    %8892 = vmatprep.subr.mxu0 %v8113
    %8893 = vmatpush1.msra.mxu0 %v8111
    %8894 = vmatprep.subr.mxu0 %v8888
    %8895 = vmatpush1.msra.mxu0 %v8885
    %8896 = vmatprep.subr.mxu0 0.0
    %8897 = vmatpush1.msra.mxu0 0.0
    %8898 = vmatprep.subr.mxu0 0.0
    %8899 = vmatpush1.msra.mxu0 0.0
    %8900 = vmatprep.subr.mxu0 0.0
    %8901 = vmatpush1.msra.mxu0 0.0
    %8902 = vmatprep.subr.mxu0 0.0
    %8903 = vmatpush1.msra.mxu0 0.0
    %8904 = vmatprep.subr.mxu0 0.0
    %8905 = vmatpush1.msra.mxu0 0.0
    %8906 = vmatprep.subr.mxu0 0.0
    %8907 = vmatpush1.msra.mxu0 0.0
    %8908 = vmatprep.subr.mxu0 0.0
    %8909 = vmatpush1.msra.mxu0 0.0
    %8910 = vmatprep.subr.mxu0 0.0
    %8911 = vmatpush1.msra.mxu0 0.0
    %8912 = vmatprep.subr.mxu0 0.0
    %8913 = vmatpush1.msra.mxu0 0.0
    %8914 = vmatprep.subr.mxu0 0.0
    %8915 = vmatpush1.msra.mxu0 0.0
    %8916 = vmatprep.subr.mxu0 0.0
    %8917 = vmatpush1.msra.mxu0 0.0
    %8918 = vmatprep.subr.mxu0 0.0
    %8919 = vmatpush1.msra.mxu0 0.0
    %8920 = vmatprep.subr.mxu0 0.0
    %8921 = vmatpush1.msra.mxu0 0.0
    %8922 = vmatprep.subr.mxu0 0.0
    %8923 = vmatpush1.msra.mxu0 0.0
    %8924 = vmatprep.subr.mxu0 0.0
    %8925 = vmatpush1.msra.mxu0 0.0
    %8926 = vmatprep.subr.mxu0 0.0
    %8927 = vmatpush1.msra.mxu0 0.0
    %8928 = vmatprep.subr.mxu0 0.0
    %8929 = vmatpush1.msra.mxu0 0.0
    %8930 = vmatprep.subr.mxu0 0.0
    %8931 = vmatpush1.msra.mxu0 0.0
    %8932 = vmatprep.subr.mxu0 0.0
    %8933 = vmatpush1.msra.mxu0 0.0
    %8934 = vmatprep.subr.mxu0 0.0
    %8935 = vmatpush1.msra.mxu0 0.0
    %8936 = vmatprep.subr.mxu0 0.0
    %8937 = vmatpush1.msra.mxu0 0.0
    %8938 = vmatprep.subr.mxu0 0.0
    %8939 = vmatpush1.msra.mxu0 0.0
    %8940 = vmatprep.subr.mxu0 0.0
    %8941 = vmatpush1.msra.mxu0 0.0
    %8942 = vmatprep.subr.mxu0 0.0
    %8943 = vmatpush1.msra.mxu0 0.0
    %8944 = vmatprep.subr.mxu0 0.0
    %8945 = vmatpush1.msra.mxu0 0.0
    %8946 = vmatprep.subr.mxu0 0.0
    %8947 = vmatpush1.msra.mxu0 0.0
    %8948 = vmatprep.subr.mxu0 0.0
    %8949 = vmatpush1.msra.mxu0 0.0
    %8950 = vmatprep.subr.mxu0 0.0
    %8951 = vmatpush1.msra.mxu0 0.0
    %8952 = vmatprep.subr.mxu0 0.0
    %8953 = vmatpush1.msra.mxu0 0.0
    %8954 = vmatprep.mubr.f32.mxu0 0.0
    %8955 = vmatmul.mubr.f32.gmra.mrb[0].mxu0 %v8882
    %v8956 = vpop.f32.mrb[0].mxu0
    %v8957 = vadd.f32 0.0, %v8956
    %v8958 = vpop.f32.mrb[0].mxu0
    %v8959 = vadd.f32 0.0, %v8958
    %8960 = vdwg.mxu0
    %v8961 = vadd.f32 %v8877, %v8957
    %v8962 = vadd.f32 %v8878, %v8959
    %s8963 = scalar_lea.vmem [#allocation10], 6
    %v8964 = vld [vmem:[%s8963] sm:$0x3]
    %v8966 = vsel %vm503, %v8964, 0
    %v8969 = vsel %vm513, %v8200, 0
    %v8972 = vsel %vm513, %v8202, 0
    %8974 = vmatprep.subr.mxu0 %v8190
    %8975 = vmatpush1.msra.mxu0 %v8188
    %8976 = vmatprep.subr.mxu0 %v8196
    %8977 = vmatpush1.msra.mxu0 %v8194
    %8978 = vmatprep.subr.mxu0 %v8972
    %8979 = vmatpush1.msra.mxu0 %v8969
    %8980 = vmatprep.subr.mxu0 0.0
    %8981 = vmatpush1.msra.mxu0 0.0
    %8982 = vmatprep.subr.mxu0 0.0
    %8983 = vmatpush1.msra.mxu0 0.0
    %8984 = vmatprep.subr.mxu0 0.0
    %8985 = vmatpush1.msra.mxu0 0.0
    %8986 = vmatprep.subr.mxu0 0.0
    %8987 = vmatpush1.msra.mxu0 0.0
    %8988 = vmatprep.subr.mxu0 0.0
    %8989 = vmatpush1.msra.mxu0 0.0
    %8990 = vmatprep.subr.mxu0 0.0
    %8991 = vmatpush1.msra.mxu0 0.0
    %8992 = vmatprep.subr.mxu0 0.0
    %8993 = vmatpush1.msra.mxu0 0.0
    %8994 = vmatprep.subr.mxu0 0.0
    %8995 = vmatpush1.msra.mxu0 0.0
    %8996 = vmatprep.subr.mxu0 0.0
    %8997 = vmatpush1.msra.mxu0 0.0
    %8998 = vmatprep.subr.mxu0 0.0
    %8999 = vmatpush1.msra.mxu0 0.0
    %9000 = vmatprep.subr.mxu0 0.0
    %9001 = vmatpush1.msra.mxu0 0.0
    %9002 = vmatprep.subr.mxu0 0.0
    %9003 = vmatpush1.msra.mxu0 0.0
    %9004 = vmatprep.subr.mxu0 0.0
    %9005 = vmatpush1.msra.mxu0 0.0
    %9006 = vmatprep.subr.mxu0 0.0
    %9007 = vmatpush1.msra.mxu0 0.0
    %9008 = vmatprep.subr.mxu0 0.0
    %9009 = vmatpush1.msra.mxu0 0.0
    %9010 = vmatprep.subr.mxu0 0.0
    %9011 = vmatpush1.msra.mxu0 0.0
    %9012 = vmatprep.subr.mxu0 0.0
    %9013 = vmatpush1.msra.mxu0 0.0
    %9014 = vmatprep.subr.mxu0 0.0
    %9015 = vmatpush1.msra.mxu0 0.0
    %9016 = vmatprep.subr.mxu0 0.0
    %9017 = vmatpush1.msra.mxu0 0.0
    %9018 = vmatprep.subr.mxu0 0.0
    %9019 = vmatpush1.msra.mxu0 0.0
    %9020 = vmatprep.subr.mxu0 0.0
    %9021 = vmatpush1.msra.mxu0 0.0
    %9022 = vmatprep.subr.mxu0 0.0
    %9023 = vmatpush1.msra.mxu0 0.0
    %9024 = vmatprep.subr.mxu0 0.0
    %9025 = vmatpush1.msra.mxu0 0.0
    %9026 = vmatprep.subr.mxu0 0.0
    %9027 = vmatpush1.msra.mxu0 0.0
    %9028 = vmatprep.subr.mxu0 0.0
    %9029 = vmatpush1.msra.mxu0 0.0
    %9030 = vmatprep.subr.mxu0 0.0
    %9031 = vmatpush1.msra.mxu0 0.0
    %9032 = vmatprep.subr.mxu0 0.0
    %9033 = vmatpush1.msra.mxu0 0.0
    %9034 = vmatprep.subr.mxu0 0.0
    %9035 = vmatpush1.msra.mxu0 0.0
    %9036 = vmatprep.subr.mxu0 0.0
    %9037 = vmatpush1.msra.mxu0 0.0
    %9038 = vmatprep.mubr.f32.mxu0 0.0
    %9039 = vmatmul.mubr.f32.gmra.mrb[0].mxu0 %v8966
    %v9040 = vpop.f32.mrb[0].mxu0
    %v9041 = vadd.f32 0.0, %v9040
    %v9042 = vpop.f32.mrb[0].mxu0
    %v9043 = vadd.f32 0.0, %v9042
    %9044 = vdwg.mxu0
    %v9045 = vadd.f32 %v8961, %v9041
    %v9046 = vadd.f32 %v8962, %v9043
    %s9047 = scalar_lea.vmem [#allocation10], 8
    %v9048 = vld [vmem:[%s9047] sm:$0x3]
    %v9050 = vsel %vm503, %v9048, 0
    %v9053 = vsel %vm513, %v8283, 0
    %v9056 = vsel %vm513, %v8285, 0
    %9058 = vmatprep.subr.mxu0 %v8273
    %9059 = vmatpush1.msra.mxu0 %v8271
    %9060 = vmatprep.subr.mxu0 %v8279
    %9061 = vmatpush1.msra.mxu0 %v8277
    %9062 = vmatprep.subr.mxu0 %v9056
    %9063 = vmatpush1.msra.mxu0 %v9053
    %9064 = vmatprep.subr.mxu0 0.0
    %9065 = vmatpush1.msra.mxu0 0.0
    %9066 = vmatprep.subr.mxu0 0.0
    %9067 = vmatpush1.msra.mxu0 0.0
    %9068 = vmatprep.subr.mxu0 0.0
    %9069 = vmatpush1.msra.mxu0 0.0
    %9070 = vmatprep.subr.mxu0 0.0
    %9071 = vmatpush1.msra.mxu0 0.0
    %9072 = vmatprep.subr.mxu0 0.0
    %9073 = vmatpush1.msra.mxu0 0.0
    %9074 = vmatprep.subr.mxu0 0.0
    %9075 = vmatpush1.msra.mxu0 0.0
    %9076 = vmatprep.subr.mxu0 0.0
    %9077 = vmatpush1.msra.mxu0 0.0
    %9078 = vmatprep.subr.mxu0 0.0
    %9079 = vmatpush1.msra.mxu0 0.0
    %9080 = vmatprep.subr.mxu0 0.0
    %9081 = vmatpush1.msra.mxu0 0.0
    %9082 = vmatprep.subr.mxu0 0.0
    %9083 = vmatpush1.msra.mxu0 0.0
    %9084 = vmatprep.subr.mxu0 0.0
    %9085 = vmatpush1.msra.mxu0 0.0
    %9086 = vmatprep.subr.mxu0 0.0
    %9087 = vmatpush1.msra.mxu0 0.0
    %9088 = vmatprep.subr.mxu0 0.0
    %9089 = vmatpush1.msra.mxu0 0.0
    %9090 = vmatprep.subr.mxu0 0.0
    %9091 = vmatpush1.msra.mxu0 0.0
    %9092 = vmatprep.subr.mxu0 0.0
    %9093 = vmatpush1.msra.mxu0 0.0
    %9094 = vmatprep.subr.mxu0 0.0
    %9095 = vmatpush1.msra.mxu0 0.0
    %9096 = vmatprep.subr.mxu0 0.0
    %9097 = vmatpush1.msra.mxu0 0.0
    %9098 = vmatprep.subr.mxu0 0.0
    %9099 = vmatpush1.msra.mxu0 0.0
    %9100 = vmatprep.subr.mxu0 0.0
    %9101 = vmatpush1.msra.mxu0 0.0
    %9102 = vmatprep.subr.mxu0 0.0
    %9103 = vmatpush1.msra.mxu0 0.0
    %9104 = vmatprep.subr.mxu0 0.0
    %9105 = vmatpush1.msra.mxu0 0.0
    %9106 = vmatprep.subr.mxu0 0.0
    %9107 = vmatpush1.msra.mxu0 0.0
    %9108 = vmatprep.subr.mxu0 0.0
    %9109 = vmatpush1.msra.mxu0 0.0
    %9110 = vmatprep.subr.mxu0 0.0
    %9111 = vmatpush1.msra.mxu0 0.0
    %9112 = vmatprep.subr.mxu0 0.0
    %9113 = vmatpush1.msra.mxu0 0.0
    %9114 = vmatprep.subr.mxu0 0.0
    %9115 = vmatpush1.msra.mxu0 0.0
    %9116 = vmatprep.subr.mxu0 0.0
    %9117 = vmatpush1.msra.mxu0 0.0
    %9118 = vmatprep.subr.mxu0 0.0
    %9119 = vmatpush1.msra.mxu0 0.0
    %9120 = vmatprep.subr.mxu0 0.0
    %9121 = vmatpush1.msra.mxu0 0.0
    %9122 = vmatprep.mubr.f32.mxu0 0.0
    %9123 = vmatmul.mubr.f32.gmra.mrb[0].mxu0 %v9050
    %v9124 = vpop.f32.mrb[0].mxu0
    %v9125 = vadd.f32 0.0, %v9124
    %v9126 = vpop.f32.mrb[0].mxu0
    %v9127 = vadd.f32 0.0, %v9126
    %9128 = vdwg.mxu0
    %v9129 = vadd.f32 %v9045, %v9125
    %v9130 = vadd.f32 %v9046, %v9127
    %s9131 = scalar_lea.vmem [#allocation10], 10
    %v9132 = vld [vmem:[%s9131] sm:$0x3]
    %v9134 = vsel %vm503, %v9132, 0
    %v9137 = vsel %vm513, %v8366, 0
    %v9140 = vsel %vm513, %v8368, 0
    %9142 = vmatprep.subr.mxu0 %v8356
    %9143 = vmatpush1.msra.mxu0 %v8354
    %9144 = vmatprep.subr.mxu0 %v8362
    %9145 = vmatpush1.msra.mxu0 %v8360
    %9146 = vmatprep.subr.mxu0 %v9140
    %9147 = vmatpush1.msra.mxu0 %v9137
    %9148 = vmatprep.subr.mxu0 0.0
    %9149 = vmatpush1.msra.mxu0 0.0
    %9150 = vmatprep.subr.mxu0 0.0
    %9151 = vmatpush1.msra.mxu0 0.0
    %9152 = vmatprep.subr.mxu0 0.0
    %9153 = vmatpush1.msra.mxu0 0.0
    %9154 = vmatprep.subr.mxu0 0.0
    %9155 = vmatpush1.msra.mxu0 0.0
    %9156 = vmatprep.subr.mxu0 0.0
    %9157 = vmatpush1.msra.mxu0 0.0
    %9158 = vmatprep.subr.mxu0 0.0
    %9159 = vmatpush1.msra.mxu0 0.0
    %9160 = vmatprep.subr.mxu0 0.0
    %9161 = vmatpush1.msra.mxu0 0.0
    %9162 = vmatprep.subr.mxu0 0.0
    %9163 = vmatpush1.msra.mxu0 0.0
    %9164 = vmatprep.subr.mxu0 0.0
    %9165 = vmatpush1.msra.mxu0 0.0
    %9166 = vmatprep.subr.mxu0 0.0
    %9167 = vmatpush1.msra.mxu0 0.0
    %9168 = vmatprep.subr.mxu0 0.0
    %9169 = vmatpush1.msra.mxu0 0.0
    %9170 = vmatprep.subr.mxu0 0.0
    %9171 = vmatpush1.msra.mxu0 0.0
    %9172 = vmatprep.subr.mxu0 0.0
    %9173 = vmatpush1.msra.mxu0 0.0
    %9174 = vmatprep.subr.mxu0 0.0
    %9175 = vmatpush1.msra.mxu0 0.0
    %9176 = vmatprep.subr.mxu0 0.0
    %9177 = vmatpush1.msra.mxu0 0.0
    %9178 = vmatprep.subr.mxu0 0.0
    %9179 = vmatpush1.msra.mxu0 0.0
    %9180 = vmatprep.subr.mxu0 0.0
    %9181 = vmatpush1.msra.mxu0 0.0
    %9182 = vmatprep.subr.mxu0 0.0
    %9183 = vmatpush1.msra.mxu0 0.0
    %9184 = vmatprep.subr.mxu0 0.0
    %9185 = vmatpush1.msra.mxu0 0.0
    %9186 = vmatprep.subr.mxu0 0.0
    %9187 = vmatpush1.msra.mxu0 0.0
    %9188 = vmatprep.subr.mxu0 0.0
    %9189 = vmatpush1.msra.mxu0 0.0
    %9190 = vmatprep.subr.mxu0 0.0
    %9191 = vmatpush1.msra.mxu0 0.0
    %9192 = vmatprep.subr.mxu0 0.0
    %9193 = vmatpush1.msra.mxu0 0.0
    %9194 = vmatprep.subr.mxu0 0.0
    %9195 = vmatpush1.msra.mxu0 0.0
    %9196 = vmatprep.subr.mxu0 0.0
    %9197 = vmatpush1.msra.mxu0 0.0
    %9198 = vmatprep.subr.mxu0 0.0
    %9199 = vmatpush1.msra.mxu0 0.0
    %9200 = vmatprep.subr.mxu0 0.0
    %9201 = vmatpush1.msra.mxu0 0.0
    %9202 = vmatprep.subr.mxu0 0.0
    %9203 = vmatpush1.msra.mxu0 0.0
    %9204 = vmatprep.subr.mxu0 0.0
    %9205 = vmatpush1.msra.mxu0 0.0
    %9206 = vmatprep.mubr.f32.mxu0 0.0
    %9207 = vmatmul.mubr.f32.gmra.mrb[0].mxu0 %v9134
    %v9208 = vpop.f32.mrb[0].mxu0
    %v9209 = vadd.f32 0.0, %v9208
    %v9210 = vpop.f32.mrb[0].mxu0
    %v9211 = vadd.f32 0.0, %v9210
    %9212 = vdwg.mxu0
    %v9213 = vadd.f32 %v9129, %v9209
    %v9214 = vadd.f32 %v9130, %v9211
    %s9215 = scalar_lea.vmem [#allocation10], 12
    %v9216 = vld [vmem:[%s9215] sm:$0x3]
    %v9218 = vsel %vm503, %v9216, 0
    %v9221 = vsel %vm513, %v8449, 0
    %v9224 = vsel %vm513, %v8451, 0
    %9226 = vmatprep.subr.mxu0 %v8439
    %9227 = vmatpush1.msra.mxu0 %v8437
    %9228 = vmatprep.subr.mxu0 %v8445
    %9229 = vmatpush1.msra.mxu0 %v8443
    %9230 = vmatprep.subr.mxu0 %v9224
    %9231 = vmatpush1.msra.mxu0 %v9221
    %9232 = vmatprep.subr.mxu0 0.0
    %9233 = vmatpush1.msra.mxu0 0.0
    %9234 = vmatprep.subr.mxu0 0.0
    %9235 = vmatpush1.msra.mxu0 0.0
    %9236 = vmatprep.subr.mxu0 0.0
    %9237 = vmatpush1.msra.mxu0 0.0
    %9238 = vmatprep.subr.mxu0 0.0
    %9239 = vmatpush1.msra.mxu0 0.0
    %9240 = vmatprep.subr.mxu0 0.0
    %9241 = vmatpush1.msra.mxu0 0.0
    %9242 = vmatprep.subr.mxu0 0.0
    %9243 = vmatpush1.msra.mxu0 0.0
    %9244 = vmatprep.subr.mxu0 0.0
    %9245 = vmatpush1.msra.mxu0 0.0
    %9246 = vmatprep.subr.mxu0 0.0
    %9247 = vmatpush1.msra.mxu0 0.0
    %9248 = vmatprep.subr.mxu0 0.0
    %9249 = vmatpush1.msra.mxu0 0.0
    %9250 = vmatprep.subr.mxu0 0.0
    %9251 = vmatpush1.msra.mxu0 0.0
    %9252 = vmatprep.subr.mxu0 0.0
    %9253 = vmatpush1.msra.mxu0 0.0
    %9254 = vmatprep.subr.mxu0 0.0
    %9255 = vmatpush1.msra.mxu0 0.0
    %9256 = vmatprep.subr.mxu0 0.0
    %9257 = vmatpush1.msra.mxu0 0.0
    %9258 = vmatprep.subr.mxu0 0.0
    %9259 = vmatpush1.msra.mxu0 0.0
    %9260 = vmatprep.subr.mxu0 0.0
    %9261 = vmatpush1.msra.mxu0 0.0
    %9262 = vmatprep.subr.mxu0 0.0
    %9263 = vmatpush1.msra.mxu0 0.0
    %9264 = vmatprep.subr.mxu0 0.0
    %9265 = vmatpush1.msra.mxu0 0.0
    %9266 = vmatprep.subr.mxu0 0.0
    %9267 = vmatpush1.msra.mxu0 0.0
    %9268 = vmatprep.subr.mxu0 0.0
    %9269 = vmatpush1.msra.mxu0 0.0
    %9270 = vmatprep.subr.mxu0 0.0
    %9271 = vmatpush1.msra.mxu0 0.0
    %9272 = vmatprep.subr.mxu0 0.0
    %9273 = vmatpush1.msra.mxu0 0.0
    %9274 = vmatprep.subr.mxu0 0.0
    %9275 = vmatpush1.msra.mxu0 0.0
    %9276 = vmatprep.subr.mxu0 0.0
    %9277 = vmatpush1.msra.mxu0 0.0
    %9278 = vmatprep.subr.mxu0 0.0
    %9279 = vmatpush1.msra.mxu0 0.0
    %9280 = vmatprep.subr.mxu0 0.0
    %9281 = vmatpush1.msra.mxu0 0.0
    %9282 = vmatprep.subr.mxu0 0.0
    %9283 = vmatpush1.msra.mxu0 0.0
    %9284 = vmatprep.subr.mxu0 0.0
    %9285 = vmatpush1.msra.mxu0 0.0
    %9286 = vmatprep.subr.mxu0 0.0
    %9287 = vmatpush1.msra.mxu0 0.0
    %9288 = vmatprep.subr.mxu0 0.0
    %9289 = vmatpush1.msra.mxu0 0.0
    %9290 = vmatprep.mubr.f32.mxu0 0.0
    %9291 = vmatmul.mubr.f32.gmra.mrb[0].mxu0 %v9218
    %v9292 = vpop.f32.mrb[0].mxu0
    %v9293 = vadd.f32 0.0, %v9292
    %v9294 = vpop.f32.mrb[0].mxu0
    %v9295 = vadd.f32 0.0, %v9294
    %9296 = vdwg.mxu0
    %v9297 = vadd.f32 %v9213, %v9293
    %v9298 = vadd.f32 %v9214, %v9295
    %s9299 = scalar_lea.vmem [#allocation10], 14
    %v9300 = vld [vmem:[%s9299] sm:$0x3]
    %v9302 = vsel %vm503, %v9300, 0
    %v9305 = vsel %vm513, %v8532, 0
    %v9308 = vsel %vm513, %v8534, 0
    %9310 = vmatprep.subr.mxu0 %v8522
    %9311 = vmatpush1.msra.mxu0 %v8520
    %9312 = vmatprep.subr.mxu0 %v8528
    %9313 = vmatpush1.msra.mxu0 %v8526
    %9314 = vmatprep.subr.mxu0 %v9308
    %9315 = vmatpush1.msra.mxu0 %v9305
    %9316 = vmatprep.subr.mxu0 0.0
    %9317 = vmatpush1.msra.mxu0 0.0
    %9318 = vmatprep.subr.mxu0 0.0
    %9319 = vmatpush1.msra.mxu0 0.0
    %9320 = vmatprep.subr.mxu0 0.0
    %9321 = vmatpush1.msra.mxu0 0.0
    %9322 = vmatprep.subr.mxu0 0.0
    %9323 = vmatpush1.msra.mxu0 0.0
    %9324 = vmatprep.subr.mxu0 0.0
    %9325 = vmatpush1.msra.mxu0 0.0
    %9326 = vmatprep.subr.mxu0 0.0
    %9327 = vmatpush1.msra.mxu0 0.0
    %9328 = vmatprep.subr.mxu0 0.0
    %9329 = vmatpush1.msra.mxu0 0.0
    %9330 = vmatprep.subr.mxu0 0.0
    %9331 = vmatpush1.msra.mxu0 0.0
    %9332 = vmatprep.subr.mxu0 0.0
    %9333 = vmatpush1.msra.mxu0 0.0
    %9334 = vmatprep.subr.mxu0 0.0
    %9335 = vmatpush1.msra.mxu0 0.0
    %9336 = vmatprep.subr.mxu0 0.0
    %9337 = vmatpush1.msra.mxu0 0.0
    %9338 = vmatprep.subr.mxu0 0.0
    %9339 = vmatpush1.msra.mxu0 0.0
    %9340 = vmatprep.subr.mxu0 0.0
    %9341 = vmatpush1.msra.mxu0 0.0
    %9342 = vmatprep.subr.mxu0 0.0
    %9343 = vmatpush1.msra.mxu0 0.0
    %9344 = vmatprep.subr.mxu0 0.0
    %9345 = vmatpush1.msra.mxu0 0.0
    %9346 = vmatprep.subr.mxu0 0.0
    %9347 = vmatpush1.msra.mxu0 0.0
    %9348 = vmatprep.subr.mxu0 0.0
    %9349 = vmatpush1.msra.mxu0 0.0
    %9350 = vmatprep.subr.mxu0 0.0
    %9351 = vmatpush1.msra.mxu0 0.0
    %9352 = vmatprep.subr.mxu0 0.0
    %9353 = vmatpush1.msra.mxu0 0.0
    %9354 = vmatprep.subr.mxu0 0.0
    %9355 = vmatpush1.msra.mxu0 0.0
    %9356 = vmatprep.subr.mxu0 0.0
    %9357 = vmatpush1.msra.mxu0 0.0
    %9358 = vmatprep.subr.mxu0 0.0
    %9359 = vmatpush1.msra.mxu0 0.0
    %9360 = vmatprep.subr.mxu0 0.0
    %9361 = vmatpush1.msra.mxu0 0.0
    %9362 = vmatprep.subr.mxu0 0.0
    %9363 = vmatpush1.msra.mxu0 0.0
    %9364 = vmatprep.subr.mxu0 0.0
    %9365 = vmatpush1.msra.mxu0 0.0
    %9366 = vmatprep.subr.mxu0 0.0
    %9367 = vmatpush1.msra.mxu0 0.0
    %9368 = vmatprep.subr.mxu0 0.0
    %9369 = vmatpush1.msra.mxu0 0.0
    %9370 = vmatprep.subr.mxu0 0.0
    %9371 = vmatpush1.msra.mxu0 0.0
    %9372 = vmatprep.subr.mxu0 0.0
    %9373 = vmatpush1.msra.mxu0 0.0
    %9374 = vmatprep.mubr.f32.mxu0 0.0
    %9375 = vmatmul.mubr.f32.gmra.mrb[0].mxu0 %v9302
    %v9376 = vpop.f32.mrb[0].mxu0
    %v9377 = vadd.f32 0.0, %v9376
    %v9378 = vpop.f32.mrb[0].mxu0
    %v9379 = vadd.f32 0.0, %v9378
    %9380 = vdwg.mxu0
    %v9381 = vadd.f32 %v9297, %v9377
    %v9382 = vadd.f32 %v9298, %v9379
    %s9383 = scalar_lea.vmem [#allocation10], 16
    %v9384 = vld [vmem:[%s9383] sm:$0x3]
    %v9386 = vsel %vm503, %v9384, 0
    %v9389 = vsel %vm513, %v8615, 0
    %v9392 = vsel %vm513, %v8617, 0
    %9394 = vmatprep.subr.mxu0 %v8605
    %9395 = vmatpush1.msra.mxu0 %v8603
    %9396 = vmatprep.subr.mxu0 %v8611
    %9397 = vmatpush1.msra.mxu0 %v8609
    %9398 = vmatprep.subr.mxu0 %v9392
    %9399 = vmatpush1.msra.mxu0 %v9389
    %9400 = vmatprep.subr.mxu0 0.0
    %9401 = vmatpush1.msra.mxu0 0.0
    %9402 = vmatprep.subr.mxu0 0.0
    %9403 = vmatpush1.msra.mxu0 0.0
    %9404 = vmatprep.subr.mxu0 0.0
    %9405 = vmatpush1.msra.mxu0 0.0
    %9406 = vmatprep.subr.mxu0 0.0
    %9407 = vmatpush1.msra.mxu0 0.0
    %9408 = vmatprep.subr.mxu0 0.0
    %9409 = vmatpush1.msra.mxu0 0.0
    %9410 = vmatprep.subr.mxu0 0.0
    %9411 = vmatpush1.msra.mxu0 0.0
    %9412 = vmatprep.subr.mxu0 0.0
    %9413 = vmatpush1.msra.mxu0 0.0
    %9414 = vmatprep.subr.mxu0 0.0
    %9415 = vmatpush1.msra.mxu0 0.0
    %9416 = vmatprep.subr.mxu0 0.0
    %9417 = vmatpush1.msra.mxu0 0.0
    %9418 = vmatprep.subr.mxu0 0.0
    %9419 = vmatpush1.msra.mxu0 0.0
    %9420 = vmatprep.subr.mxu0 0.0
    %9421 = vmatpush1.msra.mxu0 0.0
    %9422 = vmatprep.subr.mxu0 0.0
    %9423 = vmatpush1.msra.mxu0 0.0
    %9424 = vmatprep.subr.mxu0 0.0
    %9425 = vmatpush1.msra.mxu0 0.0
    %9426 = vmatprep.subr.mxu0 0.0
    %9427 = vmatpush1.msra.mxu0 0.0
    %9428 = vmatprep.subr.mxu0 0.0
    %9429 = vmatpush1.msra.mxu0 0.0
    %9430 = vmatprep.subr.mxu0 0.0
    %9431 = vmatpush1.msra.mxu0 0.0
    %9432 = vmatprep.subr.mxu0 0.0
    %9433 = vmatpush1.msra.mxu0 0.0
    %9434 = vmatprep.subr.mxu0 0.0
    %9435 = vmatpush1.msra.mxu0 0.0
    %9436 = vmatprep.subr.mxu0 0.0
    %9437 = vmatpush1.msra.mxu0 0.0
    %9438 = vmatprep.subr.mxu0 0.0
    %9439 = vmatpush1.msra.mxu0 0.0
    %9440 = vmatprep.subr.mxu0 0.0
    %9441 = vmatpush1.msra.mxu0 0.0
    %9442 = vmatprep.subr.mxu0 0.0
    %9443 = vmatpush1.msra.mxu0 0.0
    %9444 = vmatprep.subr.mxu0 0.0
    %9445 = vmatpush1.msra.mxu0 0.0
    %9446 = vmatprep.subr.mxu0 0.0
    %9447 = vmatpush1.msra.mxu0 0.0
    %9448 = vmatprep.subr.mxu0 0.0
    %9449 = vmatpush1.msra.mxu0 0.0
    %9450 = vmatprep.subr.mxu0 0.0
    %9451 = vmatpush1.msra.mxu0 0.0
    %9452 = vmatprep.subr.mxu0 0.0
    %9453 = vmatpush1.msra.mxu0 0.0
    %9454 = vmatprep.subr.mxu0 0.0
    %9455 = vmatpush1.msra.mxu0 0.0
    %9456 = vmatprep.subr.mxu0 0.0
    %9457 = vmatpush1.msra.mxu0 0.0
    %9458 = vmatprep.mubr.f32.mxu0 0.0
    %9459 = vmatmul.mubr.f32.gmra.mrb[0].mxu0 %v9386
    %v9460 = vpop.f32.mrb[0].mxu0
    %v9461 = vadd.f32 0.0, %v9460
    %v9462 = vpop.f32.mrb[0].mxu0
    %v9463 = vadd.f32 0.0, %v9462
    %9464 = vdwg.mxu0
    %v9465 = vadd.f32 %v9381, %v9461
    %v9466 = vadd.f32 %v9382, %v9463
    %s9467 = scalar_lea.vmem [#allocation10], 18
    %v9468 = vld [vmem:[%s9467] sm:$0x3]
    %v9470 = vsel %vm503, %v9468, 0
    %v9473 = vsel %vm513, %v8698, 0
    %v9476 = vsel %vm513, %v8700, 0
    %9478 = vmatprep.subr.mxu0 %v8688
    %9479 = vmatpush1.msra.mxu0 %v8686
    %9480 = vmatprep.subr.mxu0 %v8694
    %9481 = vmatpush1.msra.mxu0 %v8692
    %9482 = vmatprep.subr.mxu0 %v9476
    %9483 = vmatpush1.msra.mxu0 %v9473
    %9484 = vmatprep.subr.mxu0 0.0
    %9485 = vmatpush1.msra.mxu0 0.0
    %9486 = vmatprep.subr.mxu0 0.0
    %9487 = vmatpush1.msra.mxu0 0.0
    %9488 = vmatprep.subr.mxu0 0.0
    %9489 = vmatpush1.msra.mxu0 0.0
    %9490 = vmatprep.subr.mxu0 0.0
    %9491 = vmatpush1.msra.mxu0 0.0
    %9492 = vmatprep.subr.mxu0 0.0
    %9493 = vmatpush1.msra.mxu0 0.0
    %9494 = vmatprep.subr.mxu0 0.0
    %9495 = vmatpush1.msra.mxu0 0.0
    %9496 = vmatprep.subr.mxu0 0.0
    %9497 = vmatpush1.msra.mxu0 0.0
    %9498 = vmatprep.subr.mxu0 0.0
    %9499 = vmatpush1.msra.mxu0 0.0
    %9500 = vmatprep.subr.mxu0 0.0
    %9501 = vmatpush1.msra.mxu0 0.0
    %9502 = vmatprep.subr.mxu0 0.0
    %9503 = vmatpush1.msra.mxu0 0.0
    %9504 = vmatprep.subr.mxu0 0.0
    %9505 = vmatpush1.msra.mxu0 0.0
    %9506 = vmatprep.subr.mxu0 0.0
    %9507 = vmatpush1.msra.mxu0 0.0
    %9508 = vmatprep.subr.mxu0 0.0
    %9509 = vmatpush1.msra.mxu0 0.0
    %9510 = vmatprep.subr.mxu0 0.0
    %9511 = vmatpush1.msra.mxu0 0.0
    %9512 = vmatprep.subr.mxu0 0.0
    %9513 = vmatpush1.msra.mxu0 0.0
    %9514 = vmatprep.subr.mxu0 0.0
    %9515 = vmatpush1.msra.mxu0 0.0
    %9516 = vmatprep.subr.mxu0 0.0
    %9517 = vmatpush1.msra.mxu0 0.0
    %9518 = vmatprep.subr.mxu0 0.0
    %9519 = vmatpush1.msra.mxu0 0.0
    %9520 = vmatprep.subr.mxu0 0.0
    %9521 = vmatpush1.msra.mxu0 0.0
    %9522 = vmatprep.subr.mxu0 0.0
    %9523 = vmatpush1.msra.mxu0 0.0
    %9524 = vmatprep.subr.mxu0 0.0
    %9525 = vmatpush1.msra.mxu0 0.0
    %9526 = vmatprep.subr.mxu0 0.0
    %9527 = vmatpush1.msra.mxu0 0.0
    %9528 = vmatprep.subr.mxu0 0.0
    %9529 = vmatpush1.msra.mxu0 0.0
    %9530 = vmatprep.subr.mxu0 0.0
    %9531 = vmatpush1.msra.mxu0 0.0
    %9532 = vmatprep.subr.mxu0 0.0
    %9533 = vmatpush1.msra.mxu0 0.0
    %9534 = vmatprep.subr.mxu0 0.0
    %9535 = vmatpush1.msra.mxu0 0.0
    %9536 = vmatprep.subr.mxu0 0.0
    %9537 = vmatpush1.msra.mxu0 0.0
    %9538 = vmatprep.subr.mxu0 0.0
    %9539 = vmatpush1.msra.mxu0 0.0
    %9540 = vmatprep.subr.mxu0 0.0
    %9541 = vmatpush1.msra.mxu0 0.0
    %9542 = vmatprep.mubr.f32.mxu0 0.0
    %9543 = vmatmul.mubr.f32.gmra.mrb[0].mxu0 %v9470
    %v9544 = vpop.f32.mrb[0].mxu0
    %v9545 = vadd.f32 0.0, %v9544
    %v9546 = vpop.f32.mrb[0].mxu0
    %v9547 = vadd.f32 0.0, %v9546
    %9548 = vdwg.mxu0
    %v9549 = vadd.f32 %v9465, %v9545
    %v9550 = vadd.f32 %v9466, %v9547
    %v9551 = vmax.f32 %v9549, 0.0
    %v9552 = vmax.f32 %v9550, 0.0
    %v9553 = vld [vmem:[#allocation25] sm:$0xff]
    %v9554 = vld [vmem:[#allocation25 + $0x8] sm:$0xff]
    %v9555 = vld [vmem:[#allocation25 + $0x10] sm:$0xff]
    %v9556 = vld [vmem:[#allocation25 + $0x18] sm:$0xff]
    %v9557 = vld [vmem:[#allocation25 + $0x20] sm:$0xff]
    %v9558 = vld [vmem:[#allocation25 + $0x28] sm:$0xff]
    %v9559 = vld [vmem:[#allocation25 + $0x30] sm:$0xff]
    %v9560 = vld [vmem:[#allocation25 + $0x38] sm:$0xff]
    %v9561 = vld [vmem:[#allocation25 + $0x40] sm:$0xff]
    %v9562 = vld [vmem:[#allocation25 + $0x48] sm:$0xff]
    %v9563 = vld [vmem:[#allocation25 + $0x50] sm:$0xff]
    %v9564 = vld [vmem:[#allocation25 + $0x58] sm:$0xff]
    %v9565 = vld [vmem:[#allocation25 + $0x60] sm:$0xff]
    %v9566 = vld [vmem:[#allocation25 + $0x68] sm:$0xff]
    %v9567 = vld [vmem:[#allocation25 + $0x70] sm:$0xff]
    %v9568 = vld [vmem:[#allocation25 + $0x78] sm:$0xff]
    %v9569 = vld [vmem:[#allocation25 + $0x80] sm:$0xff]
    %v9570 = vld [vmem:[#allocation25 + $0x88] sm:$0xff]
    %v9571 = vld [vmem:[#allocation25 + $0x90] sm:$0xff]
    %v9572 = vld [vmem:[#allocation25 + $0x98] sm:$0xff]
    %v9573 = vld [vmem:[#allocation25 + $0xa0] sm:$0xff]
    %v9574 = vld [vmem:[#allocation25 + $0xa8] sm:$0xff]
    %v9575 = vld [vmem:[#allocation25 + $0xb0] sm:$0xff]
    %v9576 = vld [vmem:[#allocation25 + $0xb8] sm:$0xff]
    %v9577 = vld [vmem:[#allocation25 + $0xc0] sm:$0xff]
    %v9578 = vld [vmem:[#allocation25 + $0xc8] sm:$0xff]
    %v9579 = vld [vmem:[#allocation25 + $0xd0] sm:$0xff]
    %v9580 = vld [vmem:[#allocation25 + $0xd8] sm:$0xff]
    %v9581 = vld [vmem:[#allocation25 + $0xe0] sm:$0xff]
    %v9582 = vld [vmem:[#allocation25 + $0xe8] sm:$0xff]
    %v9583 = vld [vmem:[#allocation25 + $0xf0] sm:$0xff]
    %v9584 = vld [vmem:[#allocation25 + $0xf8] sm:$0xff]
    %v9585 = vld [vmem:[#allocation25 + $0x100] sm:$0xff]
    %v9586 = vld [vmem:[#allocation25 + $0x108] sm:$0xff]
    %v9587 = vld [vmem:[#allocation25 + $0x110] sm:$0xff]
    %v9588 = vld [vmem:[#allocation25 + $0x118] sm:$0xff]
    %v9589 = vld [vmem:[#allocation25 + $0x120] sm:$0xff]
    %v9590 = vld [vmem:[#allocation25 + $0x128] sm:$0xff]
    %v9591 = vld [vmem:[#allocation25 + $0x130] sm:$0xff]
    %v9592 = vld [vmem:[#allocation25 + $0x138] sm:$0xff]
    %v9593 = vld [vmem:[#allocation25 + $0x140] sm:$0xff]
    %v9594 = vld [vmem:[#allocation25 + $0x148] sm:$0xff]
    %v9595 = vld [vmem:[#allocation25 + $0x150] sm:$0xff]
    %v9596 = vld [vmem:[#allocation25 + $0x158] sm:$0xff]
    %v9597 = vld [vmem:[#allocation25 + $0x160] sm:$0xff]
    %v9598 = vld [vmem:[#allocation25 + $0x168] sm:$0xff]
    %v9599 = vld [vmem:[#allocation25 + $0x170] sm:$0xff]
    %v9600 = vld [vmem:[#allocation25 + $0x178] sm:$0xff]
    %v9601 = vld [vmem:[#allocation25 + $0x180] sm:$0xff]
    %v9602 = vld [vmem:[#allocation25 + $0x188] sm:$0xff]
    %v9603 = vld [vmem:[#allocation25 + $0x190] sm:$0xff]
    %v9604 = vld [vmem:[#allocation25 + $0x198] sm:$0xff]
    %v9605 = vld [vmem:[#allocation25 + $0x1a0] sm:$0xff]
    %v9606 = vld [vmem:[#allocation25 + $0x1a8] sm:$0xff]
    %v9607 = vld [vmem:[#allocation25 + $0x1b0] sm:$0xff]
    %v9608 = vld [vmem:[#allocation25 + $0x1b8] sm:$0xff]
    %v9609 = vld [vmem:[#allocation25 + $0x1c0] sm:$0xff]
    %v9610 = vld [vmem:[#allocation25 + $0x1c8] sm:$0xff]
    %v9611 = vld [vmem:[#allocation25 + $0x1d0] sm:$0xff]
    %v9612 = vld [vmem:[#allocation25 + $0x1d8] sm:$0xff]
    %v9613 = vld [vmem:[#allocation25 + $0x1e0] sm:$0xff]
    %v9614 = vld [vmem:[#allocation25 + $0x1e8] sm:$0xff]
    %v9615 = vld [vmem:[#allocation25 + $0x1f0] sm:$0xff]
    %v9616 = vld [vmem:[#allocation25 + $0x1f8] sm:$0xff]
    %v9617 = vld [vmem:[#allocation25 + $0x200] sm:$0xff]
    %v9618 = vld [vmem:[#allocation25 + $0x208] sm:$0xff]
    %v9619 = vld [vmem:[#allocation25 + $0x210] sm:$0xff]
    %v9620 = vld [vmem:[#allocation25 + $0x218] sm:$0xff]
    %v9621 = vld [vmem:[#allocation25 + $0x220] sm:$0xff]
    %v9622 = vld [vmem:[#allocation25 + $0x228] sm:$0xff]
    %v9623 = vld [vmem:[#allocation25 + $0x230] sm:$0xff]
    %v9624 = vld [vmem:[#allocation25 + $0x238] sm:$0xff]
    %v9625 = vld [vmem:[#allocation25 + $0x240] sm:$0xff]
    %v9626 = vld [vmem:[#allocation25 + $0x248] sm:$0xff]
    %v9627 = vld [vmem:[#allocation25 + $0x250] sm:$0xff]
    %v9628 = vld [vmem:[#allocation25 + $0x258] sm:$0xff]
    %v9629 = vld [vmem:[#allocation25 + $0x260] sm:$0xff]
    %v9630 = vld [vmem:[#allocation25 + $0x268] sm:$0xff]
    %v9631 = vld [vmem:[#allocation25 + $0x270] sm:$0xff]
    %v9632 = vld [vmem:[#allocation25 + $0x278] sm:$0xff]
    %v9633 = vld [vmem:[#allocation25 + $0x280] sm:$0xff]
    %v9634 = vld [vmem:[#allocation25 + $0x288] sm:$0xff]
    %v9635 = vld [vmem:[#allocation25 + $0x290] sm:$0xff]
    %v9636 = vld [vmem:[#allocation25 + $0x298] sm:$0xff]
    %v9637 = vld [vmem:[#allocation25 + $0x2a0] sm:$0xff]
    %v9638 = vld [vmem:[#allocation25 + $0x2a8] sm:$0xff]
    %v9639 = vld [vmem:[#allocation25 + $0x2b0] sm:$0xff]
    %v9640 = vld [vmem:[#allocation25 + $0x2b8] sm:$0xff]
    %v9641 = vld [vmem:[#allocation25 + $0x2c0] sm:$0xff]
    %v9642 = vld [vmem:[#allocation25 + $0x2c8] sm:$0xff]
    %v9643 = vld [vmem:[#allocation25 + $0x2d0] sm:$0xff]
    %v9644 = vld [vmem:[#allocation25 + $0x2d8] sm:$0xff]
    %v9645 = vld [vmem:[#allocation25 + $0x2e0] sm:$0xff]
    %v9646 = vld [vmem:[#allocation25 + $0x2e8] sm:$0xff]
    %v9647 = vld [vmem:[#allocation25 + $0x2f0] sm:$0xff]
    %v9648 = vld [vmem:[#allocation25 + $0x2f8] sm:$0xff]
    %v9649 = vld [vmem:[#allocation25 + $0x300] sm:$0xff]
    %v9650 = vld [vmem:[#allocation25 + $0x308] sm:$0xff]
    %v9651 = vld [vmem:[#allocation25 + $0x310] sm:$0xff]
    %v9652 = vld [vmem:[#allocation25 + $0x318] sm:$0xff]
    %v9653 = vld [vmem:[#allocation25 + $0x320] sm:$0xff]
    %v9654 = vld [vmem:[#allocation25 + $0x328] sm:$0xff]
    %v9655 = vld [vmem:[#allocation25 + $0x330] sm:$0xff]
    %v9656 = vld [vmem:[#allocation25 + $0x338] sm:$0xff]
    %v9657 = vld [vmem:[#allocation25 + $0x340] sm:$0xff]
    %v9658 = vld [vmem:[#allocation25 + $0x348] sm:$0xff]
    %v9659 = vld [vmem:[#allocation25 + $0x350] sm:$0xff]
    %v9660 = vld [vmem:[#allocation25 + $0x358] sm:$0xff]
    %v9661 = vld [vmem:[#allocation25 + $0x360] sm:$0xff]
    %v9662 = vld [vmem:[#allocation25 + $0x368] sm:$0xff]
    %v9663 = vld [vmem:[#allocation25 + $0x370] sm:$0xff]
    %v9664 = vld [vmem:[#allocation25 + $0x378] sm:$0xff]
    %v9665 = vld [vmem:[#allocation25 + $0x380] sm:$0xff]
    %v9666 = vld [vmem:[#allocation25 + $0x388] sm:$0xff]
    %v9667 = vld [vmem:[#allocation25 + $0x390] sm:$0xff]
    %v9668 = vld [vmem:[#allocation25 + $0x398] sm:$0xff]
    %v9669 = vld [vmem:[#allocation25 + $0x3a0] sm:$0xff]
    %v9670 = vld [vmem:[#allocation25 + $0x3a8] sm:$0xff]
    %v9671 = vld [vmem:[#allocation25 + $0x3b0] sm:$0xff]
    %v9672 = vld [vmem:[#allocation25 + $0x3b8] sm:$0xff]
    %v9673 = vld [vmem:[#allocation25 + $0x3c0] sm:$0xff]
    %v9674 = vld [vmem:[#allocation25 + $0x3c8] sm:$0xff]
    %v9675 = vld [vmem:[#allocation25 + $0x3d0] sm:$0xff]
    %v9676 = vld [vmem:[#allocation25 + $0x3d8] sm:$0xff]
    %v9677 = vld [vmem:[#allocation25 + $0x3e0] sm:$0xff]
    %v9678 = vld [vmem:[#allocation25 + $0x3e8] sm:$0xff]
    %v9679 = vld [vmem:[#allocation25 + $0x3f0] sm:$0xff]
    %v9680 = vld [vmem:[#allocation25 + $0x3f8] sm:$0xff]
    %v9681 = vld [vmem:[%s18] sm:$0xf]
    %v9683 = vlaneseq
    %v9684 = vshrl.u32 %v9683, 7
    %v9685 = vsub.s32 0, %v9684
    %v9686 = vrot.slane %v9681, %v9685
    %v9687 = vlaneseq
    %v9688 = vshrl.u32 %v9687, 7
    %v9689 = vsub.s32 1, %v9688
    %v9690 = vrot.slane %v9681, %v9689
    %v9691 = vlaneseq
    %v9692 = vshrl.u32 %v9691, 7
    %v9693 = vsub.s32 2, %v9692
    %v9694 = vrot.slane %v9681, %v9693
    %v9695 = vlaneseq
    %v9696 = vshrl.u32 %v9695, 7
    %v9697 = vsub.s32 3, %v9696
    %v9698 = vrot.slane %v9681, %v9697
    %9703 = vmatprep.subr.mxu0 %v9554
    %9704 = vmatpush1.msra.mxu0 %v9553
    %9705 = vmatprep.subr.mxu0 %v9558
    %9706 = vmatpush1.msra.mxu0 %v9557
    %9707 = vmatprep.subr.mxu0 %v9562
    %9708 = vmatpush1.msra.mxu0 %v9561
    %9709 = vmatprep.subr.mxu0 %v9566
    %9710 = vmatpush1.msra.mxu0 %v9565
    %9711 = vmatprep.subr.mxu0 %v9570
    %9712 = vmatpush1.msra.mxu0 %v9569
    %9713 = vmatprep.subr.mxu0 %v9574
    %9714 = vmatpush1.msra.mxu0 %v9573
    %9715 = vmatprep.subr.mxu0 %v9578
    %9716 = vmatpush1.msra.mxu0 %v9577
    %9717 = vmatprep.subr.mxu0 %v9582
    %9718 = vmatpush1.msra.mxu0 %v9581
    %9719 = vmatprep.subr.mxu0 %v9586
    %9720 = vmatpush1.msra.mxu0 %v9585
    %9721 = vmatprep.subr.mxu0 %v9590
    %9722 = vmatpush1.msra.mxu0 %v9589
    %9723 = vmatprep.subr.mxu0 %v9594
    %9724 = vmatpush1.msra.mxu0 %v9593
    %9725 = vmatprep.subr.mxu0 %v9598
    %9726 = vmatpush1.msra.mxu0 %v9597
    %9727 = vmatprep.subr.mxu0 %v9602
    %9728 = vmatpush1.msra.mxu0 %v9601
    %9729 = vmatprep.subr.mxu0 %v9606
    %9730 = vmatpush1.msra.mxu0 %v9605
    %9731 = vmatprep.subr.mxu0 %v9610
    %9732 = vmatpush1.msra.mxu0 %v9609
    %9733 = vmatprep.subr.mxu0 %v9614
    %9734 = vmatpush1.msra.mxu0 %v9613
    %9735 = vmatprep.subr.mxu0 %v9618
    %9736 = vmatpush1.msra.mxu0 %v9617
    %9737 = vmatprep.subr.mxu0 %v9622
    %9738 = vmatpush1.msra.mxu0 %v9621
    %9739 = vmatprep.subr.mxu0 %v9626
    %9740 = vmatpush1.msra.mxu0 %v9625
    %9741 = vmatprep.subr.mxu0 %v9630
    %9742 = vmatpush1.msra.mxu0 %v9629
    %9743 = vmatprep.subr.mxu0 %v9634
    %9744 = vmatpush1.msra.mxu0 %v9633
    %9745 = vmatprep.subr.mxu0 %v9638
    %9746 = vmatpush1.msra.mxu0 %v9637
    %9747 = vmatprep.subr.mxu0 %v9642
    %9748 = vmatpush1.msra.mxu0 %v9641
    %9749 = vmatprep.subr.mxu0 %v9646
    %9750 = vmatpush1.msra.mxu0 %v9645
    %9751 = vmatprep.subr.mxu0 %v9650
    %9752 = vmatpush1.msra.mxu0 %v9649
    %9753 = vmatprep.subr.mxu0 %v9654
    %9754 = vmatpush1.msra.mxu0 %v9653
    %9755 = vmatprep.subr.mxu0 %v9658
    %9756 = vmatpush1.msra.mxu0 %v9657
    %9757 = vmatprep.subr.mxu0 %v9662
    %9758 = vmatpush1.msra.mxu0 %v9661
    %9759 = vmatprep.subr.mxu0 %v9666
    %9760 = vmatpush1.msra.mxu0 %v9665
    %9761 = vmatprep.subr.mxu0 %v9670
    %9762 = vmatpush1.msra.mxu0 %v9669
    %9763 = vmatprep.subr.mxu0 %v9674
    %9764 = vmatpush1.msra.mxu0 %v9673
    %9765 = vmatprep.subr.mxu0 %v9678
    %9766 = vmatpush1.msra.mxu0 %v9677
    %9767 = vmatprep.mubr.f32.mxu0 %v9552
    %9768 = vmatmul.mubr.f32.gmra.mrb[0].mxu0 %v9551
    %v9769 = vpop.f32.mrb[0].mxu0
    %v9770 = vadd.f32 %v9686, %v9769
    %v9771 = vpop.f32.mrb[0].mxu0
    %v9772 = vadd.f32 %v9690, %v9771
    %9773 = vdwg.mxu0
    %9774 = vmatprep.subr.mxu0 %v9556
    %9775 = vmatpush1.msra.mxu0 %v9555
    %9776 = vmatprep.subr.mxu0 %v9560
    %9777 = vmatpush1.msra.mxu0 %v9559
    %9778 = vmatprep.subr.mxu0 %v9564
    %9779 = vmatpush1.msra.mxu0 %v9563
    %9780 = vmatprep.subr.mxu0 %v9568
    %9781 = vmatpush1.msra.mxu0 %v9567
    %9782 = vmatprep.subr.mxu0 %v9572
    %9783 = vmatpush1.msra.mxu0 %v9571
    %9784 = vmatprep.subr.mxu0 %v9576
    %9785 = vmatpush1.msra.mxu0 %v9575
    %9786 = vmatprep.subr.mxu0 %v9580
    %9787 = vmatpush1.msra.mxu0 %v9579
    %9788 = vmatprep.subr.mxu0 %v9584
    %9789 = vmatpush1.msra.mxu0 %v9583
    %9790 = vmatprep.subr.mxu0 %v9588
    %9791 = vmatpush1.msra.mxu0 %v9587
    %9792 = vmatprep.subr.mxu0 %v9592
    %9793 = vmatpush1.msra.mxu0 %v9591
    %9794 = vmatprep.subr.mxu0 %v9596
    %9795 = vmatpush1.msra.mxu0 %v9595
    %9796 = vmatprep.subr.mxu0 %v9600
    %9797 = vmatpush1.msra.mxu0 %v9599
    %9798 = vmatprep.subr.mxu0 %v9604
    %9799 = vmatpush1.msra.mxu0 %v9603
    %9800 = vmatprep.subr.mxu0 %v9608
    %9801 = vmatpush1.msra.mxu0 %v9607
    %9802 = vmatprep.subr.mxu0 %v9612
    %9803 = vmatpush1.msra.mxu0 %v9611
    %9804 = vmatprep.subr.mxu0 %v9616
    %9805 = vmatpush1.msra.mxu0 %v9615
    %9806 = vmatprep.subr.mxu0 %v9620
    %9807 = vmatpush1.msra.mxu0 %v9619
    %9808 = vmatprep.subr.mxu0 %v9624
    %9809 = vmatpush1.msra.mxu0 %v9623
    %9810 = vmatprep.subr.mxu0 %v9628
    %9811 = vmatpush1.msra.mxu0 %v9627
    %9812 = vmatprep.subr.mxu0 %v9632
    %9813 = vmatpush1.msra.mxu0 %v9631
    %9814 = vmatprep.subr.mxu0 %v9636
    %9815 = vmatpush1.msra.mxu0 %v9635
    %9816 = vmatprep.subr.mxu0 %v9640
    %9817 = vmatpush1.msra.mxu0 %v9639
    %9818 = vmatprep.subr.mxu0 %v9644
    %9819 = vmatpush1.msra.mxu0 %v9643
    %9820 = vmatprep.subr.mxu0 %v9648
    %9821 = vmatpush1.msra.mxu0 %v9647
    %9822 = vmatprep.subr.mxu0 %v9652
    %9823 = vmatpush1.msra.mxu0 %v9651
    %9824 = vmatprep.subr.mxu0 %v9656
    %9825 = vmatpush1.msra.mxu0 %v9655
    %9826 = vmatprep.subr.mxu0 %v9660
    %9827 = vmatpush1.msra.mxu0 %v9659
    %9828 = vmatprep.subr.mxu0 %v9664
    %9829 = vmatpush1.msra.mxu0 %v9663
    %9830 = vmatprep.subr.mxu0 %v9668
    %9831 = vmatpush1.msra.mxu0 %v9667
    %9832 = vmatprep.subr.mxu0 %v9672
    %9833 = vmatpush1.msra.mxu0 %v9671
    %9834 = vmatprep.subr.mxu0 %v9676
    %9835 = vmatpush1.msra.mxu0 %v9675
    %9836 = vmatprep.subr.mxu0 %v9680
    %9837 = vmatpush1.msra.mxu0 %v9679
    %9838 = vmatprep.mubr.f32.mxu0 %v9552
    %9839 = vmatmul.mubr.f32.gmra.mrb[0].mxu0 %v9551
    %v9840 = vpop.f32.mrb[0].mxu0
    %v9841 = vadd.f32 %v9694, %v9840
    %v9842 = vpop.f32.mrb[0].mxu0
    %v9843 = vadd.f32 %v9698, %v9842
    %9844 = vdwg.mxu0
    %v9845 = vmax.f32 %v9770, 0.0
    %v9846 = vmax.f32 %v9772, 0.0
    %v9847 = vmax.f32 %v9841, 0.0
    %v9848 = vmax.f32 %v9843, 0.0
    %v9849 = vld [vmem:[#allocation26] sm:$0xff]
    %v9850 = vld [vmem:[#allocation26 + $0x8] sm:$0xff]
    %v9851 = vld [vmem:[#allocation26 + $0x10] sm:$0xff]
    %v9852 = vld [vmem:[#allocation26 + $0x18] sm:$0xff]
    %v9853 = vld [vmem:[#allocation26 + $0x20] sm:$0xff]
    %v9854 = vld [vmem:[#allocation26 + $0x28] sm:$0xff]
    %v9855 = vld [vmem:[#allocation26 + $0x30] sm:$0xff]
    %v9856 = vld [vmem:[#allocation26 + $0x38] sm:$0xff]
    %v9857 = vld [vmem:[#allocation26 + $0x40] sm:$0xff]
    %v9858 = vld [vmem:[#allocation26 + $0x48] sm:$0xff]
    %v9859 = vld [vmem:[#allocation26 + $0x50] sm:$0xff]
    %v9860 = vld [vmem:[#allocation26 + $0x58] sm:$0xff]
    %v9861 = vld [vmem:[#allocation26 + $0x60] sm:$0xff]
    %v9862 = vld [vmem:[#allocation26 + $0x68] sm:$0xff]
    %v9863 = vld [vmem:[#allocation26 + $0x70] sm:$0xff]
    %v9864 = vld [vmem:[#allocation26 + $0x78] sm:$0xff]
    %v9865 = vld [vmem:[#allocation26 + $0x80] sm:$0xff]
    %v9866 = vld [vmem:[#allocation26 + $0x88] sm:$0xff]
    %v9867 = vld [vmem:[#allocation26 + $0x90] sm:$0xff]
    %v9868 = vld [vmem:[#allocation26 + $0x98] sm:$0xff]
    %v9869 = vld [vmem:[#allocation26 + $0xa0] sm:$0xff]
    %v9870 = vld [vmem:[#allocation26 + $0xa8] sm:$0xff]
    %v9871 = vld [vmem:[#allocation26 + $0xb0] sm:$0xff]
    %v9872 = vld [vmem:[#allocation26 + $0xb8] sm:$0xff]
    %v9873 = vld [vmem:[#allocation26 + $0xc0] sm:$0xff]
    %v9874 = vld [vmem:[#allocation26 + $0xc8] sm:$0xff]
    %v9875 = vld [vmem:[#allocation26 + $0xd0] sm:$0xff]
    %v9876 = vld [vmem:[#allocation26 + $0xd8] sm:$0xff]
    %v9877 = vld [vmem:[#allocation26 + $0xe0] sm:$0xff]
    %v9878 = vld [vmem:[#allocation26 + $0xe8] sm:$0xff]
    %v9879 = vld [vmem:[#allocation26 + $0xf0] sm:$0xff]
    %v9880 = vld [vmem:[#allocation26 + $0xf8] sm:$0xff]
    %v9881 = vld [vmem:[#allocation26 + $0x100] sm:$0xff]
    %v9882 = vld [vmem:[#allocation26 + $0x108] sm:$0xff]
    %v9883 = vld [vmem:[#allocation26 + $0x110] sm:$0xff]
    %v9884 = vld [vmem:[#allocation26 + $0x118] sm:$0xff]
    %v9885 = vld [vmem:[#allocation26 + $0x120] sm:$0xff]
    %v9886 = vld [vmem:[#allocation26 + $0x128] sm:$0xff]
    %v9887 = vld [vmem:[#allocation26 + $0x130] sm:$0xff]
    %v9888 = vld [vmem:[#allocation26 + $0x138] sm:$0xff]
    %v9889 = vld [vmem:[#allocation26 + $0x140] sm:$0xff]
    %v9890 = vld [vmem:[#allocation26 + $0x148] sm:$0xff]
    %v9891 = vld [vmem:[#allocation26 + $0x150] sm:$0xff]
    %v9892 = vld [vmem:[#allocation26 + $0x158] sm:$0xff]
    %v9893 = vld [vmem:[#allocation26 + $0x160] sm:$0xff]
    %v9894 = vld [vmem:[#allocation26 + $0x168] sm:$0xff]
    %v9895 = vld [vmem:[#allocation26 + $0x170] sm:$0xff]
    %v9896 = vld [vmem:[#allocation26 + $0x178] sm:$0xff]
    %v9897 = vld [vmem:[#allocation26 + $0x180] sm:$0xff]
    %v9898 = vld [vmem:[#allocation26 + $0x188] sm:$0xff]
    %v9899 = vld [vmem:[#allocation26 + $0x190] sm:$0xff]
    %v9900 = vld [vmem:[#allocation26 + $0x198] sm:$0xff]
    %v9901 = vld [vmem:[#allocation26 + $0x1a0] sm:$0xff]
    %v9902 = vld [vmem:[#allocation26 + $0x1a8] sm:$0xff]
    %v9903 = vld [vmem:[#allocation26 + $0x1b0] sm:$0xff]
    %v9904 = vld [vmem:[#allocation26 + $0x1b8] sm:$0xff]
    %v9905 = vld [vmem:[#allocation26 + $0x1c0] sm:$0xff]
    %v9906 = vld [vmem:[#allocation26 + $0x1c8] sm:$0xff]
    %v9907 = vld [vmem:[#allocation26 + $0x1d0] sm:$0xff]
    %v9908 = vld [vmem:[#allocation26 + $0x1d8] sm:$0xff]
    %v9909 = vld [vmem:[#allocation26 + $0x1e0] sm:$0xff]
    %v9910 = vld [vmem:[#allocation26 + $0x1e8] sm:$0xff]
    %v9911 = vld [vmem:[#allocation26 + $0x1f0] sm:$0xff]
    %v9912 = vld [vmem:[#allocation26 + $0x1f8] sm:$0xff]
    %v9913 = vld [vmem:[%s20] sm:$0x1]
    %v9915 = vlaneseq
    %v9916 = vshrl.u32 %v9915, 7
    %v9917 = vsub.s32 0, %v9916
    %v9918 = vrot.slane %v9913, %v9917
    %9920 = vmatprep.subr.mxu0 0.0
    %9921 = vmatpush1.msra.mxu0 %v9849
    %9922 = vmatprep.subr.mxu0 0.0
    %9923 = vmatpush1.msra.mxu0 %v9850
    %9924 = vmatprep.subr.mxu0 0.0
    %9925 = vmatpush1.msra.mxu0 %v9851
    %9926 = vmatprep.subr.mxu0 0.0
    %9927 = vmatpush1.msra.mxu0 %v9852
    %9928 = vmatprep.subr.mxu0 0.0
    %9929 = vmatpush1.msra.mxu0 %v9853
    %9930 = vmatprep.subr.mxu0 0.0
    %9931 = vmatpush1.msra.mxu0 %v9854
    %9932 = vmatprep.subr.mxu0 0.0
    %9933 = vmatpush1.msra.mxu0 %v9855
    %9934 = vmatprep.subr.mxu0 0.0
    %9935 = vmatpush1.msra.mxu0 %v9856
    %9936 = vmatprep.subr.mxu0 0.0
    %9937 = vmatpush1.msra.mxu0 %v9857
    %9938 = vmatprep.subr.mxu0 0.0
    %9939 = vmatpush1.msra.mxu0 %v9858
    %9940 = vmatprep.subr.mxu0 0.0
    %9941 = vmatpush1.msra.mxu0 %v9859
    %9942 = vmatprep.subr.mxu0 0.0
    %9943 = vmatpush1.msra.mxu0 %v9860
    %9944 = vmatprep.subr.mxu0 0.0
    %9945 = vmatpush1.msra.mxu0 %v9861
    %9946 = vmatprep.subr.mxu0 0.0
    %9947 = vmatpush1.msra.mxu0 %v9862
    %9948 = vmatprep.subr.mxu0 0.0
    %9949 = vmatpush1.msra.mxu0 %v9863
    %9950 = vmatprep.subr.mxu0 0.0
    %9951 = vmatpush1.msra.mxu0 %v9864
    %9952 = vmatprep.subr.mxu0 0.0
    %9953 = vmatpush1.msra.mxu0 %v9865
    %9954 = vmatprep.subr.mxu0 0.0
    %9955 = vmatpush1.msra.mxu0 %v9866
    %9956 = vmatprep.subr.mxu0 0.0
    %9957 = vmatpush1.msra.mxu0 %v9867
    %9958 = vmatprep.subr.mxu0 0.0
    %9959 = vmatpush1.msra.mxu0 %v9868
    %9960 = vmatprep.subr.mxu0 0.0
    %9961 = vmatpush1.msra.mxu0 %v9869
    %9962 = vmatprep.subr.mxu0 0.0
    %9963 = vmatpush1.msra.mxu0 %v9870
    %9964 = vmatprep.subr.mxu0 0.0
    %9965 = vmatpush1.msra.mxu0 %v9871
    %9966 = vmatprep.subr.mxu0 0.0
    %9967 = vmatpush1.msra.mxu0 %v9872
    %9968 = vmatprep.subr.mxu0 0.0
    %9969 = vmatpush1.msra.mxu0 %v9873
    %9970 = vmatprep.subr.mxu0 0.0
    %9971 = vmatpush1.msra.mxu0 %v9874
    %9972 = vmatprep.subr.mxu0 0.0
    %9973 = vmatpush1.msra.mxu0 %v9875
    %9974 = vmatprep.subr.mxu0 0.0
    %9975 = vmatpush1.msra.mxu0 %v9876
    %9976 = vmatprep.subr.mxu0 0.0
    %9977 = vmatpush1.msra.mxu0 %v9877
    %9978 = vmatprep.subr.mxu0 0.0
    %9979 = vmatpush1.msra.mxu0 %v9878
    %9980 = vmatprep.subr.mxu0 0.0
    %9981 = vmatpush1.msra.mxu0 %v9879
    %9982 = vmatprep.subr.mxu0 0.0
    %9983 = vmatpush1.msra.mxu0 %v9880
    %9984 = vmatprep.mubr.f32.mxu0 %v9846
    %9985 = vmatmul.mubr.f32.gmra.mrb[0].mxu0 %v9845
    %v9986 = vpop.f32.mrb[0].mxu0
    %v9987 = vadd.f32 %v9918, %v9986
    %v9988 = vpop.f32.mrb[0].mxu0
    %9989 = vdwg.mxu0
    %9990 = vmatprep.subr.mxu0 0.0
    %9991 = vmatpush1.msra.mxu0 %v9881
    %9992 = vmatprep.subr.mxu0 0.0
    %9993 = vmatpush1.msra.mxu0 %v9882
    %9994 = vmatprep.subr.mxu0 0.0
    %9995 = vmatpush1.msra.mxu0 %v9883
    %9996 = vmatprep.subr.mxu0 0.0
    %9997 = vmatpush1.msra.mxu0 %v9884
    %9998 = vmatprep.subr.mxu0 0.0
    %9999 = vmatpush1.msra.mxu0 %v9885
    %10000 = vmatprep.subr.mxu0 0.0
    %10001 = vmatpush1.msra.mxu0 %v9886
    %10002 = vmatprep.subr.mxu0 0.0
    %10003 = vmatpush1.msra.mxu0 %v9887
    %10004 = vmatprep.subr.mxu0 0.0
    %10005 = vmatpush1.msra.mxu0 %v9888
    %10006 = vmatprep.subr.mxu0 0.0
    %10007 = vmatpush1.msra.mxu0 %v9889
    %10008 = vmatprep.subr.mxu0 0.0
    %10009 = vmatpush1.msra.mxu0 %v9890
    %10010 = vmatprep.subr.mxu0 0.0
    %10011 = vmatpush1.msra.mxu0 %v9891
    %10012 = vmatprep.subr.mxu0 0.0
    %10013 = vmatpush1.msra.mxu0 %v9892
    %10014 = vmatprep.subr.mxu0 0.0
    %10015 = vmatpush1.msra.mxu0 %v9893
    %10016 = vmatprep.subr.mxu0 0.0
    %10017 = vmatpush1.msra.mxu0 %v9894
    %10018 = vmatprep.subr.mxu0 0.0
    %10019 = vmatpush1.msra.mxu0 %v9895
    %10020 = vmatprep.subr.mxu0 0.0
    %10021 = vmatpush1.msra.mxu0 %v9896
    %10022 = vmatprep.subr.mxu0 0.0
    %10023 = vmatpush1.msra.mxu0 %v9897
    %10024 = vmatprep.subr.mxu0 0.0
    %10025 = vmatpush1.msra.mxu0 %v9898
    %10026 = vmatprep.subr.mxu0 0.0
    %10027 = vmatpush1.msra.mxu0 %v9899
    %10028 = vmatprep.subr.mxu0 0.0
    %10029 = vmatpush1.msra.mxu0 %v9900
    %10030 = vmatprep.subr.mxu0 0.0
    %10031 = vmatpush1.msra.mxu0 %v9901
    %10032 = vmatprep.subr.mxu0 0.0
    %10033 = vmatpush1.msra.mxu0 %v9902
    %10034 = vmatprep.subr.mxu0 0.0
    %10035 = vmatpush1.msra.mxu0 %v9903
    %10036 = vmatprep.subr.mxu0 0.0
    %10037 = vmatpush1.msra.mxu0 %v9904
    %10038 = vmatprep.subr.mxu0 0.0
    %10039 = vmatpush1.msra.mxu0 %v9905
    %10040 = vmatprep.subr.mxu0 0.0
    %10041 = vmatpush1.msra.mxu0 %v9906
    %10042 = vmatprep.subr.mxu0 0.0
    %10043 = vmatpush1.msra.mxu0 %v9907
    %10044 = vmatprep.subr.mxu0 0.0
    %10045 = vmatpush1.msra.mxu0 %v9908
    %10046 = vmatprep.subr.mxu0 0.0
    %10047 = vmatpush1.msra.mxu0 %v9909
    %10048 = vmatprep.subr.mxu0 0.0
    %10049 = vmatpush1.msra.mxu0 %v9910
    %10050 = vmatprep.subr.mxu0 0.0
    %10051 = vmatpush1.msra.mxu0 %v9911
    %10052 = vmatprep.subr.mxu0 0.0
    %10053 = vmatpush1.msra.mxu0 %v9912
    %10054 = vmatprep.mubr.f32.mxu0 %v9848
    %10055 = vmatmul.mubr.f32.gmra.mrb[0].mxu0 %v9847
    %v10056 = vpop.f32.mrb[0].mxu0
    %v10057 = vadd.f32 %v9987, %v10056
    %v10058 = vpop.f32.mrb[0].mxu0
    %10059 = vdwg.mxu0
    %v10060 = vmax.f32 %v10057, 0.0
    %v10061 = vld [vmem:[%s21] sm:$0xff]
    %v10062 = vld [vmem:[%s21 + $0x8] sm:$0xff]
    %v10063 = vld [vmem:[%s21 + $0x10] sm:$0xff]
    %v10064 = vld [vmem:[%s21 + $0x18] sm:$0xff]
    %v10065 = vld [vmem:[%s21 + $0x20] sm:$0xff]
    %v10066 = vld [vmem:[%s21 + $0x28] sm:$0xff]
    %v10067 = vld [vmem:[%s21 + $0x30] sm:$0xff]
    %v10068 = vld [vmem:[%s21 + $0x38] sm:$0xff]
    %v10069 = vld [vmem:[%s21 + $0x40] sm:$0xff]
    %v10070 = vld [vmem:[%s21 + $0x48] sm:$0xff]
    %v10071 = vld [vmem:[%s21 + $0x50] sm:$0xff]
    %v10072 = vld [vmem:[%s21 + $0x58] sm:$0xff]
    %v10073 = vld [vmem:[%s21 + $0x60] sm:$0xff]
    %v10074 = vld [vmem:[%s21 + $0x68] sm:$0xff]
    %v10075 = vld [vmem:[%s21 + $0x70] sm:$0xff]
    %v10076 = vld [vmem:[%s21 + $0x78] sm:$0xff]
    %v10077 = vld [vmem:[#allocation2] sm:$0x1]
    %v10079 = vlaneseq
    %v10080 = vshrl.u32 %v10079, 7
    %v10081 = vsub.s32 0, %v10080
    %v10082 = vrot.slane %v10077, %v10081
    %10084 = vmatprep.subr.mxu0 0.0
    %10085 = vmatpush1.msra.mxu0 %v10061
    %10086 = vmatprep.subr.mxu0 0.0
    %10087 = vmatpush1.msra.mxu0 %v10062
    %10088 = vmatprep.subr.mxu0 0.0
    %10089 = vmatpush1.msra.mxu0 %v10063
    %10090 = vmatprep.subr.mxu0 0.0
    %10091 = vmatpush1.msra.mxu0 %v10064
    %10092 = vmatprep.subr.mxu0 0.0
    %10093 = vmatpush1.msra.mxu0 %v10065
    %10094 = vmatprep.subr.mxu0 0.0
    %10095 = vmatpush1.msra.mxu0 %v10066
    %10096 = vmatprep.subr.mxu0 0.0
    %10097 = vmatpush1.msra.mxu0 %v10067
    %10098 = vmatprep.subr.mxu0 0.0
    %10099 = vmatpush1.msra.mxu0 %v10068
    %10100 = vmatprep.subr.mxu0 0.0
    %10101 = vmatpush1.msra.mxu0 %v10069
    %10102 = vmatprep.subr.mxu0 0.0
    %10103 = vmatpush1.msra.mxu0 %v10070
    %10104 = vmatprep.subr.mxu0 0.0
    %10105 = vmatpush1.msra.mxu0 %v10071
    %10106 = vmatprep.subr.mxu0 0.0
    %10107 = vmatpush1.msra.mxu0 %v10072
    %10108 = vmatprep.subr.mxu0 0.0
    %10109 = vmatpush1.msra.mxu0 %v10073
    %10110 = vmatprep.subr.mxu0 0.0
    %10111 = vmatpush1.msra.mxu0 %v10074
    %10112 = vmatprep.subr.mxu0 0.0
    %10113 = vmatpush1.msra.mxu0 %v10075
    %10114 = vmatprep.subr.mxu0 0.0
    %10115 = vmatpush1.msra.mxu0 %v10076
    %10116 = vmatprep.subr.mxu0 0.0
    %10117 = vmatpush1.msra.mxu0 0.0
    %10118 = vmatprep.subr.mxu0 0.0
    %10119 = vmatpush1.msra.mxu0 0.0
    %10120 = vmatprep.subr.mxu0 0.0
    %10121 = vmatpush1.msra.mxu0 0.0
    %10122 = vmatprep.subr.mxu0 0.0
    %10123 = vmatpush1.msra.mxu0 0.0
    %10124 = vmatprep.subr.mxu0 0.0
    %10125 = vmatpush1.msra.mxu0 0.0
    %10126 = vmatprep.subr.mxu0 0.0
    %10127 = vmatpush1.msra.mxu0 0.0
    %10128 = vmatprep.subr.mxu0 0.0
    %10129 = vmatpush1.msra.mxu0 0.0
    %10130 = vmatprep.subr.mxu0 0.0
    %10131 = vmatpush1.msra.mxu0 0.0
    %10132 = vmatprep.subr.mxu0 0.0
    %10133 = vmatpush1.msra.mxu0 0.0
    %10134 = vmatprep.subr.mxu0 0.0
    %10135 = vmatpush1.msra.mxu0 0.0
    %10136 = vmatprep.subr.mxu0 0.0
    %10137 = vmatpush1.msra.mxu0 0.0
    %10138 = vmatprep.subr.mxu0 0.0
    %10139 = vmatpush1.msra.mxu0 0.0
    %10140 = vmatprep.subr.mxu0 0.0
    %10141 = vmatpush1.msra.mxu0 0.0
    %10142 = vmatprep.subr.mxu0 0.0
    %10143 = vmatpush1.msra.mxu0 0.0
    %10144 = vmatprep.subr.mxu0 0.0
    %10145 = vmatpush1.msra.mxu0 0.0
    %10146 = vmatprep.subr.mxu0 0.0
    %10147 = vmatpush1.msra.mxu0 0.0
    %10148 = vmatprep.mubr.f32.mxu0 0.0
    %10149 = vmatmul.mubr.f32.gmra.mrb[0].mxu0 %v10060
    %v10150 = vpop.f32.mrb[0].mxu0
    %v10151 = vadd.f32 %v10082, %v10150
    %v10152 = vpop.f32.mrb[0].mxu0
    %10153 = vdwg.mxu0
    %vm10154 = vcmask 1024
    %10155 = vst.msk [vmem:[%s23] sm:$0x3] %vm10154, %v10151
    // Predicated region
    $region158: #{dcnn_forward.1} parent=1 // pred_check
      _
    $region159: #{dcnn_forward.1} parent=1 // pred_check_branch
      %10157 = sbr.rel (0) target = $region161
    $region160: #{dcnn_forward.1} parent=1 // pred_region
      _
    $region161: #{dcnn_forward.1} parent=1 // pred_fallthru
      _
    // Predicated region
    $region162: #{dcnn_forward.1} parent=1 // pred_check
      _
    $region163: #{dcnn_forward.1} parent=1 // pred_check_branch
      %10159 = sbr.rel (0) target = $region165
    $region164: #{dcnn_forward.1} parent=1 // pred_region
      _
    $region165: #{dcnn_forward.1} parent=1 // pred_fallthru
      _
    %10160 = vsyncpa [#allocation4], 1
    %10161 = vsyncpa [#allocation6], 1
    %10162 = vsyncpa [#allocation9], 1
    %10163 = vsyncpa [#allocation12], 1
    %10164 = vsyncpa [#allocation15], 1
    %10165 = vsyncpa [#allocation18], 1
    %10166 = vsyncpa [#allocation21], 1
    %10167 = vsyncpa [#allocation24], 1
    %10168 = vsyncpa [#allocation27], 1

</llo_original>
